<compile_context>
chip_gen: v5e
topology: v5e:2x2
jax: 0.10.0
libtpu: 0.0.40
codegen_flags: <defaults>
</compile_context>

<pallas_src>
import functools
import math

import jax
import jax.numpy as jnp
from jax import lax
from jax.experimental import pallas as pl
from jax.experimental.pallas import tpu as pltpu

_LN_EPS = 1e-12            # BERT convention
_VMEM_LIMIT = 32 * 1024 * 1024   # explicit budget; safe on v5e/v6e/v7x


# ----------------------------------------------------------------------------
# helpers
# ----------------------------------------------------------------------------
def _gelu_exact(x):
    # F.gelu default: 0.5 * x * (1 + erf(x / sqrt(2)))
    return 0.5 * x * (1.0 + lax.erf(x * 0.7071067811865476))


def _apply_act(y, activation):
    if activation == "gelu":
        return _gelu_exact(y)
    if activation == "tanh":
        return jnp.tanh(y)
    return y


def _tile_rows(dim, target):
    """Largest multiple of 8 <= target dividing dim; else the full dim."""
    t = min(dim, target)
    t -= t % 8
    while t >= 8:
        if dim % t == 0:
            return t
        t -= 8
    return dim  # fallback: full dim (may produce masked stores for odd dims)


def _tile_lanes(dim, target):
    """Largest multiple of 128 <= target dividing dim; else the full dim."""
    t = min(dim, target)
    t -= t % 128
    while t >= 128:
        if dim % t == 0:
            return t
        t -= 128
    return dim


def _cparams(sem):
    return pltpu.CompilerParams(dimension_semantics=sem,
                                vmem_limit_bytes=_VMEM_LIMIT)


# ----------------------------------------------------------------------------
# Kernel 1: embeddings sum + LayerNorm (pos_emb fed via modulo index_map)
# ----------------------------------------------------------------------------
def _embed_ln_kernel(we_ref, pe_ref, te_ref, g_ref, b_ref, out_ref, *, eps):
    h = (we_ref[...].astype(jnp.float32)
         + pe_ref[...].astype(jnp.float32)
         + te_ref[...].astype(jnp.float32))
    mean = jnp.mean(h, axis=-1, keepdims=True)
    var = jnp.mean(jnp.square(h - mean), axis=-1, keepdims=True)
    h = (h - mean) * lax.rsqrt(var + eps)
    out_ref[...] = (h * g_ref[...] + b_ref[...]).astype(out_ref.dtype)


def embeddings_layernorm(we, pe_s, te, gamma, beta, *, eps=_LN_EPS, tm=128):
    M, H = we.shape
    S = pe_s.shape[0]
    tm = _tile_rows(math.gcd(M, S), tm)   # tm must divide both M and S
    pos_blocks = S // tm
    grid = (M // tm,)
    return pl.pallas_call(
        functools.partial(_embed_ln_kernel, eps=eps),
        out_shape=jax.ShapeDtypeStruct((M, H), we.dtype),
        grid_spec=pltpu.PrefetchScalarGridSpec(
            num_scalar_prefetch=0,
            grid=grid,
            in_specs=[
                pl.BlockSpec((tm, H), lambda i: (i, 0)),
                pl.BlockSpec((tm, H), lambda i: (i % pos_blocks, 0)),
                pl.BlockSpec((tm, H), lambda i: (i, 0)),
                pl.BlockSpec((1, H), lambda i: (0, 0)),
                pl.BlockSpec((1, H), lambda i: (0, 0)),
            ],
            out_specs=pl.BlockSpec((tm, H), lambda i: (i, 0)),
        ),
        compiler_params=_cparams(("parallel",)),
    )(we, pe_s, te, gamma.reshape(1, H), beta.reshape(1, H))


# ----------------------------------------------------------------------------
# Kernel 2: tiled matmul + bias (+ optional activation); bf16 MXU, f32 acc
# ----------------------------------------------------------------------------
def _linear_kernel_acc(x_ref, w_ref, b_ref, out_ref, acc_ref, *, activation):
    k = pl.program_id(2)

    @pl.when(k == 0)
    def _():
        acc_ref[...] = jnp.zeros_like(acc_ref)

    acc_ref[...] += jnp.dot(x_ref[...].astype(w_ref.dtype), w_ref[...],
                            preferred_element_type=jnp.float32)

    @pl.when(k == pl.num_programs(2) - 1)
    def _():
        y = acc_ref[...] + b_ref[...].astype(jnp.float32)
        out_ref[...] = _apply_act(y, activation).astype(out_ref.dtype)


def _linear_kernel_direct(x_ref, w_ref, b_ref, out_ref, *, activation):
    y = jnp.dot(x_ref[...].astype(w_ref.dtype), w_ref[...],
                preferred_element_type=jnp.float32)
    y = y + b_ref[...].astype(jnp.float32)
    out_ref[...] = _apply_act(y, activation).astype(out_ref.dtype)


def linear(x, w, b, activation=None, *, out_dtype=None, tm=128, tn=512, tk=512):
    M, K = x.shape
    Kw, N = w.shape
    assert K == Kw
    out_dtype = out_dtype or x.dtype
    tm = _tile_rows(M, tm)
    tn = _tile_lanes(N, tn)
    tk = _tile_lanes(K, tk)
    nm, nn, nk = M // tm, N // tn, K // tk
    b2 = b.reshape(1, N)

    if nk == 1:   # single K tile: no accumulator scratch / epilogue
        return pl.pallas_call(
            functools.partial(_linear_kernel_direct, activation=activation),
            out_shape=jax.ShapeDtypeStruct((M, N), out_dtype),
            grid_spec=pltpu.PrefetchScalarGridSpec(
                num_scalar_prefetch=0,
                grid=(nm, nn),
                in_specs=[
                    pl.BlockSpec((tm, tk), lambda i, j: (i, 0)),
                    pl.BlockSpec((tk, tn), lambda i, j: (0, j)),
                    pl.BlockSpec((1, tn), lambda i, j: (0, j)),
                ],
                out_specs=pl.BlockSpec((tm, tn), lambda i, j: (i, j)),
            ),
            compiler_params=_cparams(("parallel", "parallel")),
        )(x, w, b2)

    return pl.pallas_call(
        functools.partial(_linear_kernel_acc, activation=activation),
        out_shape=jax.ShapeDtypeStruct((M, N), out_dtype),
        grid_spec=pltpu.PrefetchScalarGridSpec(
            num_scalar_prefetch=0,
            grid=(nm, nn, nk),
            in_specs=[
                pl.BlockSpec((tm, tk), lambda i, j, k: (i, k)),
                pl.BlockSpec((tk, tn), lambda i, j, k: (k, j)),
                pl.BlockSpec((1, tn), lambda i, j, k: (0, j)),
            ],
            out_specs=pl.BlockSpec((tm, tn), lambda i, j, k: (i, j)),
            scratch_shapes=[pltpu.VMEM((tm, tn), jnp.float32)],
        ),
        compiler_params=_cparams(("parallel", "parallel", "arbitrary")),
    )(x, w, b2)


# ----------------------------------------------------------------------------
# Kernel 4: matmul + bias + residual + LayerNorm (full N resident per row tile)
# ----------------------------------------------------------------------------
def _res_ln_finalize(h, res, b, g, beta, out_ref, eps):
    h = h + b.astype(jnp.float32) + res.astype(jnp.float32)
    mean = jnp.mean(h, axis=-1, keepdims=True)
    var = jnp.mean(jnp.square(h - mean), axis=-1, keepdims=True)
    h = (h - mean) * lax.rsqrt(var + eps)
    out_ref[...] = (h * g + beta).astype(out_ref.dtype)


def _linres_ln_kernel_acc(x_ref, w_ref, b_ref, res_ref, g_ref, beta_ref,
                          out_ref, acc_ref, *, eps):
    k = pl.program_id(1)

    @pl.when(k == 0)
    def _():
        acc_ref[...] = jnp.zeros_like(acc_ref)

    acc_ref[...] += jnp.dot(x_ref[...].astype(w_ref.dtype), w_ref[...],
                            preferred_element_type=jnp.float32)

    @pl.when(k == pl.num_programs(1) - 1)
    def _():
        _res_ln_finalize(acc_ref[...], res_ref[...], b_ref[...],
                         g_ref[...], beta_ref[...], out_ref, eps)


def _linres_ln_kernel_direct(x_ref, w_ref, b_ref, res_ref, g_ref, beta_ref,
                             out_ref, *, eps):
    h = jnp.dot(x_ref[...].astype(w_ref.dtype), w_ref[...],
                preferred_element_type=jnp.float32)
    _res_ln_finalize(h, res_ref[...], b_ref[...], g_ref[...], beta_ref[...],
                     out_ref, eps)


def linear_residual_layernorm(x, w, b, residual, gamma, beta, *,
                              eps=_LN_EPS, tm=128, tk=256):
    M, K = x.shape
    Kw, N = w.shape
    assert K == Kw and residual.shape == (M, N)
    tm = _tile_rows(M, tm)
    tk = _tile_lanes(K, tk)
    nm, nk = M // tm, K // tk
    b2, g2, bt2 = b.reshape(1, N), gamma.reshape(1, N), beta.reshape(1, N)
    out_shape = jax.ShapeDtypeStruct((M, N), residual.dtype)

    if nk == 1:
        return pl.pallas_call(
            functools.partial(_linres_ln_kernel_direct, eps=eps),
            out_shape=out_shape,
            grid_spec=pltpu.PrefetchScalarGridSpec(
                num_scalar_prefetch=0,
                grid=(nm,),
                in_specs=[
                    pl.BlockSpec((tm, tk), lambda i: (i, 0)),
                    pl.BlockSpec((tk, N), lambda i: (0, 0)),
                    pl.BlockSpec((1, N), lambda i: (0, 0)),
                    pl.BlockSpec((tm, N), lambda i: (i, 0)),
                    pl.BlockSpec((1, N), lambda i: (0, 0)),
                    pl.BlockSpec((1, N), lambda i: (0, 0)),
                ],
                out_specs=pl.BlockSpec((tm, N), lambda i: (i, 0)),
            ),
            compiler_params=_cparams(("parallel",)),
        )(x, w, b2, residual, g2, bt2)

    return pl.pallas_call(
        functools.partial(_linres_ln_kernel_acc, eps=eps),
        out_shape=out_shape,
        grid_spec=pltpu.PrefetchScalarGridSpec(
            num_scalar_prefetch=0,
            grid=(nm, nk),
            in_specs=[
                pl.BlockSpec((tm, tk), lambda i, k: (i, k)),
                pl.BlockSpec((tk, N), lambda i, k: (k, 0)),
                pl.BlockSpec((1, N), lambda i, k: (0, 0)),
                pl.BlockSpec((tm, N), lambda i, k: (i, 0)),
                pl.BlockSpec((1, N), lambda i, k: (0, 0)),
                pl.BlockSpec((1, N), lambda i, k: (0, 0)),
            ],
            out_specs=pl.BlockSpec((tm, N), lambda i, k: (i, 0)),
            scratch_shapes=[pltpu.VMEM((tm, N), jnp.float32)],
        ),
        compiler_params=_cparams(("parallel", "arbitrary")),
    )(x, w, b2, residual, g2, bt2)


# ----------------------------------------------------------------------------
# Kernel 3: softmax attention over lane-sliced head groups of the fused QKV
# ----------------------------------------------------------------------------
def _mha_kernel(q_ref, k_ref, v_ref, o_ref, *, scale, heads_per_group, dh):
    q = q_ref[0]   # (S, W) bf16
    k = k_ref[0]
    v = v_ref[0]
    outs = []
    for h in range(heads_per_group):
        sl = slice(h * dh, (h + 1) * dh)
        qh, kh, vh = q[:, sl], k[:, sl], v[:, sl]
        # scores = q @ k^T, bf16 inputs on the MXU, f32 accumulation
        s = lax.dot_general(qh, kh, (((1,), (1,)), ((), ())),
                            preferred_element_type=jnp.float32) * scale
        m = jnp.max(s, axis=-1, keepdims=True)
        p = jnp.exp(s - m)
        l = jnp.sum(p, axis=-1, keepdims=True)
        o = jnp.dot(p.astype(vh.dtype), vh, preferred_element_type=jnp.float32)
        # normalize the (S, dh) output instead of the (S, S) probs; EUP recip.
        o = o * pl.reciprocal(l, approx=True)
        outs.append(o)
    o_all = outs[0] if len(outs) == 1 else jnp.concatenate(outs, axis=-1)
    o_ref[0] = o_all.astype(o_ref.dtype)


def fused_multi_head_attention(qkv, *, num_heads, scale, out_dtype=None,
                               max_group_lanes=512):
    # TODO(synk): attention_mask support not implemented (module is exercised
    # with attention_mask=None).
    B, S, threeH = qkv.shape
    H = threeH // 3
    dh = H // num_heads
    out_dtype = out_dtype or qkv.dtype

    # Heads per grid step: largest divisor of num_heads giving a lane-dense
    # (multiple-of-128 or full-H) block width, capped for VMEM.
    hg = num_heads
    for cand in range(num_heads, 0, -1):
        w = cand * dh
        if num_heads % cand == 0 and w <= max_group_lanes and \
                (w % 128 == 0 or w == H):
            hg = cand
            break
    W = hg * dh
    ngroups = H // W

    qkv_spec = lambda off: pl.BlockSpec((1, S, W), lambda b, g: (b, 0, g + off))
    return pl.pallas_call(
        functools.partial(_mha_kernel, scale=scale, heads_per_group=hg, dh=dh),
        out_shape=jax.ShapeDtypeStruct((B, S, H), out_dtype),
        grid_spec=pltpu.PrefetchScalarGridSpec(
            num_scalar_prefetch=0,
            grid=(B, ngroups),
            in_specs=[qkv_spec(0), qkv_spec(ngroups), qkv_spec(2 * ngroups)],
            out_specs=pl.BlockSpec((1, S, W), lambda b, g: (b, 0, g)),
        ),
        compiler_params=_cparams(("parallel", "parallel")),
    )(qkv, qkv, qkv)


# ----------------------------------------------------------------------------
# Full model forward
# ----------------------------------------------------------------------------
def _forward_impl(params, input_ids, token_type_ids, num_heads):
    B, S = input_ids.shape
    H = params["word_emb"].shape[1]
    M = B * S
    dh = H // num_heads
    scale = 1.0 / math.sqrt(dh)

    # --- embeddings ---------------------------------------------------------
    # TODO(synk): data-dependent word/type embedding row gathers use jnp.take;
    # the sum + LayerNorm is the Pallas kernel. Position rows are streamed
    # directly from pos_emb[:S] (no gather materialization).
    flat_ids = input_ids.reshape(M)
    flat_tt = token_type_ids.reshape(M)
    we = jnp.take(params["word_emb"], flat_ids, axis=0)
    te = jnp.take(params["type_emb"], flat_tt, axis=0)
    x = embeddings_layernorm(we, params["pos_emb"][:S], te,
                             params["emb_ln_g"], params["emb_ln_b"])

    # --- encoder ------------------------------------------------------------
    for lp in params["layers"]:
        # fused QKV projection, bf16 output feeds the attention MXU directly
        qkv = linear(x, lp["qkv_w"], lp["qkv_b"], out_dtype=jnp.bfloat16)
        ctx = fused_multi_head_attention(qkv.reshape(B, S, 3 * H),
                                         num_heads=num_heads, scale=scale)
        x = linear_residual_layernorm(ctx.reshape(M, H), lp["ao_w"], lp["ao_b"],
                                      x, lp["attn_ln_g"], lp["attn_ln_b"])
        h = linear(x, lp["i_w"], lp["i_b"], activation="gelu",
                   out_dtype=jnp.bfloat16)
        x = linear_residual_layernorm(h, lp["o_w"], lp["o_b"], x,
                                      lp["out_ln_g"], lp["out_ln_b"])

    # --- pooler + classifier (tiny; plain XLA per perf review) ---------------
    cls_tok = x.reshape(B, S, H)[:, 0]
    pooled = jnp.tanh(jnp.dot(cls_tok, params["pooler_w"],
                              precision=lax.Precision.HIGHEST)
                      + params["pooler_b"])
    logits = jnp.dot(pooled, params["cls_w"],
                     precision=lax.Precision.HIGHEST) + params["cls_b"]
    return logits


bert_for_sequence_classification = jax.jit(_forward_impl, static_argnums=(3,))


# ----------------------------------------------------------------------------
# Pure-JAX reference (mirrors the PyTorch module math and the bf16 cast points)
# ----------------------------------------------------------------------------
def _layernorm_ref(x, g, b, eps=_LN_EPS):
    mean = jnp.mean(x, axis=-1, keepdims=True)
    var = jnp.mean(jnp.square(x - mean), axis=-1, keepdims=True)
    return (x - mean) * lax.rsqrt(var + eps) * g + b


def _reference_forward(params, input_ids, token_type_ids, num_heads):
    B, S = input_ids.shape
    H = params["word_emb"].shape[1]
    dh = H // num_heads
    bf16 = jnp.bfloat16
    f32 = jnp.float32

    x = (params["word_emb"][input_ids]
         + params["pos_emb"][:S][None, :, :]
         + params["type_emb"][token_type_ids])
    x = _layernorm_ref(x, params["emb_ln_g"], params["emb_ln_b"])

    for lp in params["layers"]:
        qkv = (jnp.dot(x.astype(bf16), lp["qkv_w"], preferred_element_type=f32)
               + lp["qkv_b"]).astype(bf16)
        q, k, v = jnp.split(qkv, 3, axis=-1)

        def split(t):
            return t.reshape(B, S, num_heads, dh).transpose(0, 2, 1, 3)

        qh, kh, vh = split(q), split(k), split(v)
        s = jnp.einsum("bhqd,bhkd->bhqk", qh, kh,
                       preferred_element_type=f32) * (1.0 / math.sqrt(dh))
        m = jnp.max(s, axis=-1, keepdims=True)
        p = jnp.exp(s - m)
        l = jnp.sum(p, axis=-1, keepdims=True)
        ctx = jnp.einsum("bhqk,bhkd->bhqd", p.astype(bf16), vh,
                         preferred_element_type=f32) / l
        ctx = ctx.transpose(0, 2, 1, 3).reshape(B, S, H).astype(bf16)

        x = _layernorm_ref(
            jnp.dot(ctx, lp["ao_w"], preferred_element_type=f32)
            + lp["ao_b"] + x, lp["attn_ln_g"], lp["attn_ln_b"])
        h = _gelu_exact(
            jnp.dot(x.astype(bf16), lp["i_w"], preferred_element_type=f32)
            + lp["i_b"]).astype(bf16)
        x = _layernorm_ref(
            jnp.dot(h, lp["o_w"], preferred_element_type=f32)
            + lp["o_b"] + x, lp["out_ln_g"], lp["out_ln_b"])

    pooled = jnp.tanh(jnp.dot(x[:, 0], params["pooler_w"],
                              precision=lax.Precision.HIGHEST)
                      + params["pooler_b"])
    return jnp.dot(pooled, params["cls_w"],
                   precision=lax.Precision.HIGHEST) + params["cls_b"]


# ----------------------------------------------------------------------------
# Parameter init (mirrors _init_weights: Linear/Embedding std=0.02, LN=1/0)
# Encoder weights stored [in, out] (transposed vs PyTorch) in bf16; Q/K/V fused.
# ----------------------------------------------------------------------------
def init_params(key, *, vocab_size, type_vocab_size, hidden, max_len,
                num_layers, intermediate, num_classes):
    keys = jax.random.split(key, 5 + num_layers)

    def lin_w(k, fan_in, fan_out, dtype=jnp.bfloat16):
        w = jax.random.normal(k, (fan_in, fan_out), jnp.float32) * 0.02
        return w.astype(dtype)

    params = {
        "word_emb": jax.random.normal(keys[0], (vocab_size, hidden),
                                      jnp.float32) * 0.02,
        "pos_emb": jax.random.normal(keys[1], (max_len, hidden),
                                     jnp.float32) * 0.02,
        "type_emb": jax.random.normal(keys[2], (type_vocab_size, hidden),
                                      jnp.float32) * 0.02,
        "emb_ln_g": jnp.ones((hidden,), jnp.float32),
        "emb_ln_b": jnp.zeros((hidden,), jnp.float32),
        "layers": [],
    }
    for i in range(num_layers):
        lk = jax.random.split(keys[3 + i], 4)
        params["layers"].append({
            "qkv_w": lin_w(lk[0], hidden, 3 * hidden),
            "qkv_b": jnp.zeros((3 * hidden,), jnp.float32),
            "ao_w": lin_w(lk[1], hidden, hidden),
            "ao_b": jnp.zeros((hidden,), jnp.float32),
            "attn_ln_g": jnp.ones((hidden,), jnp.float32),
            "attn_ln_b": jnp.zeros((hidden,), jnp.float32),
            "i_w": lin_w(lk[2], hidden, intermediate),
            "i_b": jnp.zeros((intermediate,), jnp.float32),
            "o_w": lin_w(lk[3], intermediate, hidden),
            "o_b": jnp.zeros((hidden,), jnp.float32),
            "out_ln_g": jnp.ones((hidden,), jnp.float32),
            "out_ln_b": jnp.zeros((hidden,), jnp.float32),
        })
    params["pooler_w"] = lin_w(keys[3 + num_layers], hidden, hidden,
                               dtype=jnp.float32)
    params["pooler_b"] = jnp.zeros((hidden,), jnp.float32)
    params["cls_w"] = lin_w(keys[4 + num_layers], hidden, num_classes,
                            dtype=jnp.float32)
    params["cls_b"] = jnp.zeros((num_classes,), jnp.float32)
    return params


# ----------------------------------------------------------------------------
if __name__ == "__main__":
    # Small BERT config (TPU-friendly: lane-aligned hidden / seq).
    VOCAB, TYPE_VOCAB = 1000, 2
    HIDDEN, MAX_LEN = 128, 256
    NUM_LAYERS, NUM_HEADS = 2, 2
    INTERMEDIATE, NUM_CLASSES = 512, 2
    B, S = 2, 128

    key = jax.random.PRNGKey(0)
    k_params, k_ids = jax.random.split(key)

    params = init_params(
        k_params, vocab_size=VOCAB, type_vocab_size=TYPE_VOCAB, hidden=HIDDEN,
        max_len=MAX_LEN, num_layers=NUM_LAYERS, intermediate=INTERMEDIATE,
        num_classes=NUM_CLASSES)

    input_ids = jax.random.randint(k_ids, (B, S), 0, VOCAB, dtype=jnp.int32)
    token_type_ids = jnp.zeros((B, S), dtype=jnp.int32)

    logits = bert_for_sequence_classification(params, input_ids,
                                              token_type_ids, NUM_HEADS)
    logits = jax.block_until_ready(logits)

    ref = _reference_forward(params, input_ids, token_type_ids, NUM_HEADS)

    assert logits.shape == (B, NUM_CLASSES), logits.shape
    max_diff = float(jnp.max(jnp.abs(logits - ref)))
    assert jnp.allclose(logits, ref, atol=5e-3, rtol=5e-3), max_diff

    print("KERNEL_OK")
</pallas_src>

<mosaic_0001>
module attributes {stable_mosaic.version = 11 : i64} {
  func.func @_embed_ln_kernel(%arg0: i32, %arg1: memref<128x128xf32, #tpu.memory_space<vmem>>, %arg2: memref<128x128xf32, #tpu.memory_space<vmem>>, %arg3: memref<128x128xf32, #tpu.memory_space<vmem>>, %arg4: memref<1x128xf32, #tpu.memory_space<vmem>>, %arg5: memref<1x128xf32, #tpu.memory_space<vmem>>, %arg6: memref<128x128xf32, #tpu.memory_space<vmem>>) attributes {dimension_semantics = [#tpu.dimension_semantics<parallel>], iteration_bounds = array<i64: 2>, scalar_prefetch = 0 : i64, scratch_operands = 0 : i64, tpu.core_type = #tpu.core_type<tc>, window_params = [{transform_indices = @transform_0, window_bounds = array<i64: 128, 128>}, {transform_indices = @transform_1, window_bounds = array<i64: 128, 128>}, {transform_indices = @transform_2, window_bounds = array<i64: 128, 128>}, {pipeline_mode = #tpu.pipeline_mode<synchronous>, transform_indices = @transform_3, window_bounds = array<i64: 1, 128>}, {pipeline_mode = #tpu.pipeline_mode<synchronous>, transform_indices = @transform_4, window_bounds = array<i64: 1, 128>}, {transform_indices = @transform_5, window_bounds = array<i64: 128, 128>}]} {
    %c0 = arith.constant 0 : index
    %c0_0 = arith.constant 0 : index
    %0 = vector.load %arg1[%c0, %c0_0] : memref<128x128xf32, #tpu.memory_space<vmem>>, vector<128x128xf32>
    %c0_1 = arith.constant 0 : index
    %c0_2 = arith.constant 0 : index
    %1 = vector.load %arg2[%c0_1, %c0_2] : memref<128x128xf32, #tpu.memory_space<vmem>>, vector<128x128xf32>
    %2 = arith.addf %0, %1 : vector<128x128xf32>
    %c0_3 = arith.constant 0 : index
    %c0_4 = arith.constant 0 : index
    %3 = vector.load %arg3[%c0_3, %c0_4] : memref<128x128xf32, #tpu.memory_space<vmem>>, vector<128x128xf32>
    %4 = arith.addf %2, %3 : vector<128x128xf32>
    %cst = arith.constant dense<0.000000e+00> : vector<128xf32>
    %5 = vector.multi_reduction <add>, %4, %cst [1] : vector<128x128xf32> to vector<128xf32>
    %6 = vector.shape_cast %5 : vector<128xf32> to vector<128x1xf32>
    %cst_5 = arith.constant 1.280000e+02 : f32
    %7 = vector.broadcast %cst_5 : f32 to vector<128x1xf32>
    %8 = arith.divf %6, %7 : vector<128x1xf32>
    %9 = vector.broadcast %8 : vector<128x1xf32> to vector<128x128xf32>
    %10 = arith.subf %4, %9 : vector<128x128xf32>
    %11 = arith.mulf %10, %10 : vector<128x128xf32>
    %cst_6 = arith.constant dense<0.000000e+00> : vector<128xf32>
    %12 = vector.multi_reduction <add>, %11, %cst_6 [1] : vector<128x128xf32> to vector<128xf32>
    %13 = vector.shape_cast %12 : vector<128xf32> to vector<128x1xf32>
    %cst_7 = arith.constant 1.280000e+02 : f32
    %14 = vector.broadcast %cst_7 : f32 to vector<128x1xf32>
    %15 = arith.divf %13, %14 : vector<128x1xf32>
    %16 = vector.broadcast %8 : vector<128x1xf32> to vector<128x128xf32>
    %17 = arith.subf %4, %16 : vector<128x128xf32>
    %cst_8 = arith.constant 9.99999996E-13 : f32
    %18 = vector.broadcast %cst_8 : f32 to vector<128x1xf32>
    %19 = arith.addf %15, %18 : vector<128x1xf32>
    %20 = math.rsqrt %19 : vector<128x1xf32>
    %21 = vector.broadcast %20 : vector<128x1xf32> to vector<128x128xf32>
    %22 = arith.mulf %17, %21 : vector<128x128xf32>
    %c0_9 = arith.constant 0 : index
    %c0_10 = arith.constant 0 : index
    %23 = vector.load %arg4[%c0_9, %c0_10] : memref<1x128xf32, #tpu.memory_space<vmem>>, vector<1x128xf32>
    %24 = vector.broadcast %23 : vector<1x128xf32> to vector<128x128xf32>
    %25 = arith.mulf %22, %24 : vector<128x128xf32>
    %c0_11 = arith.constant 0 : index
    %c0_12 = arith.constant 0 : index
    %26 = vector.load %arg5[%c0_11, %c0_12] : memref<1x128xf32, #tpu.memory_space<vmem>>, vector<1x128xf32>
    %27 = vector.broadcast %26 : vector<1x128xf32> to vector<128x128xf32>
    %28 = arith.addf %25, %27 : vector<128x128xf32>
    %c0_13 = arith.constant 0 : index
    %c0_14 = arith.constant 0 : index
    %29 = vector.load %arg6[%c0_13, %c0_14] : memref<128x128xf32, #tpu.memory_space<vmem>>, vector<128x128xf32>
    tpu.vector_store %arg6[%c0_13, %c0_14], %28 {strides = array<i32>} : memref<128x128xf32, #tpu.memory_space<vmem>>, vector<128x128xf32>,
    return
  }
  func.func @transform_0(%arg0: i32) -> (i32, i32) {
    %c0_i32 = arith.constant 0 : i32
    %c0_i32_0 = arith.constant 0 : i32
    return %arg0, %c0_i32 : i32, i32
  }
  func.func @transform_1(%arg0: i32) -> (i32, i32) {
    %c1_i32 = arith.constant 1 : i32
    %c0_i32 = arith.constant 0 : i32
    %0 = arith.cmpi eq, %c1_i32, %c0_i32 : i32
    %c1_i32_0 = arith.constant 1 : i32
    %1 = arith.select %0, %c1_i32_0, %c1_i32 : i32
    %2 = arith.remsi %arg0, %1 : i32
    %c0_i32_1 = arith.constant 0 : i32
    %3 = arith.cmpi ne, %2, %c0_i32_1 : i32
    %c0_i32_2 = arith.constant 0 : i32
    %4 = arith.cmpi slt, %2, %c0_i32_2 : i32
    %c0_i32_3 = arith.constant 0 : i32
    %5 = arith.cmpi slt, %1, %c0_i32_3 : i32
    %6 = arith.xori %4, %5 : i1
    %7 = arith.andi %6, %3 : i1
    %8 = arith.addi %2, %1 : i32
    %9 = arith.select %7, %8, %2 : i32
    %c0_i32_4 = arith.constant 0 : i32
    %c0_i32_5 = arith.constant 0 : i32
    return %9, %c0_i32_4 : i32, i32
  }
  func.func @transform_2(%arg0: i32) -> (i32, i32) {
    %c0_i32 = arith.constant 0 : i32
    %c0_i32_0 = arith.constant 0 : i32
    return %arg0, %c0_i32 : i32, i32
  }
  func.func @transform_3(%arg0: i32) -> (i32, i32) {
    %c0_i32 = arith.constant 0 : i32
    %c0_i32_0 = arith.constant 0 : i32
    %c0_i32_1 = arith.constant 0 : i32
    return %c0_i32, %c0_i32_0 : i32, i32
  }
  func.func @transform_4(%arg0: i32) -> (i32, i32) {
    %c0_i32 = arith.constant 0 : i32
    %c0_i32_0 = arith.constant 0 : i32
    %c0_i32_1 = arith.constant 0 : i32
    return %c0_i32, %c0_i32_0 : i32, i32
  }
  func.func @transform_5(%arg0: i32) -> (i32, i32) {
    %c0_i32 = arith.constant 0 : i32
    %c0_i32_0 = arith.constant 0 : i32
    return %arg0, %c0_i32 : i32, i32
  }
}

module attributes {stable_mosaic.version = 11 : i64} {
  func.func @_linear_kernel_direct(%arg0: i32, %arg1: i32, %arg2: memref<128x128xf32, #tpu.memory_space<vmem>>, %arg3: memref<128x384xbf16, #tpu.memory_space<vmem>>, %arg4: memref<1x384xf32, #tpu.memory_space<vmem>>, %arg5: memref<128x384xbf16, #tpu.memory_space<vmem>>) attributes {dimension_semantics = [#tpu.dimension_semantics<parallel>, #tpu.dimension_semantics<parallel>], iteration_bounds = array<i64: 2, 1>, scalar_prefetch = 0 : i64, scratch_operands = 0 : i64, tpu.core_type = #tpu.core_type<tc>, window_params = [{transform_indices = @transform_0, window_bounds = array<i64: 128, 128>}, {transform_indices = @transform_1, window_bounds = array<i64: 128, 384>}, {transform_indices = @transform_2, window_bounds = array<i64: 1, 384>}, {transform_indices = @transform_3, window_bounds = array<i64: 128, 384>}]} {
    %c0 = arith.constant 0 : index
    %c0_0 = arith.constant 0 : index
    %0 = vector.load %arg2[%c0, %c0_0] : memref<128x128xf32, #tpu.memory_space<vmem>>, vector<128x128xf32>
    %1 = arith.truncf %0 : vector<128x128xf32> to vector<128x128xbf16>
    %c0_1 = arith.constant 0 : index
    %c0_2 = arith.constant 0 : index
    %2 = vector.load %arg3[%c0_1, %c0_2] : memref<128x384xbf16, #tpu.memory_space<vmem>>, vector<128x384xbf16>
    %cst = arith.constant dense<0.000000e+00> : vector<128x384xf32>
    %3 = tpu.matmul %1, %2, %cst {dimension_numbers = #tpu.dot_dimension_numbers<[1], [0], [0], [1], [0, 0, 1, 1], [], []>} : vector<128x128xbf16>, vector<128x384xbf16>, vector<128x384xf32> -> vector<128x384xf32>
    %c0_3 = arith.constant 0 : index
    %c0_4 = arith.constant 0 : index
    %4 = vector.load %arg4[%c0_3, %c0_4] : memref<1x384xf32, #tpu.memory_space<vmem>>, vector<1x384xf32>
    %5 = vector.broadcast %4 : vector<1x384xf32> to vector<128x384xf32>
    %6 = arith.addf %3, %5 : vector<128x384xf32>
    %7 = arith.truncf %6 : vector<128x384xf32> to vector<128x384xbf16>
    %c0_5 = arith.constant 0 : index
    %c0_6 = arith.constant 0 : index
    %8 = vector.load %arg5[%c0_5, %c0_6] : memref<128x384xbf16, #tpu.memory_space<vmem>>, vector<128x384xbf16>
    tpu.vector_store %arg5[%c0_5, %c0_6], %7 {strides = array<i32>} : memref<128x384xbf16, #tpu.memory_space<vmem>>, vector<128x384xbf16>,
    return
  }
  func.func @transform_0(%arg0: i32, %arg1: i32) -> (i32, i32) {
    %c0_i32 = arith.constant 0 : i32
    %c0_i32_0 = arith.constant 0 : i32
    return %arg0, %c0_i32 : i32, i32
  }
  func.func @transform_1(%arg0: i32, %arg1: i32) -> (i32, i32) {
    %c0_i32 = arith.constant 0 : i32
    %c0_i32_0 = arith.constant 0 : i32
    return %c0_i32, %arg1 : i32, i32
  }
  func.func @transform_2(%arg0: i32, %arg1: i32) -> (i32, i32) {
    %c0_i32 = arith.constant 0 : i32
    %c0_i32_0 = arith.constant 0 : i32
    return %c0_i32, %arg1 : i32, i32
  }
  func.func @transform_3(%arg0: i32, %arg1: i32) -> (i32, i32) {
    %c0_i32 = arith.constant 0 : i32
    return %arg0, %arg1 : i32, i32
  }
}

module attributes {stable_mosaic.version = 11 : i64} {
  func.func @_mha_kernel(%arg0: i32, %arg1: i32, %arg2: memref<1x128x128xbf16, #tpu.memory_space<vmem>>, %arg3: memref<1x128x128xbf16, #tpu.memory_space<vmem>>, %arg4: memref<1x128x128xbf16, #tpu.memory_space<vmem>>, %arg5: memref<1x128x128xbf16, #tpu.memory_space<vmem>>) attributes {dimension_semantics = [#tpu.dimension_semantics<parallel>, #tpu.dimension_semantics<parallel>], iteration_bounds = array<i64: 2, 1>, scalar_prefetch = 0 : i64, scratch_operands = 0 : i64, tpu.core_type = #tpu.core_type<tc>, window_params = [{transform_indices = @transform_0, window_bounds = array<i64: 1, 128, 128>}, {transform_indices = @transform_1, window_bounds = array<i64: 1, 128, 128>}, {transform_indices = @transform_2, window_bounds = array<i64: 1, 128, 128>}, {transform_indices = @transform_3, window_bounds = array<i64: 1, 128, 128>}]} {
    %c0 = arith.constant 0 : index
    %c0_0 = arith.constant 0 : index
    %c0_1 = arith.constant 0 : index
    %0 = vector.load %arg2[%c0, %c0_0, %c0_1] : memref<1x128x128xbf16, #tpu.memory_space<vmem>>, vector<1x128x128xbf16>
    %1 = vector.shape_cast %0 : vector<1x128x128xbf16> to vector<128x128xbf16>
    %c0_2 = arith.constant 0 : index
    %c0_3 = arith.constant 0 : index
    %c0_4 = arith.constant 0 : index
    %2 = vector.load %arg3[%c0_2, %c0_3, %c0_4] : memref<1x128x128xbf16, #tpu.memory_space<vmem>>, vector<1x128x128xbf16>
    %3 = vector.shape_cast %2 : vector<1x128x128xbf16> to vector<128x128xbf16>
    %c0_5 = arith.constant 0 : index
    %c0_6 = arith.constant 0 : index
    %c0_7 = arith.constant 0 : index
    %4 = vector.load %arg4[%c0_5, %c0_6, %c0_7] : memref<1x128x128xbf16, #tpu.memory_space<vmem>>, vector<1x128x128xbf16>
    %5 = vector.shape_cast %4 : vector<1x128x128xbf16> to vector<128x128xbf16>
    %6 = vector.extract_strided_slice %1 {offsets = [0, 0], sizes = [128, 64], strides = [1, 1]} : vector<128x128xbf16> to vector<128x64xbf16>
    %7 = vector.extract_strided_slice %3 {offsets = [0, 0], sizes = [128, 64], strides = [1, 1]} : vector<128x128xbf16> to vector<128x64xbf16>
    %8 = vector.extract_strided_slice %5 {offsets = [0, 0], sizes = [128, 64], strides = [1, 1]} : vector<128x128xbf16> to vector<128x64xbf16>
    %cst = arith.constant dense<0.000000e+00> : vector<128x128xf32>
    %9 = tpu.matmul %6, %7, %cst {dimension_numbers = #tpu.dot_dimension_numbers<[1], [1], [0], [0], [0, 0, 1, 0], [], []>} : vector<128x64xbf16>, vector<128x64xbf16>, vector<128x128xf32> -> vector<128x128xf32>
    %cst_8 = arith.constant 1.250000e-01 : f32
    %10 = vector.broadcast %cst_8 : f32 to vector<128x128xf32>
    %11 = arith.mulf %9, %10 : vector<128x128xf32>
    %cst_9 = arith.constant dense<0xFF800000> : vector<128xf32>
    %12 = vector.multi_reduction <maximumf>, %11, %cst_9 [1] : vector<128x128xf32> to vector<128xf32>
    %13 = vector.shape_cast %12 : vector<128xf32> to vector<128x1xf32>
    %14 = vector.broadcast %13 : vector<128x1xf32> to vector<128x128xf32>
    %15 = arith.subf %11, %14 : vector<128x128xf32>
    %16 = math.exp %15 : vector<128x128xf32>
    %cst_10 = arith.constant dense<0.000000e+00> : vector<128xf32>
    %17 = vector.multi_reduction <add>, %16, %cst_10 [1] : vector<128x128xf32> to vector<128xf32>
    %18 = vector.shape_cast %17 : vector<128xf32> to vector<128x1xf32>
    %19 = arith.truncf %16 : vector<128x128xf32> to vector<128x128xbf16>
    %cst_11 = arith.constant dense<0.000000e+00> : vector<128x64xf32>
    %20 = tpu.matmul %19, %8, %cst_11 {dimension_numbers = #tpu.dot_dimension_numbers<[1], [0], [0], [1], [0, 0, 1, 1], [], []>} : vector<128x128xbf16>, vector<128x64xbf16>, vector<128x64xf32> -> vector<128x64xf32>
    %21 = tpu.reciprocal %18 {approx = true} : vector<128x1xf32> -> vector<128x1xf32>
    %22 = vector.broadcast %21 : vector<128x1xf32> to vector<128x64xf32>
    %23 = arith.mulf %20, %22 : vector<128x64xf32>
    %24 = vector.extract_strided_slice %1 {offsets = [0, 64], sizes = [128, 64], strides = [1, 1]} : vector<128x128xbf16> to vector<128x64xbf16>
    %25 = vector.extract_strided_slice %3 {offsets = [0, 64], sizes = [128, 64], strides = [1, 1]} : vector<128x128xbf16> to vector<128x64xbf16>
    %26 = vector.extract_strided_slice %5 {offsets = [0, 64], sizes = [128, 64], strides = [1, 1]} : vector<128x128xbf16> to vector<128x64xbf16>
    %cst_12 = arith.constant dense<0.000000e+00> : vector<128x128xf32>
    %27 = tpu.matmul %24, %25, %cst_12 {dimension_numbers = #tpu.dot_dimension_numbers<[1], [1], [0], [0], [0, 0, 1, 0], [], []>} : vector<128x64xbf16>, vector<128x64xbf16>, vector<128x128xf32> -> vector<128x128xf32>
    %cst_13 = arith.constant 1.250000e-01 : f32
    %28 = vector.broadcast %cst_13 : f32 to vector<128x128xf32>
    %29 = arith.mulf %27, %28 : vector<128x128xf32>
    %cst_14 = arith.constant dense<0xFF800000> : vector<128xf32>
    %30 = vector.multi_reduction <maximumf>, %29, %cst_14 [1] : vector<128x128xf32> to vector<128xf32>
    %31 = vector.shape_cast %30 : vector<128xf32> to vector<128x1xf32>
    %32 = vector.broadcast %31 : vector<128x1xf32> to vector<128x128xf32>
    %33 = arith.subf %29, %32 : vector<128x128xf32>
    %34 = math.exp %33 : vector<128x128xf32>
    %cst_15 = arith.constant dense<0.000000e+00> : vector<128xf32>
    %35 = vector.multi_reduction <add>, %34, %cst_15 [1] : vector<128x128xf32> to vector<128xf32>
    %36 = vector.shape_cast %35 : vector<128xf32> to vector<128x1xf32>
    %37 = arith.truncf %34 : vector<128x128xf32> to vector<128x128xbf16>
    %cst_16 = arith.constant dense<0.000000e+00> : vector<128x64xf32>
    %38 = tpu.matmul %37, %26, %cst_16 {dimension_numbers = #tpu.dot_dimension_numbers<[1], [0], [0], [1], [0, 0, 1, 1], [], []>} : vector<128x128xbf16>, vector<128x64xbf16>, vector<128x64xf32> -> vector<128x64xf32>
    %39 = tpu.reciprocal %36 {approx = true} : vector<128x1xf32> -> vector<128x1xf32>
    %40 = vector.broadcast %39 : vector<128x1xf32> to vector<128x64xf32>
    %41 = arith.mulf %38, %40 : vector<128x64xf32>
    %42 = tpu.concatenate %23, %41 in 1 : vector<128x64xf32>, vector<128x64xf32> -> vector<128x128xf32>
    %43 = arith.truncf %42 : vector<128x128xf32> to vector<128x128xbf16>
    %c0_17 = arith.constant 0 : index
    %c0_18 = arith.constant 0 : index
    %c0_19 = arith.constant 0 : index
    %44 = vector.load %arg5[%c0_17, %c0_18, %c0_19] : memref<1x128x128xbf16, #tpu.memory_space<vmem>>, vector<1x128x128xbf16>
    %45 = vector.shape_cast %44 : vector<1x128x128xbf16> to vector<128x128xbf16>
    %46 = vector.shape_cast %43 : vector<128x128xbf16> to vector<1x128x128xbf16>
    tpu.vector_store %arg5[%c0_17, %c0_18, %c0_19], %46 {strides = array<i32>} : memref<1x128x128xbf16, #tpu.memory_space<vmem>>, vector<1x128x128xbf16>,
    return
  }
  func.func @transform_0(%arg0: i32, %arg1: i32) -> (i32, i32, i32) {
    %c0_i32 = arith.constant 0 : i32
    %0 = arith.addi %arg1, %c0_i32 : i32
    %c0_i32_0 = arith.constant 0 : i32
    %c0_i32_1 = arith.constant 0 : i32
    return %arg0, %c0_i32_0, %0 : i32, i32, i32
  }
  func.func @transform_1(%arg0: i32, %arg1: i32) -> (i32, i32, i32) {
    %c1_i32 = arith.constant 1 : i32
    %0 = arith.addi %arg1, %c1_i32 : i32
    %c0_i32 = arith.constant 0 : i32
    %c0_i32_0 = arith.constant 0 : i32
    return %arg0, %c0_i32, %0 : i32, i32, i32
  }
  func.func @transform_2(%arg0: i32, %arg1: i32) -> (i32, i32, i32) {
    %c2_i32 = arith.constant 2 : i32
    %0 = arith.addi %arg1, %c2_i32 : i32
    %c0_i32 = arith.constant 0 : i32
    %c0_i32_0 = arith.constant 0 : i32
    return %arg0, %c0_i32, %0 : i32, i32, i32
  }
  func.func @transform_3(%arg0: i32, %arg1: i32) -> (i32, i32, i32) {
    %c0_i32 = arith.constant 0 : i32
    %c0_i32_0 = arith.constant 0 : i32
    return %arg0, %c0_i32, %arg1 : i32, i32, i32
  }
}

module attributes {stable_mosaic.version = 11 : i64} {
  func.func @_linres_ln_kernel_direct(%arg0: i32, %arg1: memref<128x128xbf16, #tpu.memory_space<vmem>>, %arg2: memref<128x128xbf16, #tpu.memory_space<vmem>>, %arg3: memref<1x128xf32, #tpu.memory_space<vmem>>, %arg4: memref<128x128xf32, #tpu.memory_space<vmem>>, %arg5: memref<1x128xf32, #tpu.memory_space<vmem>>, %arg6: memref<1x128xf32, #tpu.memory_space<vmem>>, %arg7: memref<128x128xf32, #tpu.memory_space<vmem>>) attributes {dimension_semantics = [#tpu.dimension_semantics<parallel>], iteration_bounds = array<i64: 2>, scalar_prefetch = 0 : i64, scratch_operands = 0 : i64, tpu.core_type = #tpu.core_type<tc>, window_params = [{transform_indices = @transform_0, window_bounds = array<i64: 128, 128>}, {pipeline_mode = #tpu.pipeline_mode<synchronous>, transform_indices = @transform_1, window_bounds = array<i64: 128, 128>}, {pipeline_mode = #tpu.pipeline_mode<synchronous>, transform_indices = @transform_2, window_bounds = array<i64: 1, 128>}, {transform_indices = @transform_3, window_bounds = array<i64: 128, 128>}, {pipeline_mode = #tpu.pipeline_mode<synchronous>, transform_indices = @transform_4, window_bounds = array<i64: 1, 128>}, {pipeline_mode = #tpu.pipeline_mode<synchronous>, transform_indices = @transform_5, window_bounds = array<i64: 1, 128>}, {transform_indices = @transform_6, window_bounds = array<i64: 128, 128>}]} {
    %c0 = arith.constant 0 : index
    %c0_0 = arith.constant 0 : index
    %0 = vector.load %arg1[%c0, %c0_0] : memref<128x128xbf16, #tpu.memory_space<vmem>>, vector<128x128xbf16>
    %c0_1 = arith.constant 0 : index
    %c0_2 = arith.constant 0 : index
    %1 = vector.load %arg2[%c0_1, %c0_2] : memref<128x128xbf16, #tpu.memory_space<vmem>>, vector<128x128xbf16>
    %cst = arith.constant dense<0.000000e+00> : vector<128x128xf32>
    %2 = tpu.matmul %0, %1, %cst {dimension_numbers = #tpu.dot_dimension_numbers<[1], [0], [0], [1], [0, 0, 1, 1], [], []>} : vector<128x128xbf16>, vector<128x128xbf16>, vector<128x128xf32> -> vector<128x128xf32>
    %c0_3 = arith.constant 0 : index
    %c0_4 = arith.constant 0 : index
    %3 = vector.load %arg4[%c0_3, %c0_4] : memref<128x128xf32, #tpu.memory_space<vmem>>, vector<128x128xf32>
    %c0_5 = arith.constant 0 : index
    %c0_6 = arith.constant 0 : index
    %4 = vector.load %arg3[%c0_5, %c0_6] : memref<1x128xf32, #tpu.memory_space<vmem>>, vector<1x128xf32>
    %c0_7 = arith.constant 0 : index
    %c0_8 = arith.constant 0 : index
    %5 = vector.load %arg5[%c0_7, %c0_8] : memref<1x128xf32, #tpu.memory_space<vmem>>, vector<1x128xf32>
    %c0_9 = arith.constant 0 : index
    %c0_10 = arith.constant 0 : index
    %6 = vector.load %arg6[%c0_9, %c0_10] : memref<1x128xf32, #tpu.memory_space<vmem>>, vector<1x128xf32>
    %7 = vector.broadcast %4 : vector<1x128xf32> to vector<128x128xf32>
    %8 = arith.addf %2, %7 : vector<128x128xf32>
    %9 = arith.addf %8, %3 : vector<128x128xf32>
    %cst_11 = arith.constant dense<0.000000e+00> : vector<128xf32>
    %10 = vector.multi_reduction <add>, %9, %cst_11 [1] : vector<128x128xf32> to vector<128xf32>
    %11 = vector.shape_cast %10 : vector<128xf32> to vector<128x1xf32>
    %cst_12 = arith.constant 1.280000e+02 : f32
    %12 = vector.broadcast %cst_12 : f32 to vector<128x1xf32>
    %13 = arith.divf %11, %12 : vector<128x1xf32>
    %14 = vector.broadcast %13 : vector<128x1xf32> to vector<128x128xf32>
    %15 = arith.subf %9, %14 : vector<128x128xf32>
    %16 = arith.mulf %15, %15 : vector<128x128xf32>
    %cst_13 = arith.constant dense<0.000000e+00> : vector<128xf32>
    %17 = vector.multi_reduction <add>, %16, %cst_13 [1] : vector<128x128xf32> to vector<128xf32>
    %18 = vector.shape_cast %17 : vector<128xf32> to vector<128x1xf32>
    %cst_14 = arith.constant 1.280000e+02 : f32
    %19 = vector.broadcast %cst_14 : f32 to vector<128x1xf32>
    %20 = arith.divf %18, %19 : vector<128x1xf32>
    %21 = vector.broadcast %13 : vector<128x1xf32> to vector<128x128xf32>
    %22 = arith.subf %9, %21 : vector<128x128xf32>
    %cst_15 = arith.constant 9.99999996E-13 : f32
    %23 = vector.broadcast %cst_15 : f32 to vector<128x1xf32>
    %24 = arith.addf %20, %23 : vector<128x1xf32>
    %25 = math.rsqrt %24 : vector<128x1xf32>
    %26 = vector.broadcast %25 : vector<128x1xf32> to vector<128x128xf32>
    %27 = arith.mulf %22, %26 : vector<128x128xf32>
    %28 = vector.broadcast %5 : vector<1x128xf32> to vector<128x128xf32>
    %29 = arith.mulf %27, %28 : vector<128x128xf32>
    %30 = vector.broadcast %6 : vector<1x128xf32> to vector<128x128xf32>
    %31 = arith.addf %29, %30 : vector<128x128xf32>
    %c0_16 = arith.constant 0 : index
    %c0_17 = arith.constant 0 : index
    %32 = vector.load %arg7[%c0_16, %c0_17] : memref<128x128xf32, #tpu.memory_space<vmem>>, vector<128x128xf32>
    tpu.vector_store %arg7[%c0_16, %c0_17], %31 {strides = array<i32>} : memref<128x128xf32, #tpu.memory_space<vmem>>, vector<128x128xf32>,
    return
  }
  func.func @transform_0(%arg0: i32) -> (i32, i32) {
    %c0_i32 = arith.constant 0 : i32
    %c0_i32_0 = arith.constant 0 : i32
    return %arg0, %c0_i32 : i32, i32
  }
  func.func @transform_1(%arg0: i32) -> (i32, i32) {
    %c0_i32 = arith.constant 0 : i32
    %c0_i32_0 = arith.constant 0 : i32
    %c0_i32_1 = arith.constant 0 : i32
    return %c0_i32, %c0_i32_0 : i32, i32
  }
  func.func @transform_2(%arg0: i32) -> (i32, i32) {
    %c0_i32 = arith.constant 0 : i32
    %c0_i32_0 = arith.constant 0 : i32
    %c0_i32_1 = arith.constant 0 : i32
    return %c0_i32, %c0_i32_0 : i32, i32
  }
  func.func @transform_3(%arg0: i32) -> (i32, i32) {
    %c0_i32 = arith.constant 0 : i32
    %c0_i32_0 = arith.constant 0 : i32
    return %arg0, %c0_i32 : i32, i32
  }
  func.func @transform_4(%arg0: i32) -> (i32, i32) {
    %c0_i32 = arith.constant 0 : i32
    %c0_i32_0 = arith.constant 0 : i32
    %c0_i32_1 = arith.constant 0 : i32
    return %c0_i32, %c0_i32_0 : i32, i32
  }
  func.func @transform_5(%arg0: i32) -> (i32, i32) {
    %c0_i32 = arith.constant 0 : i32
    %c0_i32_0 = arith.constant 0 : i32
    %c0_i32_1 = arith.constant 0 : i32
    return %c0_i32, %c0_i32_0 : i32, i32
  }
  func.func @transform_6(%arg0: i32) -> (i32, i32) {
    %c0_i32 = arith.constant 0 : i32
    %c0_i32_0 = arith.constant 0 : i32
    return %arg0, %c0_i32 : i32, i32
  }
}

module attributes {stable_mosaic.version = 11 : i64} {
  func.func @_linear_kernel_direct(%arg0: i32, %arg1: i32, %arg2: memref<128x128xf32, #tpu.memory_space<vmem>>, %arg3: memref<128x512xbf16, #tpu.memory_space<vmem>>, %arg4: memref<1x512xf32, #tpu.memory_space<vmem>>, %arg5: memref<128x512xbf16, #tpu.memory_space<vmem>>) attributes {dimension_semantics = [#tpu.dimension_semantics<parallel>, #tpu.dimension_semantics<parallel>], iteration_bounds = array<i64: 2, 1>, scalar_prefetch = 0 : i64, scratch_operands = 0 : i64, tpu.core_type = #tpu.core_type<tc>, window_params = [{transform_indices = @transform_0, window_bounds = array<i64: 128, 128>}, {transform_indices = @transform_1, window_bounds = array<i64: 128, 512>}, {transform_indices = @transform_2, window_bounds = array<i64: 1, 512>}, {transform_indices = @transform_3, window_bounds = array<i64: 128, 512>}]} {
    %c0 = arith.constant 0 : index
    %c0_0 = arith.constant 0 : index
    %0 = vector.load %arg2[%c0, %c0_0] : memref<128x128xf32, #tpu.memory_space<vmem>>, vector<128x128xf32>
    %1 = arith.truncf %0 : vector<128x128xf32> to vector<128x128xbf16>
    %c0_1 = arith.constant 0 : index
    %c0_2 = arith.constant 0 : index
    %2 = vector.load %arg3[%c0_1, %c0_2] : memref<128x512xbf16, #tpu.memory_space<vmem>>, vector<128x512xbf16>
    %cst = arith.constant dense<0.000000e+00> : vector<128x512xf32>
    %3 = tpu.matmul %1, %2, %cst {dimension_numbers = #tpu.dot_dimension_numbers<[1], [0], [0], [1], [0, 0, 1, 1], [], []>} : vector<128x128xbf16>, vector<128x512xbf16>, vector<128x512xf32> -> vector<128x512xf32>
    %c0_3 = arith.constant 0 : index
    %c0_4 = arith.constant 0 : index
    %4 = vector.load %arg4[%c0_3, %c0_4] : memref<1x512xf32, #tpu.memory_space<vmem>>, vector<1x512xf32>
    %5 = vector.broadcast %4 : vector<1x512xf32> to vector<128x512xf32>
    %6 = arith.addf %3, %5 : vector<128x512xf32>
    %cst_5 = arith.constant 5.000000e-01 : f32
    %7 = vector.broadcast %cst_5 : f32 to vector<128x512xf32>
    %8 = arith.mulf %7, %6 : vector<128x512xf32>
    %cst_6 = arith.constant 0.707106769 : f32
    %9 = vector.broadcast %cst_6 : f32 to vector<128x512xf32>
    %10 = arith.mulf %6, %9 : vector<128x512xf32>
    %11 = math.erf %10 : vector<128x512xf32>
    %cst_7 = arith.constant 1.000000e+00 : f32
    %12 = vector.broadcast %cst_7 : f32 to vector<128x512xf32>
    %13 = arith.addf %12, %11 : vector<128x512xf32>
    %14 = arith.mulf %8, %13 : vector<128x512xf32>
    %15 = arith.truncf %14 : vector<128x512xf32> to vector<128x512xbf16>
    %c0_8 = arith.constant 0 : index
    %c0_9 = arith.constant 0 : index
    %16 = vector.load %arg5[%c0_8, %c0_9] : memref<128x512xbf16, #tpu.memory_space<vmem>>, vector<128x512xbf16>
    tpu.vector_store %arg5[%c0_8, %c0_9], %15 {strides = array<i32>} : memref<128x512xbf16, #tpu.memory_space<vmem>>, vector<128x512xbf16>,
    return
  }
  func.func @transform_0(%arg0: i32, %arg1: i32) -> (i32, i32) {
    %c0_i32 = arith.constant 0 : i32
    %c0_i32_0 = arith.constant 0 : i32
    return %arg0, %c0_i32 : i32, i32
  }
  func.func @transform_1(%arg0: i32, %arg1: i32) -> (i32, i32) {
    %c0_i32 = arith.constant 0 : i32
    %c0_i32_0 = arith.constant 0 : i32
    return %c0_i32, %arg1 : i32, i32
  }
  func.func @transform_2(%arg0: i32, %arg1: i32) -> (i32, i32) {
    %c0_i32 = arith.constant 0 : i32
    %c0_i32_0 = arith.constant 0 : i32
    return %c0_i32, %arg1 : i32, i32
  }
  func.func @transform_3(%arg0: i32, %arg1: i32) -> (i32, i32) {
    %c0_i32 = arith.constant 0 : i32
    return %arg0, %arg1 : i32, i32
  }
}

module attributes {stable_mosaic.version = 11 : i64} {
  func.func @_linres_ln_kernel_acc(%arg0: i32, %arg1: i32, %arg2: memref<128x256xbf16, #tpu.memory_space<vmem>>, %arg3: memref<256x128xbf16, #tpu.memory_space<vmem>>, %arg4: memref<1x128xf32, #tpu.memory_space<vmem>>, %arg5: memref<128x128xf32, #tpu.memory_space<vmem>>, %arg6: memref<1x128xf32, #tpu.memory_space<vmem>>, %arg7: memref<1x128xf32, #tpu.memory_space<vmem>>, %arg8: memref<128x128xf32, #tpu.memory_space<vmem>>, %arg9: memref<128x128xf32, #tpu.memory_space<vmem>>) attributes {dimension_semantics = [#tpu.dimension_semantics<parallel>, #tpu.dimension_semantics<arbitrary>], iteration_bounds = array<i64: 2, 2>, scalar_prefetch = 0 : i64, scratch_operands = 1 : i64, tpu.core_type = #tpu.core_type<tc>, window_params = [{transform_indices = @transform_0, window_bounds = array<i64: 128, 256>}, {transform_indices = @transform_1, window_bounds = array<i64: 256, 128>}, {pipeline_mode = #tpu.pipeline_mode<synchronous>, transform_indices = @transform_2, window_bounds = array<i64: 1, 128>}, {transform_indices = @transform_3, window_bounds = array<i64: 128, 128>}, {pipeline_mode = #tpu.pipeline_mode<synchronous>, transform_indices = @transform_4, window_bounds = array<i64: 1, 128>}, {pipeline_mode = #tpu.pipeline_mode<synchronous>, transform_indices = @transform_5, window_bounds = array<i64: 1, 128>}, {transform_indices = @transform_6, window_bounds = array<i64: 128, 128>}]} {
    %c0_i32 = arith.constant 0 : i32
    %0 = arith.cmpi eq, %arg1, %c0_i32 : i32
    %1 = arith.extui %0 : i1 to i32
    %c0_i32_0 = arith.constant 0 : i32
    %2 = arith.cmpi ne, %1, %c0_i32_0 : i32
    scf.if %2 {
      %cst_9 = arith.constant 0.000000e+00 : f32
      %12 = vector.broadcast %cst_9 : f32 to vector<128x128xf32>
      %c0_10 = arith.constant 0 : index
      %c0_11 = arith.constant 0 : index
      %13 = vector.load %arg9[%c0_10, %c0_11] : memref<128x128xf32, #tpu.memory_space<vmem>>, vector<128x128xf32>
      tpu.vector_store %arg9[%c0_10, %c0_11], %12 {strides = array<i32>} : memref<128x128xf32, #tpu.memory_space<vmem>>, vector<128x128xf32>,
    } else {
    }
    %c0 = arith.constant 0 : index
    %c0_1 = arith.constant 0 : index
    %3 = vector.load %arg9[%c0, %c0_1] : memref<128x128xf32, #tpu.memory_space<vmem>>, vector<128x128xf32>
    %c0_2 = arith.constant 0 : index
    %c0_3 = arith.constant 0 : index
    %4 = vector.load %arg2[%c0_2, %c0_3] : memref<128x256xbf16, #tpu.memory_space<vmem>>, vector<128x256xbf16>
    %c0_4 = arith.constant 0 : index
    %c0_5 = arith.constant 0 : index
    %5 = vector.load %arg3[%c0_4, %c0_5] : memref<256x128xbf16, #tpu.memory_space<vmem>>, vector<256x128xbf16>
    %cst = arith.constant dense<0.000000e+00> : vector<128x128xf32>
    %6 = tpu.matmul %4, %5, %cst {dimension_numbers = #tpu.dot_dimension_numbers<[1], [0], [0], [1], [0, 0, 1, 1], [], []>} : vector<128x256xbf16>, vector<256x128xbf16>, vector<128x128xf32> -> vector<128x128xf32>
    %7 = arith.addf %3, %6 : vector<128x128xf32>
    %c0_6 = arith.constant 0 : index
    %c0_7 = arith.constant 0 : index
    %8 = vector.load %arg9[%c0_6, %c0_7] : memref<128x128xf32, #tpu.memory_space<vmem>>, vector<128x128xf32>
    tpu.vector_store %arg9[%c0_6, %c0_7], %7 {strides = array<i32>} : memref<128x128xf32, #tpu.memory_space<vmem>>, vector<128x128xf32>,
    %c1_i32 = arith.constant 1 : i32
    %9 = arith.cmpi eq, %arg1, %c1_i32 : i32
    %10 = arith.extui %9 : i1 to i32
    %c0_i32_8 = arith.constant 0 : i32
    %11 = arith.cmpi ne, %10, %c0_i32_8 : i32
    scf.if %11 {
      %c0_9 = arith.constant 0 : index
      %c0_10 = arith.constant 0 : index
      %12 = vector.load %arg9[%c0_9, %c0_10] : memref<128x128xf32, #tpu.memory_space<vmem>>, vector<128x128xf32>
      %c0_11 = arith.constant 0 : index
      %c0_12 = arith.constant 0 : index
      %13 = vector.load %arg5[%c0_11, %c0_12] : memref<128x128xf32, #tpu.memory_space<vmem>>, vector<128x128xf32>
      %c0_13 = arith.constant 0 : index
      %c0_14 = arith.constant 0 : index
      %14 = vector.load %arg4[%c0_13, %c0_14] : memref<1x128xf32, #tpu.memory_space<vmem>>, vector<1x128xf32>
      %c0_15 = arith.constant 0 : index
      %c0_16 = arith.constant 0 : index
      %15 = vector.load %arg6[%c0_15, %c0_16] : memref<1x128xf32, #tpu.memory_space<vmem>>, vector<1x128xf32>
      %c0_17 = arith.constant 0 : index
      %c0_18 = arith.constant 0 : index
      %16 = vector.load %arg7[%c0_17, %c0_18] : memref<1x128xf32, #tpu.memory_space<vmem>>, vector<1x128xf32>
      %17 = vector.broadcast %14 : vector<1x128xf32> to vector<128x128xf32>
      %18 = arith.addf %12, %17 : vector<128x128xf32>
      %19 = arith.addf %18, %13 : vector<128x128xf32>
      %cst_19 = arith.constant dense<0.000000e+00> : vector<128xf32>
      %20 = vector.multi_reduction <add>, %19, %cst_19 [1] : vector<128x128xf32> to vector<128xf32>
      %21 = vector.shape_cast %20 : vector<128xf32> to vector<128x1xf32>
      %cst_20 = arith.constant 1.280000e+02 : f32
      %22 = vector.broadcast %cst_20 : f32 to vector<128x1xf32>
      %23 = arith.divf %21, %22 : vector<128x1xf32>
      %24 = vector.broadcast %23 : vector<128x1xf32> to vector<128x128xf32>
      %25 = arith.subf %19, %24 : vector<128x128xf32>
      %26 = arith.mulf %25, %25 : vector<128x128xf32>
      %cst_21 = arith.constant dense<0.000000e+00> : vector<128xf32>
      %27 = vector.multi_reduction <add>, %26, %cst_21 [1] : vector<128x128xf32> to vector<128xf32>
      %28 = vector.shape_cast %27 : vector<128xf32> to vector<128x1xf32>
      %cst_22 = arith.constant 1.280000e+02 : f32
      %29 = vector.broadcast %cst_22 : f32 to vector<128x1xf32>
      %30 = arith.divf %28, %29 : vector<128x1xf32>
      %31 = vector.broadcast %23 : vector<128x1xf32> to vector<128x128xf32>
      %32 = arith.subf %19, %31 : vector<128x128xf32>
      %cst_23 = arith.constant 9.99999996E-13 : f32
      %33 = vector.broadcast %cst_23 : f32 to vector<128x1xf32>
      %34 = arith.addf %30, %33 : vector<128x1xf32>
      %35 = math.rsqrt %34 : vector<128x1xf32>
      %36 = vector.broadcast %35 : vector<128x1xf32> to vector<128x128xf32>
      %37 = arith.mulf %32, %36 : vector<128x128xf32>
      %38 = vector.broadcast %15 : vector<1x128xf32> to vector<128x128xf32>
      %39 = arith.mulf %37, %38 : vector<128x128xf32>
      %40 = vector.broadcast %16 : vector<1x128xf32> to vector<128x128xf32>
      %41 = arith.addf %39, %40 : vector<128x128xf32>
      %c0_24 = arith.constant 0 : index
      %c0_25 = arith.constant 0 : index
      %42 = vector.load %arg8[%c0_24, %c0_25] : memref<128x128xf32, #tpu.memory_space<vmem>>, vector<128x128xf32>
      tpu.vector_store %arg8[%c0_24, %c0_25], %41 {strides = array<i32>} : memref<128x128xf32, #tpu.memory_space<vmem>>, vector<128x128xf32>,
    } else {
    }
    return
  }
  func.func @transform_0(%arg0: i32, %arg1: i32) -> (i32, i32) {
    %c0_i32 = arith.constant 0 : i32
    return %arg0, %arg1 : i32, i32
  }
  func.func @transform_1(%arg0: i32, %arg1: i32) -> (i32, i32) {
    %c0_i32 = arith.constant 0 : i32
    %c0_i32_0 = arith.constant 0 : i32
    return %arg1, %c0_i32 : i32, i32
  }
  func.func @transform_2(%arg0: i32, %arg1: i32) -> (i32, i32) {
    %c0_i32 = arith.constant 0 : i32
    %c0_i32_0 = arith.constant 0 : i32
    %c0_i32_1 = arith.constant 0 : i32
    return %c0_i32, %c0_i32_0 : i32, i32
  }
  func.func @transform_3(%arg0: i32, %arg1: i32) -> (i32, i32) {
    %c0_i32 = arith.constant 0 : i32
    %c0_i32_0 = arith.constant 0 : i32
    return %arg0, %c0_i32 : i32, i32
  }
  func.func @transform_4(%arg0: i32, %arg1: i32) -> (i32, i32) {
    %c0_i32 = arith.constant 0 : i32
    %c0_i32_0 = arith.constant 0 : i32
    %c0_i32_1 = arith.constant 0 : i32
    return %c0_i32, %c0_i32_0 : i32, i32
  }
  func.func @transform_5(%arg0: i32, %arg1: i32) -> (i32, i32) {
    %c0_i32 = arith.constant 0 : i32
    %c0_i32_0 = arith.constant 0 : i32
    %c0_i32_1 = arith.constant 0 : i32
    return %c0_i32, %c0_i32_0 : i32, i32
  }
  func.func @transform_6(%arg0: i32, %arg1: i32) -> (i32, i32) {
    %c0_i32 = arith.constant 0 : i32
    %c0_i32_0 = arith.constant 0 : i32
    return %arg0, %c0_i32 : i32, i32
  }
}

</mosaic_0001>

<llo_original>
// kernel: _forward_impl.11
$region0: #{_forward_impl.11}
  #allocation0 [shape = 'u32[]', space=smem, size = 0x4, offset = 0x4, fixed_abs, tag = 'smem constant byte address 0x4 - core index']
  #allocation1 [shape = 'u32[72,128]{1,0:T(1,128)}', space=vmem, size = 0x9000, scoped, tag = 'internal scratch']
  %s0 = inlined_call_operand.vmem [shape: f32[256,128], index: 0, kind: input, shape index: {}]
  %s1 = inlined_call_operand.vmem [shape: f32[128,128], index: 1, kind: input, shape index: {}]
  %s2 = inlined_call_operand.vmem [shape: f32[256,128], index: 2, kind: input, shape index: {}]
  %s3 = inlined_call_operand.vmem [shape: f32[1,128], index: 3, kind: input, shape index: {}]
  %s4 = inlined_call_operand.vmem [shape: f32[1,128], index: 4, kind: input, shape index: {}]
  %s5 = inlined_call_operand.vmem [shape: f32[256,128], index: 5, kind: output, shape index: {}]
  %s6 = sld [smem:[#allocation0]]
  $region53: #{_forward_impl.11} parent=0
    _
  %s8 = ssub.s32 1, %s6
  %s9 = scalar_select 0, %s8, %s6
  loop: start=0, step=1, limit=4
  $region2: #{_forward_impl.11} parent=0 // loop_pre_header
    _
  $region3: #{_forward_impl.11} parent=0 // loop_header
    %s11 = sphi 0, %s15
    %p12 = scmp.ge.s32.totalorder %s11, 4
    %s21 = sphi 0, %s23
    %s24 = sphi 0, %s21
    %s25 = sphi 0, %s24
    %s41 = sphi 0, %s25
    %s45 = sphi 0, %s45
    %s47 = sphi 0, %s45
    %s48 = sphi 0, %s47
    %s62 = sphi 0, %s48
    %s68 = sphi 0, %s70
    %s71 = sphi 0, %s68
    %s72 = sphi 0, %s71
    %s88 = sphi 0, %s72
    %s92 = sphi 0, %s92
    %s94 = sphi 0, %s92
    %s95 = sphi 0, %s94
    %s109 = sphi 0, %s95
    %s113 = sphi 0, %s113
    %s115 = sphi 0, %s113
    %s116 = sphi 0, %s115
    %s130 = sphi 0, %s116
    %s136 = sphi 0, %s138
    %s139 = sphi 0, %s136
    %s140 = sphi 0, %s139
    %s156 = sphi 0, %s140
  $region4: #{_forward_impl.11} parent=0 // loop_header_branch
    %14 = sbr.rel (%p12) target = $region8
  $region5: #{_forward_impl.11} parent=0 // loop_body
    %s16 = ssub.s32 %s11, 1
    %s17 = ssub.s32 %s11, 2
    %s18 = sadd.s32 %s11, 1
    %s19 = ssub.s32 %s11, %s18
    %p20 = scmp.eq.s32.totalorder %s19, 0
    %s22 = sadd.s32 %s21, 1
    %s23 = scalar_select %p20, %s21, %s22
    %p26 = pneg %p20
    %p27 = scmp.eq.s32.totalorder %s11, 1
    %p28 = por %p26, %p27
    %p29 = scmp.ne.s32.totalorder %s21, %s24
    %p30 = scmp.eq.s32.totalorder %s11, 0
    %p31 = por %p29, %p30
    %p32 = scmp.ne.s32.totalorder %s21, %s24
    %p33 = scmp.eq.s32.totalorder %s16, 1
    %p34 = por %p32, %p33
    %p35 = scmp.ne.s32.totalorder %s24, %s25
    %p36 = scmp.eq.s32.totalorder %s16, 0
    %p37 = por %p35, %p36
    %p38 = scmp.ne.s32.totalorder %s24, %s25
    %p39 = scmp.eq.s32.totalorder %s17, 1
    %p40 = por %p38, %p39
    %p42 = scmp.ne.s32.totalorder %s25, %s41
    %p43 = scmp.eq.s32.totalorder %s17, 0
    %p44 = por %p42, %p43
    %s46 = sadd.s32 %s45, 1
    %p49 = scmp.eq.s32.totalorder %s11, 1
    %p50 = scmp.ne.s32.totalorder %s45, %s47
    %p51 = scmp.eq.s32.totalorder %s11, 0
    %p52 = por %p50, %p51
    %p53 = scmp.ne.s32.totalorder %s45, %s47
    %p54 = scmp.eq.s32.totalorder %s16, 1
    %p55 = por %p53, %p54
    %p56 = scmp.ne.s32.totalorder %s47, %s48
    %p57 = scmp.eq.s32.totalorder %s16, 0
    %p58 = por %p56, %p57
    %p59 = scmp.ne.s32.totalorder %s47, %s48
    %p60 = scmp.eq.s32.totalorder %s17, 1
    %p61 = por %p59, %p60
    %p63 = scmp.ne.s32.totalorder %s48, %s62
    %p64 = scmp.eq.s32.totalorder %s17, 0
    %p65 = por %p63, %p64
    %s66 = ssub.s32 %s11, %s18
    %p67 = scmp.eq.s32.totalorder %s66, 0
    %s69 = sadd.s32 %s68, 1
    %s70 = scalar_select %p67, %s68, %s69
    %p73 = pneg %p67
    %p74 = scmp.eq.s32.totalorder %s11, 1
    %p75 = por %p73, %p74
    %p76 = scmp.ne.s32.totalorder %s68, %s71
    %p77 = scmp.eq.s32.totalorder %s11, 0
    %p78 = por %p76, %p77
    %p79 = scmp.ne.s32.totalorder %s68, %s71
    %p80 = scmp.eq.s32.totalorder %s16, 1
    %p81 = por %p79, %p80
    %p82 = scmp.ne.s32.totalorder %s71, %s72
    %p83 = scmp.eq.s32.totalorder %s16, 0
    %p84 = por %p82, %p83
    %p85 = scmp.ne.s32.totalorder %s71, %s72
    %p86 = scmp.eq.s32.totalorder %s17, 1
    %p87 = por %p85, %p86
    %p89 = scmp.ne.s32.totalorder %s72, %s88
    %p90 = scmp.eq.s32.totalorder %s17, 0
    %p91 = por %p89, %p90
    %s93 = sadd.s32 %s92, 1
    %p96 = scmp.eq.s32.totalorder %s11, 1
    %p97 = scmp.ne.s32.totalorder %s92, %s94
    %p98 = scmp.eq.s32.totalorder %s11, 0
    %p99 = por %p97, %p98
    %p100 = scmp.ne.s32.totalorder %s92, %s94
    %p101 = scmp.eq.s32.totalorder %s16, 1
    %p102 = por %p100, %p101
    %p103 = scmp.ne.s32.totalorder %s94, %s95
    %p104 = scmp.eq.s32.totalorder %s16, 0
    %p105 = por %p103, %p104
    %p106 = scmp.ne.s32.totalorder %s94, %s95
    %p107 = scmp.eq.s32.totalorder %s17, 1
    %p108 = por %p106, %p107
    %p110 = scmp.ne.s32.totalorder %s95, %s109
    %p111 = scmp.eq.s32.totalorder %s17, 0
    %p112 = por %p110, %p111
    %s114 = sadd.s32 %s113, 1
    %p117 = scmp.eq.s32.totalorder %s11, 1
    %p118 = scmp.ne.s32.totalorder %s113, %s115
    %p119 = scmp.eq.s32.totalorder %s11, 0
    %p120 = por %p118, %p119
    %p121 = scmp.ne.s32.totalorder %s113, %s115
    %p122 = scmp.eq.s32.totalorder %s16, 1
    %p123 = por %p121, %p122
    %p124 = scmp.ne.s32.totalorder %s115, %s116
    %p125 = scmp.eq.s32.totalorder %s16, 0
    %p126 = por %p124, %p125
    %p127 = scmp.ne.s32.totalorder %s115, %s116
    %p128 = scmp.eq.s32.totalorder %s17, 1
    %p129 = por %p127, %p128
    %p131 = scmp.ne.s32.totalorder %s116, %s130
    %p132 = scmp.eq.s32.totalorder %s17, 0
    %p133 = por %p131, %p132
    %s134 = ssub.s32 %s11, %s18
    %p135 = scmp.eq.s32.totalorder %s134, 0
    %s137 = sadd.s32 %s136, 1
    %s138 = scalar_select %p135, %s136, %s137
    %p141 = pneg %p135
    %p142 = scmp.eq.s32.totalorder %s11, 1
    %p143 = por %p141, %p142
    %p144 = scmp.ne.s32.totalorder %s136, %s139
    %p145 = scmp.eq.s32.totalorder %s11, 0
    %p146 = por %p144, %p145
    %p147 = scmp.ne.s32.totalorder %s136, %s139
    %p148 = scmp.eq.s32.totalorder %s16, 1
    %p149 = por %p147, %p148
    %p150 = scmp.ne.s32.totalorder %s139, %s140
    %p151 = scmp.eq.s32.totalorder %s16, 0
    %p152 = por %p150, %p151
    %p153 = scmp.ne.s32.totalorder %s139, %s140
    %p154 = scmp.eq.s32.totalorder %s17, 1
    %p155 = por %p153, %p154
    %p157 = scmp.ne.s32.totalorder %s140, %s156
    %p158 = scmp.eq.s32.totalorder %s17, 0
    %p159 = por %p157, %p158
    %p160 = scmp.le.s32.totalorder 1, %s11
    %p161 = scmp.lt.s32.totalorder %s11, 3
    %p162 = pnand %p160, %p161
    %p163 = pneg %p162
    // Predicated region
    $region9: #{_forward_impl.11} parent=5 // pred_check
      _
    $region10: #{_forward_impl.11} parent=5 // pred_check_branch
      %165 = sbr.rel (%p162) target = $region12
    $region11: #{_forward_impl.11} parent=5 // pred_region
      %s166 = ssub.s32 %s11, 1
      // Predicated region
      $region13: #{_forward_impl.11} parent=11 // pred_check
        %p167 = pneg %p58
      $region14: #{_forward_impl.11} parent=11 // pred_check_branch
        %169 = sbr.rel (%p167) target = $region16
      $region15: #{_forward_impl.11} parent=11 // pred_region
        _
      $region16: #{_forward_impl.11} parent=11 // pred_fallthru
        _
      // Predicated region
      $region17: #{_forward_impl.11} parent=11 // pred_check
        %p170 = pneg %p105
      $region18: #{_forward_impl.11} parent=11 // pred_check_branch
        %172 = sbr.rel (%p170) target = $region20
      $region19: #{_forward_impl.11} parent=11 // pred_region
        _
      $region20: #{_forward_impl.11} parent=11 // pred_fallthru
        _
      // Predicated region
      $region21: #{_forward_impl.11} parent=11 // pred_check
        %p173 = pneg %p126
      $region22: #{_forward_impl.11} parent=11 // pred_check_branch
        %175 = sbr.rel (%p173) target = $region24
      $region23: #{_forward_impl.11} parent=11 // pred_region
        _
      $region24: #{_forward_impl.11} parent=11 // pred_fallthru
        _
    $region12: #{_forward_impl.11} parent=5 // pred_fallthru
      _
    %p176 = scmp.lt.s32.totalorder %s11, 2
    // Predicated region
    $region25: #{_forward_impl.11} parent=5 // pred_check
      %p177 = pneg %p176
    $region26: #{_forward_impl.11} parent=5 // pred_check_branch
      %179 = sbr.rel (%p177) target = $region28
    $region27: #{_forward_impl.11} parent=5 // pred_region
      // Predicated region
      $region29: #{_forward_impl.11} parent=27 // pred_check
        %p180 = pneg %p31
      $region30: #{_forward_impl.11} parent=27 // pred_check_branch
        %182 = sbr.rel (%p180) target = $region32
      $region31: #{_forward_impl.11} parent=27 // pred_region
        %s183 = smul.u32 16, %s11
        %p184 = scmp.lt.s32.totalorder %s183, 31
        %s185 = scalar_select %p184, %s183, 31
        %s186 = smul.addr %s185, 8
        %s187 = scalar_lea.vmem %s0, %s186
        %s188 = smul.u32 16, %s11
      $region32: #{_forward_impl.11} parent=27 // pred_fallthru
        _
      // Predicated region
      $region33: #{_forward_impl.11} parent=27 // pred_check
        %p189 = pneg %p78
      $region34: #{_forward_impl.11} parent=27 // pred_check_branch
        %191 = sbr.rel (%p189) target = $region36
      $region35: #{_forward_impl.11} parent=27 // pred_region
        %s192 = smul.u32 16, %s11
        %p193 = scmp.lt.s32.totalorder %s192, 31
        %s194 = scalar_select %p193, %s192, 31
        %s195 = smul.addr %s194, 8
        %s196 = scalar_lea.vmem %s2, %s195
        %s197 = smul.u32 16, %s11
      $region36: #{_forward_impl.11} parent=27 // pred_fallthru
        _
    $region28: #{_forward_impl.11} parent=5 // pred_fallthru
      _
    %p198 = scmp.le.s32.totalorder 1, %s11
    %p199 = scmp.lt.s32.totalorder %s11, 3
    %p200 = pnand %p198, %p199
    %p201 = pneg %p200
    // Predicated region
    $region37: #{_forward_impl.11} parent=5 // pred_check
      _
    $region38: #{_forward_impl.11} parent=5 // pred_check_branch
      %203 = sbr.rel (%p200) target = $region40
    $region39: #{_forward_impl.11} parent=5 // pred_region
      %s204 = ssub.s32 %s11, 1
      %s205 = smul.u32 16, %s16
      %p206 = scmp.lt.s32.totalorder %s205, 31
      %s207 = scalar_select %p206, %s205, 31
      %s208 = smul.addr %s207, 8
      %s209 = scalar_lea.vmem %s0, %s208
      %p210 = pneg %p37
      %p211 = pneg %p34
      %p212 = pneg %p58
      %p213 = pneg %p55
      %s214 = smul.u32 16, %s16
      %p215 = scmp.lt.s32.totalorder %s214, 31
      %s216 = scalar_select %p215, %s214, 31
      %s217 = smul.addr %s216, 8
      %s218 = scalar_lea.vmem %s2, %s217
      %p219 = pneg %p84
      %p220 = pneg %p81
      %p221 = pneg %p105
      %p222 = pneg %p102
      %p223 = pneg %p126
      %p224 = pneg %p123
      %p225 = pneg %p152
      %p226 = pneg %p149
      %s227 = smul.u32 16, %s16
      %p228 = scmp.lt.s32.totalorder %s227, 31
      %s229 = scalar_select %p228, %s227, 31
      %s230 = smul.addr %s229, 8
      %s231 = scalar_lea.vmem %s5, %s230
      %s232 = smul.u32 16, %s16
      %p233 = scmp.lt.s32.totalorder %s232, 31
      %s234 = scalar_select %p233, %s232, 31
      %s235 = smul.addr %s234, 8
      %s236 = scalar_lea.vmem %s0, %s235
      %s237 = smul.u32 16, %s16
      %s238 = smul.u32 16, %s16
      %p239 = scmp.lt.s32.totalorder %s238, 31
      %s240 = scalar_select %p239, %s238, 31
      %s241 = smul.addr %s240, 8
      %s242 = scalar_lea.vmem %s2, %s241
      %s243 = smul.u32 16, %s16
      %s244 = smul.u32 16, %s16
      %p245 = scmp.lt.s32.totalorder %s244, 31
      %s246 = scalar_select %p245, %s244, 31
      %s247 = smul.addr %s246, 8
      %s248 = scalar_lea.vmem %s5, %s247
      %s249 = smul.u32 16, %s16
      %v250 = vld [vmem:[%s236] sm:$0xff]
      %v251 = vld [vmem:[%s236 + $0x8] sm:$0xff]
      %v252 = vld [vmem:[%s236 + $0x10] sm:$0xff]
      %v253 = vld [vmem:[%s236 + $0x18] sm:$0xff]
      %v254 = vld [vmem:[%s236 + $0x20] sm:$0xff]
      %v255 = vld [vmem:[%s236 + $0x28] sm:$0xff]
      %v256 = vld [vmem:[%s236 + $0x30] sm:$0xff]
      %v257 = vld [vmem:[%s236 + $0x38] sm:$0xff]
      %v258 = vld [vmem:[%s236 + $0x40] sm:$0xff]
      %v259 = vld [vmem:[%s236 + $0x48] sm:$0xff]
      %v260 = vld [vmem:[%s236 + $0x50] sm:$0xff]
      %v261 = vld [vmem:[%s236 + $0x58] sm:$0xff]
      %v262 = vld [vmem:[%s236 + $0x60] sm:$0xff]
      %v263 = vld [vmem:[%s236 + $0x68] sm:$0xff]
      %v264 = vld [vmem:[%s236 + $0x70] sm:$0xff]
      %v265 = vld [vmem:[%s236 + $0x78] sm:$0xff]
      %v266 = vld [vmem:[%s1] sm:$0xff]
      %v267 = vld [vmem:[%s1 + $0x8] sm:$0xff]
      %v268 = vld [vmem:[%s1 + $0x10] sm:$0xff]
      %v269 = vld [vmem:[%s1 + $0x18] sm:$0xff]
      %v270 = vld [vmem:[%s1 + $0x20] sm:$0xff]
      %v271 = vld [vmem:[%s1 + $0x28] sm:$0xff]
      %v272 = vld [vmem:[%s1 + $0x30] sm:$0xff]
      %v273 = vld [vmem:[%s1 + $0x38] sm:$0xff]
      %v274 = vld [vmem:[%s1 + $0x40] sm:$0xff]
      %v275 = vld [vmem:[%s1 + $0x48] sm:$0xff]
      %v276 = vld [vmem:[%s1 + $0x50] sm:$0xff]
      %v277 = vld [vmem:[%s1 + $0x58] sm:$0xff]
      %v278 = vld [vmem:[%s1 + $0x60] sm:$0xff]
      %v279 = vld [vmem:[%s1 + $0x68] sm:$0xff]
      %v280 = vld [vmem:[%s1 + $0x70] sm:$0xff]
      %v281 = vld [vmem:[%s1 + $0x78] sm:$0xff]
      %v282 = vadd.f32 %v250, %v266
      %v283 = vadd.f32 %v251, %v267
      %v284 = vadd.f32 %v252, %v268
      %v285 = vadd.f32 %v253, %v269
      %v286 = vadd.f32 %v254, %v270
      %v287 = vadd.f32 %v255, %v271
      %v288 = vadd.f32 %v256, %v272
      %v289 = vadd.f32 %v257, %v273
      %v290 = vadd.f32 %v258, %v274
      %v291 = vadd.f32 %v259, %v275
      %v292 = vadd.f32 %v260, %v276
      %v293 = vadd.f32 %v261, %v277
      %v294 = vadd.f32 %v262, %v278
      %v295 = vadd.f32 %v263, %v279
      %v296 = vadd.f32 %v264, %v280
      %v297 = vadd.f32 %v265, %v281
      %v298 = vld [vmem:[%s242] sm:$0xff]
      %v299 = vld [vmem:[%s242 + $0x8] sm:$0xff]
      %v300 = vld [vmem:[%s242 + $0x10] sm:$0xff]
      %v301 = vld [vmem:[%s242 + $0x18] sm:$0xff]
      %v302 = vld [vmem:[%s242 + $0x20] sm:$0xff]
      %v303 = vld [vmem:[%s242 + $0x28] sm:$0xff]
      %v304 = vld [vmem:[%s242 + $0x30] sm:$0xff]
      %v305 = vld [vmem:[%s242 + $0x38] sm:$0xff]
      %v306 = vld [vmem:[%s242 + $0x40] sm:$0xff]
      %v307 = vld [vmem:[%s242 + $0x48] sm:$0xff]
      %v308 = vld [vmem:[%s242 + $0x50] sm:$0xff]
      %v309 = vld [vmem:[%s242 + $0x58] sm:$0xff]
      %v310 = vld [vmem:[%s242 + $0x60] sm:$0xff]
      %v311 = vld [vmem:[%s242 + $0x68] sm:$0xff]
      %v312 = vld [vmem:[%s242 + $0x70] sm:$0xff]
      %v313 = vld [vmem:[%s242 + $0x78] sm:$0xff]
      %v314 = vadd.f32 %v282, %v298
      %v315 = vadd.f32 %v283, %v299
      %v316 = vadd.f32 %v284, %v300
      %v317 = vadd.f32 %v285, %v301
      %v318 = vadd.f32 %v286, %v302
      %v319 = vadd.f32 %v287, %v303
      %v320 = vadd.f32 %v288, %v304
      %v321 = vadd.f32 %v289, %v305
      %v322 = vadd.f32 %v290, %v306
      %v323 = vadd.f32 %v291, %v307
      %v324 = vadd.f32 %v292, %v308
      %v325 = vadd.f32 %v293, %v309
      %v326 = vadd.f32 %v294, %v310
      %v327 = vadd.f32 %v295, %v311
      %v328 = vadd.f32 %v296, %v312
      %v329 = vadd.f32 %v297, %v313
      %330 = vadd.xlane.f32.xlu0 %v314
      %v331 = vpop.xlane.xlu0 %330
      %332 = vadd.xlane.f32.xlu0 %v315
      %v333 = vpop.xlane.xlu0 %332
      %334 = vadd.xlane.f32.xlu0 %v316
      %v335 = vpop.xlane.xlu0 %334
      %336 = vadd.xlane.f32.xlu0 %v317
      %v337 = vpop.xlane.xlu0 %336
      %338 = vadd.xlane.f32.xlu0 %v318
      %v339 = vpop.xlane.xlu0 %338
      %340 = vadd.xlane.f32.xlu0 %v319
      %v341 = vpop.xlane.xlu0 %340
      %342 = vadd.xlane.f32.xlu0 %v320
      %v343 = vpop.xlane.xlu0 %342
      %344 = vadd.xlane.f32.xlu0 %v321
      %v345 = vpop.xlane.xlu0 %344
      %346 = vadd.xlane.f32.xlu0 %v322
      %v347 = vpop.xlane.xlu0 %346
      %348 = vadd.xlane.f32.xlu0 %v323
      %v349 = vpop.xlane.xlu0 %348
      %350 = vadd.xlane.f32.xlu0 %v324
      %v351 = vpop.xlane.xlu0 %350
      %352 = vadd.xlane.f32.xlu0 %v325
      %v353 = vpop.xlane.xlu0 %352
      %354 = vadd.xlane.f32.xlu0 %v326
      %v355 = vpop.xlane.xlu0 %354
      %356 = vadd.xlane.f32.xlu0 %v327
      %v357 = vpop.xlane.xlu0 %356
      %358 = vadd.xlane.f32.xlu0 %v328
      %v359 = vpop.xlane.xlu0 %358
      %360 = vadd.xlane.f32.xlu0 %v329
      %v361 = vpop.xlane.xlu0 %360
      %v362 = vrcp.pop 128.0
      %v363 = vmul.f32 128.0, %v362
      %v364 = vsub.f32 1.0, %v363
      %v365 = vmul.f32 %v362, %v364
      %v366 = vadd.f32 %v362, %v365
      %vm367 = vweird.f32 %v362
      %v368 = vsel %vm367, %v362, %v366
      %v369 = vmul.f32 %v331, %v368
      %v370 = vmul.f32 %v333, %v368
      %v371 = vmul.f32 %v335, %v368
      %v372 = vmul.f32 %v337, %v368
      %v373 = vmul.f32 %v339, %v368
      %v374 = vmul.f32 %v341, %v368
      %v375 = vmul.f32 %v343, %v368
      %v376 = vmul.f32 %v345, %v368
      %v377 = vmul.f32 %v347, %v368
      %v378 = vmul.f32 %v349, %v368
      %v379 = vmul.f32 %v351, %v368
      %v380 = vmul.f32 %v353, %v368
      %v381 = vmul.f32 %v355, %v368
      %v382 = vmul.f32 %v357, %v368
      %v383 = vmul.f32 %v359, %v368
      %v384 = vmul.f32 %v361, %v368
      %v385 = vsub.f32 %v314, %v369
      %v386 = vsub.f32 %v315, %v370
      %v387 = vsub.f32 %v316, %v371
      %v388 = vsub.f32 %v317, %v372
      %v389 = vsub.f32 %v318, %v373
      %v390 = vsub.f32 %v319, %v374
      %v391 = vsub.f32 %v320, %v375
      %v392 = vsub.f32 %v321, %v376
      %v393 = vsub.f32 %v322, %v377
      %v394 = vsub.f32 %v323, %v378
      %v395 = vsub.f32 %v324, %v379
      %v396 = vsub.f32 %v325, %v380
      %v397 = vsub.f32 %v326, %v381
      %v398 = vsub.f32 %v327, %v382
      %v399 = vsub.f32 %v328, %v383
      %v400 = vsub.f32 %v329, %v384
      %v401 = vmul.f32 %v385, %v385
      %v402 = vmul.f32 %v386, %v386
      %v403 = vmul.f32 %v387, %v387
      %v404 = vmul.f32 %v388, %v388
      %v405 = vmul.f32 %v389, %v389
      %v406 = vmul.f32 %v390, %v390
      %v407 = vmul.f32 %v391, %v391
      %v408 = vmul.f32 %v392, %v392
      %v409 = vmul.f32 %v393, %v393
      %v410 = vmul.f32 %v394, %v394
      %v411 = vmul.f32 %v395, %v395
      %v412 = vmul.f32 %v396, %v396
      %v413 = vmul.f32 %v397, %v397
      %v414 = vmul.f32 %v398, %v398
      %v415 = vmul.f32 %v399, %v399
      %v416 = vmul.f32 %v400, %v400
      %417 = vadd.xlane.f32.xlu0 %v401
      %v418 = vpop.xlane.xlu0 %417
      %419 = vadd.xlane.f32.xlu0 %v402
      %v420 = vpop.xlane.xlu0 %419
      %421 = vadd.xlane.f32.xlu0 %v403
      %v422 = vpop.xlane.xlu0 %421
      %423 = vadd.xlane.f32.xlu0 %v404
      %v424 = vpop.xlane.xlu0 %423
      %425 = vadd.xlane.f32.xlu0 %v405
      %v426 = vpop.xlane.xlu0 %425
      %427 = vadd.xlane.f32.xlu0 %v406
      %v428 = vpop.xlane.xlu0 %427
      %429 = vadd.xlane.f32.xlu0 %v407
      %v430 = vpop.xlane.xlu0 %429
      %431 = vadd.xlane.f32.xlu0 %v408
      %v432 = vpop.xlane.xlu0 %431
      %433 = vadd.xlane.f32.xlu0 %v409
      %v434 = vpop.xlane.xlu0 %433
      %435 = vadd.xlane.f32.xlu0 %v410
      %v436 = vpop.xlane.xlu0 %435
      %437 = vadd.xlane.f32.xlu0 %v411
      %v438 = vpop.xlane.xlu0 %437
      %439 = vadd.xlane.f32.xlu0 %v412
      %v440 = vpop.xlane.xlu0 %439
      %441 = vadd.xlane.f32.xlu0 %v413
      %v442 = vpop.xlane.xlu0 %441
      %443 = vadd.xlane.f32.xlu0 %v414
      %v444 = vpop.xlane.xlu0 %443
      %445 = vadd.xlane.f32.xlu0 %v415
      %v446 = vpop.xlane.xlu0 %445
      %447 = vadd.xlane.f32.xlu0 %v416
      %v448 = vpop.xlane.xlu0 %447
      %v449 = vmul.f32 %v418, %v368
      %v450 = vmul.f32 %v420, %v368
      %v451 = vmul.f32 %v422, %v368
      %v452 = vmul.f32 %v424, %v368
      %v453 = vmul.f32 %v426, %v368
      %v454 = vmul.f32 %v428, %v368
      %v455 = vmul.f32 %v430, %v368
      %v456 = vmul.f32 %v432, %v368
      %v457 = vmul.f32 %v434, %v368
      %v458 = vmul.f32 %v436, %v368
      %v459 = vmul.f32 %v438, %v368
      %v460 = vmul.f32 %v440, %v368
      %v461 = vmul.f32 %v442, %v368
      %v462 = vmul.f32 %v444, %v368
      %v463 = vmul.f32 %v446, %v368
      %v464 = vmul.f32 %v448, %v368
      %v465 = vadd.f32 %v449, 1e-12
      %v466 = vadd.f32 %v450, 1e-12
      %v467 = vadd.f32 %v451, 1e-12
      %v468 = vadd.f32 %v452, 1e-12
      %v469 = vadd.f32 %v453, 1e-12
      %v470 = vadd.f32 %v454, 1e-12
      %v471 = vadd.f32 %v455, 1e-12
      %v472 = vadd.f32 %v456, 1e-12
      %v473 = vadd.f32 %v457, 1e-12
      %v474 = vadd.f32 %v458, 1e-12
      %v475 = vadd.f32 %v459, 1e-12
      %v476 = vadd.f32 %v460, 1e-12
      %v477 = vadd.f32 %v461, 1e-12
      %v478 = vadd.f32 %v462, 1e-12
      %v479 = vadd.f32 %v463, 1e-12
      %v480 = vadd.f32 %v464, 1e-12
      %v481 = vrsqrt.pop %v465
      %v482 = vmul.f32 %v481, %v465
      %v483 = vmul.f32 %v482, %v481
      %v484 = vmul.f32 0.5, %v483
      %v485 = vsub.f32 1.5, %v484
      %v486 = vmul.f32 %v481, %v485
      %vm487 = vweird.f32 %v465
      %vm488 = vweird.f32 %v481
      %vm489 = vmor %vm487, %vm488
      %v490 = vsel %vm489, %v481, %v486
      %v491 = vrsqrt.pop %v466
      %v492 = vmul.f32 %v491, %v466
      %v493 = vmul.f32 %v492, %v491
      %v494 = vmul.f32 0.5, %v493
      %v495 = vsub.f32 1.5, %v494
      %v496 = vmul.f32 %v491, %v495
      %vm497 = vweird.f32 %v466
      %vm498 = vweird.f32 %v491
      %vm499 = vmor %vm497, %vm498
      %v500 = vsel %vm499, %v491, %v496
      %v501 = vrsqrt.pop %v467
      %v502 = vmul.f32 %v501, %v467
      %v503 = vmul.f32 %v502, %v501
      %v504 = vmul.f32 0.5, %v503
      %v505 = vsub.f32 1.5, %v504
      %v506 = vmul.f32 %v501, %v505
      %vm507 = vweird.f32 %v467
      %vm508 = vweird.f32 %v501
      %vm509 = vmor %vm507, %vm508
      %v510 = vsel %vm509, %v501, %v506
      %v511 = vrsqrt.pop %v468
      %v512 = vmul.f32 %v511, %v468
      %v513 = vmul.f32 %v512, %v511
      %v514 = vmul.f32 0.5, %v513
      %v515 = vsub.f32 1.5, %v514
      %v516 = vmul.f32 %v511, %v515
      %vm517 = vweird.f32 %v468
      %vm518 = vweird.f32 %v511
      %vm519 = vmor %vm517, %vm518
      %v520 = vsel %vm519, %v511, %v516
      %v521 = vrsqrt.pop %v469
      %v522 = vmul.f32 %v521, %v469
      %v523 = vmul.f32 %v522, %v521
      %v524 = vmul.f32 0.5, %v523
      %v525 = vsub.f32 1.5, %v524
      %v526 = vmul.f32 %v521, %v525
      %vm527 = vweird.f32 %v469
      %vm528 = vweird.f32 %v521
      %vm529 = vmor %vm527, %vm528
      %v530 = vsel %vm529, %v521, %v526
      %v531 = vrsqrt.pop %v470
      %v532 = vmul.f32 %v531, %v470
      %v533 = vmul.f32 %v532, %v531
      %v534 = vmul.f32 0.5, %v533
      %v535 = vsub.f32 1.5, %v534
      %v536 = vmul.f32 %v531, %v535
      %vm537 = vweird.f32 %v470
      %vm538 = vweird.f32 %v531
      %vm539 = vmor %vm537, %vm538
      %v540 = vsel %vm539, %v531, %v536
      %v541 = vrsqrt.pop %v471
      %v542 = vmul.f32 %v541, %v471
      %v543 = vmul.f32 %v542, %v541
      %v544 = vmul.f32 0.5, %v543
      %v545 = vsub.f32 1.5, %v544
      %v546 = vmul.f32 %v541, %v545
      %vm547 = vweird.f32 %v471
      %vm548 = vweird.f32 %v541
      %vm549 = vmor %vm547, %vm548
      %v550 = vsel %vm549, %v541, %v546
      %v551 = vrsqrt.pop %v472
      %v552 = vmul.f32 %v551, %v472
      %v553 = vmul.f32 %v552, %v551
      %v554 = vmul.f32 0.5, %v553
      %v555 = vsub.f32 1.5, %v554
      %v556 = vmul.f32 %v551, %v555
      %vm557 = vweird.f32 %v472
      %vm558 = vweird.f32 %v551
      %vm559 = vmor %vm557, %vm558
      %v560 = vsel %vm559, %v551, %v556
      %v561 = vrsqrt.pop %v473
      %v562 = vmul.f32 %v561, %v473
      %v563 = vmul.f32 %v562, %v561
      %v564 = vmul.f32 0.5, %v563
      %v565 = vsub.f32 1.5, %v564
      %v566 = vmul.f32 %v561, %v565
      %vm567 = vweird.f32 %v473
      %vm568 = vweird.f32 %v561
      %vm569 = vmor %vm567, %vm568
      %v570 = vsel %vm569, %v561, %v566
      %v571 = vrsqrt.pop %v474
      %v572 = vmul.f32 %v571, %v474
      %v573 = vmul.f32 %v572, %v571
      %v574 = vmul.f32 0.5, %v573
      %v575 = vsub.f32 1.5, %v574
      %v576 = vmul.f32 %v571, %v575
      %vm577 = vweird.f32 %v474
      %vm578 = vweird.f32 %v571
      %vm579 = vmor %vm577, %vm578
      %v580 = vsel %vm579, %v571, %v576
      %v581 = vrsqrt.pop %v475
      %v582 = vmul.f32 %v581, %v475
      %v583 = vmul.f32 %v582, %v581
      %v584 = vmul.f32 0.5, %v583
      %v585 = vsub.f32 1.5, %v584
      %v586 = vmul.f32 %v581, %v585
      %vm587 = vweird.f32 %v475
      %vm588 = vweird.f32 %v581
      %vm589 = vmor %vm587, %vm588
      %v590 = vsel %vm589, %v581, %v586
      %v591 = vrsqrt.pop %v476
      %v592 = vmul.f32 %v591, %v476
      %v593 = vmul.f32 %v592, %v591
      %v594 = vmul.f32 0.5, %v593
      %v595 = vsub.f32 1.5, %v594
      %v596 = vmul.f32 %v591, %v595
      %vm597 = vweird.f32 %v476
      %vm598 = vweird.f32 %v591
      %vm599 = vmor %vm597, %vm598
      %v600 = vsel %vm599, %v591, %v596
      %v601 = vrsqrt.pop %v477
      %v602 = vmul.f32 %v601, %v477
      %v603 = vmul.f32 %v602, %v601
      %v604 = vmul.f32 0.5, %v603
      %v605 = vsub.f32 1.5, %v604
      %v606 = vmul.f32 %v601, %v605
      %vm607 = vweird.f32 %v477
      %vm608 = vweird.f32 %v601
      %vm609 = vmor %vm607, %vm608
      %v610 = vsel %vm609, %v601, %v606
      %v611 = vrsqrt.pop %v478
      %v612 = vmul.f32 %v611, %v478
      %v613 = vmul.f32 %v612, %v611
      %v614 = vmul.f32 0.5, %v613
      %v615 = vsub.f32 1.5, %v614
      %v616 = vmul.f32 %v611, %v615
      %vm617 = vweird.f32 %v478
      %vm618 = vweird.f32 %v611
      %vm619 = vmor %vm617, %vm618
      %v620 = vsel %vm619, %v611, %v616
      %v621 = vrsqrt.pop %v479
      %v622 = vmul.f32 %v621, %v479
      %v623 = vmul.f32 %v622, %v621
      %v624 = vmul.f32 0.5, %v623
      %v625 = vsub.f32 1.5, %v624
      %v626 = vmul.f32 %v621, %v625
      %vm627 = vweird.f32 %v479
      %vm628 = vweird.f32 %v621
      %vm629 = vmor %vm627, %vm628
      %v630 = vsel %vm629, %v621, %v626
      %v631 = vrsqrt.pop %v480
      %v632 = vmul.f32 %v631, %v480
      %v633 = vmul.f32 %v632, %v631
      %v634 = vmul.f32 0.5, %v633
      %v635 = vsub.f32 1.5, %v634
      %v636 = vmul.f32 %v631, %v635
      %vm637 = vweird.f32 %v480
      %vm638 = vweird.f32 %v631
      %vm639 = vmor %vm637, %vm638
      %v640 = vsel %vm639, %v631, %v636
      %v641 = vmul.f32 %v385, %v490
      %v642 = vmul.f32 %v386, %v500
      %v643 = vmul.f32 %v387, %v510
      %v644 = vmul.f32 %v388, %v520
      %v645 = vmul.f32 %v389, %v530
      %v646 = vmul.f32 %v390, %v540
      %v647 = vmul.f32 %v391, %v550
      %v648 = vmul.f32 %v392, %v560
      %v649 = vmul.f32 %v393, %v570
      %v650 = vmul.f32 %v394, %v580
      %v651 = vmul.f32 %v395, %v590
      %v652 = vmul.f32 %v396, %v600
      %v653 = vmul.f32 %v397, %v610
      %v654 = vmul.f32 %v398, %v620
      %v655 = vmul.f32 %v399, %v630
      %v656 = vmul.f32 %v400, %v640
      %v657 = vld [vmem:[%s3] sm:$0x1]
      %v659 = vperm.slane %v657, 0
      %v661 = vmul.f32 %v641, %v659
      %v662 = vmul.f32 %v642, %v659
      %v663 = vmul.f32 %v643, %v659
      %v664 = vmul.f32 %v644, %v659
      %v665 = vmul.f32 %v645, %v659
      %v666 = vmul.f32 %v646, %v659
      %v667 = vmul.f32 %v647, %v659
      %v668 = vmul.f32 %v648, %v659
      %v669 = vmul.f32 %v649, %v659
      %v670 = vmul.f32 %v650, %v659
      %v671 = vmul.f32 %v651, %v659
      %v672 = vmul.f32 %v652, %v659
      %v673 = vmul.f32 %v653, %v659
      %v674 = vmul.f32 %v654, %v659
      %v675 = vmul.f32 %v655, %v659
      %v676 = vmul.f32 %v656, %v659
      %v677 = vld [vmem:[%s4] sm:$0x1]
      %v679 = vperm.slane %v677, 0
      %v681 = vadd.f32 %v661, %v679
      %v682 = vadd.f32 %v662, %v679
      %v683 = vadd.f32 %v663, %v679
      %v684 = vadd.f32 %v664, %v679
      %v685 = vadd.f32 %v665, %v679
      %v686 = vadd.f32 %v666, %v679
      %v687 = vadd.f32 %v667, %v679
      %v688 = vadd.f32 %v668, %v679
      %v689 = vadd.f32 %v669, %v679
      %v690 = vadd.f32 %v670, %v679
      %v691 = vadd.f32 %v671, %v679
      %v692 = vadd.f32 %v672, %v679
      %v693 = vadd.f32 %v673, %v679
      %v694 = vadd.f32 %v674, %v679
      %v695 = vadd.f32 %v675, %v679
      %v696 = vadd.f32 %v676, %v679
      %697 = vst [vmem:[%s248] sm:$0xff] %v681
      %698 = vst [vmem:[%s248 + $0x8] sm:$0xff] %v682
      %699 = vst [vmem:[%s248 + $0x10] sm:$0xff] %v683
      %700 = vst [vmem:[%s248 + $0x18] sm:$0xff] %v684
      %701 = vst [vmem:[%s248 + $0x20] sm:$0xff] %v685
      %702 = vst [vmem:[%s248 + $0x28] sm:$0xff] %v686
      %703 = vst [vmem:[%s248 + $0x30] sm:$0xff] %v687
      %704 = vst [vmem:[%s248 + $0x38] sm:$0xff] %v688
      %705 = vst [vmem:[%s248 + $0x40] sm:$0xff] %v689
      %706 = vst [vmem:[%s248 + $0x48] sm:$0xff] %v690
      %707 = vst [vmem:[%s248 + $0x50] sm:$0xff] %v691
      %708 = vst [vmem:[%s248 + $0x58] sm:$0xff] %v692
      %709 = vst [vmem:[%s248 + $0x60] sm:$0xff] %v693
      %710 = vst [vmem:[%s248 + $0x68] sm:$0xff] %v694
      %711 = vst [vmem:[%s248 + $0x70] sm:$0xff] %v695
      %712 = vst [vmem:[%s248 + $0x78] sm:$0xff] %v696
      %s713 = smul.u32 16, %s16
      %p714 = scmp.lt.s32.totalorder %s713, 31
      %s715 = scalar_select %p714, %s713, 31
      %s716 = smul.addr %s715, 8
      %s717 = scalar_lea.vmem %s5, %s716
      // Predicated region
      $region41: #{_forward_impl.11} parent=39 // pred_check
        %p718 = pneg %p149
      $region42: #{_forward_impl.11} parent=39 // pred_check_branch
        %720 = sbr.rel (%p718) target = $region44
      $region43: #{_forward_impl.11} parent=39 // pred_region
        %s721 = smul.u32 16, %s16
      $region44: #{_forward_impl.11} parent=39 // pred_fallthru
        _
    $region40: #{_forward_impl.11} parent=5 // pred_fallthru
      _
    %p722 = scmp.le.s32.totalorder 2, %s11
    // Predicated region
    $region45: #{_forward_impl.11} parent=5 // pred_check
      %p723 = pneg %p722
    $region46: #{_forward_impl.11} parent=5 // pred_check_branch
      %725 = sbr.rel (%p723) target = $region48
    $region47: #{_forward_impl.11} parent=5 // pred_region
      %s726 = ssub.s32 %s11, 2
      // Predicated region
      $region49: #{_forward_impl.11} parent=47 // pred_check
        %p727 = pneg %p155
      $region50: #{_forward_impl.11} parent=47 // pred_check_branch
        %729 = sbr.rel (%p727) target = $region52
      $region51: #{_forward_impl.11} parent=47 // pred_region
        %s730 = smul.u32 16, %s17
        %p731 = scmp.lt.s32.totalorder %s730, 31
        %s732 = scalar_select %p731, %s730, 31
        %s733 = smul.addr %s732, 8
        %s734 = scalar_lea.vmem %s5, %s733
      $region52: #{_forward_impl.11} parent=47 // pred_fallthru
        _
    $region48: #{_forward_impl.11} parent=5 // pred_fallthru
      _
  $region6: #{_forward_impl.11} parent=0 // loop_footer
    %s15 = sadd.s32 1, %s11
  $region7: #{_forward_impl.11} parent=0 // loop_footer_branch
    %10 = sbr.rel target = $region3
  $region8: #{_forward_impl.11} parent=0 // loop_exit
    _

// kernel: _forward_impl.12
$region0: #{_forward_impl.12}
  #allocation0 [shape = 'u32[]', space=smem, size = 0x4, offset = 0x4, fixed_abs, tag = 'smem constant byte address 0x4 - core index']
  #allocation1 [shape = 'u32[72,128]{1,0:T(1,128)}', space=vmem, size = 0x9000, scoped, tag = 'internal scratch']
  %s0 = inlined_call_operand.vmem [shape: f32[256,128], index: 0, kind: input, shape index: {}]
  %s1 = inlined_call_operand.vmem [shape: bf16[128,384], index: 1, kind: input, shape index: {}]
  %s2 = inlined_call_operand.vmem [shape: f32[1,384], index: 2, kind: input, shape index: {}]
  %s3 = inlined_call_operand.vmem [shape: bf16[256,384], index: 3, kind: output, shape index: {}]
  %s4 = sld [smem:[#allocation0]]
  $region45: #{_forward_impl.12} parent=0
    _
  %s6 = ssub.s32 1, %s4
  %s7 = scalar_select 0, %s6, %s4
  loop: start=0, step=1, limit=4
  $region2: #{_forward_impl.12} parent=0 // loop_pre_header
    _
  $region3: #{_forward_impl.12} parent=0 // loop_header
    %s9 = sphi 0, %s13
    %p10 = scmp.ge.s32.totalorder %s9, 4
    %s16 = sphi 0, %s28
    %s17 = sphi 0, %s24
    %s18 = sphi 0, %s16
    %s19 = sphi 0, %s17
    %s20 = sphi 0, %s18
    %s21 = sphi 0, %s19
    %s31 = sphi 0, %s33
    %s34 = sphi 0, %s31
    %s35 = sphi 0, %s34
    %s51 = sphi 0, %s35
    %s57 = sphi 0, %s59
    %s60 = sphi 0, %s57
    %s61 = sphi 0, %s60
    %s77 = sphi 0, %s61
    %s83 = sphi 0, %s85
    %s86 = sphi 0, %s83
    %s87 = sphi 0, %s86
    %s103 = sphi 0, %s87
    %s111 = sphi 0, %s113
    %s114 = sphi 0, %s111
    %s115 = sphi 0, %s114
    %s131 = sphi 0, %s115
  $region4: #{_forward_impl.12} parent=0 // loop_header_branch
    %12 = sbr.rel (%p10) target = $region8
  $region5: #{_forward_impl.12} parent=0 // loop_body
    %s14 = ssub.s32 %s9, 1
    %s15 = ssub.s32 %s9, 2
    %s22 = sadd.s32 1, %s17
    %p23 = scmp.ge.s32.totalorder %s22, 1
    %s24 = scalar_select %p23, 0, %s22
    %s25 = sadd.s32 1, %s16
    %s26 = scalar_select %p23, %s25, %s16
    %p27 = scmp.ge.s32.totalorder %s26, 2
    %s28 = scalar_select %p27, 0, %s26
    %s29 = ssub.s32 %s16, %s28
    %p30 = scmp.eq.s32.totalorder %s29, 0
    %s32 = sadd.s32 %s31, 1
    %s33 = scalar_select %p30, %s31, %s32
    %p36 = pneg %p30
    %p37 = scmp.eq.s32.totalorder %s9, 1
    %p38 = por %p36, %p37
    %p39 = scmp.ne.s32.totalorder %s31, %s34
    %p40 = scmp.eq.s32.totalorder %s9, 0
    %p41 = por %p39, %p40
    %p42 = scmp.ne.s32.totalorder %s31, %s34
    %p43 = scmp.eq.s32.totalorder %s14, 1
    %p44 = por %p42, %p43
    %p45 = scmp.ne.s32.totalorder %s34, %s35
    %p46 = scmp.eq.s32.totalorder %s14, 0
    %p47 = por %p45, %p46
    %p48 = scmp.ne.s32.totalorder %s34, %s35
    %p49 = scmp.eq.s32.totalorder %s15, 1
    %p50 = por %p48, %p49
    %p52 = scmp.ne.s32.totalorder %s35, %s51
    %p53 = scmp.eq.s32.totalorder %s15, 0
    %p54 = por %p52, %p53
    %s55 = ssub.s32 %s17, %s24
    %p56 = scmp.eq.s32.totalorder %s55, 0
    %s58 = sadd.s32 %s57, 1
    %s59 = scalar_select %p56, %s57, %s58
    %p62 = pneg %p56
    %p63 = scmp.eq.s32.totalorder %s9, 1
    %p64 = por %p62, %p63
    %p65 = scmp.ne.s32.totalorder %s57, %s60
    %p66 = scmp.eq.s32.totalorder %s9, 0
    %p67 = por %p65, %p66
    %p68 = scmp.ne.s32.totalorder %s57, %s60
    %p69 = scmp.eq.s32.totalorder %s14, 1
    %p70 = por %p68, %p69
    %p71 = scmp.ne.s32.totalorder %s60, %s61
    %p72 = scmp.eq.s32.totalorder %s14, 0
    %p73 = por %p71, %p72
    %p74 = scmp.ne.s32.totalorder %s60, %s61
    %p75 = scmp.eq.s32.totalorder %s15, 1
    %p76 = por %p74, %p75
    %p78 = scmp.ne.s32.totalorder %s61, %s77
    %p79 = scmp.eq.s32.totalorder %s15, 0
    %p80 = por %p78, %p79
    %s81 = ssub.s32 %s17, %s24
    %p82 = scmp.eq.s32.totalorder %s81, 0
    %s84 = sadd.s32 %s83, 1
    %s85 = scalar_select %p82, %s83, %s84
    %p88 = pneg %p82
    %p89 = scmp.eq.s32.totalorder %s9, 1
    %p90 = por %p88, %p89
    %p91 = scmp.ne.s32.totalorder %s83, %s86
    %p92 = scmp.eq.s32.totalorder %s9, 0
    %p93 = por %p91, %p92
    %p94 = scmp.ne.s32.totalorder %s83, %s86
    %p95 = scmp.eq.s32.totalorder %s14, 1
    %p96 = por %p94, %p95
    %p97 = scmp.ne.s32.totalorder %s86, %s87
    %p98 = scmp.eq.s32.totalorder %s14, 0
    %p99 = por %p97, %p98
    %p100 = scmp.ne.s32.totalorder %s86, %s87
    %p101 = scmp.eq.s32.totalorder %s15, 1
    %p102 = por %p100, %p101
    %p104 = scmp.ne.s32.totalorder %s87, %s103
    %p105 = scmp.eq.s32.totalorder %s15, 0
    %p106 = por %p104, %p105
    %s107 = ssub.s32 %s16, %s28
    %s108 = ssub.s32 %s17, %s24
    %s109 = sor.u32 %s107, %s108
    %p110 = scmp.eq.s32.totalorder %s109, 0
    %s112 = sadd.s32 %s111, 1
    %s113 = scalar_select %p110, %s111, %s112
    %p116 = pneg %p110
    %p117 = scmp.eq.s32.totalorder %s9, 1
    %p118 = por %p116, %p117
    %p119 = scmp.ne.s32.totalorder %s111, %s114
    %p120 = scmp.eq.s32.totalorder %s9, 0
    %p121 = por %p119, %p120
    %p122 = scmp.ne.s32.totalorder %s111, %s114
    %p123 = scmp.eq.s32.totalorder %s14, 1
    %p124 = por %p122, %p123
    %p125 = scmp.ne.s32.totalorder %s114, %s115
    %p126 = scmp.eq.s32.totalorder %s14, 0
    %p127 = por %p125, %p126
    %p128 = scmp.ne.s32.totalorder %s114, %s115
    %p129 = scmp.eq.s32.totalorder %s15, 1
    %p130 = por %p128, %p129
    %p132 = scmp.ne.s32.totalorder %s115, %s131
    %p133 = scmp.eq.s32.totalorder %s15, 0
    %p134 = por %p132, %p133
    %p135 = scmp.le.s32.totalorder 1, %s9
    %p136 = scmp.lt.s32.totalorder %s9, 3
    %p137 = pnand %p135, %p136
    %p138 = pneg %p137
    // Predicated region
    $region9: #{_forward_impl.12} parent=5 // pred_check
      _
    $region10: #{_forward_impl.12} parent=5 // pred_check_branch
      %140 = sbr.rel (%p137) target = $region12
    $region11: #{_forward_impl.12} parent=5 // pred_region
      %s141 = ssub.s32 %s9, 1
      // Predicated region
      $region13: #{_forward_impl.12} parent=11 // pred_check
        %p142 = pneg %p73
      $region14: #{_forward_impl.12} parent=11 // pred_check_branch
        %144 = sbr.rel (%p142) target = $region16
      $region15: #{_forward_impl.12} parent=11 // pred_region
        %s145 = smul.u32 3, %s19
        %p146 = scmp.lt.s32.totalorder %s145, 2
        %s147 = scalar_select %p146, %s145, 2
        %s148 = smul.addr %s147, 4
        %s149 = scalar_lea.vmem %s1, %s148
        %s150 = smul.u32 3, %s19
      $region16: #{_forward_impl.12} parent=11 // pred_fallthru
        _
      // Predicated region
      $region17: #{_forward_impl.12} parent=11 // pred_check
        %p151 = pneg %p99
      $region18: #{_forward_impl.12} parent=11 // pred_check_branch
        %153 = sbr.rel (%p151) target = $region20
      $region19: #{_forward_impl.12} parent=11 // pred_region
        %s154 = smul.u32 3, %s19
        %p155 = scmp.lt.s32.totalorder %s154, 2
        %s156 = scalar_select %p155, %s154, 2
        %s157 = scalar_lea.vmem %s2, %s156
        %s158 = smul.u32 3, %s19
      $region20: #{_forward_impl.12} parent=11 // pred_fallthru
        _
    $region12: #{_forward_impl.12} parent=5 // pred_fallthru
      _
    %p159 = scmp.lt.s32.totalorder %s9, 2
    // Predicated region
    $region21: #{_forward_impl.12} parent=5 // pred_check
      %p160 = pneg %p159
    $region22: #{_forward_impl.12} parent=5 // pred_check_branch
      %162 = sbr.rel (%p160) target = $region24
    $region23: #{_forward_impl.12} parent=5 // pred_region
      // Predicated region
      $region25: #{_forward_impl.12} parent=23 // pred_check
        %p163 = pneg %p41
      $region26: #{_forward_impl.12} parent=23 // pred_check_branch
        %165 = sbr.rel (%p163) target = $region28
      $region27: #{_forward_impl.12} parent=23 // pred_region
        %s166 = smul.u32 16, %s16
        %p167 = scmp.lt.s32.totalorder %s166, 31
        %s168 = scalar_select %p167, %s166, 31
        %s169 = smul.addr %s168, 8
        %s170 = scalar_lea.vmem %s0, %s169
        %s171 = smul.u32 16, %s16
      $region28: #{_forward_impl.12} parent=23 // pred_fallthru
        _
    $region24: #{_forward_impl.12} parent=5 // pred_fallthru
      _
    %p172 = scmp.le.s32.totalorder 1, %s9
    %p173 = scmp.lt.s32.totalorder %s9, 3
    %p174 = pnand %p172, %p173
    %p175 = pneg %p174
    // Predicated region
    $region29: #{_forward_impl.12} parent=5 // pred_check
      _
    $region30: #{_forward_impl.12} parent=5 // pred_check_branch
      %177 = sbr.rel (%p174) target = $region32
    $region31: #{_forward_impl.12} parent=5 // pred_region
      %s178 = ssub.s32 %s9, 1
      %s179 = smul.u32 16, %s18
      %p180 = scmp.lt.s32.totalorder %s179, 31
      %s181 = scalar_select %p180, %s179, 31
      %s182 = smul.addr %s181, 8
      %s183 = scalar_lea.vmem %s0, %s182
      %p184 = pneg %p47
      %p185 = pneg %p44
      %s186 = smul.u32 3, %s19
      %p187 = scmp.lt.s32.totalorder %s186, 2
      %s188 = scalar_select %p187, %s186, 2
      %s189 = smul.addr %s188, 4
      %s190 = scalar_lea.vmem %s1, %s189
      %p191 = pneg %p73
      %p192 = pneg %p70
      %s193 = smul.u32 3, %s19
      %p194 = scmp.lt.s32.totalorder %s193, 2
      %s195 = scalar_select %p194, %s193, 2
      %s196 = scalar_lea.vmem %s2, %s195
      %p197 = pneg %p99
      %p198 = pneg %p96
      %p199 = pneg %p127
      %p200 = pneg %p124
      %s201 = smul.u32 16, %s18
      %s202 = smul.u32 3, %s19
      %p203 = scmp.lt.s32.totalorder %s201, 31
      %s204 = scalar_select %p203, %s201, 31
      %p205 = scmp.lt.s32.totalorder %s202, 2
      %s206 = scalar_select %p205, %s202, 2
      %s207 = smul.addr %s204, 3
      %s208 = sadd.s32 %s206, %s207
      %s209 = smul.addr %s208, 4
      %s210 = scalar_lea.vmem %s3, %s209
      %s211 = smul.u32 16, %s18
      %p212 = scmp.lt.s32.totalorder %s211, 31
      %s213 = scalar_select %p212, %s211, 31
      %s214 = smul.addr %s213, 8
      %s215 = scalar_lea.vmem %s0, %s214
      %s216 = smul.u32 16, %s18
      %s217 = smul.u32 3, %s19
      %p218 = scmp.lt.s32.totalorder %s217, 2
      %s219 = scalar_select %p218, %s217, 2
      %s220 = smul.addr %s219, 4
      %s221 = scalar_lea.vmem %s1, %s220
      %s222 = smul.u32 3, %s19
      %s223 = smul.u32 3, %s19
      %p224 = scmp.lt.s32.totalorder %s223, 2
      %s225 = scalar_select %p224, %s223, 2
      %s226 = scalar_lea.vmem %s2, %s225
      %s227 = smul.u32 3, %s19
      %s228 = smul.u32 16, %s18
      %s229 = smul.u32 3, %s19
      %p230 = scmp.lt.s32.totalorder %s228, 31
      %s231 = scalar_select %p230, %s228, 31
      %p232 = scmp.lt.s32.totalorder %s229, 2
      %s233 = scalar_select %p232, %s229, 2
      %s234 = smul.addr %s231, 3
      %s235 = sadd.s32 %s233, %s234
      %s236 = smul.addr %s235, 4
      %s237 = scalar_lea.vmem %s3, %s236
      %s238 = smul.u32 16, %s18
      %s239 = smul.u32 3, %s19
      %v240 = vld [vmem:[%s215] sm:$0xff]
      %v241 = vld [vmem:[%s215 + $0x8] sm:$0xff]
      %v242 = vld [vmem:[%s215 + $0x10] sm:$0xff]
      %v243 = vld [vmem:[%s215 + $0x18] sm:$0xff]
      %v244 = vld [vmem:[%s215 + $0x20] sm:$0xff]
      %v245 = vld [vmem:[%s215 + $0x28] sm:$0xff]
      %v246 = vld [vmem:[%s215 + $0x30] sm:$0xff]
      %v247 = vld [vmem:[%s215 + $0x38] sm:$0xff]
      %v248 = vld [vmem:[%s215 + $0x40] sm:$0xff]
      %v249 = vld [vmem:[%s215 + $0x48] sm:$0xff]
      %v250 = vld [vmem:[%s215 + $0x50] sm:$0xff]
      %v251 = vld [vmem:[%s215 + $0x58] sm:$0xff]
      %v252 = vld [vmem:[%s215 + $0x60] sm:$0xff]
      %v253 = vld [vmem:[%s215 + $0x68] sm:$0xff]
      %v254 = vld [vmem:[%s215 + $0x70] sm:$0xff]
      %v255 = vld [vmem:[%s215 + $0x78] sm:$0xff]
      %v256 = vpack.c.bf16 %v241, %v240
      %v257 = vpack.c.bf16 %v243, %v242
      %v258 = vpack.c.bf16 %v245, %v244
      %v259 = vpack.c.bf16 %v247, %v246
      %v260 = vpack.c.bf16 %v249, %v248
      %v261 = vpack.c.bf16 %v251, %v250
      %v262 = vpack.c.bf16 %v253, %v252
      %v263 = vpack.c.bf16 %v255, %v254
      %v264 = vld [vmem:[%s221] sm:$0xff]
      %v265 = vld [vmem:[%s221 + $0x8] sm:$0xf]
      %v266 = vld [vmem:[%s221 + $0xc] sm:$0xff]
      %v267 = vld [vmem:[%s221 + $0x14] sm:$0xf]
      %v268 = vld [vmem:[%s221 + $0x18] sm:$0xff]
      %v269 = vld [vmem:[%s221 + $0x20] sm:$0xf]
      %v270 = vld [vmem:[%s221 + $0x24] sm:$0xff]
      %v271 = vld [vmem:[%s221 + $0x2c] sm:$0xf]
      %v272 = vld [vmem:[%s221 + $0x30] sm:$0xff]
      %v273 = vld [vmem:[%s221 + $0x38] sm:$0xf]
      %v274 = vld [vmem:[%s221 + $0x3c] sm:$0xff]
      %v275 = vld [vmem:[%s221 + $0x44] sm:$0xf]
      %v276 = vld [vmem:[%s221 + $0x48] sm:$0xff]
      %v277 = vld [vmem:[%s221 + $0x50] sm:$0xf]
      %v278 = vld [vmem:[%s221 + $0x54] sm:$0xff]
      %v279 = vld [vmem:[%s221 + $0x5c] sm:$0xf]
      %v280 = vld [vmem:[%s221 + $0x60] sm:$0xff]
      %v281 = vld [vmem:[%s221 + $0x68] sm:$0xf]
      %v282 = vld [vmem:[%s221 + $0x6c] sm:$0xff]
      %v283 = vld [vmem:[%s221 + $0x74] sm:$0xf]
      %v284 = vld [vmem:[%s221 + $0x78] sm:$0xff]
      %v285 = vld [vmem:[%s221 + $0x80] sm:$0xf]
      %v286 = vld [vmem:[%s221 + $0x84] sm:$0xff]
      %v287 = vld [vmem:[%s221 + $0x8c] sm:$0xf]
      %v288 = vld [vmem:[%s221 + $0x90] sm:$0xff]
      %v289 = vld [vmem:[%s221 + $0x98] sm:$0xf]
      %v290 = vld [vmem:[%s221 + $0x9c] sm:$0xff]
      %v291 = vld [vmem:[%s221 + $0xa4] sm:$0xf]
      %v292 = vld [vmem:[%s221 + $0xa8] sm:$0xff]
      %v293 = vld [vmem:[%s221 + $0xb0] sm:$0xf]
      %v294 = vld [vmem:[%s221 + $0xb4] sm:$0xff]
      %v295 = vld [vmem:[%s221 + $0xbc] sm:$0xf]
      %v296 = vld [vmem:[%s226] sm:$0x7]
      %v298 = vperm.slane %v296, 0
      %v299 = vperm.slane %v296, 1
      %v300 = vperm.slane %v296, 2
      %v336 = vunpack.c.l.b16 %v264
      %v337 = vunpack.c.h.b16 %v264
      %v338 = vunpack.c.l.b16 %v265
      %v339 = vunpack.c.l.b16 %v266
      %v340 = vunpack.c.h.b16 %v266
      %v341 = vunpack.c.l.b16 %v267
      %v342 = vunpack.c.l.b16 %v268
      %v343 = vunpack.c.h.b16 %v268
      %v344 = vunpack.c.l.b16 %v269
      %v345 = vunpack.c.l.b16 %v270
      %v346 = vunpack.c.h.b16 %v270
      %v347 = vunpack.c.l.b16 %v271
      %v348 = vunpack.c.l.b16 %v272
      %v349 = vunpack.c.h.b16 %v272
      %v350 = vunpack.c.l.b16 %v273
      %v351 = vunpack.c.l.b16 %v274
      %v352 = vunpack.c.h.b16 %v274
      %v353 = vunpack.c.l.b16 %v275
      %v354 = vunpack.c.l.b16 %v276
      %v355 = vunpack.c.h.b16 %v276
      %v356 = vunpack.c.l.b16 %v277
      %v357 = vunpack.c.l.b16 %v278
      %v358 = vunpack.c.h.b16 %v278
      %v359 = vunpack.c.l.b16 %v279
      %v360 = vunpack.c.l.b16 %v280
      %v361 = vunpack.c.h.b16 %v280
      %v362 = vunpack.c.l.b16 %v281
      %v363 = vunpack.c.l.b16 %v282
      %v364 = vunpack.c.h.b16 %v282
      %v365 = vunpack.c.l.b16 %v283
      %v366 = vunpack.c.l.b16 %v284
      %v367 = vunpack.c.h.b16 %v284
      %v368 = vunpack.c.l.b16 %v285
      %v369 = vunpack.c.l.b16 %v286
      %v370 = vunpack.c.h.b16 %v286
      %v371 = vunpack.c.l.b16 %v287
      %v372 = vunpack.c.l.b16 %v288
      %v373 = vunpack.c.h.b16 %v288
      %v374 = vunpack.c.l.b16 %v289
      %v375 = vunpack.c.l.b16 %v290
      %v376 = vunpack.c.h.b16 %v290
      %v377 = vunpack.c.l.b16 %v291
      %v378 = vunpack.c.l.b16 %v292
      %v379 = vunpack.c.h.b16 %v292
      %v380 = vunpack.c.l.b16 %v293
      %v381 = vunpack.c.l.b16 %v294
      %v382 = vunpack.c.h.b16 %v294
      %v383 = vunpack.c.l.b16 %v295
      %v384 = vpack.c.b16 %v339, %v336
      %v385 = vpack.c.b16 %v340, %v337
      %v386 = vpack.c.b16 %v341, %v338
      %v387 = vpack.c.b16 %v345, %v342
      %v388 = vpack.c.b16 %v346, %v343
      %v389 = vpack.c.b16 %v347, %v344
      %v390 = vpack.c.b16 %v351, %v348
      %v391 = vpack.c.b16 %v352, %v349
      %v392 = vpack.c.b16 %v353, %v350
      %v393 = vpack.c.b16 %v357, %v354
      %v394 = vpack.c.b16 %v358, %v355
      %v395 = vpack.c.b16 %v359, %v356
      %v396 = vpack.c.b16 %v363, %v360
      %v397 = vpack.c.b16 %v364, %v361
      %v398 = vpack.c.b16 %v365, %v362
      %v399 = vpack.c.b16 %v369, %v366
      %v400 = vpack.c.b16 %v370, %v367
      %v401 = vpack.c.b16 %v371, %v368
      %v402 = vpack.c.b16 %v375, %v372
      %v403 = vpack.c.b16 %v376, %v373
      %v404 = vpack.c.b16 %v377, %v374
      %v405 = vpack.c.b16 %v381, %v378
      %v406 = vpack.c.b16 %v382, %v379
      %v407 = vpack.c.b16 %v383, %v380
      %432 = vmatpush.bf16.msra.mxu0 %v405
      %433 = vmatpush.bf16.msra.mxu0 %v402
      %434 = vmatpush.bf16.msra.mxu0 %v399
      %435 = vmatpush.bf16.msra.mxu0 %v396
      %436 = vmatpush.bf16.msra.mxu0 %v393
      %437 = vmatpush.bf16.msra.mxu0 %v390
      %438 = vmatpush.bf16.msra.mxu0 %v387
      %439 = vmatpush.bf16.msra.mxu0 %v384
      %440 = vmatmul.bf16.gmra.mxu0 %v256
      %v441 = vpop.f32.mrf.mxu0
      %v442 = vadd.f32 %v298, %v441
      %v443 = vpop.f32.mrf.mxu0
      %v444 = vadd.f32 %v298, %v443
      %445 = vmatmul.bf16.gmra.mxu0 %v257
      %v446 = vpop.f32.mrf.mxu0
      %v447 = vadd.f32 %v298, %v446
      %v448 = vpop.f32.mrf.mxu0
      %v449 = vadd.f32 %v298, %v448
      %450 = vmatmul.bf16.gmra.mxu0 %v258
      %v451 = vpop.f32.mrf.mxu0
      %v452 = vadd.f32 %v298, %v451
      %v453 = vpop.f32.mrf.mxu0
      %v454 = vadd.f32 %v298, %v453
      %455 = vmatmul.bf16.gmra.mxu0 %v259
      %v456 = vpop.f32.mrf.mxu0
      %v457 = vadd.f32 %v298, %v456
      %v458 = vpop.f32.mrf.mxu0
      %v459 = vadd.f32 %v298, %v458
      %460 = vmatmul.bf16.gmra.mxu0 %v260
      %v461 = vpop.f32.mrf.mxu0
      %v462 = vadd.f32 %v298, %v461
      %v463 = vpop.f32.mrf.mxu0
      %v464 = vadd.f32 %v298, %v463
      %465 = vmatmul.bf16.gmra.mxu0 %v261
      %v466 = vpop.f32.mrf.mxu0
      %v467 = vadd.f32 %v298, %v466
      %v468 = vpop.f32.mrf.mxu0
      %v469 = vadd.f32 %v298, %v468
      %470 = vmatmul.bf16.gmra.mxu0 %v262
      %v471 = vpop.f32.mrf.mxu0
      %v472 = vadd.f32 %v298, %v471
      %v473 = vpop.f32.mrf.mxu0
      %v474 = vadd.f32 %v298, %v473
      %475 = vmatmul.bf16.gmra.mxu0 %v263
      %v476 = vpop.f32.mrf.mxu0
      %v477 = vadd.f32 %v298, %v476
      %v478 = vpop.f32.mrf.mxu0
      %v479 = vadd.f32 %v298, %v478
      %480 = vdwg.mxu0
      %481 = vmatpush.bf16.msra.mxu0 %v406
      %482 = vmatpush.bf16.msra.mxu0 %v403
      %483 = vmatpush.bf16.msra.mxu0 %v400
      %484 = vmatpush.bf16.msra.mxu0 %v397
      %485 = vmatpush.bf16.msra.mxu0 %v394
      %486 = vmatpush.bf16.msra.mxu0 %v391
      %487 = vmatpush.bf16.msra.mxu0 %v388
      %488 = vmatpush.bf16.msra.mxu0 %v385
      %489 = vmatmul.bf16.gmra.mxu0 %v256
      %v490 = vpop.f32.mrf.mxu0
      %v491 = vadd.f32 %v299, %v490
      %v492 = vpop.f32.mrf.mxu0
      %v493 = vadd.f32 %v299, %v492
      %494 = vmatmul.bf16.gmra.mxu0 %v257
      %v495 = vpop.f32.mrf.mxu0
      %v496 = vadd.f32 %v299, %v495
      %v497 = vpop.f32.mrf.mxu0
      %v498 = vadd.f32 %v299, %v497
      %499 = vmatmul.bf16.gmra.mxu0 %v258
      %v500 = vpop.f32.mrf.mxu0
      %v501 = vadd.f32 %v299, %v500
      %v502 = vpop.f32.mrf.mxu0
      %v503 = vadd.f32 %v299, %v502
      %504 = vmatmul.bf16.gmra.mxu0 %v259
      %v505 = vpop.f32.mrf.mxu0
      %v506 = vadd.f32 %v299, %v505
      %v507 = vpop.f32.mrf.mxu0
      %v508 = vadd.f32 %v299, %v507
      %509 = vmatmul.bf16.gmra.mxu0 %v260
      %v510 = vpop.f32.mrf.mxu0
      %v511 = vadd.f32 %v299, %v510
      %v512 = vpop.f32.mrf.mxu0
      %v513 = vadd.f32 %v299, %v512
      %514 = vmatmul.bf16.gmra.mxu0 %v261
      %v515 = vpop.f32.mrf.mxu0
      %v516 = vadd.f32 %v299, %v515
      %v517 = vpop.f32.mrf.mxu0
      %v518 = vadd.f32 %v299, %v517
      %519 = vmatmul.bf16.gmra.mxu0 %v262
      %v520 = vpop.f32.mrf.mxu0
      %v521 = vadd.f32 %v299, %v520
      %v522 = vpop.f32.mrf.mxu0
      %v523 = vadd.f32 %v299, %v522
      %524 = vmatmul.bf16.gmra.mxu0 %v263
      %v525 = vpop.f32.mrf.mxu0
      %v526 = vadd.f32 %v299, %v525
      %v527 = vpop.f32.mrf.mxu0
      %v528 = vadd.f32 %v299, %v527
      %529 = vdwg.mxu0
      %530 = vmatpush.bf16.msra.mxu0 %v407
      %531 = vmatpush.bf16.msra.mxu0 %v404
      %532 = vmatpush.bf16.msra.mxu0 %v401
      %533 = vmatpush.bf16.msra.mxu0 %v398
      %534 = vmatpush.bf16.msra.mxu0 %v395
      %535 = vmatpush.bf16.msra.mxu0 %v392
      %536 = vmatpush.bf16.msra.mxu0 %v389
      %537 = vmatpush.bf16.msra.mxu0 %v386
      %538 = vmatmul.bf16.gmra.mxu0 %v256
      %v539 = vpop.f32.mrf.mxu0
      %v540 = vadd.f32 %v300, %v539
      %v541 = vpop.f32.mrf.mxu0
      %v542 = vadd.f32 %v300, %v541
      %543 = vmatmul.bf16.gmra.mxu0 %v257
      %v544 = vpop.f32.mrf.mxu0
      %v545 = vadd.f32 %v300, %v544
      %v546 = vpop.f32.mrf.mxu0
      %v547 = vadd.f32 %v300, %v546
      %548 = vmatmul.bf16.gmra.mxu0 %v258
      %v549 = vpop.f32.mrf.mxu0
      %v550 = vadd.f32 %v300, %v549
      %v551 = vpop.f32.mrf.mxu0
      %v552 = vadd.f32 %v300, %v551
      %553 = vmatmul.bf16.gmra.mxu0 %v259
      %v554 = vpop.f32.mrf.mxu0
      %v555 = vadd.f32 %v300, %v554
      %v556 = vpop.f32.mrf.mxu0
      %v557 = vadd.f32 %v300, %v556
      %558 = vmatmul.bf16.gmra.mxu0 %v260
      %v559 = vpop.f32.mrf.mxu0
      %v560 = vadd.f32 %v300, %v559
      %v561 = vpop.f32.mrf.mxu0
      %v562 = vadd.f32 %v300, %v561
      %563 = vmatmul.bf16.gmra.mxu0 %v261
      %v564 = vpop.f32.mrf.mxu0
      %v565 = vadd.f32 %v300, %v564
      %v566 = vpop.f32.mrf.mxu0
      %v567 = vadd.f32 %v300, %v566
      %568 = vmatmul.bf16.gmra.mxu0 %v262
      %v569 = vpop.f32.mrf.mxu0
      %v570 = vadd.f32 %v300, %v569
      %v571 = vpop.f32.mrf.mxu0
      %v572 = vadd.f32 %v300, %v571
      %573 = vmatmul.bf16.gmra.mxu0 %v263
      %v574 = vpop.f32.mrf.mxu0
      %v575 = vadd.f32 %v300, %v574
      %v576 = vpop.f32.mrf.mxu0
      %v577 = vadd.f32 %v300, %v576
      %578 = vdwg.mxu0
      %v579 = vpack.c.bf16 %v491, %v442
      %v580 = vpack.c.bf16 %v540, %v540
      %v581 = vpack.c.bf16 %v493, %v444
      %v582 = vpack.c.bf16 %v542, %v542
      %v583 = vpack.c.bf16 %v496, %v447
      %v584 = vpack.c.bf16 %v545, %v545
      %v585 = vpack.c.bf16 %v498, %v449
      %v586 = vpack.c.bf16 %v547, %v547
      %v587 = vpack.c.bf16 %v501, %v452
      %v588 = vpack.c.bf16 %v550, %v550
      %v589 = vpack.c.bf16 %v503, %v454
      %v590 = vpack.c.bf16 %v552, %v552
      %v591 = vpack.c.bf16 %v506, %v457
      %v592 = vpack.c.bf16 %v555, %v555
      %v593 = vpack.c.bf16 %v508, %v459
      %v594 = vpack.c.bf16 %v557, %v557
      %v595 = vpack.c.bf16 %v511, %v462
      %v596 = vpack.c.bf16 %v560, %v560
      %v597 = vpack.c.bf16 %v513, %v464
      %v598 = vpack.c.bf16 %v562, %v562
      %v599 = vpack.c.bf16 %v516, %v467
      %v600 = vpack.c.bf16 %v565, %v565
      %v601 = vpack.c.bf16 %v518, %v469
      %v602 = vpack.c.bf16 %v567, %v567
      %v603 = vpack.c.bf16 %v521, %v472
      %v604 = vpack.c.bf16 %v570, %v570
      %v605 = vpack.c.bf16 %v523, %v474
      %v606 = vpack.c.bf16 %v572, %v572
      %v607 = vpack.c.bf16 %v526, %v477
      %v608 = vpack.c.bf16 %v575, %v575
      %v609 = vpack.c.bf16 %v528, %v479
      %v610 = vpack.c.bf16 %v577, %v577
      %611 = vst [vmem:[%s237] sm:$0xff] %v579
      %612 = vst [vmem:[%s237 + $0x8] sm:$0xf] %v580
      %613 = vst [vmem:[%s237 + $0xc] sm:$0xff] %v581
      %614 = vst [vmem:[%s237 + $0x14] sm:$0xf] %v582
      %615 = vst [vmem:[%s237 + $0x18] sm:$0xff] %v583
      %616 = vst [vmem:[%s237 + $0x20] sm:$0xf] %v584
      %617 = vst [vmem:[%s237 + $0x24] sm:$0xff] %v585
      %618 = vst [vmem:[%s237 + $0x2c] sm:$0xf] %v586
      %619 = vst [vmem:[%s237 + $0x30] sm:$0xff] %v587
      %620 = vst [vmem:[%s237 + $0x38] sm:$0xf] %v588
      %621 = vst [vmem:[%s237 + $0x3c] sm:$0xff] %v589
      %622 = vst [vmem:[%s237 + $0x44] sm:$0xf] %v590
      %623 = vst [vmem:[%s237 + $0x48] sm:$0xff] %v591
      %624 = vst [vmem:[%s237 + $0x50] sm:$0xf] %v592
      %625 = vst [vmem:[%s237 + $0x54] sm:$0xff] %v593
      %626 = vst [vmem:[%s237 + $0x5c] sm:$0xf] %v594
      %627 = vst [vmem:[%s237 + $0x60] sm:$0xff] %v595
      %628 = vst [vmem:[%s237 + $0x68] sm:$0xf] %v596
      %629 = vst [vmem:[%s237 + $0x6c] sm:$0xff] %v597
      %630 = vst [vmem:[%s237 + $0x74] sm:$0xf] %v598
      %631 = vst [vmem:[%s237 + $0x78] sm:$0xff] %v599
      %632 = vst [vmem:[%s237 + $0x80] sm:$0xf] %v600
      %633 = vst [vmem:[%s237 + $0x84] sm:$0xff] %v601
      %634 = vst [vmem:[%s237 + $0x8c] sm:$0xf] %v602
      %635 = vst [vmem:[%s237 + $0x90] sm:$0xff] %v603
      %636 = vst [vmem:[%s237 + $0x98] sm:$0xf] %v604
      %637 = vst [vmem:[%s237 + $0x9c] sm:$0xff] %v605
      %638 = vst [vmem:[%s237 + $0xa4] sm:$0xf] %v606
      %639 = vst [vmem:[%s237 + $0xa8] sm:$0xff] %v607
      %640 = vst [vmem:[%s237 + $0xb0] sm:$0xf] %v608
      %641 = vst [vmem:[%s237 + $0xb4] sm:$0xff] %v609
      %642 = vst [vmem:[%s237 + $0xbc] sm:$0xf] %v610
      %s643 = smul.u32 16, %s18
      %s644 = smul.u32 3, %s19
      %p645 = scmp.lt.s32.totalorder %s643, 31
      %s646 = scalar_select %p645, %s643, 31
      %p647 = scmp.lt.s32.totalorder %s644, 2
      %s648 = scalar_select %p647, %s644, 2
      %s649 = smul.addr %s646, 3
      %s650 = sadd.s32 %s648, %s649
      %s651 = smul.addr %s650, 4
      %s652 = scalar_lea.vmem %s3, %s651
      // Predicated region
      $region33: #{_forward_impl.12} parent=31 // pred_check
        %p653 = pneg %p124
      $region34: #{_forward_impl.12} parent=31 // pred_check_branch
        %655 = sbr.rel (%p653) target = $region36
      $region35: #{_forward_impl.12} parent=31 // pred_region
        %s656 = smul.u32 16, %s18
        %s657 = smul.u32 3, %s19
      $region36: #{_forward_impl.12} parent=31 // pred_fallthru
        _
    $region32: #{_forward_impl.12} parent=5 // pred_fallthru
      _
    %p658 = scmp.le.s32.totalorder 2, %s9
    // Predicated region
    $region37: #{_forward_impl.12} parent=5 // pred_check
      %p659 = pneg %p658
    $region38: #{_forward_impl.12} parent=5 // pred_check_branch
      %661 = sbr.rel (%p659) target = $region40
    $region39: #{_forward_impl.12} parent=5 // pred_region
      %s662 = ssub.s32 %s9, 2
      // Predicated region
      $region41: #{_forward_impl.12} parent=39 // pred_check
        %p663 = pneg %p130
      $region42: #{_forward_impl.12} parent=39 // pred_check_branch
        %665 = sbr.rel (%p663) target = $region44
      $region43: #{_forward_impl.12} parent=39 // pred_region
        %s666 = smul.u32 16, %s20
        %s667 = smul.u32 3, %s21
        %p668 = scmp.lt.s32.totalorder %s666, 31
        %s669 = scalar_select %p668, %s666, 31
        %p670 = scmp.lt.s32.totalorder %s667, 2
        %s671 = scalar_select %p670, %s667, 2
        %s672 = smul.addr %s669, 3
        %s673 = sadd.s32 %s671, %s672
        %s674 = smul.addr %s673, 4
        %s675 = scalar_lea.vmem %s3, %s674
      $region44: #{_forward_impl.12} parent=39 // pred_fallthru
        _
    $region40: #{_forward_impl.12} parent=5 // pred_fallthru
      _
  $region6: #{_forward_impl.12} parent=0 // loop_footer
    %s13 = sadd.s32 1, %s9
  $region7: #{_forward_impl.12} parent=0 // loop_footer_branch
    %8 = sbr.rel target = $region3
  $region8: #{_forward_impl.12} parent=0 // loop_exit
    _

// kernel: _forward_impl.13
$region0: #{_forward_impl.13}
  #allocation0 [shape = 'u32[]', space=smem, size = 0x4, offset = 0x4, fixed_abs, tag = 'smem constant byte address 0x4 - core index']
  #allocation1 [shape = 'u32[72,128]{1,0:T(1,128)}', space=vmem, size = 0x9000, scoped, tag = 'internal scratch']
  %s0 = inlined_call_operand.vmem [shape: bf16[2,128,384], index: 0, kind: input, shape index: {}, may-alias: {0,1,2}]
  %s1 = inlined_call_operand.vmem [shape: bf16[2,128,384], index: 1, kind: input, shape index: {}, may-alias: {0,1,2}]
  %s2 = inlined_call_operand.vmem [shape: bf16[2,128,384], index: 2, kind: input, shape index: {}, may-alias: {0,1,2}]
  %s3 = inlined_call_operand.vmem [shape: bf16[2,128,128], index: 3, kind: output, shape index: {}]
  %s4 = sld [smem:[#allocation0]]
  $region168: #{_forward_impl.13} parent=0
    _
  %s6 = ssub.s32 1, %s4
  %s7 = scalar_select 0, %s6, %s4
  $region1: #{_forward_impl.13} parent=0
    #allocation2 [shape = 'u8[65536]{0}', space=vmem, size = 0x10000, scoped, tag = 'input window, operand 0']
    #allocation3 [shape = 'u8[65536]{0}', space=vmem, size = 0x10000, scoped, tag = 'input window, operand 1']
    #allocation4 [shape = 'u8[65536]{0}', space=vmem, size = 0x10000, scoped, tag = 'input window, operand 2']
    loop: start=0, step=1, limit=4
    $region2: #{_forward_impl.13} parent=1 // loop_pre_header
      _
    $region3: #{_forward_impl.13} parent=1 // loop_header
      %s9 = sphi 0, %s13
      %p10 = scmp.ge.s32.totalorder %s9, 4
      %s16 = sphi 0, %s28
      %s17 = sphi 0, %s24
      %s18 = sphi 0, %s16
      %s19 = sphi 0, %s17
      %s20 = sphi 0, %s18
      %s21 = sphi 0, %s19
      %s33 = sphi 0, %s35
      %s36 = sphi 0, %s33
      %s37 = sphi 0, %s36
      %s53 = sphi 0, %s37
      %s63 = sphi 0, %s65
      %s66 = sphi 0, %s63
      %s67 = sphi 0, %s66
      %s83 = sphi 0, %s67
      %s93 = sphi 0, %s95
      %s96 = sphi 0, %s93
      %s97 = sphi 0, %s96
      %s113 = sphi 0, %s97
      %s121 = sphi 0, %s123
      %s124 = sphi 0, %s121
      %s125 = sphi 0, %s124
      %s141 = sphi 0, %s125
    $region4: #{_forward_impl.13} parent=1 // loop_header_branch
      %12 = sbr.rel (%p10) target = $region8
    $region5: #{_forward_impl.13} parent=1 // loop_body
      %s14 = ssub.s32 %s9, 1
      %s15 = ssub.s32 %s9, 2
      %s22 = sadd.s32 1, %s17
      %p23 = scmp.ge.s32.totalorder %s22, 1
      %s24 = scalar_select %p23, 0, %s22
      %s25 = sadd.s32 1, %s16
      %s26 = scalar_select %p23, %s25, %s16
      %p27 = scmp.ge.s32.totalorder %s26, 2
      %s28 = scalar_select %p27, 0, %s26
      %s29 = ssub.s32 %s16, %s28
      %s30 = ssub.s32 %s17, %s24
      %s31 = sor.u32 %s29, %s30
      %p32 = scmp.eq.s32.totalorder %s31, 0
      %s34 = sadd.s32 %s33, 1
      %s35 = scalar_select %p32, %s33, %s34
      %p38 = pneg %p32
      %p39 = scmp.eq.s32.totalorder %s9, 1
      %p40 = por %p38, %p39
      %p41 = scmp.ne.s32.totalorder %s33, %s36
      %p42 = scmp.eq.s32.totalorder %s9, 0
      %p43 = por %p41, %p42
      %p44 = scmp.ne.s32.totalorder %s33, %s36
      %p45 = scmp.eq.s32.totalorder %s14, 1
      %p46 = por %p44, %p45
      %p47 = scmp.ne.s32.totalorder %s36, %s37
      %p48 = scmp.eq.s32.totalorder %s14, 0
      %p49 = por %p47, %p48
      %p50 = scmp.ne.s32.totalorder %s36, %s37
      %p51 = scmp.eq.s32.totalorder %s15, 1
      %p52 = por %p50, %p51
      %p54 = scmp.ne.s32.totalorder %s37, %s53
      %p55 = scmp.eq.s32.totalorder %s15, 0
      %p56 = por %p54, %p55
      %s57 = sadd.s32 %s17, 1
      %s58 = sadd.s32 %s24, 1
      %s59 = ssub.s32 %s16, %s28
      %s60 = ssub.s32 %s57, %s58
      %s61 = sor.u32 %s59, %s60
      %p62 = scmp.eq.s32.totalorder %s61, 0
      %s64 = sadd.s32 %s63, 1
      %s65 = scalar_select %p62, %s63, %s64
      %p68 = pneg %p62
      %p69 = scmp.eq.s32.totalorder %s9, 1
      %p70 = por %p68, %p69
      %p71 = scmp.ne.s32.totalorder %s63, %s66
      %p72 = scmp.eq.s32.totalorder %s9, 0
      %p73 = por %p71, %p72
      %p74 = scmp.ne.s32.totalorder %s63, %s66
      %p75 = scmp.eq.s32.totalorder %s14, 1
      %p76 = por %p74, %p75
      %p77 = scmp.ne.s32.totalorder %s66, %s67
      %p78 = scmp.eq.s32.totalorder %s14, 0
      %p79 = por %p77, %p78
      %p80 = scmp.ne.s32.totalorder %s66, %s67
      %p81 = scmp.eq.s32.totalorder %s15, 1
      %p82 = por %p80, %p81
      %p84 = scmp.ne.s32.totalorder %s67, %s83
      %p85 = scmp.eq.s32.totalorder %s15, 0
      %p86 = por %p84, %p85
      %s87 = sadd.s32 %s17, 2
      %s88 = sadd.s32 %s24, 2
      %s89 = ssub.s32 %s16, %s28
      %s90 = ssub.s32 %s87, %s88
      %s91 = sor.u32 %s89, %s90
      %p92 = scmp.eq.s32.totalorder %s91, 0
      %s94 = sadd.s32 %s93, 1
      %s95 = scalar_select %p92, %s93, %s94
      %p98 = pneg %p92
      %p99 = scmp.eq.s32.totalorder %s9, 1
      %p100 = por %p98, %p99
      %p101 = scmp.ne.s32.totalorder %s93, %s96
      %p102 = scmp.eq.s32.totalorder %s9, 0
      %p103 = por %p101, %p102
      %p104 = scmp.ne.s32.totalorder %s93, %s96
      %p105 = scmp.eq.s32.totalorder %s14, 1
      %p106 = por %p104, %p105
      %p107 = scmp.ne.s32.totalorder %s96, %s97
      %p108 = scmp.eq.s32.totalorder %s14, 0
      %p109 = por %p107, %p108
      %p110 = scmp.ne.s32.totalorder %s96, %s97
      %p111 = scmp.eq.s32.totalorder %s15, 1
      %p112 = por %p110, %p111
      %p114 = scmp.ne.s32.totalorder %s97, %s113
      %p115 = scmp.eq.s32.totalorder %s15, 0
      %p116 = por %p114, %p115
      %s117 = ssub.s32 %s16, %s28
      %s118 = ssub.s32 %s17, %s24
      %s119 = sor.u32 %s117, %s118
      %p120 = scmp.eq.s32.totalorder %s119, 0
      %s122 = sadd.s32 %s121, 1
      %s123 = scalar_select %p120, %s121, %s122
      %p126 = pneg %p120
      %p127 = scmp.eq.s32.totalorder %s9, 1
      %p128 = por %p126, %p127
      %p129 = scmp.ne.s32.totalorder %s121, %s124
      %p130 = scmp.eq.s32.totalorder %s9, 0
      %p131 = por %p129, %p130
      %p132 = scmp.ne.s32.totalorder %s121, %s124
      %p133 = scmp.eq.s32.totalorder %s14, 1
      %p134 = por %p132, %p133
      %p135 = scmp.ne.s32.totalorder %s124, %s125
      %p136 = scmp.eq.s32.totalorder %s14, 0
      %p137 = por %p135, %p136
      %p138 = scmp.ne.s32.totalorder %s124, %s125
      %p139 = scmp.eq.s32.totalorder %s15, 1
      %p140 = por %p138, %p139
      %p142 = scmp.ne.s32.totalorder %s125, %s141
      %p143 = scmp.eq.s32.totalorder %s15, 0
      %p144 = por %p142, %p143
      %p145 = scmp.le.s32.totalorder 1, %s9
      %p146 = scmp.lt.s32.totalorder %s9, 3
      %p147 = pnand %p145, %p146
      %p148 = pneg %p147
      // Predicated region
      $region9: #{_forward_impl.13} parent=5 // pred_check
        _
      $region10: #{_forward_impl.13} parent=5 // pred_check_branch
        %150 = sbr.rel (%p147) target = $region12
      $region11: #{_forward_impl.13} parent=5 // pred_region
        %s151 = ssub.s32 %s9, 1
      $region12: #{_forward_impl.13} parent=5 // pred_fallthru
        _
      %p152 = scmp.lt.s32.totalorder %s9, 2
      // Predicated region
      $region13: #{_forward_impl.13} parent=5 // pred_check
        %p153 = pneg %p152
      $region14: #{_forward_impl.13} parent=5 // pred_check_branch
        %155 = sbr.rel (%p153) target = $region16
      $region15: #{_forward_impl.13} parent=5 // pred_region
        // Predicated region
        $region17: #{_forward_impl.13} parent=15 // pred_check
          %p156 = pneg %p43
        $region18: #{_forward_impl.13} parent=15 // pred_check_branch
          %158 = sbr.rel (%p156) target = $region20
        $region19: #{_forward_impl.13} parent=15 // pred_region
          %s159 = sand.u32 %s33, 1
          %s160 = sand.u32 %s33, 1
          %s161 = smul.addr %s160, 64
          %s162 = scalar_lea.vmem [#allocation2], %s161
          %s163 = smul.addr %s16, 48
          %s164 = sadd.s32 %s17, %s163
          %s165 = smul.addr %s164, 4
          %s166 = scalar_lea.vmem %s0, %s165
          // Predicated region
          $region21: #{_forward_impl.13} parent=19 // pred_check
            _
          $region22: #{_forward_impl.13} parent=19 // pred_check_branch
            %168 = sbr.rel (0) target = $region24
          $region23: #{_forward_impl.13} parent=19 // pred_region
            // Predicated region
            $region25: #{_forward_impl.13} parent=23 // pred_check
              _
            $region26: #{_forward_impl.13} parent=23 // pred_check_branch
              %170 = sbr.rel target = $region28
            $region27: #{_forward_impl.13} parent=23 // pred_region
              // Predicated region
              $region40: #{_forward_impl.13} parent=27 // pred_check
                _
              $region41: #{_forward_impl.13} parent=27 // pred_check_branch
                %216 = sbr.rel (0) target = $region43
              $region42: #{_forward_impl.13} parent=27 // pred_region
                loop: start=0, step=1, limit=1
                $region44: #{_forward_impl.13} parent=42 // loop_pre_header
                  _
                $region45: #{_forward_impl.13} parent=42 // loop_header
                  %s218 = sphi 0, %s222
                  %p219 = scmp.ge.s32.totalorder %s218, 1
                  %s223 = sphi %s166, %s166
                  %s224 = sphi %s162, %s162
                $region46: #{_forward_impl.13} parent=42 // loop_header_branch
                  %221 = sbr.rel (%p219) target = $region50
                $region47: #{_forward_impl.13} parent=42 // loop_body
                  _
                $region48: #{_forward_impl.13} parent=42 // loop_footer
                  %s222 = sadd.s32 1, %s218
                $region49: #{_forward_impl.13} parent=42 // loop_footer_branch
                  %217 = sbr.rel target = $region45
                $region50: #{_forward_impl.13} parent=42 // loop_exit
                  _
                %s226 = ssub.s32 16, 1
                loop: start=0, step=1, limit=1
                $region51: #{_forward_impl.13} parent=42 // loop_pre_header
                  _
                $region52: #{_forward_impl.13} parent=42 // loop_header
                  %s228 = sphi 0, %s232
                  %p229 = scmp.ge.s32.totalorder %s228, 1
                  %s233 = sphi %s166, %s166
                  %s234 = sphi %s162, %s162
                $region53: #{_forward_impl.13} parent=42 // loop_header_branch
                  %231 = sbr.rel (%p229) target = $region57
                $region54: #{_forward_impl.13} parent=42 // loop_body
                  %v235 = vld [vmem:[%s233] sm:%s226]
                  %236 = vst [vmem:[%s234] sm:%s226] %v235
                  %v237 = vld [vmem:[%s233 + $0xc] sm:%s226]
                  %238 = vst [vmem:[%s234 + $0x4] sm:%s226] %v237
                  %v239 = vld [vmem:[%s233 + $0x18] sm:%s226]
                  %240 = vst [vmem:[%s234 + $0x8] sm:%s226] %v239
                  %v241 = vld [vmem:[%s233 + $0x24] sm:%s226]
                  %242 = vst [vmem:[%s234 + $0xc] sm:%s226] %v241
                  %v243 = vld [vmem:[%s233 + $0x30] sm:%s226]
                  %244 = vst [vmem:[%s234 + $0x10] sm:%s226] %v243
                  %v245 = vld [vmem:[%s233 + $0x3c] sm:%s226]
                  %246 = vst [vmem:[%s234 + $0x14] sm:%s226] %v245
                  %v247 = vld [vmem:[%s233 + $0x48] sm:%s226]
                  %248 = vst [vmem:[%s234 + $0x18] sm:%s226] %v247
                  %v249 = vld [vmem:[%s233 + $0x54] sm:%s226]
                  %250 = vst [vmem:[%s234 + $0x1c] sm:%s226] %v249
                  %v251 = vld [vmem:[%s233 + $0x60] sm:%s226]
                  %252 = vst [vmem:[%s234 + $0x20] sm:%s226] %v251
                  %v253 = vld [vmem:[%s233 + $0x6c] sm:%s226]
                  %254 = vst [vmem:[%s234 + $0x24] sm:%s226] %v253
                  %v255 = vld [vmem:[%s233 + $0x78] sm:%s226]
                  %256 = vst [vmem:[%s234 + $0x28] sm:%s226] %v255
                  %v257 = vld [vmem:[%s233 + $0x84] sm:%s226]
                  %258 = vst [vmem:[%s234 + $0x2c] sm:%s226] %v257
                  %v259 = vld [vmem:[%s233 + $0x90] sm:%s226]
                  %260 = vst [vmem:[%s234 + $0x30] sm:%s226] %v259
                  %v261 = vld [vmem:[%s233 + $0x9c] sm:%s226]
                  %262 = vst [vmem:[%s234 + $0x34] sm:%s226] %v261
                  %v263 = vld [vmem:[%s233 + $0xa8] sm:%s226]
                  %264 = vst [vmem:[%s234 + $0x38] sm:%s226] %v263
                  %v265 = vld [vmem:[%s233 + $0xb4] sm:%s226]
                  %266 = vst [vmem:[%s234 + $0x3c] sm:%s226] %v265
                $region55: #{_forward_impl.13} parent=42 // loop_footer
                  %s232 = sadd.s32 1, %s228
                $region56: #{_forward_impl.13} parent=42 // loop_footer_branch
                  %227 = sbr.rel target = $region52
                $region57: #{_forward_impl.13} parent=42 // loop_exit
                  _
              $region43: #{_forward_impl.13} parent=27 // pred_fallthru
                _
            $region28: #{_forward_impl.13} parent=23 // pred_fallthru
              _
            // Predicated region
            $region29: #{_forward_impl.13} parent=23 // pred_check
              _
            $region30: #{_forward_impl.13} parent=23 // pred_check_branch
              %172 = sbr.rel (0) target = $region32
            $region31: #{_forward_impl.13} parent=23 // pred_region
              %s174 = ssub.s32 16, 1
              loop: start=0, step=1, limit=1
              $region33: #{_forward_impl.13} parent=31 // loop_pre_header
                _
              $region34: #{_forward_impl.13} parent=31 // loop_header
                %s176 = sphi 0, %s180
                %p177 = scmp.ge.s32.totalorder %s176, 1
                %s181 = sphi %s166, %s166
                %s182 = sphi %s162, %s162
              $region35: #{_forward_impl.13} parent=31 // loop_header_branch
                %179 = sbr.rel (%p177) target = $region39
              $region36: #{_forward_impl.13} parent=31 // loop_body
                %v183 = vld [vmem:[%s181] sm:%s174]
                %184 = vst [vmem:[%s182] sm:%s174] %v183
                %v185 = vld [vmem:[%s181 + $0xc] sm:%s174]
                %186 = vst [vmem:[%s182 + $0x4] sm:%s174] %v185
                %v187 = vld [vmem:[%s181 + $0x18] sm:%s174]
                %188 = vst [vmem:[%s182 + $0x8] sm:%s174] %v187
                %v189 = vld [vmem:[%s181 + $0x24] sm:%s174]
                %190 = vst [vmem:[%s182 + $0xc] sm:%s174] %v189
                %v191 = vld [vmem:[%s181 + $0x30] sm:%s174]
                %192 = vst [vmem:[%s182 + $0x10] sm:%s174] %v191
                %v193 = vld [vmem:[%s181 + $0x3c] sm:%s174]
                %194 = vst [vmem:[%s182 + $0x14] sm:%s174] %v193
                %v195 = vld [vmem:[%s181 + $0x48] sm:%s174]
                %196 = vst [vmem:[%s182 + $0x18] sm:%s174] %v195
                %v197 = vld [vmem:[%s181 + $0x54] sm:%s174]
                %198 = vst [vmem:[%s182 + $0x1c] sm:%s174] %v197
                %v199 = vld [vmem:[%s181 + $0x60] sm:%s174]
                %200 = vst [vmem:[%s182 + $0x20] sm:%s174] %v199
                %v201 = vld [vmem:[%s181 + $0x6c] sm:%s174]
                %202 = vst [vmem:[%s182 + $0x24] sm:%s174] %v201
                %v203 = vld [vmem:[%s181 + $0x78] sm:%s174]
                %204 = vst [vmem:[%s182 + $0x28] sm:%s174] %v203
                %v205 = vld [vmem:[%s181 + $0x84] sm:%s174]
                %206 = vst [vmem:[%s182 + $0x2c] sm:%s174] %v205
                %v207 = vld [vmem:[%s181 + $0x90] sm:%s174]
                %208 = vst [vmem:[%s182 + $0x30] sm:%s174] %v207
                %v209 = vld [vmem:[%s181 + $0x9c] sm:%s174]
                %210 = vst [vmem:[%s182 + $0x34] sm:%s174] %v209
                %v211 = vld [vmem:[%s181 + $0xa8] sm:%s174]
                %212 = vst [vmem:[%s182 + $0x38] sm:%s174] %v211
                %v213 = vld [vmem:[%s181 + $0xb4] sm:%s174]
                %214 = vst [vmem:[%s182 + $0x3c] sm:%s174] %v213
              $region37: #{_forward_impl.13} parent=31 // loop_footer
                %s180 = sadd.s32 1, %s176
              $region38: #{_forward_impl.13} parent=31 // loop_footer_branch
                %175 = sbr.rel target = $region34
              $region39: #{_forward_impl.13} parent=31 // loop_exit
                _
            $region32: #{_forward_impl.13} parent=23 // pred_fallthru
              _
          $region24: #{_forward_impl.13} parent=19 // pred_fallthru
            _
          %267 = vnop
        $region20: #{_forward_impl.13} parent=15 // pred_fallthru
          _
        // Predicated region
        $region58: #{_forward_impl.13} parent=15 // pred_check
          %p268 = pneg %p73
        $region59: #{_forward_impl.13} parent=15 // pred_check_branch
          %270 = sbr.rel (%p268) target = $region61
        $region60: #{_forward_impl.13} parent=15 // pred_region
          %s271 = sand.u32 %s63, 1
          %s272 = sand.u32 %s63, 1
          %s273 = smul.addr %s272, 64
          %s274 = scalar_lea.vmem [#allocation3], %s273
          %s275 = sadd.s32 %s17, 1
          %s276 = smul.addr %s16, 48
          %s277 = sadd.s32 %s275, %s276
          %s278 = smul.addr %s277, 4
          %s279 = scalar_lea.vmem %s1, %s278
          // Predicated region
          $region62: #{_forward_impl.13} parent=60 // pred_check
            _
          $region63: #{_forward_impl.13} parent=60 // pred_check_branch
            %281 = sbr.rel (0) target = $region65
          $region64: #{_forward_impl.13} parent=60 // pred_region
            // Predicated region
            $region66: #{_forward_impl.13} parent=64 // pred_check
              _
            $region67: #{_forward_impl.13} parent=64 // pred_check_branch
              %283 = sbr.rel target = $region69
            $region68: #{_forward_impl.13} parent=64 // pred_region
              // Predicated region
              $region81: #{_forward_impl.13} parent=68 // pred_check
                _
              $region82: #{_forward_impl.13} parent=68 // pred_check_branch
                %329 = sbr.rel (0) target = $region84
              $region83: #{_forward_impl.13} parent=68 // pred_region
                loop: start=0, step=1, limit=1
                $region85: #{_forward_impl.13} parent=83 // loop_pre_header
                  _
                $region86: #{_forward_impl.13} parent=83 // loop_header
                  %s331 = sphi 0, %s335
                  %p332 = scmp.ge.s32.totalorder %s331, 1
                  %s336 = sphi %s279, %s279
                  %s337 = sphi %s274, %s274
                $region87: #{_forward_impl.13} parent=83 // loop_header_branch
                  %334 = sbr.rel (%p332) target = $region91
                $region88: #{_forward_impl.13} parent=83 // loop_body
                  _
                $region89: #{_forward_impl.13} parent=83 // loop_footer
                  %s335 = sadd.s32 1, %s331
                $region90: #{_forward_impl.13} parent=83 // loop_footer_branch
                  %330 = sbr.rel target = $region86
                $region91: #{_forward_impl.13} parent=83 // loop_exit
                  _
                %s339 = ssub.s32 16, 1
                loop: start=0, step=1, limit=1
                $region92: #{_forward_impl.13} parent=83 // loop_pre_header
                  _
                $region93: #{_forward_impl.13} parent=83 // loop_header
                  %s341 = sphi 0, %s345
                  %p342 = scmp.ge.s32.totalorder %s341, 1
                  %s346 = sphi %s279, %s279
                  %s347 = sphi %s274, %s274
                $region94: #{_forward_impl.13} parent=83 // loop_header_branch
                  %344 = sbr.rel (%p342) target = $region98
                $region95: #{_forward_impl.13} parent=83 // loop_body
                  %v348 = vld [vmem:[%s346] sm:%s339]
                  %349 = vst [vmem:[%s347] sm:%s339] %v348
                  %v350 = vld [vmem:[%s346 + $0xc] sm:%s339]
                  %351 = vst [vmem:[%s347 + $0x4] sm:%s339] %v350
                  %v352 = vld [vmem:[%s346 + $0x18] sm:%s339]
                  %353 = vst [vmem:[%s347 + $0x8] sm:%s339] %v352
                  %v354 = vld [vmem:[%s346 + $0x24] sm:%s339]
                  %355 = vst [vmem:[%s347 + $0xc] sm:%s339] %v354
                  %v356 = vld [vmem:[%s346 + $0x30] sm:%s339]
                  %357 = vst [vmem:[%s347 + $0x10] sm:%s339] %v356
                  %v358 = vld [vmem:[%s346 + $0x3c] sm:%s339]
                  %359 = vst [vmem:[%s347 + $0x14] sm:%s339] %v358
                  %v360 = vld [vmem:[%s346 + $0x48] sm:%s339]
                  %361 = vst [vmem:[%s347 + $0x18] sm:%s339] %v360
                  %v362 = vld [vmem:[%s346 + $0x54] sm:%s339]
                  %363 = vst [vmem:[%s347 + $0x1c] sm:%s339] %v362
                  %v364 = vld [vmem:[%s346 + $0x60] sm:%s339]
                  %365 = vst [vmem:[%s347 + $0x20] sm:%s339] %v364
                  %v366 = vld [vmem:[%s346 + $0x6c] sm:%s339]
                  %367 = vst [vmem:[%s347 + $0x24] sm:%s339] %v366
                  %v368 = vld [vmem:[%s346 + $0x78] sm:%s339]
                  %369 = vst [vmem:[%s347 + $0x28] sm:%s339] %v368
                  %v370 = vld [vmem:[%s346 + $0x84] sm:%s339]
                  %371 = vst [vmem:[%s347 + $0x2c] sm:%s339] %v370
                  %v372 = vld [vmem:[%s346 + $0x90] sm:%s339]
                  %373 = vst [vmem:[%s347 + $0x30] sm:%s339] %v372
                  %v374 = vld [vmem:[%s346 + $0x9c] sm:%s339]
                  %375 = vst [vmem:[%s347 + $0x34] sm:%s339] %v374
                  %v376 = vld [vmem:[%s346 + $0xa8] sm:%s339]
                  %377 = vst [vmem:[%s347 + $0x38] sm:%s339] %v376
                  %v378 = vld [vmem:[%s346 + $0xb4] sm:%s339]
                  %379 = vst [vmem:[%s347 + $0x3c] sm:%s339] %v378
                $region96: #{_forward_impl.13} parent=83 // loop_footer
                  %s345 = sadd.s32 1, %s341
                $region97: #{_forward_impl.13} parent=83 // loop_footer_branch
                  %340 = sbr.rel target = $region93
                $region98: #{_forward_impl.13} parent=83 // loop_exit
                  _
              $region84: #{_forward_impl.13} parent=68 // pred_fallthru
                _
            $region69: #{_forward_impl.13} parent=64 // pred_fallthru
              _
            // Predicated region
            $region70: #{_forward_impl.13} parent=64 // pred_check
              _
            $region71: #{_forward_impl.13} parent=64 // pred_check_branch
              %285 = sbr.rel (0) target = $region73
            $region72: #{_forward_impl.13} parent=64 // pred_region
              %s287 = ssub.s32 16, 1
              loop: start=0, step=1, limit=1
              $region74: #{_forward_impl.13} parent=72 // loop_pre_header
                _
              $region75: #{_forward_impl.13} parent=72 // loop_header
                %s289 = sphi 0, %s293
                %p290 = scmp.ge.s32.totalorder %s289, 1
                %s294 = sphi %s279, %s279
                %s295 = sphi %s274, %s274
              $region76: #{_forward_impl.13} parent=72 // loop_header_branch
                %292 = sbr.rel (%p290) target = $region80
              $region77: #{_forward_impl.13} parent=72 // loop_body
                %v296 = vld [vmem:[%s294] sm:%s287]
                %297 = vst [vmem:[%s295] sm:%s287] %v296
                %v298 = vld [vmem:[%s294 + $0xc] sm:%s287]
                %299 = vst [vmem:[%s295 + $0x4] sm:%s287] %v298
                %v300 = vld [vmem:[%s294 + $0x18] sm:%s287]
                %301 = vst [vmem:[%s295 + $0x8] sm:%s287] %v300
                %v302 = vld [vmem:[%s294 + $0x24] sm:%s287]
                %303 = vst [vmem:[%s295 + $0xc] sm:%s287] %v302
                %v304 = vld [vmem:[%s294 + $0x30] sm:%s287]
                %305 = vst [vmem:[%s295 + $0x10] sm:%s287] %v304
                %v306 = vld [vmem:[%s294 + $0x3c] sm:%s287]
                %307 = vst [vmem:[%s295 + $0x14] sm:%s287] %v306
                %v308 = vld [vmem:[%s294 + $0x48] sm:%s287]
                %309 = vst [vmem:[%s295 + $0x18] sm:%s287] %v308
                %v310 = vld [vmem:[%s294 + $0x54] sm:%s287]
                %311 = vst [vmem:[%s295 + $0x1c] sm:%s287] %v310
                %v312 = vld [vmem:[%s294 + $0x60] sm:%s287]
                %313 = vst [vmem:[%s295 + $0x20] sm:%s287] %v312
                %v314 = vld [vmem:[%s294 + $0x6c] sm:%s287]
                %315 = vst [vmem:[%s295 + $0x24] sm:%s287] %v314
                %v316 = vld [vmem:[%s294 + $0x78] sm:%s287]
                %317 = vst [vmem:[%s295 + $0x28] sm:%s287] %v316
                %v318 = vld [vmem:[%s294 + $0x84] sm:%s287]
                %319 = vst [vmem:[%s295 + $0x2c] sm:%s287] %v318
                %v320 = vld [vmem:[%s294 + $0x90] sm:%s287]
                %321 = vst [vmem:[%s295 + $0x30] sm:%s287] %v320
                %v322 = vld [vmem:[%s294 + $0x9c] sm:%s287]
                %323 = vst [vmem:[%s295 + $0x34] sm:%s287] %v322
                %v324 = vld [vmem:[%s294 + $0xa8] sm:%s287]
                %325 = vst [vmem:[%s295 + $0x38] sm:%s287] %v324
                %v326 = vld [vmem:[%s294 + $0xb4] sm:%s287]
                %327 = vst [vmem:[%s295 + $0x3c] sm:%s287] %v326
              $region78: #{_forward_impl.13} parent=72 // loop_footer
                %s293 = sadd.s32 1, %s289
              $region79: #{_forward_impl.13} parent=72 // loop_footer_branch
                %288 = sbr.rel target = $region75
              $region80: #{_forward_impl.13} parent=72 // loop_exit
                _
            $region73: #{_forward_impl.13} parent=64 // pred_fallthru
              _
          $region65: #{_forward_impl.13} parent=60 // pred_fallthru
            _
          %380 = vnop
        $region61: #{_forward_impl.13} parent=15 // pred_fallthru
          _
        // Predicated region
        $region99: #{_forward_impl.13} parent=15 // pred_check
          %p381 = pneg %p103
        $region100: #{_forward_impl.13} parent=15 // pred_check_branch
          %383 = sbr.rel (%p381) target = $region102
        $region101: #{_forward_impl.13} parent=15 // pred_region
          %s384 = sand.u32 %s93, 1
          %s385 = sand.u32 %s93, 1
          %s386 = smul.addr %s385, 64
          %s387 = scalar_lea.vmem [#allocation4], %s386
          %s388 = sadd.s32 %s17, 2
          %s389 = smul.addr %s16, 48
          %s390 = sadd.s32 %s388, %s389
          %s391 = smul.addr %s390, 4
          %s392 = scalar_lea.vmem %s2, %s391
          // Predicated region
          $region103: #{_forward_impl.13} parent=101 // pred_check
            _
          $region104: #{_forward_impl.13} parent=101 // pred_check_branch
            %394 = sbr.rel (0) target = $region106
          $region105: #{_forward_impl.13} parent=101 // pred_region
            // Predicated region
            $region107: #{_forward_impl.13} parent=105 // pred_check
              _
            $region108: #{_forward_impl.13} parent=105 // pred_check_branch
              %396 = sbr.rel target = $region110
            $region109: #{_forward_impl.13} parent=105 // pred_region
              // Predicated region
              $region122: #{_forward_impl.13} parent=109 // pred_check
                _
              $region123: #{_forward_impl.13} parent=109 // pred_check_branch
                %442 = sbr.rel (0) target = $region125
              $region124: #{_forward_impl.13} parent=109 // pred_region
                loop: start=0, step=1, limit=1
                $region126: #{_forward_impl.13} parent=124 // loop_pre_header
                  _
                $region127: #{_forward_impl.13} parent=124 // loop_header
                  %s444 = sphi 0, %s448
                  %p445 = scmp.ge.s32.totalorder %s444, 1
                  %s449 = sphi %s392, %s392
                  %s450 = sphi %s387, %s387
                $region128: #{_forward_impl.13} parent=124 // loop_header_branch
                  %447 = sbr.rel (%p445) target = $region132
                $region129: #{_forward_impl.13} parent=124 // loop_body
                  _
                $region130: #{_forward_impl.13} parent=124 // loop_footer
                  %s448 = sadd.s32 1, %s444
                $region131: #{_forward_impl.13} parent=124 // loop_footer_branch
                  %443 = sbr.rel target = $region127
                $region132: #{_forward_impl.13} parent=124 // loop_exit
                  _
                %s452 = ssub.s32 16, 1
                loop: start=0, step=1, limit=1
                $region133: #{_forward_impl.13} parent=124 // loop_pre_header
                  _
                $region134: #{_forward_impl.13} parent=124 // loop_header
                  %s454 = sphi 0, %s458
                  %p455 = scmp.ge.s32.totalorder %s454, 1
                  %s459 = sphi %s392, %s392
                  %s460 = sphi %s387, %s387
                $region135: #{_forward_impl.13} parent=124 // loop_header_branch
                  %457 = sbr.rel (%p455) target = $region139
                $region136: #{_forward_impl.13} parent=124 // loop_body
                  %v461 = vld [vmem:[%s459] sm:%s452]
                  %462 = vst [vmem:[%s460] sm:%s452] %v461
                  %v463 = vld [vmem:[%s459 + $0xc] sm:%s452]
                  %464 = vst [vmem:[%s460 + $0x4] sm:%s452] %v463
                  %v465 = vld [vmem:[%s459 + $0x18] sm:%s452]
                  %466 = vst [vmem:[%s460 + $0x8] sm:%s452] %v465
                  %v467 = vld [vmem:[%s459 + $0x24] sm:%s452]
                  %468 = vst [vmem:[%s460 + $0xc] sm:%s452] %v467
                  %v469 = vld [vmem:[%s459 + $0x30] sm:%s452]
                  %470 = vst [vmem:[%s460 + $0x10] sm:%s452] %v469
                  %v471 = vld [vmem:[%s459 + $0x3c] sm:%s452]
                  %472 = vst [vmem:[%s460 + $0x14] sm:%s452] %v471
                  %v473 = vld [vmem:[%s459 + $0x48] sm:%s452]
                  %474 = vst [vmem:[%s460 + $0x18] sm:%s452] %v473
                  %v475 = vld [vmem:[%s459 + $0x54] sm:%s452]
                  %476 = vst [vmem:[%s460 + $0x1c] sm:%s452] %v475
                  %v477 = vld [vmem:[%s459 + $0x60] sm:%s452]
                  %478 = vst [vmem:[%s460 + $0x20] sm:%s452] %v477
                  %v479 = vld [vmem:[%s459 + $0x6c] sm:%s452]
                  %480 = vst [vmem:[%s460 + $0x24] sm:%s452] %v479
                  %v481 = vld [vmem:[%s459 + $0x78] sm:%s452]
                  %482 = vst [vmem:[%s460 + $0x28] sm:%s452] %v481
                  %v483 = vld [vmem:[%s459 + $0x84] sm:%s452]
                  %484 = vst [vmem:[%s460 + $0x2c] sm:%s452] %v483
                  %v485 = vld [vmem:[%s459 + $0x90] sm:%s452]
                  %486 = vst [vmem:[%s460 + $0x30] sm:%s452] %v485
                  %v487 = vld [vmem:[%s459 + $0x9c] sm:%s452]
                  %488 = vst [vmem:[%s460 + $0x34] sm:%s452] %v487
                  %v489 = vld [vmem:[%s459 + $0xa8] sm:%s452]
                  %490 = vst [vmem:[%s460 + $0x38] sm:%s452] %v489
                  %v491 = vld [vmem:[%s459 + $0xb4] sm:%s452]
                  %492 = vst [vmem:[%s460 + $0x3c] sm:%s452] %v491
                $region137: #{_forward_impl.13} parent=124 // loop_footer
                  %s458 = sadd.s32 1, %s454
                $region138: #{_forward_impl.13} parent=124 // loop_footer_branch
                  %453 = sbr.rel target = $region134
                $region139: #{_forward_impl.13} parent=124 // loop_exit
                  _
              $region125: #{_forward_impl.13} parent=109 // pred_fallthru
                _
            $region110: #{_forward_impl.13} parent=105 // pred_fallthru
              _
            // Predicated region
            $region111: #{_forward_impl.13} parent=105 // pred_check
              _
            $region112: #{_forward_impl.13} parent=105 // pred_check_branch
              %398 = sbr.rel (0) target = $region114
            $region113: #{_forward_impl.13} parent=105 // pred_region
              %s400 = ssub.s32 16, 1
              loop: start=0, step=1, limit=1
              $region115: #{_forward_impl.13} parent=113 // loop_pre_header
                _
              $region116: #{_forward_impl.13} parent=113 // loop_header
                %s402 = sphi 0, %s406
                %p403 = scmp.ge.s32.totalorder %s402, 1
                %s407 = sphi %s392, %s392
                %s408 = sphi %s387, %s387
              $region117: #{_forward_impl.13} parent=113 // loop_header_branch
                %405 = sbr.rel (%p403) target = $region121
              $region118: #{_forward_impl.13} parent=113 // loop_body
                %v409 = vld [vmem:[%s407] sm:%s400]
                %410 = vst [vmem:[%s408] sm:%s400] %v409
                %v411 = vld [vmem:[%s407 + $0xc] sm:%s400]
                %412 = vst [vmem:[%s408 + $0x4] sm:%s400] %v411
                %v413 = vld [vmem:[%s407 + $0x18] sm:%s400]
                %414 = vst [vmem:[%s408 + $0x8] sm:%s400] %v413
                %v415 = vld [vmem:[%s407 + $0x24] sm:%s400]
                %416 = vst [vmem:[%s408 + $0xc] sm:%s400] %v415
                %v417 = vld [vmem:[%s407 + $0x30] sm:%s400]
                %418 = vst [vmem:[%s408 + $0x10] sm:%s400] %v417
                %v419 = vld [vmem:[%s407 + $0x3c] sm:%s400]
                %420 = vst [vmem:[%s408 + $0x14] sm:%s400] %v419
                %v421 = vld [vmem:[%s407 + $0x48] sm:%s400]
                %422 = vst [vmem:[%s408 + $0x18] sm:%s400] %v421
                %v423 = vld [vmem:[%s407 + $0x54] sm:%s400]
                %424 = vst [vmem:[%s408 + $0x1c] sm:%s400] %v423
                %v425 = vld [vmem:[%s407 + $0x60] sm:%s400]
                %426 = vst [vmem:[%s408 + $0x20] sm:%s400] %v425
                %v427 = vld [vmem:[%s407 + $0x6c] sm:%s400]
                %428 = vst [vmem:[%s408 + $0x24] sm:%s400] %v427
                %v429 = vld [vmem:[%s407 + $0x78] sm:%s400]
                %430 = vst [vmem:[%s408 + $0x28] sm:%s400] %v429
                %v431 = vld [vmem:[%s407 + $0x84] sm:%s400]
                %432 = vst [vmem:[%s408 + $0x2c] sm:%s400] %v431
                %v433 = vld [vmem:[%s407 + $0x90] sm:%s400]
                %434 = vst [vmem:[%s408 + $0x30] sm:%s400] %v433
                %v435 = vld [vmem:[%s407 + $0x9c] sm:%s400]
                %436 = vst [vmem:[%s408 + $0x34] sm:%s400] %v435
                %v437 = vld [vmem:[%s407 + $0xa8] sm:%s400]
                %438 = vst [vmem:[%s408 + $0x38] sm:%s400] %v437
                %v439 = vld [vmem:[%s407 + $0xb4] sm:%s400]
                %440 = vst [vmem:[%s408 + $0x3c] sm:%s400] %v439
              $region119: #{_forward_impl.13} parent=113 // loop_footer
                %s406 = sadd.s32 1, %s402
              $region120: #{_forward_impl.13} parent=113 // loop_footer_branch
                %401 = sbr.rel target = $region116
              $region121: #{_forward_impl.13} parent=113 // loop_exit
                _
            $region114: #{_forward_impl.13} parent=105 // pred_fallthru
              _
          $region106: #{_forward_impl.13} parent=101 // pred_fallthru
            _
          %493 = vnop
        $region102: #{_forward_impl.13} parent=15 // pred_fallthru
          _
      $region16: #{_forward_impl.13} parent=5 // pred_fallthru
        _
      %p494 = scmp.le.s32.totalorder 1, %s9
      %p495 = scmp.lt.s32.totalorder %s9, 3
      %p496 = pnand %p494, %p495
      %p497 = pneg %p496
      // Predicated region
      $region140: #{_forward_impl.13} parent=5 // pred_check
        _
      $region141: #{_forward_impl.13} parent=5 // pred_check_branch
        %499 = sbr.rel (%p496) target = $region143
      $region142: #{_forward_impl.13} parent=5 // pred_region
        %s500 = ssub.s32 %s9, 1
        %s501 = sand.u32 %s36, 1
        %s502 = sand.u32 %s36, 1
        %s503 = smul.addr %s502, 64
        %s504 = scalar_lea.vmem [#allocation2], %s503
        // Predicated region
        $region144: #{_forward_impl.13} parent=142 // pred_check
          %p505 = pneg %p49
        $region145: #{_forward_impl.13} parent=142 // pred_check_branch
          %507 = sbr.rel (%p505) target = $region147
        $region146: #{_forward_impl.13} parent=142 // pred_region
          _
        $region147: #{_forward_impl.13} parent=142 // pred_fallthru
          _
        %s508 = sand.u32 %s66, 1
        %s509 = sand.u32 %s66, 1
        %s510 = smul.addr %s509, 64
        %s511 = scalar_lea.vmem [#allocation3], %s510
        // Predicated region
        $region148: #{_forward_impl.13} parent=142 // pred_check
          %p512 = pneg %p79
        $region149: #{_forward_impl.13} parent=142 // pred_check_branch
          %514 = sbr.rel (%p512) target = $region151
        $region150: #{_forward_impl.13} parent=142 // pred_region
          _
        $region151: #{_forward_impl.13} parent=142 // pred_fallthru
          _
        %s515 = sand.u32 %s96, 1
        %s516 = sand.u32 %s96, 1
        %s517 = smul.addr %s516, 64
        %s518 = scalar_lea.vmem [#allocation4], %s517
        // Predicated region
        $region152: #{_forward_impl.13} parent=142 // pred_check
          %p519 = pneg %p109
        $region153: #{_forward_impl.13} parent=142 // pred_check_branch
          %521 = sbr.rel (%p519) target = $region155
        $region154: #{_forward_impl.13} parent=142 // pred_region
          _
        $region155: #{_forward_impl.13} parent=142 // pred_fallthru
          _
        %s522 = sand.u32 %s36, 1
        %s523 = sand.u32 %s36, 1
        %s524 = smul.addr %s523, 64
        %s525 = scalar_lea.vmem [#allocation2], %s524
        %p526 = pneg %p49
        %p527 = pneg %p46
        %s528 = sand.u32 %s66, 1
        %s529 = sand.u32 %s66, 1
        %s530 = smul.addr %s529, 64
        %s531 = scalar_lea.vmem [#allocation3], %s530
        %p532 = pneg %p79
        %p533 = pneg %p76
        %s534 = sand.u32 %s96, 1
        %s535 = sand.u32 %s96, 1
        %s536 = smul.addr %s535, 64
        %s537 = scalar_lea.vmem [#allocation4], %s536
        %p538 = pneg %p109
        %p539 = pneg %p106
        %p540 = pneg %p137
        %p541 = pneg %p134
        %p542 = scmp.lt.s32.totalorder %s18, 1
        %s543 = scalar_select %p542, %s18, 1
        %p544 = scmp.lt.s32.totalorder %s19, 0
        %s545 = scalar_select %p544, %s19, 0
        %s546 = smul.addr %s543, 16
        %s547 = sadd.s32 %s545, %s546
        %s548 = smul.addr %s547, 4
        %s549 = scalar_lea.vmem %s3, %s548
        %s550 = sadd.s32 %s19, 1
        %s551 = sadd.s32 %s19, 2
        %p552 = scmp.lt.s32.totalorder %s18, 1
        %s553 = scalar_select %p552, %s18, 1
        %p554 = scmp.lt.s32.totalorder %s19, 0
        %s555 = scalar_select %p554, %s19, 0
        %s556 = smul.addr %s553, 16
        %s557 = sadd.s32 %s555, %s556
        %s558 = smul.addr %s557, 4
        %s559 = scalar_lea.vmem %s3, %s558
        %v560 = vld [vmem:[%s504] sm:$0xf]
        %v561 = vld [vmem:[%s504 + $0x4] sm:$0xf]
        %v562 = vld [vmem:[%s504 + $0x8] sm:$0xf]
        %v563 = vld [vmem:[%s504 + $0xc] sm:$0xf]
        %v564 = vld [vmem:[%s504 + $0x10] sm:$0xf]
        %v565 = vld [vmem:[%s504 + $0x14] sm:$0xf]
        %v566 = vld [vmem:[%s504 + $0x18] sm:$0xf]
        %v567 = vld [vmem:[%s504 + $0x1c] sm:$0xf]
        %v568 = vld [vmem:[%s504 + $0x20] sm:$0xf]
        %v569 = vld [vmem:[%s504 + $0x24] sm:$0xf]
        %v570 = vld [vmem:[%s504 + $0x28] sm:$0xf]
        %v571 = vld [vmem:[%s504 + $0x2c] sm:$0xf]
        %v572 = vld [vmem:[%s504 + $0x30] sm:$0xf]
        %v573 = vld [vmem:[%s504 + $0x34] sm:$0xf]
        %v574 = vld [vmem:[%s504 + $0x38] sm:$0xf]
        %v575 = vld [vmem:[%s504 + $0x3c] sm:$0xf]
        %v576 = vld [vmem:[%s511] sm:$0xf]
        %v577 = vld [vmem:[%s511 + $0x4] sm:$0xf]
        %v578 = vld [vmem:[%s511 + $0x8] sm:$0xf]
        %v579 = vld [vmem:[%s511 + $0xc] sm:$0xf]
        %v580 = vld [vmem:[%s511 + $0x10] sm:$0xf]
        %v581 = vld [vmem:[%s511 + $0x14] sm:$0xf]
        %v582 = vld [vmem:[%s511 + $0x18] sm:$0xf]
        %v583 = vld [vmem:[%s511 + $0x1c] sm:$0xf]
        %v584 = vld [vmem:[%s511 + $0x20] sm:$0xf]
        %v585 = vld [vmem:[%s511 + $0x24] sm:$0xf]
        %v586 = vld [vmem:[%s511 + $0x28] sm:$0xf]
        %v587 = vld [vmem:[%s511 + $0x2c] sm:$0xf]
        %v588 = vld [vmem:[%s511 + $0x30] sm:$0xf]
        %v589 = vld [vmem:[%s511 + $0x34] sm:$0xf]
        %v590 = vld [vmem:[%s511 + $0x38] sm:$0xf]
        %v591 = vld [vmem:[%s511 + $0x3c] sm:$0xf]
        %v592 = vld [vmem:[%s518] sm:$0xf]
        %v593 = vld [vmem:[%s518 + $0x4] sm:$0xf]
        %v594 = vld [vmem:[%s518 + $0x8] sm:$0xf]
        %v595 = vld [vmem:[%s518 + $0xc] sm:$0xf]
        %v596 = vld [vmem:[%s518 + $0x10] sm:$0xf]
        %v597 = vld [vmem:[%s518 + $0x14] sm:$0xf]
        %v598 = vld [vmem:[%s518 + $0x18] sm:$0xf]
        %v599 = vld [vmem:[%s518 + $0x1c] sm:$0xf]
        %v600 = vld [vmem:[%s518 + $0x20] sm:$0xf]
        %v601 = vld [vmem:[%s518 + $0x24] sm:$0xf]
        %v602 = vld [vmem:[%s518 + $0x28] sm:$0xf]
        %v603 = vld [vmem:[%s518 + $0x2c] sm:$0xf]
        %v604 = vld [vmem:[%s518 + $0x30] sm:$0xf]
        %v605 = vld [vmem:[%s518 + $0x34] sm:$0xf]
        %v606 = vld [vmem:[%s518 + $0x38] sm:$0xf]
        %v607 = vld [vmem:[%s518 + $0x3c] sm:$0xf]
        %v624 = vunpack.c.l.b16 %v560
        %v625 = vunpack.c.l.b16 %v561
        %v626 = vunpack.c.l.b16 %v562
        %v627 = vunpack.c.l.b16 %v563
        %v628 = vunpack.c.l.b16 %v564
        %v629 = vunpack.c.l.b16 %v565
        %v630 = vunpack.c.l.b16 %v566
        %v631 = vunpack.c.l.b16 %v567
        %v632 = vunpack.c.l.b16 %v568
        %v633 = vunpack.c.l.b16 %v569
        %v634 = vunpack.c.l.b16 %v570
        %v635 = vunpack.c.l.b16 %v571
        %v636 = vunpack.c.l.b16 %v572
        %v637 = vunpack.c.l.b16 %v573
        %v638 = vunpack.c.l.b16 %v574
        %v639 = vunpack.c.l.b16 %v575
        %v640 = vpack.c.b16 %v625, %v624
        %v641 = vpack.c.b16 %v627, %v626
        %v642 = vpack.c.b16 %v629, %v628
        %v643 = vpack.c.b16 %v631, %v630
        %v644 = vpack.c.b16 %v633, %v632
        %v645 = vpack.c.b16 %v635, %v634
        %v646 = vpack.c.b16 %v637, %v636
        %v647 = vpack.c.b16 %v639, %v638
        %v664 = vunpack.c.l.b16 %v576
        %v665 = vunpack.c.l.b16 %v577
        %v666 = vunpack.c.l.b16 %v578
        %v667 = vunpack.c.l.b16 %v579
        %v668 = vunpack.c.l.b16 %v580
        %v669 = vunpack.c.l.b16 %v581
        %v670 = vunpack.c.l.b16 %v582
        %v671 = vunpack.c.l.b16 %v583
        %v672 = vunpack.c.l.b16 %v584
        %v673 = vunpack.c.l.b16 %v585
        %v674 = vunpack.c.l.b16 %v586
        %v675 = vunpack.c.l.b16 %v587
        %v676 = vunpack.c.l.b16 %v588
        %v677 = vunpack.c.l.b16 %v589
        %v678 = vunpack.c.l.b16 %v590
        %v679 = vunpack.c.l.b16 %v591
        %v680 = vpack.c.b16 %v665, %v664
        %v681 = vpack.c.b16 %v667, %v666
        %v682 = vpack.c.b16 %v669, %v668
        %v683 = vpack.c.b16 %v671, %v670
        %v684 = vpack.c.b16 %v673, %v672
        %v685 = vpack.c.b16 %v675, %v674
        %v686 = vpack.c.b16 %v677, %v676
        %v687 = vpack.c.b16 %v679, %v678
        %vm688 = vcmask 523264
        %v690 = vsel %vm688, %v640, 0
        %v693 = vsel %vm688, %v641, 0
        %v696 = vsel %vm688, %v642, 0
        %v699 = vsel %vm688, %v643, 0
        %v702 = vsel %vm688, %v644, 0
        %v705 = vsel %vm688, %v645, 0
        %v708 = vsel %vm688, %v646, 0
        %v711 = vsel %vm688, %v647, 0
        %v714 = vsel %vm688, %v680, 0
        %v717 = vsel %vm688, %v681, 0
        %v720 = vsel %vm688, %v682, 0
        %v723 = vsel %vm688, %v683, 0
        %v726 = vsel %vm688, %v684, 0
        %v729 = vsel %vm688, %v685, 0
        %v732 = vsel %vm688, %v686, 0
        %v735 = vsel %vm688, %v687, 0
        %737 = vmatpush.bf16.xpose.msra.mxu0 %v735
        %738 = vmatpush.bf16.xpose.msra.mxu0 %v732
        %739 = vmatpush.bf16.xpose.msra.mxu0 %v729
        %740 = vmatpush.bf16.xpose.msra.mxu0 %v726
        %741 = vmatpush.bf16.xpose.msra.mxu0 %v723
        %742 = vmatpush.bf16.xpose.msra.mxu0 %v720
        %743 = vmatpush.bf16.xpose.msra.mxu0 %v717
        %744 = vmatpush.bf16.xpose.msra.mxu0 %v714
        %745 = vmatmul.bf16.gmra.mxu0 %v690
        %v746 = vpop.f32.mrf.mxu0
        %v747 = vadd.f32 0.0, %v746
        %v748 = vpop.f32.mrf.mxu0
        %v749 = vadd.f32 0.0, %v748
        %750 = vmatmul.bf16.gmra.mxu0 %v693
        %v751 = vpop.f32.mrf.mxu0
        %v752 = vadd.f32 0.0, %v751
        %v753 = vpop.f32.mrf.mxu0
        %v754 = vadd.f32 0.0, %v753
        %755 = vmatmul.bf16.gmra.mxu0 %v696
        %v756 = vpop.f32.mrf.mxu0
        %v757 = vadd.f32 0.0, %v756
        %v758 = vpop.f32.mrf.mxu0
        %v759 = vadd.f32 0.0, %v758
        %760 = vmatmul.bf16.gmra.mxu0 %v699
        %v761 = vpop.f32.mrf.mxu0
        %v762 = vadd.f32 0.0, %v761
        %v763 = vpop.f32.mrf.mxu0
        %v764 = vadd.f32 0.0, %v763
        %765 = vmatmul.bf16.gmra.mxu0 %v702
        %v766 = vpop.f32.mrf.mxu0
        %v767 = vadd.f32 0.0, %v766
        %v768 = vpop.f32.mrf.mxu0
        %v769 = vadd.f32 0.0, %v768
        %770 = vmatmul.bf16.gmra.mxu0 %v705
        %v771 = vpop.f32.mrf.mxu0
        %v772 = vadd.f32 0.0, %v771
        %v773 = vpop.f32.mrf.mxu0
        %v774 = vadd.f32 0.0, %v773
        %775 = vmatmul.bf16.gmra.mxu0 %v708
        %v776 = vpop.f32.mrf.mxu0
        %v777 = vadd.f32 0.0, %v776
        %v778 = vpop.f32.mrf.mxu0
        %v779 = vadd.f32 0.0, %v778
        %780 = vmatmul.bf16.gmra.mxu0 %v711
        %v781 = vpop.f32.mrf.mxu0
        %v782 = vadd.f32 0.0, %v781
        %v783 = vpop.f32.mrf.mxu0
        %v784 = vadd.f32 0.0, %v783
        %785 = vdwg.mxu0
        %v786 = vmul.f32 %v747, 0.125
        %v787 = vmul.f32 %v749, 0.125
        %v788 = vmul.f32 %v752, 0.125
        %v789 = vmul.f32 %v754, 0.125
        %v790 = vmul.f32 %v757, 0.125
        %v791 = vmul.f32 %v759, 0.125
        %v792 = vmul.f32 %v762, 0.125
        %v793 = vmul.f32 %v764, 0.125
        %v794 = vmul.f32 %v767, 0.125
        %v795 = vmul.f32 %v769, 0.125
        %v796 = vmul.f32 %v772, 0.125
        %v797 = vmul.f32 %v774, 0.125
        %v798 = vmul.f32 %v777, 0.125
        %v799 = vmul.f32 %v779, 0.125
        %v800 = vmul.f32 %v782, 0.125
        %v801 = vmul.f32 %v784, 0.125
        %802 = vmax.xlane.f32.xlu0 %v786
        %v803 = vpop.xlane.xlu0 %802
        %804 = vmax.xlane.f32.xlu0 %v787
        %v805 = vpop.xlane.xlu0 %804
        %806 = vmax.xlane.f32.xlu0 %v788
        %v807 = vpop.xlane.xlu0 %806
        %808 = vmax.xlane.f32.xlu0 %v789
        %v809 = vpop.xlane.xlu0 %808
        %810 = vmax.xlane.f32.xlu0 %v790
        %v811 = vpop.xlane.xlu0 %810
        %812 = vmax.xlane.f32.xlu0 %v791
        %v813 = vpop.xlane.xlu0 %812
        %814 = vmax.xlane.f32.xlu0 %v792
        %v815 = vpop.xlane.xlu0 %814
        %816 = vmax.xlane.f32.xlu0 %v793
        %v817 = vpop.xlane.xlu0 %816
        %818 = vmax.xlane.f32.xlu0 %v794
        %v819 = vpop.xlane.xlu0 %818
        %820 = vmax.xlane.f32.xlu0 %v795
        %v821 = vpop.xlane.xlu0 %820
        %822 = vmax.xlane.f32.xlu0 %v796
        %v823 = vpop.xlane.xlu0 %822
        %824 = vmax.xlane.f32.xlu0 %v797
        %v825 = vpop.xlane.xlu0 %824
        %826 = vmax.xlane.f32.xlu0 %v798
        %v827 = vpop.xlane.xlu0 %826
        %828 = vmax.xlane.f32.xlu0 %v799
        %v829 = vpop.xlane.xlu0 %828
        %830 = vmax.xlane.f32.xlu0 %v800
        %v831 = vpop.xlane.xlu0 %830
        %832 = vmax.xlane.f32.xlu0 %v801
        %v833 = vpop.xlane.xlu0 %832
        %v834 = vsub.f32 %v786, %v803
        %v835 = vsub.f32 %v787, %v805
        %v836 = vsub.f32 %v788, %v807
        %v837 = vsub.f32 %v789, %v809
        %v838 = vsub.f32 %v790, %v811
        %v839 = vsub.f32 %v791, %v813
        %v840 = vsub.f32 %v792, %v815
        %v841 = vsub.f32 %v793, %v817
        %v842 = vsub.f32 %v794, %v819
        %v843 = vsub.f32 %v795, %v821
        %v844 = vsub.f32 %v796, %v823
        %v845 = vsub.f32 %v797, %v825
        %v846 = vsub.f32 %v798, %v827
        %v847 = vsub.f32 %v799, %v829
        %v848 = vsub.f32 %v800, %v831
        %v849 = vsub.f32 %v801, %v833
        %v850 = vmul.f32 %v834, 1.442695
        %v851 = vpow.pop %v850
        %v852 = vmul.f32 %v835, 1.442695
        %v853 = vpow.pop %v852
        %v854 = vmul.f32 %v836, 1.442695
        %v855 = vpow.pop %v854
        %v856 = vmul.f32 %v837, 1.442695
        %v857 = vpow.pop %v856
        %v858 = vmul.f32 %v838, 1.442695
        %v859 = vpow.pop %v858
        %v860 = vmul.f32 %v839, 1.442695
        %v861 = vpow.pop %v860
        %v862 = vmul.f32 %v840, 1.442695
        %v863 = vpow.pop %v862
        %v864 = vmul.f32 %v841, 1.442695
        %v865 = vpow.pop %v864
        %v866 = vmul.f32 %v842, 1.442695
        %v867 = vpow.pop %v866
        %v868 = vmul.f32 %v843, 1.442695
        %v869 = vpow.pop %v868
        %v870 = vmul.f32 %v844, 1.442695
        %v871 = vpow.pop %v870
        %v872 = vmul.f32 %v845, 1.442695
        %v873 = vpow.pop %v872
        %v874 = vmul.f32 %v846, 1.442695
        %v875 = vpow.pop %v874
        %v876 = vmul.f32 %v847, 1.442695
        %v877 = vpow.pop %v876
        %v878 = vmul.f32 %v848, 1.442695
        %v879 = vpow.pop %v878
        %v880 = vmul.f32 %v849, 1.442695
        %v881 = vpow.pop %v880
        %882 = vadd.xlane.f32.xlu0 %v851
        %v883 = vpop.xlane.xlu0 %882
        %884 = vadd.xlane.f32.xlu0 %v853
        %v885 = vpop.xlane.xlu0 %884
        %886 = vadd.xlane.f32.xlu0 %v855
        %v887 = vpop.xlane.xlu0 %886
        %888 = vadd.xlane.f32.xlu0 %v857
        %v889 = vpop.xlane.xlu0 %888
        %890 = vadd.xlane.f32.xlu0 %v859
        %v891 = vpop.xlane.xlu0 %890
        %892 = vadd.xlane.f32.xlu0 %v861
        %v893 = vpop.xlane.xlu0 %892
        %894 = vadd.xlane.f32.xlu0 %v863
        %v895 = vpop.xlane.xlu0 %894
        %896 = vadd.xlane.f32.xlu0 %v865
        %v897 = vpop.xlane.xlu0 %896
        %898 = vadd.xlane.f32.xlu0 %v867
        %v899 = vpop.xlane.xlu0 %898
        %900 = vadd.xlane.f32.xlu0 %v869
        %v901 = vpop.xlane.xlu0 %900
        %902 = vadd.xlane.f32.xlu0 %v871
        %v903 = vpop.xlane.xlu0 %902
        %904 = vadd.xlane.f32.xlu0 %v873
        %v905 = vpop.xlane.xlu0 %904
        %906 = vadd.xlane.f32.xlu0 %v875
        %v907 = vpop.xlane.xlu0 %906
        %908 = vadd.xlane.f32.xlu0 %v877
        %v909 = vpop.xlane.xlu0 %908
        %910 = vadd.xlane.f32.xlu0 %v879
        %v911 = vpop.xlane.xlu0 %910
        %912 = vadd.xlane.f32.xlu0 %v881
        %v913 = vpop.xlane.xlu0 %912
        %v914 = vpack.c.bf16 %v853, %v851
        %v915 = vpack.c.bf16 %v857, %v855
        %v916 = vpack.c.bf16 %v861, %v859
        %v917 = vpack.c.bf16 %v865, %v863
        %v918 = vpack.c.bf16 %v869, %v867
        %v919 = vpack.c.bf16 %v873, %v871
        %v920 = vpack.c.bf16 %v877, %v875
        %v921 = vpack.c.bf16 %v881, %v879
        %v938 = vunpack.c.l.b16 %v592
        %v939 = vunpack.c.l.b16 %v593
        %v940 = vunpack.c.l.b16 %v594
        %v941 = vunpack.c.l.b16 %v595
        %v942 = vunpack.c.l.b16 %v596
        %v943 = vunpack.c.l.b16 %v597
        %v944 = vunpack.c.l.b16 %v598
        %v945 = vunpack.c.l.b16 %v599
        %v946 = vunpack.c.l.b16 %v600
        %v947 = vunpack.c.l.b16 %v601
        %v948 = vunpack.c.l.b16 %v602
        %v949 = vunpack.c.l.b16 %v603
        %v950 = vunpack.c.l.b16 %v604
        %v951 = vunpack.c.l.b16 %v605
        %v952 = vunpack.c.l.b16 %v606
        %v953 = vunpack.c.l.b16 %v607
        %v954 = vpack.c.b16 %v939, %v938
        %v955 = vpack.c.b16 %v941, %v940
        %v956 = vpack.c.b16 %v943, %v942
        %v957 = vpack.c.b16 %v945, %v944
        %v958 = vpack.c.b16 %v947, %v946
        %v959 = vpack.c.b16 %v949, %v948
        %v960 = vpack.c.b16 %v951, %v950
        %v961 = vpack.c.b16 %v953, %v952
        %970 = vmatpush.bf16.msra.mxu0 %v961
        %971 = vmatpush.bf16.msra.mxu0 %v960
        %972 = vmatpush.bf16.msra.mxu0 %v959
        %973 = vmatpush.bf16.msra.mxu0 %v958
        %974 = vmatpush.bf16.msra.mxu0 %v957
        %975 = vmatpush.bf16.msra.mxu0 %v956
        %976 = vmatpush.bf16.msra.mxu0 %v955
        %977 = vmatpush.bf16.msra.mxu0 %v954
        %978 = vmatmul.bf16.gmra.mxu0 %v914
        %v979 = vpop.f32.mrf.mxu0
        %v980 = vadd.f32 0.0, %v979
        %v981 = vpop.f32.mrf.mxu0
        %v982 = vadd.f32 0.0, %v981
        %983 = vmatmul.bf16.gmra.mxu0 %v915
        %v984 = vpop.f32.mrf.mxu0
        %v985 = vadd.f32 0.0, %v984
        %v986 = vpop.f32.mrf.mxu0
        %v987 = vadd.f32 0.0, %v986
        %988 = vmatmul.bf16.gmra.mxu0 %v916
        %v989 = vpop.f32.mrf.mxu0
        %v990 = vadd.f32 0.0, %v989
        %v991 = vpop.f32.mrf.mxu0
        %v992 = vadd.f32 0.0, %v991
        %993 = vmatmul.bf16.gmra.mxu0 %v917
        %v994 = vpop.f32.mrf.mxu0
        %v995 = vadd.f32 0.0, %v994
        %v996 = vpop.f32.mrf.mxu0
        %v997 = vadd.f32 0.0, %v996
        %998 = vmatmul.bf16.gmra.mxu0 %v918
        %v999 = vpop.f32.mrf.mxu0
        %v1000 = vadd.f32 0.0, %v999
        %v1001 = vpop.f32.mrf.mxu0
        %v1002 = vadd.f32 0.0, %v1001
        %1003 = vmatmul.bf16.gmra.mxu0 %v919
        %v1004 = vpop.f32.mrf.mxu0
        %v1005 = vadd.f32 0.0, %v1004
        %v1006 = vpop.f32.mrf.mxu0
        %v1007 = vadd.f32 0.0, %v1006
        %1008 = vmatmul.bf16.gmra.mxu0 %v920
        %v1009 = vpop.f32.mrf.mxu0
        %v1010 = vadd.f32 0.0, %v1009
        %v1011 = vpop.f32.mrf.mxu0
        %v1012 = vadd.f32 0.0, %v1011
        %1013 = vmatmul.bf16.gmra.mxu0 %v921
        %v1014 = vpop.f32.mrf.mxu0
        %v1015 = vadd.f32 0.0, %v1014
        %v1016 = vpop.f32.mrf.mxu0
        %v1017 = vadd.f32 0.0, %v1016
        %1018 = vdwg.mxu0
        %v1019 = vrcp.pop %v883
        %v1020 = vrcp.pop %v885
        %v1021 = vrcp.pop %v887
        %v1022 = vrcp.pop %v889
        %v1023 = vrcp.pop %v891
        %v1024 = vrcp.pop %v893
        %v1025 = vrcp.pop %v895
        %v1026 = vrcp.pop %v897
        %v1027 = vrcp.pop %v899
        %v1028 = vrcp.pop %v901
        %v1029 = vrcp.pop %v903
        %v1030 = vrcp.pop %v905
        %v1031 = vrcp.pop %v907
        %v1032 = vrcp.pop %v909
        %v1033 = vrcp.pop %v911
        %v1034 = vrcp.pop %v913
        %v1035 = vmul.f32 %v980, %v1019
        %v1036 = vmul.f32 %v982, %v1020
        %v1037 = vmul.f32 %v985, %v1021
        %v1038 = vmul.f32 %v987, %v1022
        %v1039 = vmul.f32 %v990, %v1023
        %v1040 = vmul.f32 %v992, %v1024
        %v1041 = vmul.f32 %v995, %v1025
        %v1042 = vmul.f32 %v997, %v1026
        %v1043 = vmul.f32 %v1000, %v1027
        %v1044 = vmul.f32 %v1002, %v1028
        %v1045 = vmul.f32 %v1005, %v1029
        %v1046 = vmul.f32 %v1007, %v1030
        %v1047 = vmul.f32 %v1010, %v1031
        %v1048 = vmul.f32 %v1012, %v1032
        %v1049 = vmul.f32 %v1015, %v1033
        %v1050 = vmul.f32 %v1017, %v1034
        %1051 = vrot.lane.b32.xlu0 %v640, 64
        %v1052 = vpop.permute.xlu0 %1051
        %1053 = vrot.lane.b32.xlu0 %v641, 64
        %v1054 = vpop.permute.xlu0 %1053
        %1055 = vrot.lane.b32.xlu0 %v642, 64
        %v1056 = vpop.permute.xlu0 %1055
        %1057 = vrot.lane.b32.xlu0 %v643, 64
        %v1058 = vpop.permute.xlu0 %1057
        %1059 = vrot.lane.b32.xlu0 %v644, 64
        %v1060 = vpop.permute.xlu0 %1059
        %1061 = vrot.lane.b32.xlu0 %v645, 64
        %v1062 = vpop.permute.xlu0 %1061
        %1063 = vrot.lane.b32.xlu0 %v646, 64
        %v1064 = vpop.permute.xlu0 %1063
        %1065 = vrot.lane.b32.xlu0 %v647, 64
        %v1066 = vpop.permute.xlu0 %1065
        %1067 = vrot.lane.b32.xlu0 %v680, 64
        %v1068 = vpop.permute.xlu0 %1067
        %1069 = vrot.lane.b32.xlu0 %v681, 64
        %v1070 = vpop.permute.xlu0 %1069
        %1071 = vrot.lane.b32.xlu0 %v682, 64
        %v1072 = vpop.permute.xlu0 %1071
        %1073 = vrot.lane.b32.xlu0 %v683, 64
        %v1074 = vpop.permute.xlu0 %1073
        %1075 = vrot.lane.b32.xlu0 %v684, 64
        %v1076 = vpop.permute.xlu0 %1075
        %1077 = vrot.lane.b32.xlu0 %v685, 64
        %v1078 = vpop.permute.xlu0 %1077
        %1079 = vrot.lane.b32.xlu0 %v686, 64
        %v1080 = vpop.permute.xlu0 %1079
        %1081 = vrot.lane.b32.xlu0 %v687, 64
        %v1082 = vpop.permute.xlu0 %1081
        %v1084 = vsel %vm688, %v1052, 0
        %v1087 = vsel %vm688, %v1054, 0
        %v1090 = vsel %vm688, %v1056, 0
        %v1093 = vsel %vm688, %v1058, 0
        %v1096 = vsel %vm688, %v1060, 0
        %v1099 = vsel %vm688, %v1062, 0
        %v1102 = vsel %vm688, %v1064, 0
        %v1105 = vsel %vm688, %v1066, 0
        %v1108 = vsel %vm688, %v1068, 0
        %v1111 = vsel %vm688, %v1070, 0
        %v1114 = vsel %vm688, %v1072, 0
        %v1117 = vsel %vm688, %v1074, 0
        %v1120 = vsel %vm688, %v1076, 0
        %v1123 = vsel %vm688, %v1078, 0
        %v1126 = vsel %vm688, %v1080, 0
        %v1129 = vsel %vm688, %v1082, 0
        %1131 = vmatpush.bf16.xpose.msra.mxu0 %v1129
        %1132 = vmatpush.bf16.xpose.msra.mxu0 %v1126
        %1133 = vmatpush.bf16.xpose.msra.mxu0 %v1123
        %1134 = vmatpush.bf16.xpose.msra.mxu0 %v1120
        %1135 = vmatpush.bf16.xpose.msra.mxu0 %v1117
        %1136 = vmatpush.bf16.xpose.msra.mxu0 %v1114
        %1137 = vmatpush.bf16.xpose.msra.mxu0 %v1111
        %1138 = vmatpush.bf16.xpose.msra.mxu0 %v1108
        %1139 = vmatmul.bf16.gmra.mxu0 %v1084
        %v1140 = vpop.f32.mrf.mxu0
        %v1141 = vadd.f32 0.0, %v1140
        %v1142 = vpop.f32.mrf.mxu0
        %v1143 = vadd.f32 0.0, %v1142
        %1144 = vmatmul.bf16.gmra.mxu0 %v1087
        %v1145 = vpop.f32.mrf.mxu0
        %v1146 = vadd.f32 0.0, %v1145
        %v1147 = vpop.f32.mrf.mxu0
        %v1148 = vadd.f32 0.0, %v1147
        %1149 = vmatmul.bf16.gmra.mxu0 %v1090
        %v1150 = vpop.f32.mrf.mxu0
        %v1151 = vadd.f32 0.0, %v1150
        %v1152 = vpop.f32.mrf.mxu0
        %v1153 = vadd.f32 0.0, %v1152
        %1154 = vmatmul.bf16.gmra.mxu0 %v1093
        %v1155 = vpop.f32.mrf.mxu0
        %v1156 = vadd.f32 0.0, %v1155
        %v1157 = vpop.f32.mrf.mxu0
        %v1158 = vadd.f32 0.0, %v1157
        %1159 = vmatmul.bf16.gmra.mxu0 %v1096
        %v1160 = vpop.f32.mrf.mxu0
        %v1161 = vadd.f32 0.0, %v1160
        %v1162 = vpop.f32.mrf.mxu0
        %v1163 = vadd.f32 0.0, %v1162
        %1164 = vmatmul.bf16.gmra.mxu0 %v1099
        %v1165 = vpop.f32.mrf.mxu0
        %v1166 = vadd.f32 0.0, %v1165
        %v1167 = vpop.f32.mrf.mxu0
        %v1168 = vadd.f32 0.0, %v1167
        %1169 = vmatmul.bf16.gmra.mxu0 %v1102
        %v1170 = vpop.f32.mrf.mxu0
        %v1171 = vadd.f32 0.0, %v1170
        %v1172 = vpop.f32.mrf.mxu0
        %v1173 = vadd.f32 0.0, %v1172
        %1174 = vmatmul.bf16.gmra.mxu0 %v1105
        %v1175 = vpop.f32.mrf.mxu0
        %v1176 = vadd.f32 0.0, %v1175
        %v1177 = vpop.f32.mrf.mxu0
        %v1178 = vadd.f32 0.0, %v1177
        %1179 = vdwg.mxu0
        %v1180 = vmul.f32 %v1141, 0.125
        %v1181 = vmul.f32 %v1143, 0.125
        %v1182 = vmul.f32 %v1146, 0.125
        %v1183 = vmul.f32 %v1148, 0.125
        %v1184 = vmul.f32 %v1151, 0.125
        %v1185 = vmul.f32 %v1153, 0.125
        %v1186 = vmul.f32 %v1156, 0.125
        %v1187 = vmul.f32 %v1158, 0.125
        %v1188 = vmul.f32 %v1161, 0.125
        %v1189 = vmul.f32 %v1163, 0.125
        %v1190 = vmul.f32 %v1166, 0.125
        %v1191 = vmul.f32 %v1168, 0.125
        %v1192 = vmul.f32 %v1171, 0.125
        %v1193 = vmul.f32 %v1173, 0.125
        %v1194 = vmul.f32 %v1176, 0.125
        %v1195 = vmul.f32 %v1178, 0.125
        %1196 = vmax.xlane.f32.xlu0 %v1180
        %v1197 = vpop.xlane.xlu0 %1196
        %1198 = vmax.xlane.f32.xlu0 %v1181
        %v1199 = vpop.xlane.xlu0 %1198
        %1200 = vmax.xlane.f32.xlu0 %v1182
        %v1201 = vpop.xlane.xlu0 %1200
        %1202 = vmax.xlane.f32.xlu0 %v1183
        %v1203 = vpop.xlane.xlu0 %1202
        %1204 = vmax.xlane.f32.xlu0 %v1184
        %v1205 = vpop.xlane.xlu0 %1204
        %1206 = vmax.xlane.f32.xlu0 %v1185
        %v1207 = vpop.xlane.xlu0 %1206
        %1208 = vmax.xlane.f32.xlu0 %v1186
        %v1209 = vpop.xlane.xlu0 %1208
        %1210 = vmax.xlane.f32.xlu0 %v1187
        %v1211 = vpop.xlane.xlu0 %1210
        %1212 = vmax.xlane.f32.xlu0 %v1188
        %v1213 = vpop.xlane.xlu0 %1212
        %1214 = vmax.xlane.f32.xlu0 %v1189
        %v1215 = vpop.xlane.xlu0 %1214
        %1216 = vmax.xlane.f32.xlu0 %v1190
        %v1217 = vpop.xlane.xlu0 %1216
        %1218 = vmax.xlane.f32.xlu0 %v1191
        %v1219 = vpop.xlane.xlu0 %1218
        %1220 = vmax.xlane.f32.xlu0 %v1192
        %v1221 = vpop.xlane.xlu0 %1220
        %1222 = vmax.xlane.f32.xlu0 %v1193
        %v1223 = vpop.xlane.xlu0 %1222
        %1224 = vmax.xlane.f32.xlu0 %v1194
        %v1225 = vpop.xlane.xlu0 %1224
        %1226 = vmax.xlane.f32.xlu0 %v1195
        %v1227 = vpop.xlane.xlu0 %1226
        %v1228 = vsub.f32 %v1180, %v1197
        %v1229 = vsub.f32 %v1181, %v1199
        %v1230 = vsub.f32 %v1182, %v1201
        %v1231 = vsub.f32 %v1183, %v1203
        %v1232 = vsub.f32 %v1184, %v1205
        %v1233 = vsub.f32 %v1185, %v1207
        %v1234 = vsub.f32 %v1186, %v1209
        %v1235 = vsub.f32 %v1187, %v1211
        %v1236 = vsub.f32 %v1188, %v1213
        %v1237 = vsub.f32 %v1189, %v1215
        %v1238 = vsub.f32 %v1190, %v1217
        %v1239 = vsub.f32 %v1191, %v1219
        %v1240 = vsub.f32 %v1192, %v1221
        %v1241 = vsub.f32 %v1193, %v1223
        %v1242 = vsub.f32 %v1194, %v1225
        %v1243 = vsub.f32 %v1195, %v1227
        %v1244 = vmul.f32 %v1228, 1.442695
        %v1245 = vpow.pop %v1244
        %v1246 = vmul.f32 %v1229, 1.442695
        %v1247 = vpow.pop %v1246
        %v1248 = vmul.f32 %v1230, 1.442695
        %v1249 = vpow.pop %v1248
        %v1250 = vmul.f32 %v1231, 1.442695
        %v1251 = vpow.pop %v1250
        %v1252 = vmul.f32 %v1232, 1.442695
        %v1253 = vpow.pop %v1252
        %v1254 = vmul.f32 %v1233, 1.442695
        %v1255 = vpow.pop %v1254
        %v1256 = vmul.f32 %v1234, 1.442695
        %v1257 = vpow.pop %v1256
        %v1258 = vmul.f32 %v1235, 1.442695
        %v1259 = vpow.pop %v1258
        %v1260 = vmul.f32 %v1236, 1.442695
        %v1261 = vpow.pop %v1260
        %v1262 = vmul.f32 %v1237, 1.442695
        %v1263 = vpow.pop %v1262
        %v1264 = vmul.f32 %v1238, 1.442695
        %v1265 = vpow.pop %v1264
        %v1266 = vmul.f32 %v1239, 1.442695
        %v1267 = vpow.pop %v1266
        %v1268 = vmul.f32 %v1240, 1.442695
        %v1269 = vpow.pop %v1268
        %v1270 = vmul.f32 %v1241, 1.442695
        %v1271 = vpow.pop %v1270
        %v1272 = vmul.f32 %v1242, 1.442695
        %v1273 = vpow.pop %v1272
        %v1274 = vmul.f32 %v1243, 1.442695
        %v1275 = vpow.pop %v1274
        %1276 = vadd.xlane.f32.xlu0 %v1245
        %v1277 = vpop.xlane.xlu0 %1276
        %1278 = vadd.xlane.f32.xlu0 %v1247
        %v1279 = vpop.xlane.xlu0 %1278
        %1280 = vadd.xlane.f32.xlu0 %v1249
        %v1281 = vpop.xlane.xlu0 %1280
        %1282 = vadd.xlane.f32.xlu0 %v1251
        %v1283 = vpop.xlane.xlu0 %1282
        %1284 = vadd.xlane.f32.xlu0 %v1253
        %v1285 = vpop.xlane.xlu0 %1284
        %1286 = vadd.xlane.f32.xlu0 %v1255
        %v1287 = vpop.xlane.xlu0 %1286
        %1288 = vadd.xlane.f32.xlu0 %v1257
        %v1289 = vpop.xlane.xlu0 %1288
        %1290 = vadd.xlane.f32.xlu0 %v1259
        %v1291 = vpop.xlane.xlu0 %1290
        %1292 = vadd.xlane.f32.xlu0 %v1261
        %v1293 = vpop.xlane.xlu0 %1292
        %1294 = vadd.xlane.f32.xlu0 %v1263
        %v1295 = vpop.xlane.xlu0 %1294
        %1296 = vadd.xlane.f32.xlu0 %v1265
        %v1297 = vpop.xlane.xlu0 %1296
        %1298 = vadd.xlane.f32.xlu0 %v1267
        %v1299 = vpop.xlane.xlu0 %1298
        %1300 = vadd.xlane.f32.xlu0 %v1269
        %v1301 = vpop.xlane.xlu0 %1300
        %1302 = vadd.xlane.f32.xlu0 %v1271
        %v1303 = vpop.xlane.xlu0 %1302
        %1304 = vadd.xlane.f32.xlu0 %v1273
        %v1305 = vpop.xlane.xlu0 %1304
        %1306 = vadd.xlane.f32.xlu0 %v1275
        %v1307 = vpop.xlane.xlu0 %1306
        %v1308 = vpack.c.bf16 %v1247, %v1245
        %v1309 = vpack.c.bf16 %v1251, %v1249
        %v1310 = vpack.c.bf16 %v1255, %v1253
        %v1311 = vpack.c.bf16 %v1259, %v1257
        %v1312 = vpack.c.bf16 %v1263, %v1261
        %v1313 = vpack.c.bf16 %v1267, %v1265
        %v1314 = vpack.c.bf16 %v1271, %v1269
        %v1315 = vpack.c.bf16 %v1275, %v1273
        %1316 = vrot.lane.b32.xlu0 %v954, 64
        %v1317 = vpop.permute.xlu0 %1316
        %1318 = vrot.lane.b32.xlu0 %v955, 64
        %v1319 = vpop.permute.xlu0 %1318
        %1320 = vrot.lane.b32.xlu0 %v956, 64
        %v1321 = vpop.permute.xlu0 %1320
        %1322 = vrot.lane.b32.xlu0 %v957, 64
        %v1323 = vpop.permute.xlu0 %1322
        %1324 = vrot.lane.b32.xlu0 %v958, 64
        %v1325 = vpop.permute.xlu0 %1324
        %1326 = vrot.lane.b32.xlu0 %v959, 64
        %v1327 = vpop.permute.xlu0 %1326
        %1328 = vrot.lane.b32.xlu0 %v960, 64
        %v1329 = vpop.permute.xlu0 %1328
        %1330 = vrot.lane.b32.xlu0 %v961, 64
        %v1331 = vpop.permute.xlu0 %1330
        %1340 = vmatpush.bf16.msra.mxu0 %v1331
        %1341 = vmatpush.bf16.msra.mxu0 %v1329
        %1342 = vmatpush.bf16.msra.mxu0 %v1327
        %1343 = vmatpush.bf16.msra.mxu0 %v1325
        %1344 = vmatpush.bf16.msra.mxu0 %v1323
        %1345 = vmatpush.bf16.msra.mxu0 %v1321
        %1346 = vmatpush.bf16.msra.mxu0 %v1319
        %1347 = vmatpush.bf16.msra.mxu0 %v1317
        %1348 = vmatmul.bf16.gmra.mxu0 %v1308
        %v1349 = vpop.f32.mrf.mxu0
        %v1350 = vadd.f32 0.0, %v1349
        %v1351 = vpop.f32.mrf.mxu0
        %v1352 = vadd.f32 0.0, %v1351
        %1353 = vmatmul.bf16.gmra.mxu0 %v1309
        %v1354 = vpop.f32.mrf.mxu0
        %v1355 = vadd.f32 0.0, %v1354
        %v1356 = vpop.f32.mrf.mxu0
        %v1357 = vadd.f32 0.0, %v1356
        %1358 = vmatmul.bf16.gmra.mxu0 %v1310
        %v1359 = vpop.f32.mrf.mxu0
        %v1360 = vadd.f32 0.0, %v1359
        %v1361 = vpop.f32.mrf.mxu0
        %v1362 = vadd.f32 0.0, %v1361
        %1363 = vmatmul.bf16.gmra.mxu0 %v1311
        %v1364 = vpop.f32.mrf.mxu0
        %v1365 = vadd.f32 0.0, %v1364
        %v1366 = vpop.f32.mrf.mxu0
        %v1367 = vadd.f32 0.0, %v1366
        %1368 = vmatmul.bf16.gmra.mxu0 %v1312
        %v1369 = vpop.f32.mrf.mxu0
        %v1370 = vadd.f32 0.0, %v1369
        %v1371 = vpop.f32.mrf.mxu0
        %v1372 = vadd.f32 0.0, %v1371
        %1373 = vmatmul.bf16.gmra.mxu0 %v1313
        %v1374 = vpop.f32.mrf.mxu0
        %v1375 = vadd.f32 0.0, %v1374
        %v1376 = vpop.f32.mrf.mxu0
        %v1377 = vadd.f32 0.0, %v1376
        %1378 = vmatmul.bf16.gmra.mxu0 %v1314
        %v1379 = vpop.f32.mrf.mxu0
        %v1380 = vadd.f32 0.0, %v1379
        %v1381 = vpop.f32.mrf.mxu0
        %v1382 = vadd.f32 0.0, %v1381
        %1383 = vmatmul.bf16.gmra.mxu0 %v1315
        %v1384 = vpop.f32.mrf.mxu0
        %v1385 = vadd.f32 0.0, %v1384
        %v1386 = vpop.f32.mrf.mxu0
        %v1387 = vadd.f32 0.0, %v1386
        %1388 = vdwg.mxu0
        %v1389 = vrcp.pop %v1277
        %v1390 = vrcp.pop %v1279
        %v1391 = vrcp.pop %v1281
        %v1392 = vrcp.pop %v1283
        %v1393 = vrcp.pop %v1285
        %v1394 = vrcp.pop %v1287
        %v1395 = vrcp.pop %v1289
        %v1396 = vrcp.pop %v1291
        %v1397 = vrcp.pop %v1293
        %v1398 = vrcp.pop %v1295
        %v1399 = vrcp.pop %v1297
        %v1400 = vrcp.pop %v1299
        %v1401 = vrcp.pop %v1301
        %v1402 = vrcp.pop %v1303
        %v1403 = vrcp.pop %v1305
        %v1404 = vrcp.pop %v1307
        %v1405 = vmul.f32 %v1350, %v1389
        %v1406 = vmul.f32 %v1352, %v1390
        %v1407 = vmul.f32 %v1355, %v1391
        %v1408 = vmul.f32 %v1357, %v1392
        %v1409 = vmul.f32 %v1360, %v1393
        %v1410 = vmul.f32 %v1362, %v1394
        %v1411 = vmul.f32 %v1365, %v1395
        %v1412 = vmul.f32 %v1367, %v1396
        %v1413 = vmul.f32 %v1370, %v1397
        %v1414 = vmul.f32 %v1372, %v1398
        %v1415 = vmul.f32 %v1375, %v1399
        %v1416 = vmul.f32 %v1377, %v1400
        %v1417 = vmul.f32 %v1380, %v1401
        %v1418 = vmul.f32 %v1382, %v1402
        %v1419 = vmul.f32 %v1385, %v1403
        %v1420 = vmul.f32 %v1387, %v1404
        %1437 = vrot.lane.b32.xlu0 %v1405, 64
        %v1438 = vpop.permute.xlu0 %1437
        %1439 = vrot.lane.b32.xlu0 %v1406, 64
        %v1440 = vpop.permute.xlu0 %1439
        %1441 = vrot.lane.b32.xlu0 %v1407, 64
        %v1442 = vpop.permute.xlu0 %1441
        %1443 = vrot.lane.b32.xlu0 %v1408, 64
        %v1444 = vpop.permute.xlu0 %1443
        %1445 = vrot.lane.b32.xlu0 %v1409, 64
        %v1446 = vpop.permute.xlu0 %1445
        %1447 = vrot.lane.b32.xlu0 %v1410, 64
        %v1448 = vpop.permute.xlu0 %1447
        %1449 = vrot.lane.b32.xlu0 %v1411, 64
        %v1450 = vpop.permute.xlu0 %1449
        %1451 = vrot.lane.b32.xlu0 %v1412, 64
        %v1452 = vpop.permute.xlu0 %1451
        %1453 = vrot.lane.b32.xlu0 %v1413, 64
        %v1454 = vpop.permute.xlu0 %1453
        %1455 = vrot.lane.b32.xlu0 %v1414, 64
        %v1456 = vpop.permute.xlu0 %1455
        %1457 = vrot.lane.b32.xlu0 %v1415, 64
        %v1458 = vpop.permute.xlu0 %1457
        %1459 = vrot.lane.b32.xlu0 %v1416, 64
        %v1460 = vpop.permute.xlu0 %1459
        %1461 = vrot.lane.b32.xlu0 %v1417, 64
        %v1462 = vpop.permute.xlu0 %1461
        %1463 = vrot.lane.b32.xlu0 %v1418, 64
        %v1464 = vpop.permute.xlu0 %1463
        %1465 = vrot.lane.b32.xlu0 %v1419, 64
        %v1466 = vpop.permute.xlu0 %1465
        %1467 = vrot.lane.b32.xlu0 %v1420, 64
        %v1468 = vpop.permute.xlu0 %1467
        %v1485 = vsel %vm688, %v1035, %v1438
        %v1486 = vsel %vm688, %v1036, %v1440
        %v1487 = vsel %vm688, %v1037, %v1442
        %v1488 = vsel %vm688, %v1038, %v1444
        %v1489 = vsel %vm688, %v1039, %v1446
        %v1490 = vsel %vm688, %v1040, %v1448
        %v1491 = vsel %vm688, %v1041, %v1450
        %v1492 = vsel %vm688, %v1042, %v1452
        %v1493 = vsel %vm688, %v1043, %v1454
        %v1494 = vsel %vm688, %v1044, %v1456
        %v1495 = vsel %vm688, %v1045, %v1458
        %v1496 = vsel %vm688, %v1046, %v1460
        %v1497 = vsel %vm688, %v1047, %v1462
        %v1498 = vsel %vm688, %v1048, %v1464
        %v1499 = vsel %vm688, %v1049, %v1466
        %v1500 = vsel %vm688, %v1050, %v1468
        %v1501 = vpack.c.bf16 %v1485, %v1485
        %v1502 = vpack.c.bf16 %v1486, %v1486
        %v1503 = vpack.c.bf16 %v1487, %v1487
        %v1504 = vpack.c.bf16 %v1488, %v1488
        %v1505 = vpack.c.bf16 %v1489, %v1489
        %v1506 = vpack.c.bf16 %v1490, %v1490
        %v1507 = vpack.c.bf16 %v1491, %v1491
        %v1508 = vpack.c.bf16 %v1492, %v1492
        %v1509 = vpack.c.bf16 %v1493, %v1493
        %v1510 = vpack.c.bf16 %v1494, %v1494
        %v1511 = vpack.c.bf16 %v1495, %v1495
        %v1512 = vpack.c.bf16 %v1496, %v1496
        %v1513 = vpack.c.bf16 %v1497, %v1497
        %v1514 = vpack.c.bf16 %v1498, %v1498
        %v1515 = vpack.c.bf16 %v1499, %v1499
        %v1516 = vpack.c.bf16 %v1500, %v1500
        %1517 = vst [vmem:[%s559] sm:$0xf] %v1501
        %1518 = vst [vmem:[%s559 + $0x4] sm:$0xf] %v1502
        %1519 = vst [vmem:[%s559 + $0x8] sm:$0xf] %v1503
        %1520 = vst [vmem:[%s559 + $0xc] sm:$0xf] %v1504
        %1521 = vst [vmem:[%s559 + $0x10] sm:$0xf] %v1505
        %1522 = vst [vmem:[%s559 + $0x14] sm:$0xf] %v1506
        %1523 = vst [vmem:[%s559 + $0x18] sm:$0xf] %v1507
        %1524 = vst [vmem:[%s559 + $0x1c] sm:$0xf] %v1508
        %1525 = vst [vmem:[%s559 + $0x20] sm:$0xf] %v1509
        %1526 = vst [vmem:[%s559 + $0x24] sm:$0xf] %v1510
        %1527 = vst [vmem:[%s559 + $0x28] sm:$0xf] %v1511
        %1528 = vst [vmem:[%s559 + $0x2c] sm:$0xf] %v1512
        %1529 = vst [vmem:[%s559 + $0x30] sm:$0xf] %v1513
        %1530 = vst [vmem:[%s559 + $0x34] sm:$0xf] %v1514
        %1531 = vst [vmem:[%s559 + $0x38] sm:$0xf] %v1515
        %1532 = vst [vmem:[%s559 + $0x3c] sm:$0xf] %v1516
        %p1533 = scmp.lt.s32.totalorder %s18, 1
        %s1534 = scalar_select %p1533, %s18, 1
        %p1535 = scmp.lt.s32.totalorder %s19, 0
        %s1536 = scalar_select %p1535, %s19, 0
        %s1537 = smul.addr %s1534, 16
        %s1538 = sadd.s32 %s1536, %s1537
        %s1539 = smul.addr %s1538, 4
        %s1540 = scalar_lea.vmem %s3, %s1539
        // Predicated region
        $region156: #{_forward_impl.13} parent=142 // pred_check
          %p1541 = pneg %p134
        $region157: #{_forward_impl.13} parent=142 // pred_check_branch
          %1543 = sbr.rel (%p1541) target = $region159
        $region158: #{_forward_impl.13} parent=142 // pred_region
          _
        $region159: #{_forward_impl.13} parent=142 // pred_fallthru
          _
      $region143: #{_forward_impl.13} parent=5 // pred_fallthru
        _
      %p1544 = scmp.le.s32.totalorder 2, %s9
      // Predicated region
      $region160: #{_forward_impl.13} parent=5 // pred_check
        %p1545 = pneg %p1544
      $region161: #{_forward_impl.13} parent=5 // pred_check_branch
        %1547 = sbr.rel (%p1545) target = $region163
      $region162: #{_forward_impl.13} parent=5 // pred_region
        %s1548 = ssub.s32 %s9, 2
        // Predicated region
        $region164: #{_forward_impl.13} parent=162 // pred_check
          %p1549 = pneg %p140
        $region165: #{_forward_impl.13} parent=162 // pred_check_branch
          %1551 = sbr.rel (%p1549) target = $region167
        $region166: #{_forward_impl.13} parent=162 // pred_region
          %p1552 = scmp.lt.s32.totalorder %s20, 1
          %s1553 = scalar_select %p1552, %s20, 1
          %p1554 = scmp.lt.s32.totalorder %s21, 0
          %s1555 = scalar_select %p1554, %s21, 0
          %s1556 = smul.addr %s1553, 16
          %s1557 = sadd.s32 %s1555, %s1556
          %s1558 = smul.addr %s1557, 4
          %s1559 = scalar_lea.vmem %s3, %s1558
        $region167: #{_forward_impl.13} parent=162 // pred_fallthru
          _
      $region163: #{_forward_impl.13} parent=5 // pred_fallthru
        _
    $region6: #{_forward_impl.13} parent=1 // loop_footer
      %s13 = sadd.s32 1, %s9
    $region7: #{_forward_impl.13} parent=1 // loop_footer_branch
      %8 = sbr.rel target = $region3
    $region8: #{_forward_impl.13} parent=1 // loop_exit
      _

// kernel: _forward_impl.14
$region0: #{_forward_impl.14}
  #allocation0 [shape = 'u32[]', space=smem, size = 0x4, offset = 0x4, fixed_abs, tag = 'smem constant byte address 0x4 - core index']
  #allocation1 [shape = 'u32[72,128]{1,0:T(1,128)}', space=vmem, size = 0x9000, scoped, tag = 'internal scratch']
  %s0 = inlined_call_operand.vmem [shape: bf16[256,128], index: 0, kind: input, shape index: {}]
  %s1 = inlined_call_operand.vmem [shape: bf16[128,128], index: 1, kind: input, shape index: {}]
  %s2 = inlined_call_operand.vmem [shape: f32[1,128], index: 2, kind: input, shape index: {}]
  %s3 = inlined_call_operand.vmem [shape: f32[256,128], index: 3, kind: input, shape index: {}]
  %s4 = inlined_call_operand.vmem [shape: f32[1,128], index: 4, kind: input, shape index: {}]
  %s5 = inlined_call_operand.vmem [shape: f32[1,128], index: 5, kind: input, shape index: {}]
  %s6 = inlined_call_operand.vmem [shape: f32[256,128], index: 6, kind: output, shape index: {}]
  %s7 = sld [smem:[#allocation0]]
  $region57: #{_forward_impl.14} parent=0
    _
  %s9 = ssub.s32 1, %s7
  %s10 = scalar_select 0, %s9, %s7
  loop: start=0, step=1, limit=4
  $region2: #{_forward_impl.14} parent=0 // loop_pre_header
    _
  $region3: #{_forward_impl.14} parent=0 // loop_header
    %s12 = sphi 0, %s16
    %p13 = scmp.ge.s32.totalorder %s12, 4
    %s22 = sphi 0, %s24
    %s25 = sphi 0, %s22
    %s26 = sphi 0, %s25
    %s42 = sphi 0, %s26
    %s46 = sphi 0, %s46
    %s48 = sphi 0, %s46
    %s49 = sphi 0, %s48
    %s63 = sphi 0, %s49
    %s67 = sphi 0, %s67
    %s69 = sphi 0, %s67
    %s70 = sphi 0, %s69
    %s84 = sphi 0, %s70
    %s90 = sphi 0, %s92
    %s93 = sphi 0, %s90
    %s94 = sphi 0, %s93
    %s110 = sphi 0, %s94
    %s114 = sphi 0, %s114
    %s116 = sphi 0, %s114
    %s117 = sphi 0, %s116
    %s131 = sphi 0, %s117
    %s135 = sphi 0, %s135
    %s137 = sphi 0, %s135
    %s138 = sphi 0, %s137
    %s152 = sphi 0, %s138
    %s158 = sphi 0, %s160
    %s161 = sphi 0, %s158
    %s162 = sphi 0, %s161
    %s178 = sphi 0, %s162
  $region4: #{_forward_impl.14} parent=0 // loop_header_branch
    %15 = sbr.rel (%p13) target = $region8
  $region5: #{_forward_impl.14} parent=0 // loop_body
    %s17 = ssub.s32 %s12, 1
    %s18 = ssub.s32 %s12, 2
    %s19 = sadd.s32 %s12, 1
    %s20 = ssub.s32 %s12, %s19
    %p21 = scmp.eq.s32.totalorder %s20, 0
    %s23 = sadd.s32 %s22, 1
    %s24 = scalar_select %p21, %s22, %s23
    %p27 = pneg %p21
    %p28 = scmp.eq.s32.totalorder %s12, 1
    %p29 = por %p27, %p28
    %p30 = scmp.ne.s32.totalorder %s22, %s25
    %p31 = scmp.eq.s32.totalorder %s12, 0
    %p32 = por %p30, %p31
    %p33 = scmp.ne.s32.totalorder %s22, %s25
    %p34 = scmp.eq.s32.totalorder %s17, 1
    %p35 = por %p33, %p34
    %p36 = scmp.ne.s32.totalorder %s25, %s26
    %p37 = scmp.eq.s32.totalorder %s17, 0
    %p38 = por %p36, %p37
    %p39 = scmp.ne.s32.totalorder %s25, %s26
    %p40 = scmp.eq.s32.totalorder %s18, 1
    %p41 = por %p39, %p40
    %p43 = scmp.ne.s32.totalorder %s26, %s42
    %p44 = scmp.eq.s32.totalorder %s18, 0
    %p45 = por %p43, %p44
    %s47 = sadd.s32 %s46, 1
    %p50 = scmp.eq.s32.totalorder %s12, 1
    %p51 = scmp.ne.s32.totalorder %s46, %s48
    %p52 = scmp.eq.s32.totalorder %s12, 0
    %p53 = por %p51, %p52
    %p54 = scmp.ne.s32.totalorder %s46, %s48
    %p55 = scmp.eq.s32.totalorder %s17, 1
    %p56 = por %p54, %p55
    %p57 = scmp.ne.s32.totalorder %s48, %s49
    %p58 = scmp.eq.s32.totalorder %s17, 0
    %p59 = por %p57, %p58
    %p60 = scmp.ne.s32.totalorder %s48, %s49
    %p61 = scmp.eq.s32.totalorder %s18, 1
    %p62 = por %p60, %p61
    %p64 = scmp.ne.s32.totalorder %s49, %s63
    %p65 = scmp.eq.s32.totalorder %s18, 0
    %p66 = por %p64, %p65
    %s68 = sadd.s32 %s67, 1
    %p71 = scmp.eq.s32.totalorder %s12, 1
    %p72 = scmp.ne.s32.totalorder %s67, %s69
    %p73 = scmp.eq.s32.totalorder %s12, 0
    %p74 = por %p72, %p73
    %p75 = scmp.ne.s32.totalorder %s67, %s69
    %p76 = scmp.eq.s32.totalorder %s17, 1
    %p77 = por %p75, %p76
    %p78 = scmp.ne.s32.totalorder %s69, %s70
    %p79 = scmp.eq.s32.totalorder %s17, 0
    %p80 = por %p78, %p79
    %p81 = scmp.ne.s32.totalorder %s69, %s70
    %p82 = scmp.eq.s32.totalorder %s18, 1
    %p83 = por %p81, %p82
    %p85 = scmp.ne.s32.totalorder %s70, %s84
    %p86 = scmp.eq.s32.totalorder %s18, 0
    %p87 = por %p85, %p86
    %s88 = ssub.s32 %s12, %s19
    %p89 = scmp.eq.s32.totalorder %s88, 0
    %s91 = sadd.s32 %s90, 1
    %s92 = scalar_select %p89, %s90, %s91
    %p95 = pneg %p89
    %p96 = scmp.eq.s32.totalorder %s12, 1
    %p97 = por %p95, %p96
    %p98 = scmp.ne.s32.totalorder %s90, %s93
    %p99 = scmp.eq.s32.totalorder %s12, 0
    %p100 = por %p98, %p99
    %p101 = scmp.ne.s32.totalorder %s90, %s93
    %p102 = scmp.eq.s32.totalorder %s17, 1
    %p103 = por %p101, %p102
    %p104 = scmp.ne.s32.totalorder %s93, %s94
    %p105 = scmp.eq.s32.totalorder %s17, 0
    %p106 = por %p104, %p105
    %p107 = scmp.ne.s32.totalorder %s93, %s94
    %p108 = scmp.eq.s32.totalorder %s18, 1
    %p109 = por %p107, %p108
    %p111 = scmp.ne.s32.totalorder %s94, %s110
    %p112 = scmp.eq.s32.totalorder %s18, 0
    %p113 = por %p111, %p112
    %s115 = sadd.s32 %s114, 1
    %p118 = scmp.eq.s32.totalorder %s12, 1
    %p119 = scmp.ne.s32.totalorder %s114, %s116
    %p120 = scmp.eq.s32.totalorder %s12, 0
    %p121 = por %p119, %p120
    %p122 = scmp.ne.s32.totalorder %s114, %s116
    %p123 = scmp.eq.s32.totalorder %s17, 1
    %p124 = por %p122, %p123
    %p125 = scmp.ne.s32.totalorder %s116, %s117
    %p126 = scmp.eq.s32.totalorder %s17, 0
    %p127 = por %p125, %p126
    %p128 = scmp.ne.s32.totalorder %s116, %s117
    %p129 = scmp.eq.s32.totalorder %s18, 1
    %p130 = por %p128, %p129
    %p132 = scmp.ne.s32.totalorder %s117, %s131
    %p133 = scmp.eq.s32.totalorder %s18, 0
    %p134 = por %p132, %p133
    %s136 = sadd.s32 %s135, 1
    %p139 = scmp.eq.s32.totalorder %s12, 1
    %p140 = scmp.ne.s32.totalorder %s135, %s137
    %p141 = scmp.eq.s32.totalorder %s12, 0
    %p142 = por %p140, %p141
    %p143 = scmp.ne.s32.totalorder %s135, %s137
    %p144 = scmp.eq.s32.totalorder %s17, 1
    %p145 = por %p143, %p144
    %p146 = scmp.ne.s32.totalorder %s137, %s138
    %p147 = scmp.eq.s32.totalorder %s17, 0
    %p148 = por %p146, %p147
    %p149 = scmp.ne.s32.totalorder %s137, %s138
    %p150 = scmp.eq.s32.totalorder %s18, 1
    %p151 = por %p149, %p150
    %p153 = scmp.ne.s32.totalorder %s138, %s152
    %p154 = scmp.eq.s32.totalorder %s18, 0
    %p155 = por %p153, %p154
    %s156 = ssub.s32 %s12, %s19
    %p157 = scmp.eq.s32.totalorder %s156, 0
    %s159 = sadd.s32 %s158, 1
    %s160 = scalar_select %p157, %s158, %s159
    %p163 = pneg %p157
    %p164 = scmp.eq.s32.totalorder %s12, 1
    %p165 = por %p163, %p164
    %p166 = scmp.ne.s32.totalorder %s158, %s161
    %p167 = scmp.eq.s32.totalorder %s12, 0
    %p168 = por %p166, %p167
    %p169 = scmp.ne.s32.totalorder %s158, %s161
    %p170 = scmp.eq.s32.totalorder %s17, 1
    %p171 = por %p169, %p170
    %p172 = scmp.ne.s32.totalorder %s161, %s162
    %p173 = scmp.eq.s32.totalorder %s17, 0
    %p174 = por %p172, %p173
    %p175 = scmp.ne.s32.totalorder %s161, %s162
    %p176 = scmp.eq.s32.totalorder %s18, 1
    %p177 = por %p175, %p176
    %p179 = scmp.ne.s32.totalorder %s162, %s178
    %p180 = scmp.eq.s32.totalorder %s18, 0
    %p181 = por %p179, %p180
    %p182 = scmp.le.s32.totalorder 1, %s12
    %p183 = scmp.lt.s32.totalorder %s12, 3
    %p184 = pnand %p182, %p183
    %p185 = pneg %p184
    // Predicated region
    $region9: #{_forward_impl.14} parent=5 // pred_check
      _
    $region10: #{_forward_impl.14} parent=5 // pred_check_branch
      %187 = sbr.rel (%p184) target = $region12
    $region11: #{_forward_impl.14} parent=5 // pred_region
      %s188 = ssub.s32 %s12, 1
      // Predicated region
      $region13: #{_forward_impl.14} parent=11 // pred_check
        %p189 = pneg %p59
      $region14: #{_forward_impl.14} parent=11 // pred_check_branch
        %191 = sbr.rel (%p189) target = $region16
      $region15: #{_forward_impl.14} parent=11 // pred_region
        _
      $region16: #{_forward_impl.14} parent=11 // pred_fallthru
        _
      // Predicated region
      $region17: #{_forward_impl.14} parent=11 // pred_check
        %p192 = pneg %p80
      $region18: #{_forward_impl.14} parent=11 // pred_check_branch
        %194 = sbr.rel (%p192) target = $region20
      $region19: #{_forward_impl.14} parent=11 // pred_region
        _
      $region20: #{_forward_impl.14} parent=11 // pred_fallthru
        _
      // Predicated region
      $region21: #{_forward_impl.14} parent=11 // pred_check
        %p195 = pneg %p127
      $region22: #{_forward_impl.14} parent=11 // pred_check_branch
        %197 = sbr.rel (%p195) target = $region24
      $region23: #{_forward_impl.14} parent=11 // pred_region
        _
      $region24: #{_forward_impl.14} parent=11 // pred_fallthru
        _
      // Predicated region
      $region25: #{_forward_impl.14} parent=11 // pred_check
        %p198 = pneg %p148
      $region26: #{_forward_impl.14} parent=11 // pred_check_branch
        %200 = sbr.rel (%p198) target = $region28
      $region27: #{_forward_impl.14} parent=11 // pred_region
        _
      $region28: #{_forward_impl.14} parent=11 // pred_fallthru
        _
    $region12: #{_forward_impl.14} parent=5 // pred_fallthru
      _
    %p201 = scmp.lt.s32.totalorder %s12, 2
    // Predicated region
    $region29: #{_forward_impl.14} parent=5 // pred_check
      %p202 = pneg %p201
    $region30: #{_forward_impl.14} parent=5 // pred_check_branch
      %204 = sbr.rel (%p202) target = $region32
    $region31: #{_forward_impl.14} parent=5 // pred_region
      // Predicated region
      $region33: #{_forward_impl.14} parent=31 // pred_check
        %p205 = pneg %p32
      $region34: #{_forward_impl.14} parent=31 // pred_check_branch
        %207 = sbr.rel (%p205) target = $region36
      $region35: #{_forward_impl.14} parent=31 // pred_region
        %s208 = smul.u32 16, %s12
        %p209 = scmp.lt.s32.totalorder %s208, 31
        %s210 = scalar_select %p209, %s208, 31
        %s211 = smul.addr %s210, 4
        %s212 = scalar_lea.vmem %s0, %s211
        %s213 = smul.u32 16, %s12
      $region36: #{_forward_impl.14} parent=31 // pred_fallthru
        _
      // Predicated region
      $region37: #{_forward_impl.14} parent=31 // pred_check
        %p214 = pneg %p100
      $region38: #{_forward_impl.14} parent=31 // pred_check_branch
        %216 = sbr.rel (%p214) target = $region40
      $region39: #{_forward_impl.14} parent=31 // pred_region
        %s217 = smul.u32 16, %s12
        %p218 = scmp.lt.s32.totalorder %s217, 31
        %s219 = scalar_select %p218, %s217, 31
        %s220 = smul.addr %s219, 8
        %s221 = scalar_lea.vmem %s3, %s220
        %s222 = smul.u32 16, %s12
      $region40: #{_forward_impl.14} parent=31 // pred_fallthru
        _
    $region32: #{_forward_impl.14} parent=5 // pred_fallthru
      _
    %p223 = scmp.le.s32.totalorder 1, %s12
    %p224 = scmp.lt.s32.totalorder %s12, 3
    %p225 = pnand %p223, %p224
    %p226 = pneg %p225
    // Predicated region
    $region41: #{_forward_impl.14} parent=5 // pred_check
      _
    $region42: #{_forward_impl.14} parent=5 // pred_check_branch
      %228 = sbr.rel (%p225) target = $region44
    $region43: #{_forward_impl.14} parent=5 // pred_region
      %s229 = ssub.s32 %s12, 1
      %s230 = smul.u32 16, %s17
      %p231 = scmp.lt.s32.totalorder %s230, 31
      %s232 = scalar_select %p231, %s230, 31
      %s233 = smul.addr %s232, 4
      %s234 = scalar_lea.vmem %s0, %s233
      %p235 = pneg %p38
      %p236 = pneg %p35
      %p237 = pneg %p59
      %p238 = pneg %p56
      %p239 = pneg %p80
      %p240 = pneg %p77
      %s241 = smul.u32 16, %s17
      %p242 = scmp.lt.s32.totalorder %s241, 31
      %s243 = scalar_select %p242, %s241, 31
      %s244 = smul.addr %s243, 8
      %s245 = scalar_lea.vmem %s3, %s244
      %p246 = pneg %p106
      %p247 = pneg %p103
      %p248 = pneg %p127
      %p249 = pneg %p124
      %p250 = pneg %p148
      %p251 = pneg %p145
      %p252 = pneg %p174
      %p253 = pneg %p171
      %s254 = smul.u32 16, %s17
      %p255 = scmp.lt.s32.totalorder %s254, 31
      %s256 = scalar_select %p255, %s254, 31
      %s257 = smul.addr %s256, 8
      %s258 = scalar_lea.vmem %s6, %s257
      %s259 = smul.u32 16, %s17
      %p260 = scmp.lt.s32.totalorder %s259, 31
      %s261 = scalar_select %p260, %s259, 31
      %s262 = smul.addr %s261, 4
      %s263 = scalar_lea.vmem %s0, %s262
      %s264 = smul.u32 16, %s17
      %s265 = smul.u32 16, %s17
      %p266 = scmp.lt.s32.totalorder %s265, 31
      %s267 = scalar_select %p266, %s265, 31
      %s268 = smul.addr %s267, 8
      %s269 = scalar_lea.vmem %s3, %s268
      %s270 = smul.u32 16, %s17
      %s271 = smul.u32 16, %s17
      %p272 = scmp.lt.s32.totalorder %s271, 31
      %s273 = scalar_select %p272, %s271, 31
      %s274 = smul.addr %s273, 8
      %s275 = scalar_lea.vmem %s6, %s274
      %s276 = smul.u32 16, %s17
      %v277 = vld [vmem:[%s263] sm:$0xf]
      %v278 = vld [vmem:[%s263 + $0x4] sm:$0xf]
      %v279 = vld [vmem:[%s263 + $0x8] sm:$0xf]
      %v280 = vld [vmem:[%s263 + $0xc] sm:$0xf]
      %v281 = vld [vmem:[%s263 + $0x10] sm:$0xf]
      %v282 = vld [vmem:[%s263 + $0x14] sm:$0xf]
      %v283 = vld [vmem:[%s263 + $0x18] sm:$0xf]
      %v284 = vld [vmem:[%s263 + $0x1c] sm:$0xf]
      %v285 = vld [vmem:[%s263 + $0x20] sm:$0xf]
      %v286 = vld [vmem:[%s263 + $0x24] sm:$0xf]
      %v287 = vld [vmem:[%s263 + $0x28] sm:$0xf]
      %v288 = vld [vmem:[%s263 + $0x2c] sm:$0xf]
      %v289 = vld [vmem:[%s263 + $0x30] sm:$0xf]
      %v290 = vld [vmem:[%s263 + $0x34] sm:$0xf]
      %v291 = vld [vmem:[%s263 + $0x38] sm:$0xf]
      %v292 = vld [vmem:[%s263 + $0x3c] sm:$0xf]
      %v293 = vld [vmem:[%s1] sm:$0xf]
      %v294 = vld [vmem:[%s1 + $0x4] sm:$0xf]
      %v295 = vld [vmem:[%s1 + $0x8] sm:$0xf]
      %v296 = vld [vmem:[%s1 + $0xc] sm:$0xf]
      %v297 = vld [vmem:[%s1 + $0x10] sm:$0xf]
      %v298 = vld [vmem:[%s1 + $0x14] sm:$0xf]
      %v299 = vld [vmem:[%s1 + $0x18] sm:$0xf]
      %v300 = vld [vmem:[%s1 + $0x1c] sm:$0xf]
      %v301 = vld [vmem:[%s1 + $0x20] sm:$0xf]
      %v302 = vld [vmem:[%s1 + $0x24] sm:$0xf]
      %v303 = vld [vmem:[%s1 + $0x28] sm:$0xf]
      %v304 = vld [vmem:[%s1 + $0x2c] sm:$0xf]
      %v305 = vld [vmem:[%s1 + $0x30] sm:$0xf]
      %v306 = vld [vmem:[%s1 + $0x34] sm:$0xf]
      %v307 = vld [vmem:[%s1 + $0x38] sm:$0xf]
      %v308 = vld [vmem:[%s1 + $0x3c] sm:$0xf]
      %v309 = vld [vmem:[%s269] sm:$0xff]
      %v310 = vld [vmem:[%s269 + $0x8] sm:$0xff]
      %v311 = vld [vmem:[%s269 + $0x10] sm:$0xff]
      %v312 = vld [vmem:[%s269 + $0x18] sm:$0xff]
      %v313 = vld [vmem:[%s269 + $0x20] sm:$0xff]
      %v314 = vld [vmem:[%s269 + $0x28] sm:$0xff]
      %v315 = vld [vmem:[%s269 + $0x30] sm:$0xff]
      %v316 = vld [vmem:[%s269 + $0x38] sm:$0xff]
      %v317 = vld [vmem:[%s269 + $0x40] sm:$0xff]
      %v318 = vld [vmem:[%s269 + $0x48] sm:$0xff]
      %v319 = vld [vmem:[%s269 + $0x50] sm:$0xff]
      %v320 = vld [vmem:[%s269 + $0x58] sm:$0xff]
      %v321 = vld [vmem:[%s269 + $0x60] sm:$0xff]
      %v322 = vld [vmem:[%s269 + $0x68] sm:$0xff]
      %v323 = vld [vmem:[%s269 + $0x70] sm:$0xff]
      %v324 = vld [vmem:[%s269 + $0x78] sm:$0xff]
      %v325 = vld [vmem:[%s2] sm:$0x1]
      %v326 = vld [vmem:[%s4] sm:$0x1]
      %v327 = vld [vmem:[%s5] sm:$0x1]
      %v329 = vperm.slane %v325, 0
      %v347 = vunpack.c.l.b16 %v277
      %v348 = vunpack.c.l.b16 %v278
      %v349 = vunpack.c.l.b16 %v279
      %v350 = vunpack.c.l.b16 %v280
      %v351 = vunpack.c.l.b16 %v281
      %v352 = vunpack.c.l.b16 %v282
      %v353 = vunpack.c.l.b16 %v283
      %v354 = vunpack.c.l.b16 %v284
      %v355 = vunpack.c.l.b16 %v285
      %v356 = vunpack.c.l.b16 %v286
      %v357 = vunpack.c.l.b16 %v287
      %v358 = vunpack.c.l.b16 %v288
      %v359 = vunpack.c.l.b16 %v289
      %v360 = vunpack.c.l.b16 %v290
      %v361 = vunpack.c.l.b16 %v291
      %v362 = vunpack.c.l.b16 %v292
      %v363 = vpack.c.b16 %v348, %v347
      %v364 = vpack.c.b16 %v350, %v349
      %v365 = vpack.c.b16 %v352, %v351
      %v366 = vpack.c.b16 %v354, %v353
      %v367 = vpack.c.b16 %v356, %v355
      %v368 = vpack.c.b16 %v358, %v357
      %v369 = vpack.c.b16 %v360, %v359
      %v370 = vpack.c.b16 %v362, %v361
      %v395 = vunpack.c.l.b16 %v293
      %v396 = vunpack.c.l.b16 %v294
      %v397 = vunpack.c.l.b16 %v295
      %v398 = vunpack.c.l.b16 %v296
      %v399 = vunpack.c.l.b16 %v297
      %v400 = vunpack.c.l.b16 %v298
      %v401 = vunpack.c.l.b16 %v299
      %v402 = vunpack.c.l.b16 %v300
      %v403 = vunpack.c.l.b16 %v301
      %v404 = vunpack.c.l.b16 %v302
      %v405 = vunpack.c.l.b16 %v303
      %v406 = vunpack.c.l.b16 %v304
      %v407 = vunpack.c.l.b16 %v305
      %v408 = vunpack.c.l.b16 %v306
      %v409 = vunpack.c.l.b16 %v307
      %v410 = vunpack.c.l.b16 %v308
      %v411 = vpack.c.b16 %v396, %v395
      %v412 = vpack.c.b16 %v398, %v397
      %v413 = vpack.c.b16 %v400, %v399
      %v414 = vpack.c.b16 %v402, %v401
      %v415 = vpack.c.b16 %v404, %v403
      %v416 = vpack.c.b16 %v406, %v405
      %v417 = vpack.c.b16 %v408, %v407
      %v418 = vpack.c.b16 %v410, %v409
      %427 = vmatpush.bf16.msra.mxu0 %v418
      %428 = vmatpush.bf16.msra.mxu0 %v417
      %429 = vmatpush.bf16.msra.mxu0 %v416
      %430 = vmatpush.bf16.msra.mxu0 %v415
      %431 = vmatpush.bf16.msra.mxu0 %v414
      %432 = vmatpush.bf16.msra.mxu0 %v413
      %433 = vmatpush.bf16.msra.mxu0 %v412
      %434 = vmatpush.bf16.msra.mxu0 %v411
      %435 = vmatmul.bf16.gmra.mxu0 %v363
      %v436 = vpop.f32.mrf.mxu0
      %v437 = vadd.f32 %v329, %v436
      %v438 = vpop.f32.mrf.mxu0
      %v439 = vadd.f32 %v329, %v438
      %440 = vmatmul.bf16.gmra.mxu0 %v364
      %v441 = vpop.f32.mrf.mxu0
      %v442 = vadd.f32 %v329, %v441
      %v443 = vpop.f32.mrf.mxu0
      %v444 = vadd.f32 %v329, %v443
      %445 = vmatmul.bf16.gmra.mxu0 %v365
      %v446 = vpop.f32.mrf.mxu0
      %v447 = vadd.f32 %v329, %v446
      %v448 = vpop.f32.mrf.mxu0
      %v449 = vadd.f32 %v329, %v448
      %450 = vmatmul.bf16.gmra.mxu0 %v366
      %v451 = vpop.f32.mrf.mxu0
      %v452 = vadd.f32 %v329, %v451
      %v453 = vpop.f32.mrf.mxu0
      %v454 = vadd.f32 %v329, %v453
      %455 = vmatmul.bf16.gmra.mxu0 %v367
      %v456 = vpop.f32.mrf.mxu0
      %v457 = vadd.f32 %v329, %v456
      %v458 = vpop.f32.mrf.mxu0
      %v459 = vadd.f32 %v329, %v458
      %460 = vmatmul.bf16.gmra.mxu0 %v368
      %v461 = vpop.f32.mrf.mxu0
      %v462 = vadd.f32 %v329, %v461
      %v463 = vpop.f32.mrf.mxu0
      %v464 = vadd.f32 %v329, %v463
      %465 = vmatmul.bf16.gmra.mxu0 %v369
      %v466 = vpop.f32.mrf.mxu0
      %v467 = vadd.f32 %v329, %v466
      %v468 = vpop.f32.mrf.mxu0
      %v469 = vadd.f32 %v329, %v468
      %470 = vmatmul.bf16.gmra.mxu0 %v370
      %v471 = vpop.f32.mrf.mxu0
      %v472 = vadd.f32 %v329, %v471
      %v473 = vpop.f32.mrf.mxu0
      %v474 = vadd.f32 %v329, %v473
      %475 = vdwg.mxu0
      %v476 = vadd.f32 %v437, %v309
      %v477 = vadd.f32 %v439, %v310
      %v478 = vadd.f32 %v442, %v311
      %v479 = vadd.f32 %v444, %v312
      %v480 = vadd.f32 %v447, %v313
      %v481 = vadd.f32 %v449, %v314
      %v482 = vadd.f32 %v452, %v315
      %v483 = vadd.f32 %v454, %v316
      %v484 = vadd.f32 %v457, %v317
      %v485 = vadd.f32 %v459, %v318
      %v486 = vadd.f32 %v462, %v319
      %v487 = vadd.f32 %v464, %v320
      %v488 = vadd.f32 %v467, %v321
      %v489 = vadd.f32 %v469, %v322
      %v490 = vadd.f32 %v472, %v323
      %v491 = vadd.f32 %v474, %v324
      %492 = vadd.xlane.f32.xlu0 %v476
      %v493 = vpop.xlane.xlu0 %492
      %494 = vadd.xlane.f32.xlu0 %v477
      %v495 = vpop.xlane.xlu0 %494
      %496 = vadd.xlane.f32.xlu0 %v478
      %v497 = vpop.xlane.xlu0 %496
      %498 = vadd.xlane.f32.xlu0 %v479
      %v499 = vpop.xlane.xlu0 %498
      %500 = vadd.xlane.f32.xlu0 %v480
      %v501 = vpop.xlane.xlu0 %500
      %502 = vadd.xlane.f32.xlu0 %v481
      %v503 = vpop.xlane.xlu0 %502
      %504 = vadd.xlane.f32.xlu0 %v482
      %v505 = vpop.xlane.xlu0 %504
      %506 = vadd.xlane.f32.xlu0 %v483
      %v507 = vpop.xlane.xlu0 %506
      %508 = vadd.xlane.f32.xlu0 %v484
      %v509 = vpop.xlane.xlu0 %508
      %510 = vadd.xlane.f32.xlu0 %v485
      %v511 = vpop.xlane.xlu0 %510
      %512 = vadd.xlane.f32.xlu0 %v486
      %v513 = vpop.xlane.xlu0 %512
      %514 = vadd.xlane.f32.xlu0 %v487
      %v515 = vpop.xlane.xlu0 %514
      %516 = vadd.xlane.f32.xlu0 %v488
      %v517 = vpop.xlane.xlu0 %516
      %518 = vadd.xlane.f32.xlu0 %v489
      %v519 = vpop.xlane.xlu0 %518
      %520 = vadd.xlane.f32.xlu0 %v490
      %v521 = vpop.xlane.xlu0 %520
      %522 = vadd.xlane.f32.xlu0 %v491
      %v523 = vpop.xlane.xlu0 %522
      %v524 = vrcp.pop 128.0
      %v525 = vmul.f32 128.0, %v524
      %v526 = vsub.f32 1.0, %v525
      %v527 = vmul.f32 %v524, %v526
      %v528 = vadd.f32 %v524, %v527
      %vm529 = vweird.f32 %v524
      %v530 = vsel %vm529, %v524, %v528
      %v531 = vmul.f32 %v493, %v530
      %v532 = vmul.f32 %v495, %v530
      %v533 = vmul.f32 %v497, %v530
      %v534 = vmul.f32 %v499, %v530
      %v535 = vmul.f32 %v501, %v530
      %v536 = vmul.f32 %v503, %v530
      %v537 = vmul.f32 %v505, %v530
      %v538 = vmul.f32 %v507, %v530
      %v539 = vmul.f32 %v509, %v530
      %v540 = vmul.f32 %v511, %v530
      %v541 = vmul.f32 %v513, %v530
      %v542 = vmul.f32 %v515, %v530
      %v543 = vmul.f32 %v517, %v530
      %v544 = vmul.f32 %v519, %v530
      %v545 = vmul.f32 %v521, %v530
      %v546 = vmul.f32 %v523, %v530
      %v547 = vsub.f32 %v476, %v531
      %v548 = vsub.f32 %v477, %v532
      %v549 = vsub.f32 %v478, %v533
      %v550 = vsub.f32 %v479, %v534
      %v551 = vsub.f32 %v480, %v535
      %v552 = vsub.f32 %v481, %v536
      %v553 = vsub.f32 %v482, %v537
      %v554 = vsub.f32 %v483, %v538
      %v555 = vsub.f32 %v484, %v539
      %v556 = vsub.f32 %v485, %v540
      %v557 = vsub.f32 %v486, %v541
      %v558 = vsub.f32 %v487, %v542
      %v559 = vsub.f32 %v488, %v543
      %v560 = vsub.f32 %v489, %v544
      %v561 = vsub.f32 %v490, %v545
      %v562 = vsub.f32 %v491, %v546
      %v563 = vmul.f32 %v547, %v547
      %v564 = vmul.f32 %v548, %v548
      %v565 = vmul.f32 %v549, %v549
      %v566 = vmul.f32 %v550, %v550
      %v567 = vmul.f32 %v551, %v551
      %v568 = vmul.f32 %v552, %v552
      %v569 = vmul.f32 %v553, %v553
      %v570 = vmul.f32 %v554, %v554
      %v571 = vmul.f32 %v555, %v555
      %v572 = vmul.f32 %v556, %v556
      %v573 = vmul.f32 %v557, %v557
      %v574 = vmul.f32 %v558, %v558
      %v575 = vmul.f32 %v559, %v559
      %v576 = vmul.f32 %v560, %v560
      %v577 = vmul.f32 %v561, %v561
      %v578 = vmul.f32 %v562, %v562
      %579 = vadd.xlane.f32.xlu0 %v563
      %v580 = vpop.xlane.xlu0 %579
      %581 = vadd.xlane.f32.xlu0 %v564
      %v582 = vpop.xlane.xlu0 %581
      %583 = vadd.xlane.f32.xlu0 %v565
      %v584 = vpop.xlane.xlu0 %583
      %585 = vadd.xlane.f32.xlu0 %v566
      %v586 = vpop.xlane.xlu0 %585
      %587 = vadd.xlane.f32.xlu0 %v567
      %v588 = vpop.xlane.xlu0 %587
      %589 = vadd.xlane.f32.xlu0 %v568
      %v590 = vpop.xlane.xlu0 %589
      %591 = vadd.xlane.f32.xlu0 %v569
      %v592 = vpop.xlane.xlu0 %591
      %593 = vadd.xlane.f32.xlu0 %v570
      %v594 = vpop.xlane.xlu0 %593
      %595 = vadd.xlane.f32.xlu0 %v571
      %v596 = vpop.xlane.xlu0 %595
      %597 = vadd.xlane.f32.xlu0 %v572
      %v598 = vpop.xlane.xlu0 %597
      %599 = vadd.xlane.f32.xlu0 %v573
      %v600 = vpop.xlane.xlu0 %599
      %601 = vadd.xlane.f32.xlu0 %v574
      %v602 = vpop.xlane.xlu0 %601
      %603 = vadd.xlane.f32.xlu0 %v575
      %v604 = vpop.xlane.xlu0 %603
      %605 = vadd.xlane.f32.xlu0 %v576
      %v606 = vpop.xlane.xlu0 %605
      %607 = vadd.xlane.f32.xlu0 %v577
      %v608 = vpop.xlane.xlu0 %607
      %609 = vadd.xlane.f32.xlu0 %v578
      %v610 = vpop.xlane.xlu0 %609
      %v611 = vmul.f32 %v580, %v530
      %v612 = vmul.f32 %v582, %v530
      %v613 = vmul.f32 %v584, %v530
      %v614 = vmul.f32 %v586, %v530
      %v615 = vmul.f32 %v588, %v530
      %v616 = vmul.f32 %v590, %v530
      %v617 = vmul.f32 %v592, %v530
      %v618 = vmul.f32 %v594, %v530
      %v619 = vmul.f32 %v596, %v530
      %v620 = vmul.f32 %v598, %v530
      %v621 = vmul.f32 %v600, %v530
      %v622 = vmul.f32 %v602, %v530
      %v623 = vmul.f32 %v604, %v530
      %v624 = vmul.f32 %v606, %v530
      %v625 = vmul.f32 %v608, %v530
      %v626 = vmul.f32 %v610, %v530
      %v627 = vadd.f32 %v611, 1e-12
      %v628 = vadd.f32 %v612, 1e-12
      %v629 = vadd.f32 %v613, 1e-12
      %v630 = vadd.f32 %v614, 1e-12
      %v631 = vadd.f32 %v615, 1e-12
      %v632 = vadd.f32 %v616, 1e-12
      %v633 = vadd.f32 %v617, 1e-12
      %v634 = vadd.f32 %v618, 1e-12
      %v635 = vadd.f32 %v619, 1e-12
      %v636 = vadd.f32 %v620, 1e-12
      %v637 = vadd.f32 %v621, 1e-12
      %v638 = vadd.f32 %v622, 1e-12
      %v639 = vadd.f32 %v623, 1e-12
      %v640 = vadd.f32 %v624, 1e-12
      %v641 = vadd.f32 %v625, 1e-12
      %v642 = vadd.f32 %v626, 1e-12
      %v643 = vrsqrt.pop %v627
      %v644 = vmul.f32 %v643, %v627
      %v645 = vmul.f32 %v644, %v643
      %v646 = vmul.f32 0.5, %v645
      %v647 = vsub.f32 1.5, %v646
      %v648 = vmul.f32 %v643, %v647
      %vm649 = vweird.f32 %v627
      %vm650 = vweird.f32 %v643
      %vm651 = vmor %vm649, %vm650
      %v652 = vsel %vm651, %v643, %v648
      %v653 = vrsqrt.pop %v628
      %v654 = vmul.f32 %v653, %v628
      %v655 = vmul.f32 %v654, %v653
      %v656 = vmul.f32 0.5, %v655
      %v657 = vsub.f32 1.5, %v656
      %v658 = vmul.f32 %v653, %v657
      %vm659 = vweird.f32 %v628
      %vm660 = vweird.f32 %v653
      %vm661 = vmor %vm659, %vm660
      %v662 = vsel %vm661, %v653, %v658
      %v663 = vrsqrt.pop %v629
      %v664 = vmul.f32 %v663, %v629
      %v665 = vmul.f32 %v664, %v663
      %v666 = vmul.f32 0.5, %v665
      %v667 = vsub.f32 1.5, %v666
      %v668 = vmul.f32 %v663, %v667
      %vm669 = vweird.f32 %v629
      %vm670 = vweird.f32 %v663
      %vm671 = vmor %vm669, %vm670
      %v672 = vsel %vm671, %v663, %v668
      %v673 = vrsqrt.pop %v630
      %v674 = vmul.f32 %v673, %v630
      %v675 = vmul.f32 %v674, %v673
      %v676 = vmul.f32 0.5, %v675
      %v677 = vsub.f32 1.5, %v676
      %v678 = vmul.f32 %v673, %v677
      %vm679 = vweird.f32 %v630
      %vm680 = vweird.f32 %v673
      %vm681 = vmor %vm679, %vm680
      %v682 = vsel %vm681, %v673, %v678
      %v683 = vrsqrt.pop %v631
      %v684 = vmul.f32 %v683, %v631
      %v685 = vmul.f32 %v684, %v683
      %v686 = vmul.f32 0.5, %v685
      %v687 = vsub.f32 1.5, %v686
      %v688 = vmul.f32 %v683, %v687
      %vm689 = vweird.f32 %v631
      %vm690 = vweird.f32 %v683
      %vm691 = vmor %vm689, %vm690
      %v692 = vsel %vm691, %v683, %v688
      %v693 = vrsqrt.pop %v632
      %v694 = vmul.f32 %v693, %v632
      %v695 = vmul.f32 %v694, %v693
      %v696 = vmul.f32 0.5, %v695
      %v697 = vsub.f32 1.5, %v696
      %v698 = vmul.f32 %v693, %v697
      %vm699 = vweird.f32 %v632
      %vm700 = vweird.f32 %v693
      %vm701 = vmor %vm699, %vm700
      %v702 = vsel %vm701, %v693, %v698
      %v703 = vrsqrt.pop %v633
      %v704 = vmul.f32 %v703, %v633
      %v705 = vmul.f32 %v704, %v703
      %v706 = vmul.f32 0.5, %v705
      %v707 = vsub.f32 1.5, %v706
      %v708 = vmul.f32 %v703, %v707
      %vm709 = vweird.f32 %v633
      %vm710 = vweird.f32 %v703
      %vm711 = vmor %vm709, %vm710
      %v712 = vsel %vm711, %v703, %v708
      %v713 = vrsqrt.pop %v634
      %v714 = vmul.f32 %v713, %v634
      %v715 = vmul.f32 %v714, %v713
      %v716 = vmul.f32 0.5, %v715
      %v717 = vsub.f32 1.5, %v716
      %v718 = vmul.f32 %v713, %v717
      %vm719 = vweird.f32 %v634
      %vm720 = vweird.f32 %v713
      %vm721 = vmor %vm719, %vm720
      %v722 = vsel %vm721, %v713, %v718
      %v723 = vrsqrt.pop %v635
      %v724 = vmul.f32 %v723, %v635
      %v725 = vmul.f32 %v724, %v723
      %v726 = vmul.f32 0.5, %v725
      %v727 = vsub.f32 1.5, %v726
      %v728 = vmul.f32 %v723, %v727
      %vm729 = vweird.f32 %v635
      %vm730 = vweird.f32 %v723
      %vm731 = vmor %vm729, %vm730
      %v732 = vsel %vm731, %v723, %v728
      %v733 = vrsqrt.pop %v636
      %v734 = vmul.f32 %v733, %v636
      %v735 = vmul.f32 %v734, %v733
      %v736 = vmul.f32 0.5, %v735
      %v737 = vsub.f32 1.5, %v736
      %v738 = vmul.f32 %v733, %v737
      %vm739 = vweird.f32 %v636
      %vm740 = vweird.f32 %v733
      %vm741 = vmor %vm739, %vm740
      %v742 = vsel %vm741, %v733, %v738
      %v743 = vrsqrt.pop %v637
      %v744 = vmul.f32 %v743, %v637
      %v745 = vmul.f32 %v744, %v743
      %v746 = vmul.f32 0.5, %v745
      %v747 = vsub.f32 1.5, %v746
      %v748 = vmul.f32 %v743, %v747
      %vm749 = vweird.f32 %v637
      %vm750 = vweird.f32 %v743
      %vm751 = vmor %vm749, %vm750
      %v752 = vsel %vm751, %v743, %v748
      %v753 = vrsqrt.pop %v638
      %v754 = vmul.f32 %v753, %v638
      %v755 = vmul.f32 %v754, %v753
      %v756 = vmul.f32 0.5, %v755
      %v757 = vsub.f32 1.5, %v756
      %v758 = vmul.f32 %v753, %v757
      %vm759 = vweird.f32 %v638
      %vm760 = vweird.f32 %v753
      %vm761 = vmor %vm759, %vm760
      %v762 = vsel %vm761, %v753, %v758
      %v763 = vrsqrt.pop %v639
      %v764 = vmul.f32 %v763, %v639
      %v765 = vmul.f32 %v764, %v763
      %v766 = vmul.f32 0.5, %v765
      %v767 = vsub.f32 1.5, %v766
      %v768 = vmul.f32 %v763, %v767
      %vm769 = vweird.f32 %v639
      %vm770 = vweird.f32 %v763
      %vm771 = vmor %vm769, %vm770
      %v772 = vsel %vm771, %v763, %v768
      %v773 = vrsqrt.pop %v640
      %v774 = vmul.f32 %v773, %v640
      %v775 = vmul.f32 %v774, %v773
      %v776 = vmul.f32 0.5, %v775
      %v777 = vsub.f32 1.5, %v776
      %v778 = vmul.f32 %v773, %v777
      %vm779 = vweird.f32 %v640
      %vm780 = vweird.f32 %v773
      %vm781 = vmor %vm779, %vm780
      %v782 = vsel %vm781, %v773, %v778
      %v783 = vrsqrt.pop %v641
      %v784 = vmul.f32 %v783, %v641
      %v785 = vmul.f32 %v784, %v783
      %v786 = vmul.f32 0.5, %v785
      %v787 = vsub.f32 1.5, %v786
      %v788 = vmul.f32 %v783, %v787
      %vm789 = vweird.f32 %v641
      %vm790 = vweird.f32 %v783
      %vm791 = vmor %vm789, %vm790
      %v792 = vsel %vm791, %v783, %v788
      %v793 = vrsqrt.pop %v642
      %v794 = vmul.f32 %v793, %v642
      %v795 = vmul.f32 %v794, %v793
      %v796 = vmul.f32 0.5, %v795
      %v797 = vsub.f32 1.5, %v796
      %v798 = vmul.f32 %v793, %v797
      %vm799 = vweird.f32 %v642
      %vm800 = vweird.f32 %v793
      %vm801 = vmor %vm799, %vm800
      %v802 = vsel %vm801, %v793, %v798
      %v803 = vmul.f32 %v547, %v652
      %v804 = vmul.f32 %v548, %v662
      %v805 = vmul.f32 %v549, %v672
      %v806 = vmul.f32 %v550, %v682
      %v807 = vmul.f32 %v551, %v692
      %v808 = vmul.f32 %v552, %v702
      %v809 = vmul.f32 %v553, %v712
      %v810 = vmul.f32 %v554, %v722
      %v811 = vmul.f32 %v555, %v732
      %v812 = vmul.f32 %v556, %v742
      %v813 = vmul.f32 %v557, %v752
      %v814 = vmul.f32 %v558, %v762
      %v815 = vmul.f32 %v559, %v772
      %v816 = vmul.f32 %v560, %v782
      %v817 = vmul.f32 %v561, %v792
      %v818 = vmul.f32 %v562, %v802
      %v820 = vperm.slane %v326, 0
      %v822 = vmul.f32 %v803, %v820
      %v823 = vmul.f32 %v804, %v820
      %v824 = vmul.f32 %v805, %v820
      %v825 = vmul.f32 %v806, %v820
      %v826 = vmul.f32 %v807, %v820
      %v827 = vmul.f32 %v808, %v820
      %v828 = vmul.f32 %v809, %v820
      %v829 = vmul.f32 %v810, %v820
      %v830 = vmul.f32 %v811, %v820
      %v831 = vmul.f32 %v812, %v820
      %v832 = vmul.f32 %v813, %v820
      %v833 = vmul.f32 %v814, %v820
      %v834 = vmul.f32 %v815, %v820
      %v835 = vmul.f32 %v816, %v820
      %v836 = vmul.f32 %v817, %v820
      %v837 = vmul.f32 %v818, %v820
      %v839 = vperm.slane %v327, 0
      %v841 = vadd.f32 %v822, %v839
      %v842 = vadd.f32 %v823, %v839
      %v843 = vadd.f32 %v824, %v839
      %v844 = vadd.f32 %v825, %v839
      %v845 = vadd.f32 %v826, %v839
      %v846 = vadd.f32 %v827, %v839
      %v847 = vadd.f32 %v828, %v839
      %v848 = vadd.f32 %v829, %v839
      %v849 = vadd.f32 %v830, %v839
      %v850 = vadd.f32 %v831, %v839
      %v851 = vadd.f32 %v832, %v839
      %v852 = vadd.f32 %v833, %v839
      %v853 = vadd.f32 %v834, %v839
      %v854 = vadd.f32 %v835, %v839
      %v855 = vadd.f32 %v836, %v839
      %v856 = vadd.f32 %v837, %v839
      %857 = vst [vmem:[%s275] sm:$0xff] %v841
      %858 = vst [vmem:[%s275 + $0x8] sm:$0xff] %v842
      %859 = vst [vmem:[%s275 + $0x10] sm:$0xff] %v843
      %860 = vst [vmem:[%s275 + $0x18] sm:$0xff] %v844
      %861 = vst [vmem:[%s275 + $0x20] sm:$0xff] %v845
      %862 = vst [vmem:[%s275 + $0x28] sm:$0xff] %v846
      %863 = vst [vmem:[%s275 + $0x30] sm:$0xff] %v847
      %864 = vst [vmem:[%s275 + $0x38] sm:$0xff] %v848
      %865 = vst [vmem:[%s275 + $0x40] sm:$0xff] %v849
      %866 = vst [vmem:[%s275 + $0x48] sm:$0xff] %v850
      %867 = vst [vmem:[%s275 + $0x50] sm:$0xff] %v851
      %868 = vst [vmem:[%s275 + $0x58] sm:$0xff] %v852
      %869 = vst [vmem:[%s275 + $0x60] sm:$0xff] %v853
      %870 = vst [vmem:[%s275 + $0x68] sm:$0xff] %v854
      %871 = vst [vmem:[%s275 + $0x70] sm:$0xff] %v855
      %872 = vst [vmem:[%s275 + $0x78] sm:$0xff] %v856
      %s873 = smul.u32 16, %s17
      %p874 = scmp.lt.s32.totalorder %s873, 31
      %s875 = scalar_select %p874, %s873, 31
      %s876 = smul.addr %s875, 8
      %s877 = scalar_lea.vmem %s6, %s876
      // Predicated region
      $region45: #{_forward_impl.14} parent=43 // pred_check
        %p878 = pneg %p171
      $region46: #{_forward_impl.14} parent=43 // pred_check_branch
        %880 = sbr.rel (%p878) target = $region48
      $region47: #{_forward_impl.14} parent=43 // pred_region
        %s881 = smul.u32 16, %s17
      $region48: #{_forward_impl.14} parent=43 // pred_fallthru
        _
    $region44: #{_forward_impl.14} parent=5 // pred_fallthru
      _
    %p882 = scmp.le.s32.totalorder 2, %s12
    // Predicated region
    $region49: #{_forward_impl.14} parent=5 // pred_check
      %p883 = pneg %p882
    $region50: #{_forward_impl.14} parent=5 // pred_check_branch
      %885 = sbr.rel (%p883) target = $region52
    $region51: #{_forward_impl.14} parent=5 // pred_region
      %s886 = ssub.s32 %s12, 2
      // Predicated region
      $region53: #{_forward_impl.14} parent=51 // pred_check
        %p887 = pneg %p177
      $region54: #{_forward_impl.14} parent=51 // pred_check_branch
        %889 = sbr.rel (%p887) target = $region56
      $region55: #{_forward_impl.14} parent=51 // pred_region
        %s890 = smul.u32 16, %s18
        %p891 = scmp.lt.s32.totalorder %s890, 31
        %s892 = scalar_select %p891, %s890, 31
        %s893 = smul.addr %s892, 8
        %s894 = scalar_lea.vmem %s6, %s893
      $region56: #{_forward_impl.14} parent=51 // pred_fallthru
        _
    $region52: #{_forward_impl.14} parent=5 // pred_fallthru
      _
  $region6: #{_forward_impl.14} parent=0 // loop_footer
    %s16 = sadd.s32 1, %s12
  $region7: #{_forward_impl.14} parent=0 // loop_footer_branch
    %11 = sbr.rel target = $region3
  $region8: #{_forward_impl.14} parent=0 // loop_exit
    _

// kernel: _forward_impl.15
$region0: #{_forward_impl.15}
  #allocation0 [shape = 'u32[]', space=smem, size = 0x4, offset = 0x4, fixed_abs, tag = 'smem constant byte address 0x4 - core index']
  #allocation1 [shape = 'u32[72,128]{1,0:T(1,128)}', space=vmem, size = 0x9000, scoped, tag = 'internal scratch']
  %s0 = inlined_call_operand.vmem [shape: f32[256,128], index: 0, kind: input, shape index: {}]
  %s1 = inlined_call_operand.vmem [shape: bf16[128,512], index: 1, kind: input, shape index: {}]
  %s2 = inlined_call_operand.vmem [shape: f32[1,512], index: 2, kind: input, shape index: {}]
  %s3 = inlined_call_operand.vmem [shape: bf16[256,512], index: 3, kind: output, shape index: {}]
  %s4 = sld [smem:[#allocation0]]
  $region45: #{_forward_impl.15} parent=0
    _
  %s6 = ssub.s32 1, %s4
  %s7 = scalar_select 0, %s6, %s4
  loop: start=0, step=1, limit=4
  $region2: #{_forward_impl.15} parent=0 // loop_pre_header
    _
  $region3: #{_forward_impl.15} parent=0 // loop_header
    %s9 = sphi 0, %s13
    %p10 = scmp.ge.s32.totalorder %s9, 4
    %s16 = sphi 0, %s28
    %s17 = sphi 0, %s24
    %s18 = sphi 0, %s16
    %s19 = sphi 0, %s17
    %s20 = sphi 0, %s18
    %s21 = sphi 0, %s19
    %s31 = sphi 0, %s33
    %s34 = sphi 0, %s31
    %s35 = sphi 0, %s34
    %s51 = sphi 0, %s35
    %s57 = sphi 0, %s59
    %s60 = sphi 0, %s57
    %s61 = sphi 0, %s60
    %s77 = sphi 0, %s61
    %s83 = sphi 0, %s85
    %s86 = sphi 0, %s83
    %s87 = sphi 0, %s86
    %s103 = sphi 0, %s87
    %s111 = sphi 0, %s113
    %s114 = sphi 0, %s111
    %s115 = sphi 0, %s114
    %s131 = sphi 0, %s115
  $region4: #{_forward_impl.15} parent=0 // loop_header_branch
    %12 = sbr.rel (%p10) target = $region8
  $region5: #{_forward_impl.15} parent=0 // loop_body
    %s14 = ssub.s32 %s9, 1
    %s15 = ssub.s32 %s9, 2
    %s22 = sadd.s32 1, %s17
    %p23 = scmp.ge.s32.totalorder %s22, 1
    %s24 = scalar_select %p23, 0, %s22
    %s25 = sadd.s32 1, %s16
    %s26 = scalar_select %p23, %s25, %s16
    %p27 = scmp.ge.s32.totalorder %s26, 2
    %s28 = scalar_select %p27, 0, %s26
    %s29 = ssub.s32 %s16, %s28
    %p30 = scmp.eq.s32.totalorder %s29, 0
    %s32 = sadd.s32 %s31, 1
    %s33 = scalar_select %p30, %s31, %s32
    %p36 = pneg %p30
    %p37 = scmp.eq.s32.totalorder %s9, 1
    %p38 = por %p36, %p37
    %p39 = scmp.ne.s32.totalorder %s31, %s34
    %p40 = scmp.eq.s32.totalorder %s9, 0
    %p41 = por %p39, %p40
    %p42 = scmp.ne.s32.totalorder %s31, %s34
    %p43 = scmp.eq.s32.totalorder %s14, 1
    %p44 = por %p42, %p43
    %p45 = scmp.ne.s32.totalorder %s34, %s35
    %p46 = scmp.eq.s32.totalorder %s14, 0
    %p47 = por %p45, %p46
    %p48 = scmp.ne.s32.totalorder %s34, %s35
    %p49 = scmp.eq.s32.totalorder %s15, 1
    %p50 = por %p48, %p49
    %p52 = scmp.ne.s32.totalorder %s35, %s51
    %p53 = scmp.eq.s32.totalorder %s15, 0
    %p54 = por %p52, %p53
    %s55 = ssub.s32 %s17, %s24
    %p56 = scmp.eq.s32.totalorder %s55, 0
    %s58 = sadd.s32 %s57, 1
    %s59 = scalar_select %p56, %s57, %s58
    %p62 = pneg %p56
    %p63 = scmp.eq.s32.totalorder %s9, 1
    %p64 = por %p62, %p63
    %p65 = scmp.ne.s32.totalorder %s57, %s60
    %p66 = scmp.eq.s32.totalorder %s9, 0
    %p67 = por %p65, %p66
    %p68 = scmp.ne.s32.totalorder %s57, %s60
    %p69 = scmp.eq.s32.totalorder %s14, 1
    %p70 = por %p68, %p69
    %p71 = scmp.ne.s32.totalorder %s60, %s61
    %p72 = scmp.eq.s32.totalorder %s14, 0
    %p73 = por %p71, %p72
    %p74 = scmp.ne.s32.totalorder %s60, %s61
    %p75 = scmp.eq.s32.totalorder %s15, 1
    %p76 = por %p74, %p75
    %p78 = scmp.ne.s32.totalorder %s61, %s77
    %p79 = scmp.eq.s32.totalorder %s15, 0
    %p80 = por %p78, %p79
    %s81 = ssub.s32 %s17, %s24
    %p82 = scmp.eq.s32.totalorder %s81, 0
    %s84 = sadd.s32 %s83, 1
    %s85 = scalar_select %p82, %s83, %s84
    %p88 = pneg %p82
    %p89 = scmp.eq.s32.totalorder %s9, 1
    %p90 = por %p88, %p89
    %p91 = scmp.ne.s32.totalorder %s83, %s86
    %p92 = scmp.eq.s32.totalorder %s9, 0
    %p93 = por %p91, %p92
    %p94 = scmp.ne.s32.totalorder %s83, %s86
    %p95 = scmp.eq.s32.totalorder %s14, 1
    %p96 = por %p94, %p95
    %p97 = scmp.ne.s32.totalorder %s86, %s87
    %p98 = scmp.eq.s32.totalorder %s14, 0
    %p99 = por %p97, %p98
    %p100 = scmp.ne.s32.totalorder %s86, %s87
    %p101 = scmp.eq.s32.totalorder %s15, 1
    %p102 = por %p100, %p101
    %p104 = scmp.ne.s32.totalorder %s87, %s103
    %p105 = scmp.eq.s32.totalorder %s15, 0
    %p106 = por %p104, %p105
    %s107 = ssub.s32 %s16, %s28
    %s108 = ssub.s32 %s17, %s24
    %s109 = sor.u32 %s107, %s108
    %p110 = scmp.eq.s32.totalorder %s109, 0
    %s112 = sadd.s32 %s111, 1
    %s113 = scalar_select %p110, %s111, %s112
    %p116 = pneg %p110
    %p117 = scmp.eq.s32.totalorder %s9, 1
    %p118 = por %p116, %p117
    %p119 = scmp.ne.s32.totalorder %s111, %s114
    %p120 = scmp.eq.s32.totalorder %s9, 0
    %p121 = por %p119, %p120
    %p122 = scmp.ne.s32.totalorder %s111, %s114
    %p123 = scmp.eq.s32.totalorder %s14, 1
    %p124 = por %p122, %p123
    %p125 = scmp.ne.s32.totalorder %s114, %s115
    %p126 = scmp.eq.s32.totalorder %s14, 0
    %p127 = por %p125, %p126
    %p128 = scmp.ne.s32.totalorder %s114, %s115
    %p129 = scmp.eq.s32.totalorder %s15, 1
    %p130 = por %p128, %p129
    %p132 = scmp.ne.s32.totalorder %s115, %s131
    %p133 = scmp.eq.s32.totalorder %s15, 0
    %p134 = por %p132, %p133
    %p135 = scmp.le.s32.totalorder 1, %s9
    %p136 = scmp.lt.s32.totalorder %s9, 3
    %p137 = pnand %p135, %p136
    %p138 = pneg %p137
    // Predicated region
    $region9: #{_forward_impl.15} parent=5 // pred_check
      _
    $region10: #{_forward_impl.15} parent=5 // pred_check_branch
      %140 = sbr.rel (%p137) target = $region12
    $region11: #{_forward_impl.15} parent=5 // pred_region
      %s141 = ssub.s32 %s9, 1
      // Predicated region
      $region13: #{_forward_impl.15} parent=11 // pred_check
        %p142 = pneg %p73
      $region14: #{_forward_impl.15} parent=11 // pred_check_branch
        %144 = sbr.rel (%p142) target = $region16
      $region15: #{_forward_impl.15} parent=11 // pred_region
        %s145 = smul.u32 4, %s19
        %p146 = scmp.lt.s32.totalorder %s145, 3
        %s147 = scalar_select %p146, %s145, 3
        %s148 = smul.addr %s147, 4
        %s149 = scalar_lea.vmem %s1, %s148
        %s150 = smul.u32 4, %s19
      $region16: #{_forward_impl.15} parent=11 // pred_fallthru
        _
      // Predicated region
      $region17: #{_forward_impl.15} parent=11 // pred_check
        %p151 = pneg %p99
      $region18: #{_forward_impl.15} parent=11 // pred_check_branch
        %153 = sbr.rel (%p151) target = $region20
      $region19: #{_forward_impl.15} parent=11 // pred_region
        %s154 = smul.u32 4, %s19
        %p155 = scmp.lt.s32.totalorder %s154, 3
        %s156 = scalar_select %p155, %s154, 3
        %s157 = scalar_lea.vmem %s2, %s156
        %s158 = smul.u32 4, %s19
      $region20: #{_forward_impl.15} parent=11 // pred_fallthru
        _
    $region12: #{_forward_impl.15} parent=5 // pred_fallthru
      _
    %p159 = scmp.lt.s32.totalorder %s9, 2
    // Predicated region
    $region21: #{_forward_impl.15} parent=5 // pred_check
      %p160 = pneg %p159
    $region22: #{_forward_impl.15} parent=5 // pred_check_branch
      %162 = sbr.rel (%p160) target = $region24
    $region23: #{_forward_impl.15} parent=5 // pred_region
      // Predicated region
      $region25: #{_forward_impl.15} parent=23 // pred_check
        %p163 = pneg %p41
      $region26: #{_forward_impl.15} parent=23 // pred_check_branch
        %165 = sbr.rel (%p163) target = $region28
      $region27: #{_forward_impl.15} parent=23 // pred_region
        %s166 = smul.u32 16, %s16
        %p167 = scmp.lt.s32.totalorder %s166, 31
        %s168 = scalar_select %p167, %s166, 31
        %s169 = smul.addr %s168, 8
        %s170 = scalar_lea.vmem %s0, %s169
        %s171 = smul.u32 16, %s16
      $region28: #{_forward_impl.15} parent=23 // pred_fallthru
        _
    $region24: #{_forward_impl.15} parent=5 // pred_fallthru
      _
    %p172 = scmp.le.s32.totalorder 1, %s9
    %p173 = scmp.lt.s32.totalorder %s9, 3
    %p174 = pnand %p172, %p173
    %p175 = pneg %p174
    // Predicated region
    $region29: #{_forward_impl.15} parent=5 // pred_check
      _
    $region30: #{_forward_impl.15} parent=5 // pred_check_branch
      %177 = sbr.rel (%p174) target = $region32
    $region31: #{_forward_impl.15} parent=5 // pred_region
      %s178 = ssub.s32 %s9, 1
      %s179 = smul.u32 16, %s18
      %p180 = scmp.lt.s32.totalorder %s179, 31
      %s181 = scalar_select %p180, %s179, 31
      %s182 = smul.addr %s181, 8
      %s183 = scalar_lea.vmem %s0, %s182
      %p184 = pneg %p47
      %p185 = pneg %p44
      %s186 = smul.u32 4, %s19
      %p187 = scmp.lt.s32.totalorder %s186, 3
      %s188 = scalar_select %p187, %s186, 3
      %s189 = smul.addr %s188, 4
      %s190 = scalar_lea.vmem %s1, %s189
      %p191 = pneg %p73
      %p192 = pneg %p70
      %s193 = smul.u32 4, %s19
      %p194 = scmp.lt.s32.totalorder %s193, 3
      %s195 = scalar_select %p194, %s193, 3
      %s196 = scalar_lea.vmem %s2, %s195
      %p197 = pneg %p99
      %p198 = pneg %p96
      %p199 = pneg %p127
      %p200 = pneg %p124
      %s201 = smul.u32 16, %s18
      %s202 = smul.u32 4, %s19
      %p203 = scmp.lt.s32.totalorder %s201, 31
      %s204 = scalar_select %p203, %s201, 31
      %p205 = scmp.lt.s32.totalorder %s202, 3
      %s206 = scalar_select %p205, %s202, 3
      %s207 = smul.addr %s204, 4
      %s208 = sadd.s32 %s206, %s207
      %s209 = smul.addr %s208, 4
      %s210 = scalar_lea.vmem %s3, %s209
      %s211 = smul.u32 16, %s18
      %p212 = scmp.lt.s32.totalorder %s211, 31
      %s213 = scalar_select %p212, %s211, 31
      %s214 = smul.addr %s213, 8
      %s215 = scalar_lea.vmem %s0, %s214
      %s216 = smul.u32 16, %s18
      %s217 = smul.u32 4, %s19
      %p218 = scmp.lt.s32.totalorder %s217, 3
      %s219 = scalar_select %p218, %s217, 3
      %s220 = smul.addr %s219, 4
      %s221 = scalar_lea.vmem %s1, %s220
      %s222 = smul.u32 4, %s19
      %s223 = smul.u32 4, %s19
      %p224 = scmp.lt.s32.totalorder %s223, 3
      %s225 = scalar_select %p224, %s223, 3
      %s226 = scalar_lea.vmem %s2, %s225
      %s227 = smul.u32 4, %s19
      %s228 = smul.u32 16, %s18
      %s229 = smul.u32 4, %s19
      %p230 = scmp.lt.s32.totalorder %s228, 31
      %s231 = scalar_select %p230, %s228, 31
      %p232 = scmp.lt.s32.totalorder %s229, 3
      %s233 = scalar_select %p232, %s229, 3
      %s234 = smul.addr %s231, 4
      %s235 = sadd.s32 %s233, %s234
      %s236 = smul.addr %s235, 4
      %s237 = scalar_lea.vmem %s3, %s236
      %s238 = smul.u32 16, %s18
      %s239 = smul.u32 4, %s19
      %v240 = vld [vmem:[%s215] sm:$0xff]
      %v241 = vld [vmem:[%s215 + $0x8] sm:$0xff]
      %v242 = vld [vmem:[%s215 + $0x10] sm:$0xff]
      %v243 = vld [vmem:[%s215 + $0x18] sm:$0xff]
      %v244 = vld [vmem:[%s215 + $0x20] sm:$0xff]
      %v245 = vld [vmem:[%s215 + $0x28] sm:$0xff]
      %v246 = vld [vmem:[%s215 + $0x30] sm:$0xff]
      %v247 = vld [vmem:[%s215 + $0x38] sm:$0xff]
      %v248 = vld [vmem:[%s215 + $0x40] sm:$0xff]
      %v249 = vld [vmem:[%s215 + $0x48] sm:$0xff]
      %v250 = vld [vmem:[%s215 + $0x50] sm:$0xff]
      %v251 = vld [vmem:[%s215 + $0x58] sm:$0xff]
      %v252 = vld [vmem:[%s215 + $0x60] sm:$0xff]
      %v253 = vld [vmem:[%s215 + $0x68] sm:$0xff]
      %v254 = vld [vmem:[%s215 + $0x70] sm:$0xff]
      %v255 = vld [vmem:[%s215 + $0x78] sm:$0xff]
      %v256 = vpack.c.bf16 %v241, %v240
      %v257 = vpack.c.bf16 %v243, %v242
      %v258 = vpack.c.bf16 %v245, %v244
      %v259 = vpack.c.bf16 %v247, %v246
      %v260 = vpack.c.bf16 %v249, %v248
      %v261 = vpack.c.bf16 %v251, %v250
      %v262 = vpack.c.bf16 %v253, %v252
      %v263 = vpack.c.bf16 %v255, %v254
      %v264 = vld [vmem:[%s221] sm:$0xff]
      %v265 = vld [vmem:[%s221 + $0x8] sm:$0xff]
      %v266 = vld [vmem:[%s221 + $0x10] sm:$0xff]
      %v267 = vld [vmem:[%s221 + $0x18] sm:$0xff]
      %v268 = vld [vmem:[%s221 + $0x20] sm:$0xff]
      %v269 = vld [vmem:[%s221 + $0x28] sm:$0xff]
      %v270 = vld [vmem:[%s221 + $0x30] sm:$0xff]
      %v271 = vld [vmem:[%s221 + $0x38] sm:$0xff]
      %v272 = vld [vmem:[%s221 + $0x40] sm:$0xff]
      %v273 = vld [vmem:[%s221 + $0x48] sm:$0xff]
      %v274 = vld [vmem:[%s221 + $0x50] sm:$0xff]
      %v275 = vld [vmem:[%s221 + $0x58] sm:$0xff]
      %v276 = vld [vmem:[%s221 + $0x60] sm:$0xff]
      %v277 = vld [vmem:[%s221 + $0x68] sm:$0xff]
      %v278 = vld [vmem:[%s221 + $0x70] sm:$0xff]
      %v279 = vld [vmem:[%s221 + $0x78] sm:$0xff]
      %v280 = vld [vmem:[%s221 + $0x80] sm:$0xff]
      %v281 = vld [vmem:[%s221 + $0x88] sm:$0xff]
      %v282 = vld [vmem:[%s221 + $0x90] sm:$0xff]
      %v283 = vld [vmem:[%s221 + $0x98] sm:$0xff]
      %v284 = vld [vmem:[%s221 + $0xa0] sm:$0xff]
      %v285 = vld [vmem:[%s221 + $0xa8] sm:$0xff]
      %v286 = vld [vmem:[%s221 + $0xb0] sm:$0xff]
      %v287 = vld [vmem:[%s221 + $0xb8] sm:$0xff]
      %v288 = vld [vmem:[%s221 + $0xc0] sm:$0xff]
      %v289 = vld [vmem:[%s221 + $0xc8] sm:$0xff]
      %v290 = vld [vmem:[%s221 + $0xd0] sm:$0xff]
      %v291 = vld [vmem:[%s221 + $0xd8] sm:$0xff]
      %v292 = vld [vmem:[%s221 + $0xe0] sm:$0xff]
      %v293 = vld [vmem:[%s221 + $0xe8] sm:$0xff]
      %v294 = vld [vmem:[%s221 + $0xf0] sm:$0xff]
      %v295 = vld [vmem:[%s221 + $0xf8] sm:$0xff]
      %v296 = vld [vmem:[%s226] sm:$0xf]
      %v298 = vperm.slane %v296, 0
      %v299 = vperm.slane %v296, 1
      %v300 = vperm.slane %v296, 2
      %v301 = vperm.slane %v296, 3
      %v338 = vunpack.c.l.b16 %v264
      %v339 = vunpack.c.h.b16 %v264
      %v340 = vunpack.c.l.b16 %v265
      %v341 = vunpack.c.h.b16 %v265
      %v342 = vunpack.c.l.b16 %v266
      %v343 = vunpack.c.h.b16 %v266
      %v344 = vunpack.c.l.b16 %v267
      %v345 = vunpack.c.h.b16 %v267
      %v346 = vunpack.c.l.b16 %v268
      %v347 = vunpack.c.h.b16 %v268
      %v348 = vunpack.c.l.b16 %v269
      %v349 = vunpack.c.h.b16 %v269
      %v350 = vunpack.c.l.b16 %v270
      %v351 = vunpack.c.h.b16 %v270
      %v352 = vunpack.c.l.b16 %v271
      %v353 = vunpack.c.h.b16 %v271
      %v354 = vunpack.c.l.b16 %v272
      %v355 = vunpack.c.h.b16 %v272
      %v356 = vunpack.c.l.b16 %v273
      %v357 = vunpack.c.h.b16 %v273
      %v358 = vunpack.c.l.b16 %v274
      %v359 = vunpack.c.h.b16 %v274
      %v360 = vunpack.c.l.b16 %v275
      %v361 = vunpack.c.h.b16 %v275
      %v362 = vunpack.c.l.b16 %v276
      %v363 = vunpack.c.h.b16 %v276
      %v364 = vunpack.c.l.b16 %v277
      %v365 = vunpack.c.h.b16 %v277
      %v366 = vunpack.c.l.b16 %v278
      %v367 = vunpack.c.h.b16 %v278
      %v368 = vunpack.c.l.b16 %v279
      %v369 = vunpack.c.h.b16 %v279
      %v370 = vunpack.c.l.b16 %v280
      %v371 = vunpack.c.h.b16 %v280
      %v372 = vunpack.c.l.b16 %v281
      %v373 = vunpack.c.h.b16 %v281
      %v374 = vunpack.c.l.b16 %v282
      %v375 = vunpack.c.h.b16 %v282
      %v376 = vunpack.c.l.b16 %v283
      %v377 = vunpack.c.h.b16 %v283
      %v378 = vunpack.c.l.b16 %v284
      %v379 = vunpack.c.h.b16 %v284
      %v380 = vunpack.c.l.b16 %v285
      %v381 = vunpack.c.h.b16 %v285
      %v382 = vunpack.c.l.b16 %v286
      %v383 = vunpack.c.h.b16 %v286
      %v384 = vunpack.c.l.b16 %v287
      %v385 = vunpack.c.h.b16 %v287
      %v386 = vunpack.c.l.b16 %v288
      %v387 = vunpack.c.h.b16 %v288
      %v388 = vunpack.c.l.b16 %v289
      %v389 = vunpack.c.h.b16 %v289
      %v390 = vunpack.c.l.b16 %v290
      %v391 = vunpack.c.h.b16 %v290
      %v392 = vunpack.c.l.b16 %v291
      %v393 = vunpack.c.h.b16 %v291
      %v394 = vunpack.c.l.b16 %v292
      %v395 = vunpack.c.h.b16 %v292
      %v396 = vunpack.c.l.b16 %v293
      %v397 = vunpack.c.h.b16 %v293
      %v398 = vunpack.c.l.b16 %v294
      %v399 = vunpack.c.h.b16 %v294
      %v400 = vunpack.c.l.b16 %v295
      %v401 = vunpack.c.h.b16 %v295
      %v402 = vpack.c.b16 %v342, %v338
      %v403 = vpack.c.b16 %v343, %v339
      %v404 = vpack.c.b16 %v344, %v340
      %v405 = vpack.c.b16 %v345, %v341
      %v406 = vpack.c.b16 %v350, %v346
      %v407 = vpack.c.b16 %v351, %v347
      %v408 = vpack.c.b16 %v352, %v348
      %v409 = vpack.c.b16 %v353, %v349
      %v410 = vpack.c.b16 %v358, %v354
      %v411 = vpack.c.b16 %v359, %v355
      %v412 = vpack.c.b16 %v360, %v356
      %v413 = vpack.c.b16 %v361, %v357
      %v414 = vpack.c.b16 %v366, %v362
      %v415 = vpack.c.b16 %v367, %v363
      %v416 = vpack.c.b16 %v368, %v364
      %v417 = vpack.c.b16 %v369, %v365
      %v418 = vpack.c.b16 %v374, %v370
      %v419 = vpack.c.b16 %v375, %v371
      %v420 = vpack.c.b16 %v376, %v372
      %v421 = vpack.c.b16 %v377, %v373
      %v422 = vpack.c.b16 %v382, %v378
      %v423 = vpack.c.b16 %v383, %v379
      %v424 = vpack.c.b16 %v384, %v380
      %v425 = vpack.c.b16 %v385, %v381
      %v426 = vpack.c.b16 %v390, %v386
      %v427 = vpack.c.b16 %v391, %v387
      %v428 = vpack.c.b16 %v392, %v388
      %v429 = vpack.c.b16 %v393, %v389
      %v430 = vpack.c.b16 %v398, %v394
      %v431 = vpack.c.b16 %v399, %v395
      %v432 = vpack.c.b16 %v400, %v396
      %v433 = vpack.c.b16 %v401, %v397
      %466 = vmatpush.bf16.msra.mxu0 %v430
      %467 = vmatpush.bf16.msra.mxu0 %v426
      %468 = vmatpush.bf16.msra.mxu0 %v422
      %469 = vmatpush.bf16.msra.mxu0 %v418
      %470 = vmatpush.bf16.msra.mxu0 %v414
      %471 = vmatpush.bf16.msra.mxu0 %v410
      %472 = vmatpush.bf16.msra.mxu0 %v406
      %473 = vmatpush.bf16.msra.mxu0 %v402
      %474 = vmatmul.bf16.gmra.mxu0 %v256
      %v475 = vpop.f32.mrf.mxu0
      %v476 = vadd.f32 %v298, %v475
      %v477 = vpop.f32.mrf.mxu0
      %v478 = vadd.f32 %v298, %v477
      %479 = vmatmul.bf16.gmra.mxu0 %v257
      %v480 = vpop.f32.mrf.mxu0
      %v481 = vadd.f32 %v298, %v480
      %v482 = vpop.f32.mrf.mxu0
      %v483 = vadd.f32 %v298, %v482
      %484 = vmatmul.bf16.gmra.mxu0 %v258
      %v485 = vpop.f32.mrf.mxu0
      %v486 = vadd.f32 %v298, %v485
      %v487 = vpop.f32.mrf.mxu0
      %v488 = vadd.f32 %v298, %v487
      %489 = vmatmul.bf16.gmra.mxu0 %v259
      %v490 = vpop.f32.mrf.mxu0
      %v491 = vadd.f32 %v298, %v490
      %v492 = vpop.f32.mrf.mxu0
      %v493 = vadd.f32 %v298, %v492
      %494 = vmatmul.bf16.gmra.mxu0 %v260
      %v495 = vpop.f32.mrf.mxu0
      %v496 = vadd.f32 %v298, %v495
      %v497 = vpop.f32.mrf.mxu0
      %v498 = vadd.f32 %v298, %v497
      %499 = vmatmul.bf16.gmra.mxu0 %v261
      %v500 = vpop.f32.mrf.mxu0
      %v501 = vadd.f32 %v298, %v500
      %v502 = vpop.f32.mrf.mxu0
      %v503 = vadd.f32 %v298, %v502
      %504 = vmatmul.bf16.gmra.mxu0 %v262
      %v505 = vpop.f32.mrf.mxu0
      %v506 = vadd.f32 %v298, %v505
      %v507 = vpop.f32.mrf.mxu0
      %v508 = vadd.f32 %v298, %v507
      %509 = vmatmul.bf16.gmra.mxu0 %v263
      %v510 = vpop.f32.mrf.mxu0
      %v511 = vadd.f32 %v298, %v510
      %v512 = vpop.f32.mrf.mxu0
      %v513 = vadd.f32 %v298, %v512
      %514 = vdwg.mxu0
      %515 = vmatpush.bf16.msra.mxu0 %v431
      %516 = vmatpush.bf16.msra.mxu0 %v427
      %517 = vmatpush.bf16.msra.mxu0 %v423
      %518 = vmatpush.bf16.msra.mxu0 %v419
      %519 = vmatpush.bf16.msra.mxu0 %v415
      %520 = vmatpush.bf16.msra.mxu0 %v411
      %521 = vmatpush.bf16.msra.mxu0 %v407
      %522 = vmatpush.bf16.msra.mxu0 %v403
      %523 = vmatmul.bf16.gmra.mxu0 %v256
      %v524 = vpop.f32.mrf.mxu0
      %v525 = vadd.f32 %v299, %v524
      %v526 = vpop.f32.mrf.mxu0
      %v527 = vadd.f32 %v299, %v526
      %528 = vmatmul.bf16.gmra.mxu0 %v257
      %v529 = vpop.f32.mrf.mxu0
      %v530 = vadd.f32 %v299, %v529
      %v531 = vpop.f32.mrf.mxu0
      %v532 = vadd.f32 %v299, %v531
      %533 = vmatmul.bf16.gmra.mxu0 %v258
      %v534 = vpop.f32.mrf.mxu0
      %v535 = vadd.f32 %v299, %v534
      %v536 = vpop.f32.mrf.mxu0
      %v537 = vadd.f32 %v299, %v536
      %538 = vmatmul.bf16.gmra.mxu0 %v259
      %v539 = vpop.f32.mrf.mxu0
      %v540 = vadd.f32 %v299, %v539
      %v541 = vpop.f32.mrf.mxu0
      %v542 = vadd.f32 %v299, %v541
      %543 = vmatmul.bf16.gmra.mxu0 %v260
      %v544 = vpop.f32.mrf.mxu0
      %v545 = vadd.f32 %v299, %v544
      %v546 = vpop.f32.mrf.mxu0
      %v547 = vadd.f32 %v299, %v546
      %548 = vmatmul.bf16.gmra.mxu0 %v261
      %v549 = vpop.f32.mrf.mxu0
      %v550 = vadd.f32 %v299, %v549
      %v551 = vpop.f32.mrf.mxu0
      %v552 = vadd.f32 %v299, %v551
      %553 = vmatmul.bf16.gmra.mxu0 %v262
      %v554 = vpop.f32.mrf.mxu0
      %v555 = vadd.f32 %v299, %v554
      %v556 = vpop.f32.mrf.mxu0
      %v557 = vadd.f32 %v299, %v556
      %558 = vmatmul.bf16.gmra.mxu0 %v263
      %v559 = vpop.f32.mrf.mxu0
      %v560 = vadd.f32 %v299, %v559
      %v561 = vpop.f32.mrf.mxu0
      %v562 = vadd.f32 %v299, %v561
      %563 = vdwg.mxu0
      %564 = vmatpush.bf16.msra.mxu0 %v432
      %565 = vmatpush.bf16.msra.mxu0 %v428
      %566 = vmatpush.bf16.msra.mxu0 %v424
      %567 = vmatpush.bf16.msra.mxu0 %v420
      %568 = vmatpush.bf16.msra.mxu0 %v416
      %569 = vmatpush.bf16.msra.mxu0 %v412
      %570 = vmatpush.bf16.msra.mxu0 %v408
      %571 = vmatpush.bf16.msra.mxu0 %v404
      %572 = vmatmul.bf16.gmra.mxu0 %v256
      %v573 = vpop.f32.mrf.mxu0
      %v574 = vadd.f32 %v300, %v573
      %v575 = vpop.f32.mrf.mxu0
      %v576 = vadd.f32 %v300, %v575
      %577 = vmatmul.bf16.gmra.mxu0 %v257
      %v578 = vpop.f32.mrf.mxu0
      %v579 = vadd.f32 %v300, %v578
      %v580 = vpop.f32.mrf.mxu0
      %v581 = vadd.f32 %v300, %v580
      %582 = vmatmul.bf16.gmra.mxu0 %v258
      %v583 = vpop.f32.mrf.mxu0
      %v584 = vadd.f32 %v300, %v583
      %v585 = vpop.f32.mrf.mxu0
      %v586 = vadd.f32 %v300, %v585
      %587 = vmatmul.bf16.gmra.mxu0 %v259
      %v588 = vpop.f32.mrf.mxu0
      %v589 = vadd.f32 %v300, %v588
      %v590 = vpop.f32.mrf.mxu0
      %v591 = vadd.f32 %v300, %v590
      %592 = vmatmul.bf16.gmra.mxu0 %v260
      %v593 = vpop.f32.mrf.mxu0
      %v594 = vadd.f32 %v300, %v593
      %v595 = vpop.f32.mrf.mxu0
      %v596 = vadd.f32 %v300, %v595
      %597 = vmatmul.bf16.gmra.mxu0 %v261
      %v598 = vpop.f32.mrf.mxu0
      %v599 = vadd.f32 %v300, %v598
      %v600 = vpop.f32.mrf.mxu0
      %v601 = vadd.f32 %v300, %v600
      %602 = vmatmul.bf16.gmra.mxu0 %v262
      %v603 = vpop.f32.mrf.mxu0
      %v604 = vadd.f32 %v300, %v603
      %v605 = vpop.f32.mrf.mxu0
      %v606 = vadd.f32 %v300, %v605
      %607 = vmatmul.bf16.gmra.mxu0 %v263
      %v608 = vpop.f32.mrf.mxu0
      %v609 = vadd.f32 %v300, %v608
      %v610 = vpop.f32.mrf.mxu0
      %v611 = vadd.f32 %v300, %v610
      %612 = vdwg.mxu0
      %613 = vmatpush.bf16.msra.mxu0 %v433
      %614 = vmatpush.bf16.msra.mxu0 %v429
      %615 = vmatpush.bf16.msra.mxu0 %v425
      %616 = vmatpush.bf16.msra.mxu0 %v421
      %617 = vmatpush.bf16.msra.mxu0 %v417
      %618 = vmatpush.bf16.msra.mxu0 %v413
      %619 = vmatpush.bf16.msra.mxu0 %v409
      %620 = vmatpush.bf16.msra.mxu0 %v405
      %621 = vmatmul.bf16.gmra.mxu0 %v256
      %v622 = vpop.f32.mrf.mxu0
      %v623 = vadd.f32 %v301, %v622
      %v624 = vpop.f32.mrf.mxu0
      %v625 = vadd.f32 %v301, %v624
      %626 = vmatmul.bf16.gmra.mxu0 %v257
      %v627 = vpop.f32.mrf.mxu0
      %v628 = vadd.f32 %v301, %v627
      %v629 = vpop.f32.mrf.mxu0
      %v630 = vadd.f32 %v301, %v629
      %631 = vmatmul.bf16.gmra.mxu0 %v258
      %v632 = vpop.f32.mrf.mxu0
      %v633 = vadd.f32 %v301, %v632
      %v634 = vpop.f32.mrf.mxu0
      %v635 = vadd.f32 %v301, %v634
      %636 = vmatmul.bf16.gmra.mxu0 %v259
      %v637 = vpop.f32.mrf.mxu0
      %v638 = vadd.f32 %v301, %v637
      %v639 = vpop.f32.mrf.mxu0
      %v640 = vadd.f32 %v301, %v639
      %641 = vmatmul.bf16.gmra.mxu0 %v260
      %v642 = vpop.f32.mrf.mxu0
      %v643 = vadd.f32 %v301, %v642
      %v644 = vpop.f32.mrf.mxu0
      %v645 = vadd.f32 %v301, %v644
      %646 = vmatmul.bf16.gmra.mxu0 %v261
      %v647 = vpop.f32.mrf.mxu0
      %v648 = vadd.f32 %v301, %v647
      %v649 = vpop.f32.mrf.mxu0
      %v650 = vadd.f32 %v301, %v649
      %651 = vmatmul.bf16.gmra.mxu0 %v262
      %v652 = vpop.f32.mrf.mxu0
      %v653 = vadd.f32 %v301, %v652
      %v654 = vpop.f32.mrf.mxu0
      %v655 = vadd.f32 %v301, %v654
      %656 = vmatmul.bf16.gmra.mxu0 %v263
      %v657 = vpop.f32.mrf.mxu0
      %v658 = vadd.f32 %v301, %v657
      %v659 = vpop.f32.mrf.mxu0
      %v660 = vadd.f32 %v301, %v659
      %661 = vdwg.mxu0
      %v662 = vmul.f32 %v476, 0.5
      %v663 = vmul.f32 %v525, 0.5
      %v664 = vmul.f32 %v574, 0.5
      %v665 = vmul.f32 %v623, 0.5
      %v666 = vmul.f32 %v478, 0.5
      %v667 = vmul.f32 %v527, 0.5
      %v668 = vmul.f32 %v576, 0.5
      %v669 = vmul.f32 %v625, 0.5
      %v670 = vmul.f32 %v481, 0.5
      %v671 = vmul.f32 %v530, 0.5
      %v672 = vmul.f32 %v579, 0.5
      %v673 = vmul.f32 %v628, 0.5
      %v674 = vmul.f32 %v483, 0.5
      %v675 = vmul.f32 %v532, 0.5
      %v676 = vmul.f32 %v581, 0.5
      %v677 = vmul.f32 %v630, 0.5
      %v678 = vmul.f32 %v486, 0.5
      %v679 = vmul.f32 %v535, 0.5
      %v680 = vmul.f32 %v584, 0.5
      %v681 = vmul.f32 %v633, 0.5
      %v682 = vmul.f32 %v488, 0.5
      %v683 = vmul.f32 %v537, 0.5
      %v684 = vmul.f32 %v586, 0.5
      %v685 = vmul.f32 %v635, 0.5
      %v686 = vmul.f32 %v491, 0.5
      %v687 = vmul.f32 %v540, 0.5
      %v688 = vmul.f32 %v589, 0.5
      %v689 = vmul.f32 %v638, 0.5
      %v690 = vmul.f32 %v493, 0.5
      %v691 = vmul.f32 %v542, 0.5
      %v692 = vmul.f32 %v591, 0.5
      %v693 = vmul.f32 %v640, 0.5
      %v694 = vmul.f32 %v496, 0.5
      %v695 = vmul.f32 %v545, 0.5
      %v696 = vmul.f32 %v594, 0.5
      %v697 = vmul.f32 %v643, 0.5
      %v698 = vmul.f32 %v498, 0.5
      %v699 = vmul.f32 %v547, 0.5
      %v700 = vmul.f32 %v596, 0.5
      %v701 = vmul.f32 %v645, 0.5
      %v702 = vmul.f32 %v501, 0.5
      %v703 = vmul.f32 %v550, 0.5
      %v704 = vmul.f32 %v599, 0.5
      %v705 = vmul.f32 %v648, 0.5
      %v706 = vmul.f32 %v503, 0.5
      %v707 = vmul.f32 %v552, 0.5
      %v708 = vmul.f32 %v601, 0.5
      %v709 = vmul.f32 %v650, 0.5
      %v710 = vmul.f32 %v506, 0.5
      %v711 = vmul.f32 %v555, 0.5
      %v712 = vmul.f32 %v604, 0.5
      %v713 = vmul.f32 %v653, 0.5
      %v714 = vmul.f32 %v508, 0.5
      %v715 = vmul.f32 %v557, 0.5
      %v716 = vmul.f32 %v606, 0.5
      %v717 = vmul.f32 %v655, 0.5
      %v718 = vmul.f32 %v511, 0.5
      %v719 = vmul.f32 %v560, 0.5
      %v720 = vmul.f32 %v609, 0.5
      %v721 = vmul.f32 %v658, 0.5
      %v722 = vmul.f32 %v513, 0.5
      %v723 = vmul.f32 %v562, 0.5
      %v724 = vmul.f32 %v611, 0.5
      %v725 = vmul.f32 %v660, 0.5
      %v726 = vmul.f32 %v476, 0.70710677
      %v727 = vmul.f32 %v525, 0.70710677
      %v728 = vmul.f32 %v574, 0.70710677
      %v729 = vmul.f32 %v623, 0.70710677
      %v730 = vmul.f32 %v478, 0.70710677
      %v731 = vmul.f32 %v527, 0.70710677
      %v732 = vmul.f32 %v576, 0.70710677
      %v733 = vmul.f32 %v625, 0.70710677
      %v734 = vmul.f32 %v481, 0.70710677
      %v735 = vmul.f32 %v530, 0.70710677
      %v736 = vmul.f32 %v579, 0.70710677
      %v737 = vmul.f32 %v628, 0.70710677
      %v738 = vmul.f32 %v483, 0.70710677
      %v739 = vmul.f32 %v532, 0.70710677
      %v740 = vmul.f32 %v581, 0.70710677
      %v741 = vmul.f32 %v630, 0.70710677
      %v742 = vmul.f32 %v486, 0.70710677
      %v743 = vmul.f32 %v535, 0.70710677
      %v744 = vmul.f32 %v584, 0.70710677
      %v745 = vmul.f32 %v633, 0.70710677
      %v746 = vmul.f32 %v488, 0.70710677
      %v747 = vmul.f32 %v537, 0.70710677
      %v748 = vmul.f32 %v586, 0.70710677
      %v749 = vmul.f32 %v635, 0.70710677
      %v750 = vmul.f32 %v491, 0.70710677
      %v751 = vmul.f32 %v540, 0.70710677
      %v752 = vmul.f32 %v589, 0.70710677
      %v753 = vmul.f32 %v638, 0.70710677
      %v754 = vmul.f32 %v493, 0.70710677
      %v755 = vmul.f32 %v542, 0.70710677
      %v756 = vmul.f32 %v591, 0.70710677
      %v757 = vmul.f32 %v640, 0.70710677
      %v758 = vmul.f32 %v496, 0.70710677
      %v759 = vmul.f32 %v545, 0.70710677
      %v760 = vmul.f32 %v594, 0.70710677
      %v761 = vmul.f32 %v643, 0.70710677
      %v762 = vmul.f32 %v498, 0.70710677
      %v763 = vmul.f32 %v547, 0.70710677
      %v764 = vmul.f32 %v596, 0.70710677
      %v765 = vmul.f32 %v645, 0.70710677
      %v766 = vmul.f32 %v501, 0.70710677
      %v767 = vmul.f32 %v550, 0.70710677
      %v768 = vmul.f32 %v599, 0.70710677
      %v769 = vmul.f32 %v648, 0.70710677
      %v770 = vmul.f32 %v503, 0.70710677
      %v771 = vmul.f32 %v552, 0.70710677
      %v772 = vmul.f32 %v601, 0.70710677
      %v773 = vmul.f32 %v650, 0.70710677
      %v774 = vmul.f32 %v506, 0.70710677
      %v775 = vmul.f32 %v555, 0.70710677
      %v776 = vmul.f32 %v604, 0.70710677
      %v777 = vmul.f32 %v653, 0.70710677
      %v778 = vmul.f32 %v508, 0.70710677
      %v779 = vmul.f32 %v557, 0.70710677
      %v780 = vmul.f32 %v606, 0.70710677
      %v781 = vmul.f32 %v655, 0.70710677
      %v782 = vmul.f32 %v511, 0.70710677
      %v783 = vmul.f32 %v560, 0.70710677
      %v784 = vmul.f32 %v609, 0.70710677
      %v785 = vmul.f32 %v658, 0.70710677
      %v786 = vmul.f32 %v513, 0.70710677
      %v787 = vmul.f32 %v562, 0.70710677
      %v788 = vmul.f32 %v611, 0.70710677
      %v789 = vmul.f32 %v660, 0.70710677
      %v790 = vmul.f32 %v726, %v726
      %v791 = vmin.f32 16.0, %v790
      %v792 = vmul.f32 %v791, 2.1237322e-06
      %v793 = vadd.f32 %v792, 0.00028619796
      %v794 = vmul.f32 %v791, %v793
      %v795 = vadd.f32 %v794, 0.0036580483
      %v796 = vmul.f32 %v791, %v795
      %v797 = vadd.f32 %v796, 0.05243302
      %v798 = vmul.f32 %v791, %v797
      %v799 = vadd.f32 %v798, 0.18741608
      %v800 = vmul.f32 %v791, %v799
      %v801 = vadd.f32 %v800, 1.1283791
      %v802 = vmul.f32 %v726, %v801
      %v803 = vmul.f32 %v791, 3.8918573e-05
      %v804 = vadd.f32 %v803, 0.001143296
      %v805 = vmul.f32 %v791, %v804
      %v806 = vadd.f32 %v805, 0.014752088
      %v807 = vmul.f32 %v791, %v806
      %v808 = vadd.f32 %v807, 0.112945676
      %v809 = vmul.f32 %v791, %v808
      %v810 = vadd.f32 %v809, 0.4994258
      %v811 = vmul.f32 %v791, %v810
      %v812 = vadd.f32 %v811, 1.0
      %v813 = vrcp.pop %v812
      %v814 = vmul.f32 %v812, %v813
      %v815 = vsub.f32 1.0, %v814
      %v816 = vmul.f32 %v813, %v815
      %v817 = vadd.f32 %v813, %v816
      %vm818 = vweird.f32 %v812
      %vm819 = vweird.f32 %v813
      %vm820 = vmor %vm818, %vm819
      %v821 = vsel %vm820, %v813, %v817
      %v822 = vand.u32 2147483647, %v812
      %vm823 = vcmp.eq.f32.partialorder %v822, 8.507059e+37
      %v824 = vand.u32 %v812, 2147483648
      %v825 = vor.u32 1.1754944e-38, %v824
      %v826 = vsel %vm823, %v825, %v821
      %v827 = vmul.f32 %v802, %v826
      %v828 = vmin.f32 %v827, 1.0
      %v829 = vmax.f32 %v828, -1.0
      %v830 = vmul.f32 %v727, %v727
      %v831 = vmin.f32 16.0, %v830
      %v832 = vmul.f32 %v831, 2.1237322e-06
      %v833 = vadd.f32 %v832, 0.00028619796
      %v834 = vmul.f32 %v831, %v833
      %v835 = vadd.f32 %v834, 0.0036580483
      %v836 = vmul.f32 %v831, %v835
      %v837 = vadd.f32 %v836, 0.05243302
      %v838 = vmul.f32 %v831, %v837
      %v839 = vadd.f32 %v838, 0.18741608
      %v840 = vmul.f32 %v831, %v839
      %v841 = vadd.f32 %v840, 1.1283791
      %v842 = vmul.f32 %v727, %v841
      %v843 = vmul.f32 %v831, 3.8918573e-05
      %v844 = vadd.f32 %v843, 0.001143296
      %v845 = vmul.f32 %v831, %v844
      %v846 = vadd.f32 %v845, 0.014752088
      %v847 = vmul.f32 %v831, %v846
      %v848 = vadd.f32 %v847, 0.112945676
      %v849 = vmul.f32 %v831, %v848
      %v850 = vadd.f32 %v849, 0.4994258
      %v851 = vmul.f32 %v831, %v850
      %v852 = vadd.f32 %v851, 1.0
      %v853 = vrcp.pop %v852
      %v854 = vmul.f32 %v852, %v853
      %v855 = vsub.f32 1.0, %v854
      %v856 = vmul.f32 %v853, %v855
      %v857 = vadd.f32 %v853, %v856
      %vm858 = vweird.f32 %v852
      %vm859 = vweird.f32 %v853
      %vm860 = vmor %vm858, %vm859
      %v861 = vsel %vm860, %v853, %v857
      %v862 = vand.u32 2147483647, %v852
      %vm863 = vcmp.eq.f32.partialorder %v862, 8.507059e+37
      %v864 = vand.u32 %v852, 2147483648
      %v865 = vor.u32 1.1754944e-38, %v864
      %v866 = vsel %vm863, %v865, %v861
      %v867 = vmul.f32 %v842, %v866
      %v868 = vmin.f32 %v867, 1.0
      %v869 = vmax.f32 %v868, -1.0
      %v870 = vmul.f32 %v728, %v728
      %v871 = vmin.f32 16.0, %v870
      %v872 = vmul.f32 %v871, 2.1237322e-06
      %v873 = vadd.f32 %v872, 0.00028619796
      %v874 = vmul.f32 %v871, %v873
      %v875 = vadd.f32 %v874, 0.0036580483
      %v876 = vmul.f32 %v871, %v875
      %v877 = vadd.f32 %v876, 0.05243302
      %v878 = vmul.f32 %v871, %v877
      %v879 = vadd.f32 %v878, 0.18741608
      %v880 = vmul.f32 %v871, %v879
      %v881 = vadd.f32 %v880, 1.1283791
      %v882 = vmul.f32 %v728, %v881
      %v883 = vmul.f32 %v871, 3.8918573e-05
      %v884 = vadd.f32 %v883, 0.001143296
      %v885 = vmul.f32 %v871, %v884
      %v886 = vadd.f32 %v885, 0.014752088
      %v887 = vmul.f32 %v871, %v886
      %v888 = vadd.f32 %v887, 0.112945676
      %v889 = vmul.f32 %v871, %v888
      %v890 = vadd.f32 %v889, 0.4994258
      %v891 = vmul.f32 %v871, %v890
      %v892 = vadd.f32 %v891, 1.0
      %v893 = vrcp.pop %v892
      %v894 = vmul.f32 %v892, %v893
      %v895 = vsub.f32 1.0, %v894
      %v896 = vmul.f32 %v893, %v895
      %v897 = vadd.f32 %v893, %v896
      %vm898 = vweird.f32 %v892
      %vm899 = vweird.f32 %v893
      %vm900 = vmor %vm898, %vm899
      %v901 = vsel %vm900, %v893, %v897
      %v902 = vand.u32 2147483647, %v892
      %vm903 = vcmp.eq.f32.partialorder %v902, 8.507059e+37
      %v904 = vand.u32 %v892, 2147483648
      %v905 = vor.u32 1.1754944e-38, %v904
      %v906 = vsel %vm903, %v905, %v901
      %v907 = vmul.f32 %v882, %v906
      %v908 = vmin.f32 %v907, 1.0
      %v909 = vmax.f32 %v908, -1.0
      %v910 = vmul.f32 %v729, %v729
      %v911 = vmin.f32 16.0, %v910
      %v912 = vmul.f32 %v911, 2.1237322e-06
      %v913 = vadd.f32 %v912, 0.00028619796
      %v914 = vmul.f32 %v911, %v913
      %v915 = vadd.f32 %v914, 0.0036580483
      %v916 = vmul.f32 %v911, %v915
      %v917 = vadd.f32 %v916, 0.05243302
      %v918 = vmul.f32 %v911, %v917
      %v919 = vadd.f32 %v918, 0.18741608
      %v920 = vmul.f32 %v911, %v919
      %v921 = vadd.f32 %v920, 1.1283791
      %v922 = vmul.f32 %v729, %v921
      %v923 = vmul.f32 %v911, 3.8918573e-05
      %v924 = vadd.f32 %v923, 0.001143296
      %v925 = vmul.f32 %v911, %v924
      %v926 = vadd.f32 %v925, 0.014752088
      %v927 = vmul.f32 %v911, %v926
      %v928 = vadd.f32 %v927, 0.112945676
      %v929 = vmul.f32 %v911, %v928
      %v930 = vadd.f32 %v929, 0.4994258
      %v931 = vmul.f32 %v911, %v930
      %v932 = vadd.f32 %v931, 1.0
      %v933 = vrcp.pop %v932
      %v934 = vmul.f32 %v932, %v933
      %v935 = vsub.f32 1.0, %v934
      %v936 = vmul.f32 %v933, %v935
      %v937 = vadd.f32 %v933, %v936
      %vm938 = vweird.f32 %v932
      %vm939 = vweird.f32 %v933
      %vm940 = vmor %vm938, %vm939
      %v941 = vsel %vm940, %v933, %v937
      %v942 = vand.u32 2147483647, %v932
      %vm943 = vcmp.eq.f32.partialorder %v942, 8.507059e+37
      %v944 = vand.u32 %v932, 2147483648
      %v945 = vor.u32 1.1754944e-38, %v944
      %v946 = vsel %vm943, %v945, %v941
      %v947 = vmul.f32 %v922, %v946
      %v948 = vmin.f32 %v947, 1.0
      %v949 = vmax.f32 %v948, -1.0
      %v950 = vmul.f32 %v730, %v730
      %v951 = vmin.f32 16.0, %v950
      %v952 = vmul.f32 %v951, 2.1237322e-06
      %v953 = vadd.f32 %v952, 0.00028619796
      %v954 = vmul.f32 %v951, %v953
      %v955 = vadd.f32 %v954, 0.0036580483
      %v956 = vmul.f32 %v951, %v955
      %v957 = vadd.f32 %v956, 0.05243302
      %v958 = vmul.f32 %v951, %v957
      %v959 = vadd.f32 %v958, 0.18741608
      %v960 = vmul.f32 %v951, %v959
      %v961 = vadd.f32 %v960, 1.1283791
      %v962 = vmul.f32 %v730, %v961
      %v963 = vmul.f32 %v951, 3.8918573e-05
      %v964 = vadd.f32 %v963, 0.001143296
      %v965 = vmul.f32 %v951, %v964
      %v966 = vadd.f32 %v965, 0.014752088
      %v967 = vmul.f32 %v951, %v966
      %v968 = vadd.f32 %v967, 0.112945676
      %v969 = vmul.f32 %v951, %v968
      %v970 = vadd.f32 %v969, 0.4994258
      %v971 = vmul.f32 %v951, %v970
      %v972 = vadd.f32 %v971, 1.0
      %v973 = vrcp.pop %v972
      %v974 = vmul.f32 %v972, %v973
      %v975 = vsub.f32 1.0, %v974
      %v976 = vmul.f32 %v973, %v975
      %v977 = vadd.f32 %v973, %v976
      %vm978 = vweird.f32 %v972
      %vm979 = vweird.f32 %v973
      %vm980 = vmor %vm978, %vm979
      %v981 = vsel %vm980, %v973, %v977
      %v982 = vand.u32 2147483647, %v972
      %vm983 = vcmp.eq.f32.partialorder %v982, 8.507059e+37
      %v984 = vand.u32 %v972, 2147483648
      %v985 = vor.u32 1.1754944e-38, %v984
      %v986 = vsel %vm983, %v985, %v981
      %v987 = vmul.f32 %v962, %v986
      %v988 = vmin.f32 %v987, 1.0
      %v989 = vmax.f32 %v988, -1.0
      %v990 = vmul.f32 %v731, %v731
      %v991 = vmin.f32 16.0, %v990
      %v992 = vmul.f32 %v991, 2.1237322e-06
      %v993 = vadd.f32 %v992, 0.00028619796
      %v994 = vmul.f32 %v991, %v993
      %v995 = vadd.f32 %v994, 0.0036580483
      %v996 = vmul.f32 %v991, %v995
      %v997 = vadd.f32 %v996, 0.05243302
      %v998 = vmul.f32 %v991, %v997
      %v999 = vadd.f32 %v998, 0.18741608
      %v1000 = vmul.f32 %v991, %v999
      %v1001 = vadd.f32 %v1000, 1.1283791
      %v1002 = vmul.f32 %v731, %v1001
      %v1003 = vmul.f32 %v991, 3.8918573e-05
      %v1004 = vadd.f32 %v1003, 0.001143296
      %v1005 = vmul.f32 %v991, %v1004
      %v1006 = vadd.f32 %v1005, 0.014752088
      %v1007 = vmul.f32 %v991, %v1006
      %v1008 = vadd.f32 %v1007, 0.112945676
      %v1009 = vmul.f32 %v991, %v1008
      %v1010 = vadd.f32 %v1009, 0.4994258
      %v1011 = vmul.f32 %v991, %v1010
      %v1012 = vadd.f32 %v1011, 1.0
      %v1013 = vrcp.pop %v1012
      %v1014 = vmul.f32 %v1012, %v1013
      %v1015 = vsub.f32 1.0, %v1014
      %v1016 = vmul.f32 %v1013, %v1015
      %v1017 = vadd.f32 %v1013, %v1016
      %vm1018 = vweird.f32 %v1012
      %vm1019 = vweird.f32 %v1013
      %vm1020 = vmor %vm1018, %vm1019
      %v1021 = vsel %vm1020, %v1013, %v1017
      %v1022 = vand.u32 2147483647, %v1012
      %vm1023 = vcmp.eq.f32.partialorder %v1022, 8.507059e+37
      %v1024 = vand.u32 %v1012, 2147483648
      %v1025 = vor.u32 1.1754944e-38, %v1024
      %v1026 = vsel %vm1023, %v1025, %v1021
      %v1027 = vmul.f32 %v1002, %v1026
      %v1028 = vmin.f32 %v1027, 1.0
      %v1029 = vmax.f32 %v1028, -1.0
      %v1030 = vmul.f32 %v732, %v732
      %v1031 = vmin.f32 16.0, %v1030
      %v1032 = vmul.f32 %v1031, 2.1237322e-06
      %v1033 = vadd.f32 %v1032, 0.00028619796
      %v1034 = vmul.f32 %v1031, %v1033
      %v1035 = vadd.f32 %v1034, 0.0036580483
      %v1036 = vmul.f32 %v1031, %v1035
      %v1037 = vadd.f32 %v1036, 0.05243302
      %v1038 = vmul.f32 %v1031, %v1037
      %v1039 = vadd.f32 %v1038, 0.18741608
      %v1040 = vmul.f32 %v1031, %v1039
      %v1041 = vadd.f32 %v1040, 1.1283791
      %v1042 = vmul.f32 %v732, %v1041
      %v1043 = vmul.f32 %v1031, 3.8918573e-05
      %v1044 = vadd.f32 %v1043, 0.001143296
      %v1045 = vmul.f32 %v1031, %v1044
      %v1046 = vadd.f32 %v1045, 0.014752088
      %v1047 = vmul.f32 %v1031, %v1046
      %v1048 = vadd.f32 %v1047, 0.112945676
      %v1049 = vmul.f32 %v1031, %v1048
      %v1050 = vadd.f32 %v1049, 0.4994258
      %v1051 = vmul.f32 %v1031, %v1050
      %v1052 = vadd.f32 %v1051, 1.0
      %v1053 = vrcp.pop %v1052
      %v1054 = vmul.f32 %v1052, %v1053
      %v1055 = vsub.f32 1.0, %v1054
      %v1056 = vmul.f32 %v1053, %v1055
      %v1057 = vadd.f32 %v1053, %v1056
      %vm1058 = vweird.f32 %v1052
      %vm1059 = vweird.f32 %v1053
      %vm1060 = vmor %vm1058, %vm1059
      %v1061 = vsel %vm1060, %v1053, %v1057
      %v1062 = vand.u32 2147483647, %v1052
      %vm1063 = vcmp.eq.f32.partialorder %v1062, 8.507059e+37
      %v1064 = vand.u32 %v1052, 2147483648
      %v1065 = vor.u32 1.1754944e-38, %v1064
      %v1066 = vsel %vm1063, %v1065, %v1061
      %v1067 = vmul.f32 %v1042, %v1066
      %v1068 = vmin.f32 %v1067, 1.0
      %v1069 = vmax.f32 %v1068, -1.0
      %v1070 = vmul.f32 %v733, %v733
      %v1071 = vmin.f32 16.0, %v1070
      %v1072 = vmul.f32 %v1071, 2.1237322e-06
      %v1073 = vadd.f32 %v1072, 0.00028619796
      %v1074 = vmul.f32 %v1071, %v1073
      %v1075 = vadd.f32 %v1074, 0.0036580483
      %v1076 = vmul.f32 %v1071, %v1075
      %v1077 = vadd.f32 %v1076, 0.05243302
      %v1078 = vmul.f32 %v1071, %v1077
      %v1079 = vadd.f32 %v1078, 0.18741608
      %v1080 = vmul.f32 %v1071, %v1079
      %v1081 = vadd.f32 %v1080, 1.1283791
      %v1082 = vmul.f32 %v733, %v1081
      %v1083 = vmul.f32 %v1071, 3.8918573e-05
      %v1084 = vadd.f32 %v1083, 0.001143296
      %v1085 = vmul.f32 %v1071, %v1084
      %v1086 = vadd.f32 %v1085, 0.014752088
      %v1087 = vmul.f32 %v1071, %v1086
      %v1088 = vadd.f32 %v1087, 0.112945676
      %v1089 = vmul.f32 %v1071, %v1088
      %v1090 = vadd.f32 %v1089, 0.4994258
      %v1091 = vmul.f32 %v1071, %v1090
      %v1092 = vadd.f32 %v1091, 1.0
      %v1093 = vrcp.pop %v1092
      %v1094 = vmul.f32 %v1092, %v1093
      %v1095 = vsub.f32 1.0, %v1094
      %v1096 = vmul.f32 %v1093, %v1095
      %v1097 = vadd.f32 %v1093, %v1096
      %vm1098 = vweird.f32 %v1092
      %vm1099 = vweird.f32 %v1093
      %vm1100 = vmor %vm1098, %vm1099
      %v1101 = vsel %vm1100, %v1093, %v1097
      %v1102 = vand.u32 2147483647, %v1092
      %vm1103 = vcmp.eq.f32.partialorder %v1102, 8.507059e+37
      %v1104 = vand.u32 %v1092, 2147483648
      %v1105 = vor.u32 1.1754944e-38, %v1104
      %v1106 = vsel %vm1103, %v1105, %v1101
      %v1107 = vmul.f32 %v1082, %v1106
      %v1108 = vmin.f32 %v1107, 1.0
      %v1109 = vmax.f32 %v1108, -1.0
      %v1110 = vmul.f32 %v734, %v734
      %v1111 = vmin.f32 16.0, %v1110
      %v1112 = vmul.f32 %v1111, 2.1237322e-06
      %v1113 = vadd.f32 %v1112, 0.00028619796
      %v1114 = vmul.f32 %v1111, %v1113
      %v1115 = vadd.f32 %v1114, 0.0036580483
      %v1116 = vmul.f32 %v1111, %v1115
      %v1117 = vadd.f32 %v1116, 0.05243302
      %v1118 = vmul.f32 %v1111, %v1117
      %v1119 = vadd.f32 %v1118, 0.18741608
      %v1120 = vmul.f32 %v1111, %v1119
      %v1121 = vadd.f32 %v1120, 1.1283791
      %v1122 = vmul.f32 %v734, %v1121
      %v1123 = vmul.f32 %v1111, 3.8918573e-05
      %v1124 = vadd.f32 %v1123, 0.001143296
      %v1125 = vmul.f32 %v1111, %v1124
      %v1126 = vadd.f32 %v1125, 0.014752088
      %v1127 = vmul.f32 %v1111, %v1126
      %v1128 = vadd.f32 %v1127, 0.112945676
      %v1129 = vmul.f32 %v1111, %v1128
      %v1130 = vadd.f32 %v1129, 0.4994258
      %v1131 = vmul.f32 %v1111, %v1130
      %v1132 = vadd.f32 %v1131, 1.0
      %v1133 = vrcp.pop %v1132
      %v1134 = vmul.f32 %v1132, %v1133
      %v1135 = vsub.f32 1.0, %v1134
      %v1136 = vmul.f32 %v1133, %v1135
      %v1137 = vadd.f32 %v1133, %v1136
      %vm1138 = vweird.f32 %v1132
      %vm1139 = vweird.f32 %v1133
      %vm1140 = vmor %vm1138, %vm1139
      %v1141 = vsel %vm1140, %v1133, %v1137
      %v1142 = vand.u32 2147483647, %v1132
      %vm1143 = vcmp.eq.f32.partialorder %v1142, 8.507059e+37
      %v1144 = vand.u32 %v1132, 2147483648
      %v1145 = vor.u32 1.1754944e-38, %v1144
      %v1146 = vsel %vm1143, %v1145, %v1141
      %v1147 = vmul.f32 %v1122, %v1146
      %v1148 = vmin.f32 %v1147, 1.0
      %v1149 = vmax.f32 %v1148, -1.0
      %v1150 = vmul.f32 %v735, %v735
      %v1151 = vmin.f32 16.0, %v1150
      %v1152 = vmul.f32 %v1151, 2.1237322e-06
      %v1153 = vadd.f32 %v1152, 0.00028619796
      %v1154 = vmul.f32 %v1151, %v1153
      %v1155 = vadd.f32 %v1154, 0.0036580483
      %v1156 = vmul.f32 %v1151, %v1155
      %v1157 = vadd.f32 %v1156, 0.05243302
      %v1158 = vmul.f32 %v1151, %v1157
      %v1159 = vadd.f32 %v1158, 0.18741608
      %v1160 = vmul.f32 %v1151, %v1159
      %v1161 = vadd.f32 %v1160, 1.1283791
      %v1162 = vmul.f32 %v735, %v1161
      %v1163 = vmul.f32 %v1151, 3.8918573e-05
      %v1164 = vadd.f32 %v1163, 0.001143296
      %v1165 = vmul.f32 %v1151, %v1164
      %v1166 = vadd.f32 %v1165, 0.014752088
      %v1167 = vmul.f32 %v1151, %v1166
      %v1168 = vadd.f32 %v1167, 0.112945676
      %v1169 = vmul.f32 %v1151, %v1168
      %v1170 = vadd.f32 %v1169, 0.4994258
      %v1171 = vmul.f32 %v1151, %v1170
      %v1172 = vadd.f32 %v1171, 1.0
      %v1173 = vrcp.pop %v1172
      %v1174 = vmul.f32 %v1172, %v1173
      %v1175 = vsub.f32 1.0, %v1174
      %v1176 = vmul.f32 %v1173, %v1175
      %v1177 = vadd.f32 %v1173, %v1176
      %vm1178 = vweird.f32 %v1172
      %vm1179 = vweird.f32 %v1173
      %vm1180 = vmor %vm1178, %vm1179
      %v1181 = vsel %vm1180, %v1173, %v1177
      %v1182 = vand.u32 2147483647, %v1172
      %vm1183 = vcmp.eq.f32.partialorder %v1182, 8.507059e+37
      %v1184 = vand.u32 %v1172, 2147483648
      %v1185 = vor.u32 1.1754944e-38, %v1184
      %v1186 = vsel %vm1183, %v1185, %v1181
      %v1187 = vmul.f32 %v1162, %v1186
      %v1188 = vmin.f32 %v1187, 1.0
      %v1189 = vmax.f32 %v1188, -1.0
      %v1190 = vmul.f32 %v736, %v736
      %v1191 = vmin.f32 16.0, %v1190
      %v1192 = vmul.f32 %v1191, 2.1237322e-06
      %v1193 = vadd.f32 %v1192, 0.00028619796
      %v1194 = vmul.f32 %v1191, %v1193
      %v1195 = vadd.f32 %v1194, 0.0036580483
      %v1196 = vmul.f32 %v1191, %v1195
      %v1197 = vadd.f32 %v1196, 0.05243302
      %v1198 = vmul.f32 %v1191, %v1197
      %v1199 = vadd.f32 %v1198, 0.18741608
      %v1200 = vmul.f32 %v1191, %v1199
      %v1201 = vadd.f32 %v1200, 1.1283791
      %v1202 = vmul.f32 %v736, %v1201
      %v1203 = vmul.f32 %v1191, 3.8918573e-05
      %v1204 = vadd.f32 %v1203, 0.001143296
      %v1205 = vmul.f32 %v1191, %v1204
      %v1206 = vadd.f32 %v1205, 0.014752088
      %v1207 = vmul.f32 %v1191, %v1206
      %v1208 = vadd.f32 %v1207, 0.112945676
      %v1209 = vmul.f32 %v1191, %v1208
      %v1210 = vadd.f32 %v1209, 0.4994258
      %v1211 = vmul.f32 %v1191, %v1210
      %v1212 = vadd.f32 %v1211, 1.0
      %v1213 = vrcp.pop %v1212
      %v1214 = vmul.f32 %v1212, %v1213
      %v1215 = vsub.f32 1.0, %v1214
      %v1216 = vmul.f32 %v1213, %v1215
      %v1217 = vadd.f32 %v1213, %v1216
      %vm1218 = vweird.f32 %v1212
      %vm1219 = vweird.f32 %v1213
      %vm1220 = vmor %vm1218, %vm1219
      %v1221 = vsel %vm1220, %v1213, %v1217
      %v1222 = vand.u32 2147483647, %v1212
      %vm1223 = vcmp.eq.f32.partialorder %v1222, 8.507059e+37
      %v1224 = vand.u32 %v1212, 2147483648
      %v1225 = vor.u32 1.1754944e-38, %v1224
      %v1226 = vsel %vm1223, %v1225, %v1221
      %v1227 = vmul.f32 %v1202, %v1226
      %v1228 = vmin.f32 %v1227, 1.0
      %v1229 = vmax.f32 %v1228, -1.0
      %v1230 = vmul.f32 %v737, %v737
      %v1231 = vmin.f32 16.0, %v1230
      %v1232 = vmul.f32 %v1231, 2.1237322e-06
      %v1233 = vadd.f32 %v1232, 0.00028619796
      %v1234 = vmul.f32 %v1231, %v1233
      %v1235 = vadd.f32 %v1234, 0.0036580483
      %v1236 = vmul.f32 %v1231, %v1235
      %v1237 = vadd.f32 %v1236, 0.05243302
      %v1238 = vmul.f32 %v1231, %v1237
      %v1239 = vadd.f32 %v1238, 0.18741608
      %v1240 = vmul.f32 %v1231, %v1239
      %v1241 = vadd.f32 %v1240, 1.1283791
      %v1242 = vmul.f32 %v737, %v1241
      %v1243 = vmul.f32 %v1231, 3.8918573e-05
      %v1244 = vadd.f32 %v1243, 0.001143296
      %v1245 = vmul.f32 %v1231, %v1244
      %v1246 = vadd.f32 %v1245, 0.014752088
      %v1247 = vmul.f32 %v1231, %v1246
      %v1248 = vadd.f32 %v1247, 0.112945676
      %v1249 = vmul.f32 %v1231, %v1248
      %v1250 = vadd.f32 %v1249, 0.4994258
      %v1251 = vmul.f32 %v1231, %v1250
      %v1252 = vadd.f32 %v1251, 1.0
      %v1253 = vrcp.pop %v1252
      %v1254 = vmul.f32 %v1252, %v1253
      %v1255 = vsub.f32 1.0, %v1254
      %v1256 = vmul.f32 %v1253, %v1255
      %v1257 = vadd.f32 %v1253, %v1256
      %vm1258 = vweird.f32 %v1252
      %vm1259 = vweird.f32 %v1253
      %vm1260 = vmor %vm1258, %vm1259
      %v1261 = vsel %vm1260, %v1253, %v1257
      %v1262 = vand.u32 2147483647, %v1252
      %vm1263 = vcmp.eq.f32.partialorder %v1262, 8.507059e+37
      %v1264 = vand.u32 %v1252, 2147483648
      %v1265 = vor.u32 1.1754944e-38, %v1264
      %v1266 = vsel %vm1263, %v1265, %v1261
      %v1267 = vmul.f32 %v1242, %v1266
      %v1268 = vmin.f32 %v1267, 1.0
      %v1269 = vmax.f32 %v1268, -1.0
      %v1270 = vmul.f32 %v738, %v738
      %v1271 = vmin.f32 16.0, %v1270
      %v1272 = vmul.f32 %v1271, 2.1237322e-06
      %v1273 = vadd.f32 %v1272, 0.00028619796
      %v1274 = vmul.f32 %v1271, %v1273
      %v1275 = vadd.f32 %v1274, 0.0036580483
      %v1276 = vmul.f32 %v1271, %v1275
      %v1277 = vadd.f32 %v1276, 0.05243302
      %v1278 = vmul.f32 %v1271, %v1277
      %v1279 = vadd.f32 %v1278, 0.18741608
      %v1280 = vmul.f32 %v1271, %v1279
      %v1281 = vadd.f32 %v1280, 1.1283791
      %v1282 = vmul.f32 %v738, %v1281
      %v1283 = vmul.f32 %v1271, 3.8918573e-05
      %v1284 = vadd.f32 %v1283, 0.001143296
      %v1285 = vmul.f32 %v1271, %v1284
      %v1286 = vadd.f32 %v1285, 0.014752088
      %v1287 = vmul.f32 %v1271, %v1286
      %v1288 = vadd.f32 %v1287, 0.112945676
      %v1289 = vmul.f32 %v1271, %v1288
      %v1290 = vadd.f32 %v1289, 0.4994258
      %v1291 = vmul.f32 %v1271, %v1290
      %v1292 = vadd.f32 %v1291, 1.0
      %v1293 = vrcp.pop %v1292
      %v1294 = vmul.f32 %v1292, %v1293
      %v1295 = vsub.f32 1.0, %v1294
      %v1296 = vmul.f32 %v1293, %v1295
      %v1297 = vadd.f32 %v1293, %v1296
      %vm1298 = vweird.f32 %v1292
      %vm1299 = vweird.f32 %v1293
      %vm1300 = vmor %vm1298, %vm1299
      %v1301 = vsel %vm1300, %v1293, %v1297
      %v1302 = vand.u32 2147483647, %v1292
      %vm1303 = vcmp.eq.f32.partialorder %v1302, 8.507059e+37
      %v1304 = vand.u32 %v1292, 2147483648
      %v1305 = vor.u32 1.1754944e-38, %v1304
      %v1306 = vsel %vm1303, %v1305, %v1301
      %v1307 = vmul.f32 %v1282, %v1306
      %v1308 = vmin.f32 %v1307, 1.0
      %v1309 = vmax.f32 %v1308, -1.0
      %v1310 = vmul.f32 %v739, %v739
      %v1311 = vmin.f32 16.0, %v1310
      %v1312 = vmul.f32 %v1311, 2.1237322e-06
      %v1313 = vadd.f32 %v1312, 0.00028619796
      %v1314 = vmul.f32 %v1311, %v1313
      %v1315 = vadd.f32 %v1314, 0.0036580483
      %v1316 = vmul.f32 %v1311, %v1315
      %v1317 = vadd.f32 %v1316, 0.05243302
      %v1318 = vmul.f32 %v1311, %v1317
      %v1319 = vadd.f32 %v1318, 0.18741608
      %v1320 = vmul.f32 %v1311, %v1319
      %v1321 = vadd.f32 %v1320, 1.1283791
      %v1322 = vmul.f32 %v739, %v1321
      %v1323 = vmul.f32 %v1311, 3.8918573e-05
      %v1324 = vadd.f32 %v1323, 0.001143296
      %v1325 = vmul.f32 %v1311, %v1324
      %v1326 = vadd.f32 %v1325, 0.014752088
      %v1327 = vmul.f32 %v1311, %v1326
      %v1328 = vadd.f32 %v1327, 0.112945676
      %v1329 = vmul.f32 %v1311, %v1328
      %v1330 = vadd.f32 %v1329, 0.4994258
      %v1331 = vmul.f32 %v1311, %v1330
      %v1332 = vadd.f32 %v1331, 1.0
      %v1333 = vrcp.pop %v1332
      %v1334 = vmul.f32 %v1332, %v1333
      %v1335 = vsub.f32 1.0, %v1334
      %v1336 = vmul.f32 %v1333, %v1335
      %v1337 = vadd.f32 %v1333, %v1336
      %vm1338 = vweird.f32 %v1332
      %vm1339 = vweird.f32 %v1333
      %vm1340 = vmor %vm1338, %vm1339
      %v1341 = vsel %vm1340, %v1333, %v1337
      %v1342 = vand.u32 2147483647, %v1332
      %vm1343 = vcmp.eq.f32.partialorder %v1342, 8.507059e+37
      %v1344 = vand.u32 %v1332, 2147483648
      %v1345 = vor.u32 1.1754944e-38, %v1344
      %v1346 = vsel %vm1343, %v1345, %v1341
      %v1347 = vmul.f32 %v1322, %v1346
      %v1348 = vmin.f32 %v1347, 1.0
      %v1349 = vmax.f32 %v1348, -1.0
      %v1350 = vmul.f32 %v740, %v740
      %v1351 = vmin.f32 16.0, %v1350
      %v1352 = vmul.f32 %v1351, 2.1237322e-06
      %v1353 = vadd.f32 %v1352, 0.00028619796
      %v1354 = vmul.f32 %v1351, %v1353
      %v1355 = vadd.f32 %v1354, 0.0036580483
      %v1356 = vmul.f32 %v1351, %v1355
      %v1357 = vadd.f32 %v1356, 0.05243302
      %v1358 = vmul.f32 %v1351, %v1357
      %v1359 = vadd.f32 %v1358, 0.18741608
      %v1360 = vmul.f32 %v1351, %v1359
      %v1361 = vadd.f32 %v1360, 1.1283791
      %v1362 = vmul.f32 %v740, %v1361
      %v1363 = vmul.f32 %v1351, 3.8918573e-05
      %v1364 = vadd.f32 %v1363, 0.001143296
      %v1365 = vmul.f32 %v1351, %v1364
      %v1366 = vadd.f32 %v1365, 0.014752088
      %v1367 = vmul.f32 %v1351, %v1366
      %v1368 = vadd.f32 %v1367, 0.112945676
      %v1369 = vmul.f32 %v1351, %v1368
      %v1370 = vadd.f32 %v1369, 0.4994258
      %v1371 = vmul.f32 %v1351, %v1370
      %v1372 = vadd.f32 %v1371, 1.0
      %v1373 = vrcp.pop %v1372
      %v1374 = vmul.f32 %v1372, %v1373
      %v1375 = vsub.f32 1.0, %v1374
      %v1376 = vmul.f32 %v1373, %v1375
      %v1377 = vadd.f32 %v1373, %v1376
      %vm1378 = vweird.f32 %v1372
      %vm1379 = vweird.f32 %v1373
      %vm1380 = vmor %vm1378, %vm1379
      %v1381 = vsel %vm1380, %v1373, %v1377
      %v1382 = vand.u32 2147483647, %v1372
      %vm1383 = vcmp.eq.f32.partialorder %v1382, 8.507059e+37
      %v1384 = vand.u32 %v1372, 2147483648
      %v1385 = vor.u32 1.1754944e-38, %v1384
      %v1386 = vsel %vm1383, %v1385, %v1381
      %v1387 = vmul.f32 %v1362, %v1386
      %v1388 = vmin.f32 %v1387, 1.0
      %v1389 = vmax.f32 %v1388, -1.0
      %v1390 = vmul.f32 %v741, %v741
      %v1391 = vmin.f32 16.0, %v1390
      %v1392 = vmul.f32 %v1391, 2.1237322e-06
      %v1393 = vadd.f32 %v1392, 0.00028619796
      %v1394 = vmul.f32 %v1391, %v1393
      %v1395 = vadd.f32 %v1394, 0.0036580483
      %v1396 = vmul.f32 %v1391, %v1395
      %v1397 = vadd.f32 %v1396, 0.05243302
      %v1398 = vmul.f32 %v1391, %v1397
      %v1399 = vadd.f32 %v1398, 0.18741608
      %v1400 = vmul.f32 %v1391, %v1399
      %v1401 = vadd.f32 %v1400, 1.1283791
      %v1402 = vmul.f32 %v741, %v1401
      %v1403 = vmul.f32 %v1391, 3.8918573e-05
      %v1404 = vadd.f32 %v1403, 0.001143296
      %v1405 = vmul.f32 %v1391, %v1404
      %v1406 = vadd.f32 %v1405, 0.014752088
      %v1407 = vmul.f32 %v1391, %v1406
      %v1408 = vadd.f32 %v1407, 0.112945676
      %v1409 = vmul.f32 %v1391, %v1408
      %v1410 = vadd.f32 %v1409, 0.4994258
      %v1411 = vmul.f32 %v1391, %v1410
      %v1412 = vadd.f32 %v1411, 1.0
      %v1413 = vrcp.pop %v1412
      %v1414 = vmul.f32 %v1412, %v1413
      %v1415 = vsub.f32 1.0, %v1414
      %v1416 = vmul.f32 %v1413, %v1415
      %v1417 = vadd.f32 %v1413, %v1416
      %vm1418 = vweird.f32 %v1412
      %vm1419 = vweird.f32 %v1413
      %vm1420 = vmor %vm1418, %vm1419
      %v1421 = vsel %vm1420, %v1413, %v1417
      %v1422 = vand.u32 2147483647, %v1412
      %vm1423 = vcmp.eq.f32.partialorder %v1422, 8.507059e+37
      %v1424 = vand.u32 %v1412, 2147483648
      %v1425 = vor.u32 1.1754944e-38, %v1424
      %v1426 = vsel %vm1423, %v1425, %v1421
      %v1427 = vmul.f32 %v1402, %v1426
      %v1428 = vmin.f32 %v1427, 1.0
      %v1429 = vmax.f32 %v1428, -1.0
      %v1430 = vmul.f32 %v742, %v742
      %v1431 = vmin.f32 16.0, %v1430
      %v1432 = vmul.f32 %v1431, 2.1237322e-06
      %v1433 = vadd.f32 %v1432, 0.00028619796
      %v1434 = vmul.f32 %v1431, %v1433
      %v1435 = vadd.f32 %v1434, 0.0036580483
      %v1436 = vmul.f32 %v1431, %v1435
      %v1437 = vadd.f32 %v1436, 0.05243302
      %v1438 = vmul.f32 %v1431, %v1437
      %v1439 = vadd.f32 %v1438, 0.18741608
      %v1440 = vmul.f32 %v1431, %v1439
      %v1441 = vadd.f32 %v1440, 1.1283791
      %v1442 = vmul.f32 %v742, %v1441
      %v1443 = vmul.f32 %v1431, 3.8918573e-05
      %v1444 = vadd.f32 %v1443, 0.001143296
      %v1445 = vmul.f32 %v1431, %v1444
      %v1446 = vadd.f32 %v1445, 0.014752088
      %v1447 = vmul.f32 %v1431, %v1446
      %v1448 = vadd.f32 %v1447, 0.112945676
      %v1449 = vmul.f32 %v1431, %v1448
      %v1450 = vadd.f32 %v1449, 0.4994258
      %v1451 = vmul.f32 %v1431, %v1450
      %v1452 = vadd.f32 %v1451, 1.0
      %v1453 = vrcp.pop %v1452
      %v1454 = vmul.f32 %v1452, %v1453
      %v1455 = vsub.f32 1.0, %v1454
      %v1456 = vmul.f32 %v1453, %v1455
      %v1457 = vadd.f32 %v1453, %v1456
      %vm1458 = vweird.f32 %v1452
      %vm1459 = vweird.f32 %v1453
      %vm1460 = vmor %vm1458, %vm1459
      %v1461 = vsel %vm1460, %v1453, %v1457
      %v1462 = vand.u32 2147483647, %v1452
      %vm1463 = vcmp.eq.f32.partialorder %v1462, 8.507059e+37
      %v1464 = vand.u32 %v1452, 2147483648
      %v1465 = vor.u32 1.1754944e-38, %v1464
      %v1466 = vsel %vm1463, %v1465, %v1461
      %v1467 = vmul.f32 %v1442, %v1466
      %v1468 = vmin.f32 %v1467, 1.0
      %v1469 = vmax.f32 %v1468, -1.0
      %v1470 = vmul.f32 %v743, %v743
      %v1471 = vmin.f32 16.0, %v1470
      %v1472 = vmul.f32 %v1471, 2.1237322e-06
      %v1473 = vadd.f32 %v1472, 0.00028619796
      %v1474 = vmul.f32 %v1471, %v1473
      %v1475 = vadd.f32 %v1474, 0.0036580483
      %v1476 = vmul.f32 %v1471, %v1475
      %v1477 = vadd.f32 %v1476, 0.05243302
      %v1478 = vmul.f32 %v1471, %v1477
      %v1479 = vadd.f32 %v1478, 0.18741608
      %v1480 = vmul.f32 %v1471, %v1479
      %v1481 = vadd.f32 %v1480, 1.1283791
      %v1482 = vmul.f32 %v743, %v1481
      %v1483 = vmul.f32 %v1471, 3.8918573e-05
      %v1484 = vadd.f32 %v1483, 0.001143296
      %v1485 = vmul.f32 %v1471, %v1484
      %v1486 = vadd.f32 %v1485, 0.014752088
      %v1487 = vmul.f32 %v1471, %v1486
      %v1488 = vadd.f32 %v1487, 0.112945676
      %v1489 = vmul.f32 %v1471, %v1488
      %v1490 = vadd.f32 %v1489, 0.4994258
      %v1491 = vmul.f32 %v1471, %v1490
      %v1492 = vadd.f32 %v1491, 1.0
      %v1493 = vrcp.pop %v1492
      %v1494 = vmul.f32 %v1492, %v1493
      %v1495 = vsub.f32 1.0, %v1494
      %v1496 = vmul.f32 %v1493, %v1495
      %v1497 = vadd.f32 %v1493, %v1496
      %vm1498 = vweird.f32 %v1492
      %vm1499 = vweird.f32 %v1493
      %vm1500 = vmor %vm1498, %vm1499
      %v1501 = vsel %vm1500, %v1493, %v1497
      %v1502 = vand.u32 2147483647, %v1492
      %vm1503 = vcmp.eq.f32.partialorder %v1502, 8.507059e+37
      %v1504 = vand.u32 %v1492, 2147483648
      %v1505 = vor.u32 1.1754944e-38, %v1504
      %v1506 = vsel %vm1503, %v1505, %v1501
      %v1507 = vmul.f32 %v1482, %v1506
      %v1508 = vmin.f32 %v1507, 1.0
      %v1509 = vmax.f32 %v1508, -1.0
      %v1510 = vmul.f32 %v744, %v744
      %v1511 = vmin.f32 16.0, %v1510
      %v1512 = vmul.f32 %v1511, 2.1237322e-06
      %v1513 = vadd.f32 %v1512, 0.00028619796
      %v1514 = vmul.f32 %v1511, %v1513
      %v1515 = vadd.f32 %v1514, 0.0036580483
      %v1516 = vmul.f32 %v1511, %v1515
      %v1517 = vadd.f32 %v1516, 0.05243302
      %v1518 = vmul.f32 %v1511, %v1517
      %v1519 = vadd.f32 %v1518, 0.18741608
      %v1520 = vmul.f32 %v1511, %v1519
      %v1521 = vadd.f32 %v1520, 1.1283791
      %v1522 = vmul.f32 %v744, %v1521
      %v1523 = vmul.f32 %v1511, 3.8918573e-05
      %v1524 = vadd.f32 %v1523, 0.001143296
      %v1525 = vmul.f32 %v1511, %v1524
      %v1526 = vadd.f32 %v1525, 0.014752088
      %v1527 = vmul.f32 %v1511, %v1526
      %v1528 = vadd.f32 %v1527, 0.112945676
      %v1529 = vmul.f32 %v1511, %v1528
      %v1530 = vadd.f32 %v1529, 0.4994258
      %v1531 = vmul.f32 %v1511, %v1530
      %v1532 = vadd.f32 %v1531, 1.0
      %v1533 = vrcp.pop %v1532
      %v1534 = vmul.f32 %v1532, %v1533
      %v1535 = vsub.f32 1.0, %v1534
      %v1536 = vmul.f32 %v1533, %v1535
      %v1537 = vadd.f32 %v1533, %v1536
      %vm1538 = vweird.f32 %v1532
      %vm1539 = vweird.f32 %v1533
      %vm1540 = vmor %vm1538, %vm1539
      %v1541 = vsel %vm1540, %v1533, %v1537
      %v1542 = vand.u32 2147483647, %v1532
      %vm1543 = vcmp.eq.f32.partialorder %v1542, 8.507059e+37
      %v1544 = vand.u32 %v1532, 2147483648
      %v1545 = vor.u32 1.1754944e-38, %v1544
      %v1546 = vsel %vm1543, %v1545, %v1541
      %v1547 = vmul.f32 %v1522, %v1546
      %v1548 = vmin.f32 %v1547, 1.0
      %v1549 = vmax.f32 %v1548, -1.0
      %v1550 = vmul.f32 %v745, %v745
      %v1551 = vmin.f32 16.0, %v1550
      %v1552 = vmul.f32 %v1551, 2.1237322e-06
      %v1553 = vadd.f32 %v1552, 0.00028619796
      %v1554 = vmul.f32 %v1551, %v1553
      %v1555 = vadd.f32 %v1554, 0.0036580483
      %v1556 = vmul.f32 %v1551, %v1555
      %v1557 = vadd.f32 %v1556, 0.05243302
      %v1558 = vmul.f32 %v1551, %v1557
      %v1559 = vadd.f32 %v1558, 0.18741608
      %v1560 = vmul.f32 %v1551, %v1559
      %v1561 = vadd.f32 %v1560, 1.1283791
      %v1562 = vmul.f32 %v745, %v1561
      %v1563 = vmul.f32 %v1551, 3.8918573e-05
      %v1564 = vadd.f32 %v1563, 0.001143296
      %v1565 = vmul.f32 %v1551, %v1564
      %v1566 = vadd.f32 %v1565, 0.014752088
      %v1567 = vmul.f32 %v1551, %v1566
      %v1568 = vadd.f32 %v1567, 0.112945676
      %v1569 = vmul.f32 %v1551, %v1568
      %v1570 = vadd.f32 %v1569, 0.4994258
      %v1571 = vmul.f32 %v1551, %v1570
      %v1572 = vadd.f32 %v1571, 1.0
      %v1573 = vrcp.pop %v1572
      %v1574 = vmul.f32 %v1572, %v1573
      %v1575 = vsub.f32 1.0, %v1574
      %v1576 = vmul.f32 %v1573, %v1575
      %v1577 = vadd.f32 %v1573, %v1576
      %vm1578 = vweird.f32 %v1572
      %vm1579 = vweird.f32 %v1573
      %vm1580 = vmor %vm1578, %vm1579
      %v1581 = vsel %vm1580, %v1573, %v1577
      %v1582 = vand.u32 2147483647, %v1572
      %vm1583 = vcmp.eq.f32.partialorder %v1582, 8.507059e+37
      %v1584 = vand.u32 %v1572, 2147483648
      %v1585 = vor.u32 1.1754944e-38, %v1584
      %v1586 = vsel %vm1583, %v1585, %v1581
      %v1587 = vmul.f32 %v1562, %v1586
      %v1588 = vmin.f32 %v1587, 1.0
      %v1589 = vmax.f32 %v1588, -1.0
      %v1590 = vmul.f32 %v746, %v746
      %v1591 = vmin.f32 16.0, %v1590
      %v1592 = vmul.f32 %v1591, 2.1237322e-06
      %v1593 = vadd.f32 %v1592, 0.00028619796
      %v1594 = vmul.f32 %v1591, %v1593
      %v1595 = vadd.f32 %v1594, 0.0036580483
      %v1596 = vmul.f32 %v1591, %v1595
      %v1597 = vadd.f32 %v1596, 0.05243302
      %v1598 = vmul.f32 %v1591, %v1597
      %v1599 = vadd.f32 %v1598, 0.18741608
      %v1600 = vmul.f32 %v1591, %v1599
      %v1601 = vadd.f32 %v1600, 1.1283791
      %v1602 = vmul.f32 %v746, %v1601
      %v1603 = vmul.f32 %v1591, 3.8918573e-05
      %v1604 = vadd.f32 %v1603, 0.001143296
      %v1605 = vmul.f32 %v1591, %v1604
      %v1606 = vadd.f32 %v1605, 0.014752088
      %v1607 = vmul.f32 %v1591, %v1606
      %v1608 = vadd.f32 %v1607, 0.112945676
      %v1609 = vmul.f32 %v1591, %v1608
      %v1610 = vadd.f32 %v1609, 0.4994258
      %v1611 = vmul.f32 %v1591, %v1610
      %v1612 = vadd.f32 %v1611, 1.0
      %v1613 = vrcp.pop %v1612
      %v1614 = vmul.f32 %v1612, %v1613
      %v1615 = vsub.f32 1.0, %v1614
      %v1616 = vmul.f32 %v1613, %v1615
      %v1617 = vadd.f32 %v1613, %v1616
      %vm1618 = vweird.f32 %v1612
      %vm1619 = vweird.f32 %v1613
      %vm1620 = vmor %vm1618, %vm1619
      %v1621 = vsel %vm1620, %v1613, %v1617
      %v1622 = vand.u32 2147483647, %v1612
      %vm1623 = vcmp.eq.f32.partialorder %v1622, 8.507059e+37
      %v1624 = vand.u32 %v1612, 2147483648
      %v1625 = vor.u32 1.1754944e-38, %v1624
      %v1626 = vsel %vm1623, %v1625, %v1621
      %v1627 = vmul.f32 %v1602, %v1626
      %v1628 = vmin.f32 %v1627, 1.0
      %v1629 = vmax.f32 %v1628, -1.0
      %v1630 = vmul.f32 %v747, %v747
      %v1631 = vmin.f32 16.0, %v1630
      %v1632 = vmul.f32 %v1631, 2.1237322e-06
      %v1633 = vadd.f32 %v1632, 0.00028619796
      %v1634 = vmul.f32 %v1631, %v1633
      %v1635 = vadd.f32 %v1634, 0.0036580483
      %v1636 = vmul.f32 %v1631, %v1635
      %v1637 = vadd.f32 %v1636, 0.05243302
      %v1638 = vmul.f32 %v1631, %v1637
      %v1639 = vadd.f32 %v1638, 0.18741608
      %v1640 = vmul.f32 %v1631, %v1639
      %v1641 = vadd.f32 %v1640, 1.1283791
      %v1642 = vmul.f32 %v747, %v1641
      %v1643 = vmul.f32 %v1631, 3.8918573e-05
      %v1644 = vadd.f32 %v1643, 0.001143296
      %v1645 = vmul.f32 %v1631, %v1644
      %v1646 = vadd.f32 %v1645, 0.014752088
      %v1647 = vmul.f32 %v1631, %v1646
      %v1648 = vadd.f32 %v1647, 0.112945676
      %v1649 = vmul.f32 %v1631, %v1648
      %v1650 = vadd.f32 %v1649, 0.4994258
      %v1651 = vmul.f32 %v1631, %v1650
      %v1652 = vadd.f32 %v1651, 1.0
      %v1653 = vrcp.pop %v1652
      %v1654 = vmul.f32 %v1652, %v1653
      %v1655 = vsub.f32 1.0, %v1654
      %v1656 = vmul.f32 %v1653, %v1655
      %v1657 = vadd.f32 %v1653, %v1656
      %vm1658 = vweird.f32 %v1652
      %vm1659 = vweird.f32 %v1653
      %vm1660 = vmor %vm1658, %vm1659
      %v1661 = vsel %vm1660, %v1653, %v1657
      %v1662 = vand.u32 2147483647, %v1652
      %vm1663 = vcmp.eq.f32.partialorder %v1662, 8.507059e+37
      %v1664 = vand.u32 %v1652, 2147483648
      %v1665 = vor.u32 1.1754944e-38, %v1664
      %v1666 = vsel %vm1663, %v1665, %v1661
      %v1667 = vmul.f32 %v1642, %v1666
      %v1668 = vmin.f32 %v1667, 1.0
      %v1669 = vmax.f32 %v1668, -1.0
      %v1670 = vmul.f32 %v748, %v748
      %v1671 = vmin.f32 16.0, %v1670
      %v1672 = vmul.f32 %v1671, 2.1237322e-06
      %v1673 = vadd.f32 %v1672, 0.00028619796
      %v1674 = vmul.f32 %v1671, %v1673
      %v1675 = vadd.f32 %v1674, 0.0036580483
      %v1676 = vmul.f32 %v1671, %v1675
      %v1677 = vadd.f32 %v1676, 0.05243302
      %v1678 = vmul.f32 %v1671, %v1677
      %v1679 = vadd.f32 %v1678, 0.18741608
      %v1680 = vmul.f32 %v1671, %v1679
      %v1681 = vadd.f32 %v1680, 1.1283791
      %v1682 = vmul.f32 %v748, %v1681
      %v1683 = vmul.f32 %v1671, 3.8918573e-05
      %v1684 = vadd.f32 %v1683, 0.001143296
      %v1685 = vmul.f32 %v1671, %v1684
      %v1686 = vadd.f32 %v1685, 0.014752088
      %v1687 = vmul.f32 %v1671, %v1686
      %v1688 = vadd.f32 %v1687, 0.112945676
      %v1689 = vmul.f32 %v1671, %v1688
      %v1690 = vadd.f32 %v1689, 0.4994258
      %v1691 = vmul.f32 %v1671, %v1690
      %v1692 = vadd.f32 %v1691, 1.0
      %v1693 = vrcp.pop %v1692
      %v1694 = vmul.f32 %v1692, %v1693
      %v1695 = vsub.f32 1.0, %v1694
      %v1696 = vmul.f32 %v1693, %v1695
      %v1697 = vadd.f32 %v1693, %v1696
      %vm1698 = vweird.f32 %v1692
      %vm1699 = vweird.f32 %v1693
      %vm1700 = vmor %vm1698, %vm1699
      %v1701 = vsel %vm1700, %v1693, %v1697
      %v1702 = vand.u32 2147483647, %v1692
      %vm1703 = vcmp.eq.f32.partialorder %v1702, 8.507059e+37
      %v1704 = vand.u32 %v1692, 2147483648
      %v1705 = vor.u32 1.1754944e-38, %v1704
      %v1706 = vsel %vm1703, %v1705, %v1701
      %v1707 = vmul.f32 %v1682, %v1706
      %v1708 = vmin.f32 %v1707, 1.0
      %v1709 = vmax.f32 %v1708, -1.0
      %v1710 = vmul.f32 %v749, %v749
      %v1711 = vmin.f32 16.0, %v1710
      %v1712 = vmul.f32 %v1711, 2.1237322e-06
      %v1713 = vadd.f32 %v1712, 0.00028619796
      %v1714 = vmul.f32 %v1711, %v1713
      %v1715 = vadd.f32 %v1714, 0.0036580483
      %v1716 = vmul.f32 %v1711, %v1715
      %v1717 = vadd.f32 %v1716, 0.05243302
      %v1718 = vmul.f32 %v1711, %v1717
      %v1719 = vadd.f32 %v1718, 0.18741608
      %v1720 = vmul.f32 %v1711, %v1719
      %v1721 = vadd.f32 %v1720, 1.1283791
      %v1722 = vmul.f32 %v749, %v1721
      %v1723 = vmul.f32 %v1711, 3.8918573e-05
      %v1724 = vadd.f32 %v1723, 0.001143296
      %v1725 = vmul.f32 %v1711, %v1724
      %v1726 = vadd.f32 %v1725, 0.014752088
      %v1727 = vmul.f32 %v1711, %v1726
      %v1728 = vadd.f32 %v1727, 0.112945676
      %v1729 = vmul.f32 %v1711, %v1728
      %v1730 = vadd.f32 %v1729, 0.4994258
      %v1731 = vmul.f32 %v1711, %v1730
      %v1732 = vadd.f32 %v1731, 1.0
      %v1733 = vrcp.pop %v1732
      %v1734 = vmul.f32 %v1732, %v1733
      %v1735 = vsub.f32 1.0, %v1734
      %v1736 = vmul.f32 %v1733, %v1735
      %v1737 = vadd.f32 %v1733, %v1736
      %vm1738 = vweird.f32 %v1732
      %vm1739 = vweird.f32 %v1733
      %vm1740 = vmor %vm1738, %vm1739
      %v1741 = vsel %vm1740, %v1733, %v1737
      %v1742 = vand.u32 2147483647, %v1732
      %vm1743 = vcmp.eq.f32.partialorder %v1742, 8.507059e+37
      %v1744 = vand.u32 %v1732, 2147483648
      %v1745 = vor.u32 1.1754944e-38, %v1744
      %v1746 = vsel %vm1743, %v1745, %v1741
      %v1747 = vmul.f32 %v1722, %v1746
      %v1748 = vmin.f32 %v1747, 1.0
      %v1749 = vmax.f32 %v1748, -1.0
      %v1750 = vmul.f32 %v750, %v750
      %v1751 = vmin.f32 16.0, %v1750
      %v1752 = vmul.f32 %v1751, 2.1237322e-06
      %v1753 = vadd.f32 %v1752, 0.00028619796
      %v1754 = vmul.f32 %v1751, %v1753
      %v1755 = vadd.f32 %v1754, 0.0036580483
      %v1756 = vmul.f32 %v1751, %v1755
      %v1757 = vadd.f32 %v1756, 0.05243302
      %v1758 = vmul.f32 %v1751, %v1757
      %v1759 = vadd.f32 %v1758, 0.18741608
      %v1760 = vmul.f32 %v1751, %v1759
      %v1761 = vadd.f32 %v1760, 1.1283791
      %v1762 = vmul.f32 %v750, %v1761
      %v1763 = vmul.f32 %v1751, 3.8918573e-05
      %v1764 = vadd.f32 %v1763, 0.001143296
      %v1765 = vmul.f32 %v1751, %v1764
      %v1766 = vadd.f32 %v1765, 0.014752088
      %v1767 = vmul.f32 %v1751, %v1766
      %v1768 = vadd.f32 %v1767, 0.112945676
      %v1769 = vmul.f32 %v1751, %v1768
      %v1770 = vadd.f32 %v1769, 0.4994258
      %v1771 = vmul.f32 %v1751, %v1770
      %v1772 = vadd.f32 %v1771, 1.0
      %v1773 = vrcp.pop %v1772
      %v1774 = vmul.f32 %v1772, %v1773
      %v1775 = vsub.f32 1.0, %v1774
      %v1776 = vmul.f32 %v1773, %v1775
      %v1777 = vadd.f32 %v1773, %v1776
      %vm1778 = vweird.f32 %v1772
      %vm1779 = vweird.f32 %v1773
      %vm1780 = vmor %vm1778, %vm1779
      %v1781 = vsel %vm1780, %v1773, %v1777
      %v1782 = vand.u32 2147483647, %v1772
      %vm1783 = vcmp.eq.f32.partialorder %v1782, 8.507059e+37
      %v1784 = vand.u32 %v1772, 2147483648
      %v1785 = vor.u32 1.1754944e-38, %v1784
      %v1786 = vsel %vm1783, %v1785, %v1781
      %v1787 = vmul.f32 %v1762, %v1786
      %v1788 = vmin.f32 %v1787, 1.0
      %v1789 = vmax.f32 %v1788, -1.0
      %v1790 = vmul.f32 %v751, %v751
      %v1791 = vmin.f32 16.0, %v1790
      %v1792 = vmul.f32 %v1791, 2.1237322e-06
      %v1793 = vadd.f32 %v1792, 0.00028619796
      %v1794 = vmul.f32 %v1791, %v1793
      %v1795 = vadd.f32 %v1794, 0.0036580483
      %v1796 = vmul.f32 %v1791, %v1795
      %v1797 = vadd.f32 %v1796, 0.05243302
      %v1798 = vmul.f32 %v1791, %v1797
      %v1799 = vadd.f32 %v1798, 0.18741608
      %v1800 = vmul.f32 %v1791, %v1799
      %v1801 = vadd.f32 %v1800, 1.1283791
      %v1802 = vmul.f32 %v751, %v1801
      %v1803 = vmul.f32 %v1791, 3.8918573e-05
      %v1804 = vadd.f32 %v1803, 0.001143296
      %v1805 = vmul.f32 %v1791, %v1804
      %v1806 = vadd.f32 %v1805, 0.014752088
      %v1807 = vmul.f32 %v1791, %v1806
      %v1808 = vadd.f32 %v1807, 0.112945676
      %v1809 = vmul.f32 %v1791, %v1808
      %v1810 = vadd.f32 %v1809, 0.4994258
      %v1811 = vmul.f32 %v1791, %v1810
      %v1812 = vadd.f32 %v1811, 1.0
      %v1813 = vrcp.pop %v1812
      %v1814 = vmul.f32 %v1812, %v1813
      %v1815 = vsub.f32 1.0, %v1814
      %v1816 = vmul.f32 %v1813, %v1815
      %v1817 = vadd.f32 %v1813, %v1816
      %vm1818 = vweird.f32 %v1812
      %vm1819 = vweird.f32 %v1813
      %vm1820 = vmor %vm1818, %vm1819
      %v1821 = vsel %vm1820, %v1813, %v1817
      %v1822 = vand.u32 2147483647, %v1812
      %vm1823 = vcmp.eq.f32.partialorder %v1822, 8.507059e+37
      %v1824 = vand.u32 %v1812, 2147483648
      %v1825 = vor.u32 1.1754944e-38, %v1824
      %v1826 = vsel %vm1823, %v1825, %v1821
      %v1827 = vmul.f32 %v1802, %v1826
      %v1828 = vmin.f32 %v1827, 1.0
      %v1829 = vmax.f32 %v1828, -1.0
      %v1830 = vmul.f32 %v752, %v752
      %v1831 = vmin.f32 16.0, %v1830
      %v1832 = vmul.f32 %v1831, 2.1237322e-06
      %v1833 = vadd.f32 %v1832, 0.00028619796
      %v1834 = vmul.f32 %v1831, %v1833
      %v1835 = vadd.f32 %v1834, 0.0036580483
      %v1836 = vmul.f32 %v1831, %v1835
      %v1837 = vadd.f32 %v1836, 0.05243302
      %v1838 = vmul.f32 %v1831, %v1837
      %v1839 = vadd.f32 %v1838, 0.18741608
      %v1840 = vmul.f32 %v1831, %v1839
      %v1841 = vadd.f32 %v1840, 1.1283791
      %v1842 = vmul.f32 %v752, %v1841
      %v1843 = vmul.f32 %v1831, 3.8918573e-05
      %v1844 = vadd.f32 %v1843, 0.001143296
      %v1845 = vmul.f32 %v1831, %v1844
      %v1846 = vadd.f32 %v1845, 0.014752088
      %v1847 = vmul.f32 %v1831, %v1846
      %v1848 = vadd.f32 %v1847, 0.112945676
      %v1849 = vmul.f32 %v1831, %v1848
      %v1850 = vadd.f32 %v1849, 0.4994258
      %v1851 = vmul.f32 %v1831, %v1850
      %v1852 = vadd.f32 %v1851, 1.0
      %v1853 = vrcp.pop %v1852
      %v1854 = vmul.f32 %v1852, %v1853
      %v1855 = vsub.f32 1.0, %v1854
      %v1856 = vmul.f32 %v1853, %v1855
      %v1857 = vadd.f32 %v1853, %v1856
      %vm1858 = vweird.f32 %v1852
      %vm1859 = vweird.f32 %v1853
      %vm1860 = vmor %vm1858, %vm1859
      %v1861 = vsel %vm1860, %v1853, %v1857
      %v1862 = vand.u32 2147483647, %v1852
      %vm1863 = vcmp.eq.f32.partialorder %v1862, 8.507059e+37
      %v1864 = vand.u32 %v1852, 2147483648
      %v1865 = vor.u32 1.1754944e-38, %v1864
      %v1866 = vsel %vm1863, %v1865, %v1861
      %v1867 = vmul.f32 %v1842, %v1866
      %v1868 = vmin.f32 %v1867, 1.0
      %v1869 = vmax.f32 %v1868, -1.0
      %v1870 = vmul.f32 %v753, %v753
      %v1871 = vmin.f32 16.0, %v1870
      %v1872 = vmul.f32 %v1871, 2.1237322e-06
      %v1873 = vadd.f32 %v1872, 0.00028619796
      %v1874 = vmul.f32 %v1871, %v1873
      %v1875 = vadd.f32 %v1874, 0.0036580483
      %v1876 = vmul.f32 %v1871, %v1875
      %v1877 = vadd.f32 %v1876, 0.05243302
      %v1878 = vmul.f32 %v1871, %v1877
      %v1879 = vadd.f32 %v1878, 0.18741608
      %v1880 = vmul.f32 %v1871, %v1879
      %v1881 = vadd.f32 %v1880, 1.1283791
      %v1882 = vmul.f32 %v753, %v1881
      %v1883 = vmul.f32 %v1871, 3.8918573e-05
      %v1884 = vadd.f32 %v1883, 0.001143296
      %v1885 = vmul.f32 %v1871, %v1884
      %v1886 = vadd.f32 %v1885, 0.014752088
      %v1887 = vmul.f32 %v1871, %v1886
      %v1888 = vadd.f32 %v1887, 0.112945676
      %v1889 = vmul.f32 %v1871, %v1888
      %v1890 = vadd.f32 %v1889, 0.4994258
      %v1891 = vmul.f32 %v1871, %v1890
      %v1892 = vadd.f32 %v1891, 1.0
      %v1893 = vrcp.pop %v1892
      %v1894 = vmul.f32 %v1892, %v1893
      %v1895 = vsub.f32 1.0, %v1894
      %v1896 = vmul.f32 %v1893, %v1895
      %v1897 = vadd.f32 %v1893, %v1896
      %vm1898 = vweird.f32 %v1892
      %vm1899 = vweird.f32 %v1893
      %vm1900 = vmor %vm1898, %vm1899
      %v1901 = vsel %vm1900, %v1893, %v1897
      %v1902 = vand.u32 2147483647, %v1892
      %vm1903 = vcmp.eq.f32.partialorder %v1902, 8.507059e+37
      %v1904 = vand.u32 %v1892, 2147483648
      %v1905 = vor.u32 1.1754944e-38, %v1904
      %v1906 = vsel %vm1903, %v1905, %v1901
      %v1907 = vmul.f32 %v1882, %v1906
      %v1908 = vmin.f32 %v1907, 1.0
      %v1909 = vmax.f32 %v1908, -1.0
      %v1910 = vmul.f32 %v754, %v754
      %v1911 = vmin.f32 16.0, %v1910
      %v1912 = vmul.f32 %v1911, 2.1237322e-06
      %v1913 = vadd.f32 %v1912, 0.00028619796
      %v1914 = vmul.f32 %v1911, %v1913
      %v1915 = vadd.f32 %v1914, 0.0036580483
      %v1916 = vmul.f32 %v1911, %v1915
      %v1917 = vadd.f32 %v1916, 0.05243302
      %v1918 = vmul.f32 %v1911, %v1917
      %v1919 = vadd.f32 %v1918, 0.18741608
      %v1920 = vmul.f32 %v1911, %v1919
      %v1921 = vadd.f32 %v1920, 1.1283791
      %v1922 = vmul.f32 %v754, %v1921
      %v1923 = vmul.f32 %v1911, 3.8918573e-05
      %v1924 = vadd.f32 %v1923, 0.001143296
      %v1925 = vmul.f32 %v1911, %v1924
      %v1926 = vadd.f32 %v1925, 0.014752088
      %v1927 = vmul.f32 %v1911, %v1926
      %v1928 = vadd.f32 %v1927, 0.112945676
      %v1929 = vmul.f32 %v1911, %v1928
      %v1930 = vadd.f32 %v1929, 0.4994258
      %v1931 = vmul.f32 %v1911, %v1930
      %v1932 = vadd.f32 %v1931, 1.0
      %v1933 = vrcp.pop %v1932
      %v1934 = vmul.f32 %v1932, %v1933
      %v1935 = vsub.f32 1.0, %v1934
      %v1936 = vmul.f32 %v1933, %v1935
      %v1937 = vadd.f32 %v1933, %v1936
      %vm1938 = vweird.f32 %v1932
      %vm1939 = vweird.f32 %v1933
      %vm1940 = vmor %vm1938, %vm1939
      %v1941 = vsel %vm1940, %v1933, %v1937
      %v1942 = vand.u32 2147483647, %v1932
      %vm1943 = vcmp.eq.f32.partialorder %v1942, 8.507059e+37
      %v1944 = vand.u32 %v1932, 2147483648
      %v1945 = vor.u32 1.1754944e-38, %v1944
      %v1946 = vsel %vm1943, %v1945, %v1941
      %v1947 = vmul.f32 %v1922, %v1946
      %v1948 = vmin.f32 %v1947, 1.0
      %v1949 = vmax.f32 %v1948, -1.0
      %v1950 = vmul.f32 %v755, %v755
      %v1951 = vmin.f32 16.0, %v1950
      %v1952 = vmul.f32 %v1951, 2.1237322e-06
      %v1953 = vadd.f32 %v1952, 0.00028619796
      %v1954 = vmul.f32 %v1951, %v1953
      %v1955 = vadd.f32 %v1954, 0.0036580483
      %v1956 = vmul.f32 %v1951, %v1955
      %v1957 = vadd.f32 %v1956, 0.05243302
      %v1958 = vmul.f32 %v1951, %v1957
      %v1959 = vadd.f32 %v1958, 0.18741608
      %v1960 = vmul.f32 %v1951, %v1959
      %v1961 = vadd.f32 %v1960, 1.1283791
      %v1962 = vmul.f32 %v755, %v1961
      %v1963 = vmul.f32 %v1951, 3.8918573e-05
      %v1964 = vadd.f32 %v1963, 0.001143296
      %v1965 = vmul.f32 %v1951, %v1964
      %v1966 = vadd.f32 %v1965, 0.014752088
      %v1967 = vmul.f32 %v1951, %v1966
      %v1968 = vadd.f32 %v1967, 0.112945676
      %v1969 = vmul.f32 %v1951, %v1968
      %v1970 = vadd.f32 %v1969, 0.4994258
      %v1971 = vmul.f32 %v1951, %v1970
      %v1972 = vadd.f32 %v1971, 1.0
      %v1973 = vrcp.pop %v1972
      %v1974 = vmul.f32 %v1972, %v1973
      %v1975 = vsub.f32 1.0, %v1974
      %v1976 = vmul.f32 %v1973, %v1975
      %v1977 = vadd.f32 %v1973, %v1976
      %vm1978 = vweird.f32 %v1972
      %vm1979 = vweird.f32 %v1973
      %vm1980 = vmor %vm1978, %vm1979
      %v1981 = vsel %vm1980, %v1973, %v1977
      %v1982 = vand.u32 2147483647, %v1972
      %vm1983 = vcmp.eq.f32.partialorder %v1982, 8.507059e+37
      %v1984 = vand.u32 %v1972, 2147483648
      %v1985 = vor.u32 1.1754944e-38, %v1984
      %v1986 = vsel %vm1983, %v1985, %v1981
      %v1987 = vmul.f32 %v1962, %v1986
      %v1988 = vmin.f32 %v1987, 1.0
      %v1989 = vmax.f32 %v1988, -1.0
      %v1990 = vmul.f32 %v756, %v756
      %v1991 = vmin.f32 16.0, %v1990
      %v1992 = vmul.f32 %v1991, 2.1237322e-06
      %v1993 = vadd.f32 %v1992, 0.00028619796
      %v1994 = vmul.f32 %v1991, %v1993
      %v1995 = vadd.f32 %v1994, 0.0036580483
      %v1996 = vmul.f32 %v1991, %v1995
      %v1997 = vadd.f32 %v1996, 0.05243302
      %v1998 = vmul.f32 %v1991, %v1997
      %v1999 = vadd.f32 %v1998, 0.18741608
      %v2000 = vmul.f32 %v1991, %v1999
      %v2001 = vadd.f32 %v2000, 1.1283791
      %v2002 = vmul.f32 %v756, %v2001
      %v2003 = vmul.f32 %v1991, 3.8918573e-05
      %v2004 = vadd.f32 %v2003, 0.001143296
      %v2005 = vmul.f32 %v1991, %v2004
      %v2006 = vadd.f32 %v2005, 0.014752088
      %v2007 = vmul.f32 %v1991, %v2006
      %v2008 = vadd.f32 %v2007, 0.112945676
      %v2009 = vmul.f32 %v1991, %v2008
      %v2010 = vadd.f32 %v2009, 0.4994258
      %v2011 = vmul.f32 %v1991, %v2010
      %v2012 = vadd.f32 %v2011, 1.0
      %v2013 = vrcp.pop %v2012
      %v2014 = vmul.f32 %v2012, %v2013
      %v2015 = vsub.f32 1.0, %v2014
      %v2016 = vmul.f32 %v2013, %v2015
      %v2017 = vadd.f32 %v2013, %v2016
      %vm2018 = vweird.f32 %v2012
      %vm2019 = vweird.f32 %v2013
      %vm2020 = vmor %vm2018, %vm2019
      %v2021 = vsel %vm2020, %v2013, %v2017
      %v2022 = vand.u32 2147483647, %v2012
      %vm2023 = vcmp.eq.f32.partialorder %v2022, 8.507059e+37
      %v2024 = vand.u32 %v2012, 2147483648
      %v2025 = vor.u32 1.1754944e-38, %v2024
      %v2026 = vsel %vm2023, %v2025, %v2021
      %v2027 = vmul.f32 %v2002, %v2026
      %v2028 = vmin.f32 %v2027, 1.0
      %v2029 = vmax.f32 %v2028, -1.0
      %v2030 = vmul.f32 %v757, %v757
      %v2031 = vmin.f32 16.0, %v2030
      %v2032 = vmul.f32 %v2031, 2.1237322e-06
      %v2033 = vadd.f32 %v2032, 0.00028619796
      %v2034 = vmul.f32 %v2031, %v2033
      %v2035 = vadd.f32 %v2034, 0.0036580483
      %v2036 = vmul.f32 %v2031, %v2035
      %v2037 = vadd.f32 %v2036, 0.05243302
      %v2038 = vmul.f32 %v2031, %v2037
      %v2039 = vadd.f32 %v2038, 0.18741608
      %v2040 = vmul.f32 %v2031, %v2039
      %v2041 = vadd.f32 %v2040, 1.1283791
      %v2042 = vmul.f32 %v757, %v2041
      %v2043 = vmul.f32 %v2031, 3.8918573e-05
      %v2044 = vadd.f32 %v2043, 0.001143296
      %v2045 = vmul.f32 %v2031, %v2044
      %v2046 = vadd.f32 %v2045, 0.014752088
      %v2047 = vmul.f32 %v2031, %v2046
      %v2048 = vadd.f32 %v2047, 0.112945676
      %v2049 = vmul.f32 %v2031, %v2048
      %v2050 = vadd.f32 %v2049, 0.4994258
      %v2051 = vmul.f32 %v2031, %v2050
      %v2052 = vadd.f32 %v2051, 1.0
      %v2053 = vrcp.pop %v2052
      %v2054 = vmul.f32 %v2052, %v2053
      %v2055 = vsub.f32 1.0, %v2054
      %v2056 = vmul.f32 %v2053, %v2055
      %v2057 = vadd.f32 %v2053, %v2056
      %vm2058 = vweird.f32 %v2052
      %vm2059 = vweird.f32 %v2053
      %vm2060 = vmor %vm2058, %vm2059
      %v2061 = vsel %vm2060, %v2053, %v2057
      %v2062 = vand.u32 2147483647, %v2052
      %vm2063 = vcmp.eq.f32.partialorder %v2062, 8.507059e+37
      %v2064 = vand.u32 %v2052, 2147483648
      %v2065 = vor.u32 1.1754944e-38, %v2064
      %v2066 = vsel %vm2063, %v2065, %v2061
      %v2067 = vmul.f32 %v2042, %v2066
      %v2068 = vmin.f32 %v2067, 1.0
      %v2069 = vmax.f32 %v2068, -1.0
      %v2070 = vmul.f32 %v758, %v758
      %v2071 = vmin.f32 16.0, %v2070
      %v2072 = vmul.f32 %v2071, 2.1237322e-06
      %v2073 = vadd.f32 %v2072, 0.00028619796
      %v2074 = vmul.f32 %v2071, %v2073
      %v2075 = vadd.f32 %v2074, 0.0036580483
      %v2076 = vmul.f32 %v2071, %v2075
      %v2077 = vadd.f32 %v2076, 0.05243302
      %v2078 = vmul.f32 %v2071, %v2077
      %v2079 = vadd.f32 %v2078, 0.18741608
      %v2080 = vmul.f32 %v2071, %v2079
      %v2081 = vadd.f32 %v2080, 1.1283791
      %v2082 = vmul.f32 %v758, %v2081
      %v2083 = vmul.f32 %v2071, 3.8918573e-05
      %v2084 = vadd.f32 %v2083, 0.001143296
      %v2085 = vmul.f32 %v2071, %v2084
      %v2086 = vadd.f32 %v2085, 0.014752088
      %v2087 = vmul.f32 %v2071, %v2086
      %v2088 = vadd.f32 %v2087, 0.112945676
      %v2089 = vmul.f32 %v2071, %v2088
      %v2090 = vadd.f32 %v2089, 0.4994258
      %v2091 = vmul.f32 %v2071, %v2090
      %v2092 = vadd.f32 %v2091, 1.0
      %v2093 = vrcp.pop %v2092
      %v2094 = vmul.f32 %v2092, %v2093
      %v2095 = vsub.f32 1.0, %v2094
      %v2096 = vmul.f32 %v2093, %v2095
      %v2097 = vadd.f32 %v2093, %v2096
      %vm2098 = vweird.f32 %v2092
      %vm2099 = vweird.f32 %v2093
      %vm2100 = vmor %vm2098, %vm2099
      %v2101 = vsel %vm2100, %v2093, %v2097
      %v2102 = vand.u32 2147483647, %v2092
      %vm2103 = vcmp.eq.f32.partialorder %v2102, 8.507059e+37
      %v2104 = vand.u32 %v2092, 2147483648
      %v2105 = vor.u32 1.1754944e-38, %v2104
      %v2106 = vsel %vm2103, %v2105, %v2101
      %v2107 = vmul.f32 %v2082, %v2106
      %v2108 = vmin.f32 %v2107, 1.0
      %v2109 = vmax.f32 %v2108, -1.0
      %v2110 = vmul.f32 %v759, %v759
      %v2111 = vmin.f32 16.0, %v2110
      %v2112 = vmul.f32 %v2111, 2.1237322e-06
      %v2113 = vadd.f32 %v2112, 0.00028619796
      %v2114 = vmul.f32 %v2111, %v2113
      %v2115 = vadd.f32 %v2114, 0.0036580483
      %v2116 = vmul.f32 %v2111, %v2115
      %v2117 = vadd.f32 %v2116, 0.05243302
      %v2118 = vmul.f32 %v2111, %v2117
      %v2119 = vadd.f32 %v2118, 0.18741608
      %v2120 = vmul.f32 %v2111, %v2119
      %v2121 = vadd.f32 %v2120, 1.1283791
      %v2122 = vmul.f32 %v759, %v2121
      %v2123 = vmul.f32 %v2111, 3.8918573e-05
      %v2124 = vadd.f32 %v2123, 0.001143296
      %v2125 = vmul.f32 %v2111, %v2124
      %v2126 = vadd.f32 %v2125, 0.014752088
      %v2127 = vmul.f32 %v2111, %v2126
      %v2128 = vadd.f32 %v2127, 0.112945676
      %v2129 = vmul.f32 %v2111, %v2128
      %v2130 = vadd.f32 %v2129, 0.4994258
      %v2131 = vmul.f32 %v2111, %v2130
      %v2132 = vadd.f32 %v2131, 1.0
      %v2133 = vrcp.pop %v2132
      %v2134 = vmul.f32 %v2132, %v2133
      %v2135 = vsub.f32 1.0, %v2134
      %v2136 = vmul.f32 %v2133, %v2135
      %v2137 = vadd.f32 %v2133, %v2136
      %vm2138 = vweird.f32 %v2132
      %vm2139 = vweird.f32 %v2133
      %vm2140 = vmor %vm2138, %vm2139
      %v2141 = vsel %vm2140, %v2133, %v2137
      %v2142 = vand.u32 2147483647, %v2132
      %vm2143 = vcmp.eq.f32.partialorder %v2142, 8.507059e+37
      %v2144 = vand.u32 %v2132, 2147483648
      %v2145 = vor.u32 1.1754944e-38, %v2144
      %v2146 = vsel %vm2143, %v2145, %v2141
      %v2147 = vmul.f32 %v2122, %v2146
      %v2148 = vmin.f32 %v2147, 1.0
      %v2149 = vmax.f32 %v2148, -1.0
      %v2150 = vmul.f32 %v760, %v760
      %v2151 = vmin.f32 16.0, %v2150
      %v2152 = vmul.f32 %v2151, 2.1237322e-06
      %v2153 = vadd.f32 %v2152, 0.00028619796
      %v2154 = vmul.f32 %v2151, %v2153
      %v2155 = vadd.f32 %v2154, 0.0036580483
      %v2156 = vmul.f32 %v2151, %v2155
      %v2157 = vadd.f32 %v2156, 0.05243302
      %v2158 = vmul.f32 %v2151, %v2157
      %v2159 = vadd.f32 %v2158, 0.18741608
      %v2160 = vmul.f32 %v2151, %v2159
      %v2161 = vadd.f32 %v2160, 1.1283791
      %v2162 = vmul.f32 %v760, %v2161
      %v2163 = vmul.f32 %v2151, 3.8918573e-05
      %v2164 = vadd.f32 %v2163, 0.001143296
      %v2165 = vmul.f32 %v2151, %v2164
      %v2166 = vadd.f32 %v2165, 0.014752088
      %v2167 = vmul.f32 %v2151, %v2166
      %v2168 = vadd.f32 %v2167, 0.112945676
      %v2169 = vmul.f32 %v2151, %v2168
      %v2170 = vadd.f32 %v2169, 0.4994258
      %v2171 = vmul.f32 %v2151, %v2170
      %v2172 = vadd.f32 %v2171, 1.0
      %v2173 = vrcp.pop %v2172
      %v2174 = vmul.f32 %v2172, %v2173
      %v2175 = vsub.f32 1.0, %v2174
      %v2176 = vmul.f32 %v2173, %v2175
      %v2177 = vadd.f32 %v2173, %v2176
      %vm2178 = vweird.f32 %v2172
      %vm2179 = vweird.f32 %v2173
      %vm2180 = vmor %vm2178, %vm2179
      %v2181 = vsel %vm2180, %v2173, %v2177
      %v2182 = vand.u32 2147483647, %v2172
      %vm2183 = vcmp.eq.f32.partialorder %v2182, 8.507059e+37
      %v2184 = vand.u32 %v2172, 2147483648
      %v2185 = vor.u32 1.1754944e-38, %v2184
      %v2186 = vsel %vm2183, %v2185, %v2181
      %v2187 = vmul.f32 %v2162, %v2186
      %v2188 = vmin.f32 %v2187, 1.0
      %v2189 = vmax.f32 %v2188, -1.0
      %v2190 = vmul.f32 %v761, %v761
      %v2191 = vmin.f32 16.0, %v2190
      %v2192 = vmul.f32 %v2191, 2.1237322e-06
      %v2193 = vadd.f32 %v2192, 0.00028619796
      %v2194 = vmul.f32 %v2191, %v2193
      %v2195 = vadd.f32 %v2194, 0.0036580483
      %v2196 = vmul.f32 %v2191, %v2195
      %v2197 = vadd.f32 %v2196, 0.05243302
      %v2198 = vmul.f32 %v2191, %v2197
      %v2199 = vadd.f32 %v2198, 0.18741608
      %v2200 = vmul.f32 %v2191, %v2199
      %v2201 = vadd.f32 %v2200, 1.1283791
      %v2202 = vmul.f32 %v761, %v2201
      %v2203 = vmul.f32 %v2191, 3.8918573e-05
      %v2204 = vadd.f32 %v2203, 0.001143296
      %v2205 = vmul.f32 %v2191, %v2204
      %v2206 = vadd.f32 %v2205, 0.014752088
      %v2207 = vmul.f32 %v2191, %v2206
      %v2208 = vadd.f32 %v2207, 0.112945676
      %v2209 = vmul.f32 %v2191, %v2208
      %v2210 = vadd.f32 %v2209, 0.4994258
      %v2211 = vmul.f32 %v2191, %v2210
      %v2212 = vadd.f32 %v2211, 1.0
      %v2213 = vrcp.pop %v2212
      %v2214 = vmul.f32 %v2212, %v2213
      %v2215 = vsub.f32 1.0, %v2214
      %v2216 = vmul.f32 %v2213, %v2215
      %v2217 = vadd.f32 %v2213, %v2216
      %vm2218 = vweird.f32 %v2212
      %vm2219 = vweird.f32 %v2213
      %vm2220 = vmor %vm2218, %vm2219
      %v2221 = vsel %vm2220, %v2213, %v2217
      %v2222 = vand.u32 2147483647, %v2212
      %vm2223 = vcmp.eq.f32.partialorder %v2222, 8.507059e+37
      %v2224 = vand.u32 %v2212, 2147483648
      %v2225 = vor.u32 1.1754944e-38, %v2224
      %v2226 = vsel %vm2223, %v2225, %v2221
      %v2227 = vmul.f32 %v2202, %v2226
      %v2228 = vmin.f32 %v2227, 1.0
      %v2229 = vmax.f32 %v2228, -1.0
      %v2230 = vmul.f32 %v762, %v762
      %v2231 = vmin.f32 16.0, %v2230
      %v2232 = vmul.f32 %v2231, 2.1237322e-06
      %v2233 = vadd.f32 %v2232, 0.00028619796
      %v2234 = vmul.f32 %v2231, %v2233
      %v2235 = vadd.f32 %v2234, 0.0036580483
      %v2236 = vmul.f32 %v2231, %v2235
      %v2237 = vadd.f32 %v2236, 0.05243302
      %v2238 = vmul.f32 %v2231, %v2237
      %v2239 = vadd.f32 %v2238, 0.18741608
      %v2240 = vmul.f32 %v2231, %v2239
      %v2241 = vadd.f32 %v2240, 1.1283791
      %v2242 = vmul.f32 %v762, %v2241
      %v2243 = vmul.f32 %v2231, 3.8918573e-05
      %v2244 = vadd.f32 %v2243, 0.001143296
      %v2245 = vmul.f32 %v2231, %v2244
      %v2246 = vadd.f32 %v2245, 0.014752088
      %v2247 = vmul.f32 %v2231, %v2246
      %v2248 = vadd.f32 %v2247, 0.112945676
      %v2249 = vmul.f32 %v2231, %v2248
      %v2250 = vadd.f32 %v2249, 0.4994258
      %v2251 = vmul.f32 %v2231, %v2250
      %v2252 = vadd.f32 %v2251, 1.0
      %v2253 = vrcp.pop %v2252
      %v2254 = vmul.f32 %v2252, %v2253
      %v2255 = vsub.f32 1.0, %v2254
      %v2256 = vmul.f32 %v2253, %v2255
      %v2257 = vadd.f32 %v2253, %v2256
      %vm2258 = vweird.f32 %v2252
      %vm2259 = vweird.f32 %v2253
      %vm2260 = vmor %vm2258, %vm2259
      %v2261 = vsel %vm2260, %v2253, %v2257
      %v2262 = vand.u32 2147483647, %v2252
      %vm2263 = vcmp.eq.f32.partialorder %v2262, 8.507059e+37
      %v2264 = vand.u32 %v2252, 2147483648
      %v2265 = vor.u32 1.1754944e-38, %v2264
      %v2266 = vsel %vm2263, %v2265, %v2261
      %v2267 = vmul.f32 %v2242, %v2266
      %v2268 = vmin.f32 %v2267, 1.0
      %v2269 = vmax.f32 %v2268, -1.0
      %v2270 = vmul.f32 %v763, %v763
      %v2271 = vmin.f32 16.0, %v2270
      %v2272 = vmul.f32 %v2271, 2.1237322e-06
      %v2273 = vadd.f32 %v2272, 0.00028619796
      %v2274 = vmul.f32 %v2271, %v2273
      %v2275 = vadd.f32 %v2274, 0.0036580483
      %v2276 = vmul.f32 %v2271, %v2275
      %v2277 = vadd.f32 %v2276, 0.05243302
      %v2278 = vmul.f32 %v2271, %v2277
      %v2279 = vadd.f32 %v2278, 0.18741608
      %v2280 = vmul.f32 %v2271, %v2279
      %v2281 = vadd.f32 %v2280, 1.1283791
      %v2282 = vmul.f32 %v763, %v2281
      %v2283 = vmul.f32 %v2271, 3.8918573e-05
      %v2284 = vadd.f32 %v2283, 0.001143296
      %v2285 = vmul.f32 %v2271, %v2284
      %v2286 = vadd.f32 %v2285, 0.014752088
      %v2287 = vmul.f32 %v2271, %v2286
      %v2288 = vadd.f32 %v2287, 0.112945676
      %v2289 = vmul.f32 %v2271, %v2288
      %v2290 = vadd.f32 %v2289, 0.4994258
      %v2291 = vmul.f32 %v2271, %v2290
      %v2292 = vadd.f32 %v2291, 1.0
      %v2293 = vrcp.pop %v2292
      %v2294 = vmul.f32 %v2292, %v2293
      %v2295 = vsub.f32 1.0, %v2294
      %v2296 = vmul.f32 %v2293, %v2295
      %v2297 = vadd.f32 %v2293, %v2296
      %vm2298 = vweird.f32 %v2292
      %vm2299 = vweird.f32 %v2293
      %vm2300 = vmor %vm2298, %vm2299
      %v2301 = vsel %vm2300, %v2293, %v2297
      %v2302 = vand.u32 2147483647, %v2292
      %vm2303 = vcmp.eq.f32.partialorder %v2302, 8.507059e+37
      %v2304 = vand.u32 %v2292, 2147483648
      %v2305 = vor.u32 1.1754944e-38, %v2304
      %v2306 = vsel %vm2303, %v2305, %v2301
      %v2307 = vmul.f32 %v2282, %v2306
      %v2308 = vmin.f32 %v2307, 1.0
      %v2309 = vmax.f32 %v2308, -1.0
      %v2310 = vmul.f32 %v764, %v764
      %v2311 = vmin.f32 16.0, %v2310
      %v2312 = vmul.f32 %v2311, 2.1237322e-06
      %v2313 = vadd.f32 %v2312, 0.00028619796
      %v2314 = vmul.f32 %v2311, %v2313
      %v2315 = vadd.f32 %v2314, 0.0036580483
      %v2316 = vmul.f32 %v2311, %v2315
      %v2317 = vadd.f32 %v2316, 0.05243302
      %v2318 = vmul.f32 %v2311, %v2317
      %v2319 = vadd.f32 %v2318, 0.18741608
      %v2320 = vmul.f32 %v2311, %v2319
      %v2321 = vadd.f32 %v2320, 1.1283791
      %v2322 = vmul.f32 %v764, %v2321
      %v2323 = vmul.f32 %v2311, 3.8918573e-05
      %v2324 = vadd.f32 %v2323, 0.001143296
      %v2325 = vmul.f32 %v2311, %v2324
      %v2326 = vadd.f32 %v2325, 0.014752088
      %v2327 = vmul.f32 %v2311, %v2326
      %v2328 = vadd.f32 %v2327, 0.112945676
      %v2329 = vmul.f32 %v2311, %v2328
      %v2330 = vadd.f32 %v2329, 0.4994258
      %v2331 = vmul.f32 %v2311, %v2330
      %v2332 = vadd.f32 %v2331, 1.0
      %v2333 = vrcp.pop %v2332
      %v2334 = vmul.f32 %v2332, %v2333
      %v2335 = vsub.f32 1.0, %v2334
      %v2336 = vmul.f32 %v2333, %v2335
      %v2337 = vadd.f32 %v2333, %v2336
      %vm2338 = vweird.f32 %v2332
      %vm2339 = vweird.f32 %v2333
      %vm2340 = vmor %vm2338, %vm2339
      %v2341 = vsel %vm2340, %v2333, %v2337
      %v2342 = vand.u32 2147483647, %v2332
      %vm2343 = vcmp.eq.f32.partialorder %v2342, 8.507059e+37
      %v2344 = vand.u32 %v2332, 2147483648
      %v2345 = vor.u32 1.1754944e-38, %v2344
      %v2346 = vsel %vm2343, %v2345, %v2341
      %v2347 = vmul.f32 %v2322, %v2346
      %v2348 = vmin.f32 %v2347, 1.0
      %v2349 = vmax.f32 %v2348, -1.0
      %v2350 = vmul.f32 %v765, %v765
      %v2351 = vmin.f32 16.0, %v2350
      %v2352 = vmul.f32 %v2351, 2.1237322e-06
      %v2353 = vadd.f32 %v2352, 0.00028619796
      %v2354 = vmul.f32 %v2351, %v2353
      %v2355 = vadd.f32 %v2354, 0.0036580483
      %v2356 = vmul.f32 %v2351, %v2355
      %v2357 = vadd.f32 %v2356, 0.05243302
      %v2358 = vmul.f32 %v2351, %v2357
      %v2359 = vadd.f32 %v2358, 0.18741608
      %v2360 = vmul.f32 %v2351, %v2359
      %v2361 = vadd.f32 %v2360, 1.1283791
      %v2362 = vmul.f32 %v765, %v2361
      %v2363 = vmul.f32 %v2351, 3.8918573e-05
      %v2364 = vadd.f32 %v2363, 0.001143296
      %v2365 = vmul.f32 %v2351, %v2364
      %v2366 = vadd.f32 %v2365, 0.014752088
      %v2367 = vmul.f32 %v2351, %v2366
      %v2368 = vadd.f32 %v2367, 0.112945676
      %v2369 = vmul.f32 %v2351, %v2368
      %v2370 = vadd.f32 %v2369, 0.4994258
      %v2371 = vmul.f32 %v2351, %v2370
      %v2372 = vadd.f32 %v2371, 1.0
      %v2373 = vrcp.pop %v2372
      %v2374 = vmul.f32 %v2372, %v2373
      %v2375 = vsub.f32 1.0, %v2374
      %v2376 = vmul.f32 %v2373, %v2375
      %v2377 = vadd.f32 %v2373, %v2376
      %vm2378 = vweird.f32 %v2372
      %vm2379 = vweird.f32 %v2373
      %vm2380 = vmor %vm2378, %vm2379
      %v2381 = vsel %vm2380, %v2373, %v2377
      %v2382 = vand.u32 2147483647, %v2372
      %vm2383 = vcmp.eq.f32.partialorder %v2382, 8.507059e+37
      %v2384 = vand.u32 %v2372, 2147483648
      %v2385 = vor.u32 1.1754944e-38, %v2384
      %v2386 = vsel %vm2383, %v2385, %v2381
      %v2387 = vmul.f32 %v2362, %v2386
      %v2388 = vmin.f32 %v2387, 1.0
      %v2389 = vmax.f32 %v2388, -1.0
      %v2390 = vmul.f32 %v766, %v766
      %v2391 = vmin.f32 16.0, %v2390
      %v2392 = vmul.f32 %v2391, 2.1237322e-06
      %v2393 = vadd.f32 %v2392, 0.00028619796
      %v2394 = vmul.f32 %v2391, %v2393
      %v2395 = vadd.f32 %v2394, 0.0036580483
      %v2396 = vmul.f32 %v2391, %v2395
      %v2397 = vadd.f32 %v2396, 0.05243302
      %v2398 = vmul.f32 %v2391, %v2397
      %v2399 = vadd.f32 %v2398, 0.18741608
      %v2400 = vmul.f32 %v2391, %v2399
      %v2401 = vadd.f32 %v2400, 1.1283791
      %v2402 = vmul.f32 %v766, %v2401
      %v2403 = vmul.f32 %v2391, 3.8918573e-05
      %v2404 = vadd.f32 %v2403, 0.001143296
      %v2405 = vmul.f32 %v2391, %v2404
      %v2406 = vadd.f32 %v2405, 0.014752088
      %v2407 = vmul.f32 %v2391, %v2406
      %v2408 = vadd.f32 %v2407, 0.112945676
      %v2409 = vmul.f32 %v2391, %v2408
      %v2410 = vadd.f32 %v2409, 0.4994258
      %v2411 = vmul.f32 %v2391, %v2410
      %v2412 = vadd.f32 %v2411, 1.0
      %v2413 = vrcp.pop %v2412
      %v2414 = vmul.f32 %v2412, %v2413
      %v2415 = vsub.f32 1.0, %v2414
      %v2416 = vmul.f32 %v2413, %v2415
      %v2417 = vadd.f32 %v2413, %v2416
      %vm2418 = vweird.f32 %v2412
      %vm2419 = vweird.f32 %v2413
      %vm2420 = vmor %vm2418, %vm2419
      %v2421 = vsel %vm2420, %v2413, %v2417
      %v2422 = vand.u32 2147483647, %v2412
      %vm2423 = vcmp.eq.f32.partialorder %v2422, 8.507059e+37
      %v2424 = vand.u32 %v2412, 2147483648
      %v2425 = vor.u32 1.1754944e-38, %v2424
      %v2426 = vsel %vm2423, %v2425, %v2421
      %v2427 = vmul.f32 %v2402, %v2426
      %v2428 = vmin.f32 %v2427, 1.0
      %v2429 = vmax.f32 %v2428, -1.0
      %v2430 = vmul.f32 %v767, %v767
      %v2431 = vmin.f32 16.0, %v2430
      %v2432 = vmul.f32 %v2431, 2.1237322e-06
      %v2433 = vadd.f32 %v2432, 0.00028619796
      %v2434 = vmul.f32 %v2431, %v2433
      %v2435 = vadd.f32 %v2434, 0.0036580483
      %v2436 = vmul.f32 %v2431, %v2435
      %v2437 = vadd.f32 %v2436, 0.05243302
      %v2438 = vmul.f32 %v2431, %v2437
      %v2439 = vadd.f32 %v2438, 0.18741608
      %v2440 = vmul.f32 %v2431, %v2439
      %v2441 = vadd.f32 %v2440, 1.1283791
      %v2442 = vmul.f32 %v767, %v2441
      %v2443 = vmul.f32 %v2431, 3.8918573e-05
      %v2444 = vadd.f32 %v2443, 0.001143296
      %v2445 = vmul.f32 %v2431, %v2444
      %v2446 = vadd.f32 %v2445, 0.014752088
      %v2447 = vmul.f32 %v2431, %v2446
      %v2448 = vadd.f32 %v2447, 0.112945676
      %v2449 = vmul.f32 %v2431, %v2448
      %v2450 = vadd.f32 %v2449, 0.4994258
      %v2451 = vmul.f32 %v2431, %v2450
      %v2452 = vadd.f32 %v2451, 1.0
      %v2453 = vrcp.pop %v2452
      %v2454 = vmul.f32 %v2452, %v2453
      %v2455 = vsub.f32 1.0, %v2454
      %v2456 = vmul.f32 %v2453, %v2455
      %v2457 = vadd.f32 %v2453, %v2456
      %vm2458 = vweird.f32 %v2452
      %vm2459 = vweird.f32 %v2453
      %vm2460 = vmor %vm2458, %vm2459
      %v2461 = vsel %vm2460, %v2453, %v2457
      %v2462 = vand.u32 2147483647, %v2452
      %vm2463 = vcmp.eq.f32.partialorder %v2462, 8.507059e+37
      %v2464 = vand.u32 %v2452, 2147483648
      %v2465 = vor.u32 1.1754944e-38, %v2464
      %v2466 = vsel %vm2463, %v2465, %v2461
      %v2467 = vmul.f32 %v2442, %v2466
      %v2468 = vmin.f32 %v2467, 1.0
      %v2469 = vmax.f32 %v2468, -1.0
      %v2470 = vmul.f32 %v768, %v768
      %v2471 = vmin.f32 16.0, %v2470
      %v2472 = vmul.f32 %v2471, 2.1237322e-06
      %v2473 = vadd.f32 %v2472, 0.00028619796
      %v2474 = vmul.f32 %v2471, %v2473
      %v2475 = vadd.f32 %v2474, 0.0036580483
      %v2476 = vmul.f32 %v2471, %v2475
      %v2477 = vadd.f32 %v2476, 0.05243302
      %v2478 = vmul.f32 %v2471, %v2477
      %v2479 = vadd.f32 %v2478, 0.18741608
      %v2480 = vmul.f32 %v2471, %v2479
      %v2481 = vadd.f32 %v2480, 1.1283791
      %v2482 = vmul.f32 %v768, %v2481
      %v2483 = vmul.f32 %v2471, 3.8918573e-05
      %v2484 = vadd.f32 %v2483, 0.001143296
      %v2485 = vmul.f32 %v2471, %v2484
      %v2486 = vadd.f32 %v2485, 0.014752088
      %v2487 = vmul.f32 %v2471, %v2486
      %v2488 = vadd.f32 %v2487, 0.112945676
      %v2489 = vmul.f32 %v2471, %v2488
      %v2490 = vadd.f32 %v2489, 0.4994258
      %v2491 = vmul.f32 %v2471, %v2490
      %v2492 = vadd.f32 %v2491, 1.0
      %v2493 = vrcp.pop %v2492
      %v2494 = vmul.f32 %v2492, %v2493
      %v2495 = vsub.f32 1.0, %v2494
      %v2496 = vmul.f32 %v2493, %v2495
      %v2497 = vadd.f32 %v2493, %v2496
      %vm2498 = vweird.f32 %v2492
      %vm2499 = vweird.f32 %v2493
      %vm2500 = vmor %vm2498, %vm2499
      %v2501 = vsel %vm2500, %v2493, %v2497
      %v2502 = vand.u32 2147483647, %v2492
      %vm2503 = vcmp.eq.f32.partialorder %v2502, 8.507059e+37
      %v2504 = vand.u32 %v2492, 2147483648
      %v2505 = vor.u32 1.1754944e-38, %v2504
      %v2506 = vsel %vm2503, %v2505, %v2501
      %v2507 = vmul.f32 %v2482, %v2506
      %v2508 = vmin.f32 %v2507, 1.0
      %v2509 = vmax.f32 %v2508, -1.0
      %v2510 = vmul.f32 %v769, %v769
      %v2511 = vmin.f32 16.0, %v2510
      %v2512 = vmul.f32 %v2511, 2.1237322e-06
      %v2513 = vadd.f32 %v2512, 0.00028619796
      %v2514 = vmul.f32 %v2511, %v2513
      %v2515 = vadd.f32 %v2514, 0.0036580483
      %v2516 = vmul.f32 %v2511, %v2515
      %v2517 = vadd.f32 %v2516, 0.05243302
      %v2518 = vmul.f32 %v2511, %v2517
      %v2519 = vadd.f32 %v2518, 0.18741608
      %v2520 = vmul.f32 %v2511, %v2519
      %v2521 = vadd.f32 %v2520, 1.1283791
      %v2522 = vmul.f32 %v769, %v2521
      %v2523 = vmul.f32 %v2511, 3.8918573e-05
      %v2524 = vadd.f32 %v2523, 0.001143296
      %v2525 = vmul.f32 %v2511, %v2524
      %v2526 = vadd.f32 %v2525, 0.014752088
      %v2527 = vmul.f32 %v2511, %v2526
      %v2528 = vadd.f32 %v2527, 0.112945676
      %v2529 = vmul.f32 %v2511, %v2528
      %v2530 = vadd.f32 %v2529, 0.4994258
      %v2531 = vmul.f32 %v2511, %v2530
      %v2532 = vadd.f32 %v2531, 1.0
      %v2533 = vrcp.pop %v2532
      %v2534 = vmul.f32 %v2532, %v2533
      %v2535 = vsub.f32 1.0, %v2534
      %v2536 = vmul.f32 %v2533, %v2535
      %v2537 = vadd.f32 %v2533, %v2536
      %vm2538 = vweird.f32 %v2532
      %vm2539 = vweird.f32 %v2533
      %vm2540 = vmor %vm2538, %vm2539
      %v2541 = vsel %vm2540, %v2533, %v2537
      %v2542 = vand.u32 2147483647, %v2532
      %vm2543 = vcmp.eq.f32.partialorder %v2542, 8.507059e+37
      %v2544 = vand.u32 %v2532, 2147483648
      %v2545 = vor.u32 1.1754944e-38, %v2544
      %v2546 = vsel %vm2543, %v2545, %v2541
      %v2547 = vmul.f32 %v2522, %v2546
      %v2548 = vmin.f32 %v2547, 1.0
      %v2549 = vmax.f32 %v2548, -1.0
      %v2550 = vmul.f32 %v770, %v770
      %v2551 = vmin.f32 16.0, %v2550
      %v2552 = vmul.f32 %v2551, 2.1237322e-06
      %v2553 = vadd.f32 %v2552, 0.00028619796
      %v2554 = vmul.f32 %v2551, %v2553
      %v2555 = vadd.f32 %v2554, 0.0036580483
      %v2556 = vmul.f32 %v2551, %v2555
      %v2557 = vadd.f32 %v2556, 0.05243302
      %v2558 = vmul.f32 %v2551, %v2557
      %v2559 = vadd.f32 %v2558, 0.18741608
      %v2560 = vmul.f32 %v2551, %v2559
      %v2561 = vadd.f32 %v2560, 1.1283791
      %v2562 = vmul.f32 %v770, %v2561
      %v2563 = vmul.f32 %v2551, 3.8918573e-05
      %v2564 = vadd.f32 %v2563, 0.001143296
      %v2565 = vmul.f32 %v2551, %v2564
      %v2566 = vadd.f32 %v2565, 0.014752088
      %v2567 = vmul.f32 %v2551, %v2566
      %v2568 = vadd.f32 %v2567, 0.112945676
      %v2569 = vmul.f32 %v2551, %v2568
      %v2570 = vadd.f32 %v2569, 0.4994258
      %v2571 = vmul.f32 %v2551, %v2570
      %v2572 = vadd.f32 %v2571, 1.0
      %v2573 = vrcp.pop %v2572
      %v2574 = vmul.f32 %v2572, %v2573
      %v2575 = vsub.f32 1.0, %v2574
      %v2576 = vmul.f32 %v2573, %v2575
      %v2577 = vadd.f32 %v2573, %v2576
      %vm2578 = vweird.f32 %v2572
      %vm2579 = vweird.f32 %v2573
      %vm2580 = vmor %vm2578, %vm2579
      %v2581 = vsel %vm2580, %v2573, %v2577
      %v2582 = vand.u32 2147483647, %v2572
      %vm2583 = vcmp.eq.f32.partialorder %v2582, 8.507059e+37
      %v2584 = vand.u32 %v2572, 2147483648
      %v2585 = vor.u32 1.1754944e-38, %v2584
      %v2586 = vsel %vm2583, %v2585, %v2581
      %v2587 = vmul.f32 %v2562, %v2586
      %v2588 = vmin.f32 %v2587, 1.0
      %v2589 = vmax.f32 %v2588, -1.0
      %v2590 = vmul.f32 %v771, %v771
      %v2591 = vmin.f32 16.0, %v2590
      %v2592 = vmul.f32 %v2591, 2.1237322e-06
      %v2593 = vadd.f32 %v2592, 0.00028619796
      %v2594 = vmul.f32 %v2591, %v2593
      %v2595 = vadd.f32 %v2594, 0.0036580483
      %v2596 = vmul.f32 %v2591, %v2595
      %v2597 = vadd.f32 %v2596, 0.05243302
      %v2598 = vmul.f32 %v2591, %v2597
      %v2599 = vadd.f32 %v2598, 0.18741608
      %v2600 = vmul.f32 %v2591, %v2599
      %v2601 = vadd.f32 %v2600, 1.1283791
      %v2602 = vmul.f32 %v771, %v2601
      %v2603 = vmul.f32 %v2591, 3.8918573e-05
      %v2604 = vadd.f32 %v2603, 0.001143296
      %v2605 = vmul.f32 %v2591, %v2604
      %v2606 = vadd.f32 %v2605, 0.014752088
      %v2607 = vmul.f32 %v2591, %v2606
      %v2608 = vadd.f32 %v2607, 0.112945676
      %v2609 = vmul.f32 %v2591, %v2608
      %v2610 = vadd.f32 %v2609, 0.4994258
      %v2611 = vmul.f32 %v2591, %v2610
      %v2612 = vadd.f32 %v2611, 1.0
      %v2613 = vrcp.pop %v2612
      %v2614 = vmul.f32 %v2612, %v2613
      %v2615 = vsub.f32 1.0, %v2614
      %v2616 = vmul.f32 %v2613, %v2615
      %v2617 = vadd.f32 %v2613, %v2616
      %vm2618 = vweird.f32 %v2612
      %vm2619 = vweird.f32 %v2613
      %vm2620 = vmor %vm2618, %vm2619
      %v2621 = vsel %vm2620, %v2613, %v2617
      %v2622 = vand.u32 2147483647, %v2612
      %vm2623 = vcmp.eq.f32.partialorder %v2622, 8.507059e+37
      %v2624 = vand.u32 %v2612, 2147483648
      %v2625 = vor.u32 1.1754944e-38, %v2624
      %v2626 = vsel %vm2623, %v2625, %v2621
      %v2627 = vmul.f32 %v2602, %v2626
      %v2628 = vmin.f32 %v2627, 1.0
      %v2629 = vmax.f32 %v2628, -1.0
      %v2630 = vmul.f32 %v772, %v772
      %v2631 = vmin.f32 16.0, %v2630
      %v2632 = vmul.f32 %v2631, 2.1237322e-06
      %v2633 = vadd.f32 %v2632, 0.00028619796
      %v2634 = vmul.f32 %v2631, %v2633
      %v2635 = vadd.f32 %v2634, 0.0036580483
      %v2636 = vmul.f32 %v2631, %v2635
      %v2637 = vadd.f32 %v2636, 0.05243302
      %v2638 = vmul.f32 %v2631, %v2637
      %v2639 = vadd.f32 %v2638, 0.18741608
      %v2640 = vmul.f32 %v2631, %v2639
      %v2641 = vadd.f32 %v2640, 1.1283791
      %v2642 = vmul.f32 %v772, %v2641
      %v2643 = vmul.f32 %v2631, 3.8918573e-05
      %v2644 = vadd.f32 %v2643, 0.001143296
      %v2645 = vmul.f32 %v2631, %v2644
      %v2646 = vadd.f32 %v2645, 0.014752088
      %v2647 = vmul.f32 %v2631, %v2646
      %v2648 = vadd.f32 %v2647, 0.112945676
      %v2649 = vmul.f32 %v2631, %v2648
      %v2650 = vadd.f32 %v2649, 0.4994258
      %v2651 = vmul.f32 %v2631, %v2650
      %v2652 = vadd.f32 %v2651, 1.0
      %v2653 = vrcp.pop %v2652
      %v2654 = vmul.f32 %v2652, %v2653
      %v2655 = vsub.f32 1.0, %v2654
      %v2656 = vmul.f32 %v2653, %v2655
      %v2657 = vadd.f32 %v2653, %v2656
      %vm2658 = vweird.f32 %v2652
      %vm2659 = vweird.f32 %v2653
      %vm2660 = vmor %vm2658, %vm2659
      %v2661 = vsel %vm2660, %v2653, %v2657
      %v2662 = vand.u32 2147483647, %v2652
      %vm2663 = vcmp.eq.f32.partialorder %v2662, 8.507059e+37
      %v2664 = vand.u32 %v2652, 2147483648
      %v2665 = vor.u32 1.1754944e-38, %v2664
      %v2666 = vsel %vm2663, %v2665, %v2661
      %v2667 = vmul.f32 %v2642, %v2666
      %v2668 = vmin.f32 %v2667, 1.0
      %v2669 = vmax.f32 %v2668, -1.0
      %v2670 = vmul.f32 %v773, %v773
      %v2671 = vmin.f32 16.0, %v2670
      %v2672 = vmul.f32 %v2671, 2.1237322e-06
      %v2673 = vadd.f32 %v2672, 0.00028619796
      %v2674 = vmul.f32 %v2671, %v2673
      %v2675 = vadd.f32 %v2674, 0.0036580483
      %v2676 = vmul.f32 %v2671, %v2675
      %v2677 = vadd.f32 %v2676, 0.05243302
      %v2678 = vmul.f32 %v2671, %v2677
      %v2679 = vadd.f32 %v2678, 0.18741608
      %v2680 = vmul.f32 %v2671, %v2679
      %v2681 = vadd.f32 %v2680, 1.1283791
      %v2682 = vmul.f32 %v773, %v2681
      %v2683 = vmul.f32 %v2671, 3.8918573e-05
      %v2684 = vadd.f32 %v2683, 0.001143296
      %v2685 = vmul.f32 %v2671, %v2684
      %v2686 = vadd.f32 %v2685, 0.014752088
      %v2687 = vmul.f32 %v2671, %v2686
      %v2688 = vadd.f32 %v2687, 0.112945676
      %v2689 = vmul.f32 %v2671, %v2688
      %v2690 = vadd.f32 %v2689, 0.4994258
      %v2691 = vmul.f32 %v2671, %v2690
      %v2692 = vadd.f32 %v2691, 1.0
      %v2693 = vrcp.pop %v2692
      %v2694 = vmul.f32 %v2692, %v2693
      %v2695 = vsub.f32 1.0, %v2694
      %v2696 = vmul.f32 %v2693, %v2695
      %v2697 = vadd.f32 %v2693, %v2696
      %vm2698 = vweird.f32 %v2692
      %vm2699 = vweird.f32 %v2693
      %vm2700 = vmor %vm2698, %vm2699
      %v2701 = vsel %vm2700, %v2693, %v2697
      %v2702 = vand.u32 2147483647, %v2692
      %vm2703 = vcmp.eq.f32.partialorder %v2702, 8.507059e+37
      %v2704 = vand.u32 %v2692, 2147483648
      %v2705 = vor.u32 1.1754944e-38, %v2704
      %v2706 = vsel %vm2703, %v2705, %v2701
      %v2707 = vmul.f32 %v2682, %v2706
      %v2708 = vmin.f32 %v2707, 1.0
      %v2709 = vmax.f32 %v2708, -1.0
      %v2710 = vmul.f32 %v774, %v774
      %v2711 = vmin.f32 16.0, %v2710
      %v2712 = vmul.f32 %v2711, 2.1237322e-06
      %v2713 = vadd.f32 %v2712, 0.00028619796
      %v2714 = vmul.f32 %v2711, %v2713
      %v2715 = vadd.f32 %v2714, 0.0036580483
      %v2716 = vmul.f32 %v2711, %v2715
      %v2717 = vadd.f32 %v2716, 0.05243302
      %v2718 = vmul.f32 %v2711, %v2717
      %v2719 = vadd.f32 %v2718, 0.18741608
      %v2720 = vmul.f32 %v2711, %v2719
      %v2721 = vadd.f32 %v2720, 1.1283791
      %v2722 = vmul.f32 %v774, %v2721
      %v2723 = vmul.f32 %v2711, 3.8918573e-05
      %v2724 = vadd.f32 %v2723, 0.001143296
      %v2725 = vmul.f32 %v2711, %v2724
      %v2726 = vadd.f32 %v2725, 0.014752088
      %v2727 = vmul.f32 %v2711, %v2726
      %v2728 = vadd.f32 %v2727, 0.112945676
      %v2729 = vmul.f32 %v2711, %v2728
      %v2730 = vadd.f32 %v2729, 0.4994258
      %v2731 = vmul.f32 %v2711, %v2730
      %v2732 = vadd.f32 %v2731, 1.0
      %v2733 = vrcp.pop %v2732
      %v2734 = vmul.f32 %v2732, %v2733
      %v2735 = vsub.f32 1.0, %v2734
      %v2736 = vmul.f32 %v2733, %v2735
      %v2737 = vadd.f32 %v2733, %v2736
      %vm2738 = vweird.f32 %v2732
      %vm2739 = vweird.f32 %v2733
      %vm2740 = vmor %vm2738, %vm2739
      %v2741 = vsel %vm2740, %v2733, %v2737
      %v2742 = vand.u32 2147483647, %v2732
      %vm2743 = vcmp.eq.f32.partialorder %v2742, 8.507059e+37
      %v2744 = vand.u32 %v2732, 2147483648
      %v2745 = vor.u32 1.1754944e-38, %v2744
      %v2746 = vsel %vm2743, %v2745, %v2741
      %v2747 = vmul.f32 %v2722, %v2746
      %v2748 = vmin.f32 %v2747, 1.0
      %v2749 = vmax.f32 %v2748, -1.0
      %v2750 = vmul.f32 %v775, %v775
      %v2751 = vmin.f32 16.0, %v2750
      %v2752 = vmul.f32 %v2751, 2.1237322e-06
      %v2753 = vadd.f32 %v2752, 0.00028619796
      %v2754 = vmul.f32 %v2751, %v2753
      %v2755 = vadd.f32 %v2754, 0.0036580483
      %v2756 = vmul.f32 %v2751, %v2755
      %v2757 = vadd.f32 %v2756, 0.05243302
      %v2758 = vmul.f32 %v2751, %v2757
      %v2759 = vadd.f32 %v2758, 0.18741608
      %v2760 = vmul.f32 %v2751, %v2759
      %v2761 = vadd.f32 %v2760, 1.1283791
      %v2762 = vmul.f32 %v775, %v2761
      %v2763 = vmul.f32 %v2751, 3.8918573e-05
      %v2764 = vadd.f32 %v2763, 0.001143296
      %v2765 = vmul.f32 %v2751, %v2764
      %v2766 = vadd.f32 %v2765, 0.014752088
      %v2767 = vmul.f32 %v2751, %v2766
      %v2768 = vadd.f32 %v2767, 0.112945676
      %v2769 = vmul.f32 %v2751, %v2768
      %v2770 = vadd.f32 %v2769, 0.4994258
      %v2771 = vmul.f32 %v2751, %v2770
      %v2772 = vadd.f32 %v2771, 1.0
      %v2773 = vrcp.pop %v2772
      %v2774 = vmul.f32 %v2772, %v2773
      %v2775 = vsub.f32 1.0, %v2774
      %v2776 = vmul.f32 %v2773, %v2775
      %v2777 = vadd.f32 %v2773, %v2776
      %vm2778 = vweird.f32 %v2772
      %vm2779 = vweird.f32 %v2773
      %vm2780 = vmor %vm2778, %vm2779
      %v2781 = vsel %vm2780, %v2773, %v2777
      %v2782 = vand.u32 2147483647, %v2772
      %vm2783 = vcmp.eq.f32.partialorder %v2782, 8.507059e+37
      %v2784 = vand.u32 %v2772, 2147483648
      %v2785 = vor.u32 1.1754944e-38, %v2784
      %v2786 = vsel %vm2783, %v2785, %v2781
      %v2787 = vmul.f32 %v2762, %v2786
      %v2788 = vmin.f32 %v2787, 1.0
      %v2789 = vmax.f32 %v2788, -1.0
      %v2790 = vmul.f32 %v776, %v776
      %v2791 = vmin.f32 16.0, %v2790
      %v2792 = vmul.f32 %v2791, 2.1237322e-06
      %v2793 = vadd.f32 %v2792, 0.00028619796
      %v2794 = vmul.f32 %v2791, %v2793
      %v2795 = vadd.f32 %v2794, 0.0036580483
      %v2796 = vmul.f32 %v2791, %v2795
      %v2797 = vadd.f32 %v2796, 0.05243302
      %v2798 = vmul.f32 %v2791, %v2797
      %v2799 = vadd.f32 %v2798, 0.18741608
      %v2800 = vmul.f32 %v2791, %v2799
      %v2801 = vadd.f32 %v2800, 1.1283791
      %v2802 = vmul.f32 %v776, %v2801
      %v2803 = vmul.f32 %v2791, 3.8918573e-05
      %v2804 = vadd.f32 %v2803, 0.001143296
      %v2805 = vmul.f32 %v2791, %v2804
      %v2806 = vadd.f32 %v2805, 0.014752088
      %v2807 = vmul.f32 %v2791, %v2806
      %v2808 = vadd.f32 %v2807, 0.112945676
      %v2809 = vmul.f32 %v2791, %v2808
      %v2810 = vadd.f32 %v2809, 0.4994258
      %v2811 = vmul.f32 %v2791, %v2810
      %v2812 = vadd.f32 %v2811, 1.0
      %v2813 = vrcp.pop %v2812
      %v2814 = vmul.f32 %v2812, %v2813
      %v2815 = vsub.f32 1.0, %v2814
      %v2816 = vmul.f32 %v2813, %v2815
      %v2817 = vadd.f32 %v2813, %v2816
      %vm2818 = vweird.f32 %v2812
      %vm2819 = vweird.f32 %v2813
      %vm2820 = vmor %vm2818, %vm2819
      %v2821 = vsel %vm2820, %v2813, %v2817
      %v2822 = vand.u32 2147483647, %v2812
      %vm2823 = vcmp.eq.f32.partialorder %v2822, 8.507059e+37
      %v2824 = vand.u32 %v2812, 2147483648
      %v2825 = vor.u32 1.1754944e-38, %v2824
      %v2826 = vsel %vm2823, %v2825, %v2821
      %v2827 = vmul.f32 %v2802, %v2826
      %v2828 = vmin.f32 %v2827, 1.0
      %v2829 = vmax.f32 %v2828, -1.0
      %v2830 = vmul.f32 %v777, %v777
      %v2831 = vmin.f32 16.0, %v2830
      %v2832 = vmul.f32 %v2831, 2.1237322e-06
      %v2833 = vadd.f32 %v2832, 0.00028619796
      %v2834 = vmul.f32 %v2831, %v2833
      %v2835 = vadd.f32 %v2834, 0.0036580483
      %v2836 = vmul.f32 %v2831, %v2835
      %v2837 = vadd.f32 %v2836, 0.05243302
      %v2838 = vmul.f32 %v2831, %v2837
      %v2839 = vadd.f32 %v2838, 0.18741608
      %v2840 = vmul.f32 %v2831, %v2839
      %v2841 = vadd.f32 %v2840, 1.1283791
      %v2842 = vmul.f32 %v777, %v2841
      %v2843 = vmul.f32 %v2831, 3.8918573e-05
      %v2844 = vadd.f32 %v2843, 0.001143296
      %v2845 = vmul.f32 %v2831, %v2844
      %v2846 = vadd.f32 %v2845, 0.014752088
      %v2847 = vmul.f32 %v2831, %v2846
      %v2848 = vadd.f32 %v2847, 0.112945676
      %v2849 = vmul.f32 %v2831, %v2848
      %v2850 = vadd.f32 %v2849, 0.4994258
      %v2851 = vmul.f32 %v2831, %v2850
      %v2852 = vadd.f32 %v2851, 1.0
      %v2853 = vrcp.pop %v2852
      %v2854 = vmul.f32 %v2852, %v2853
      %v2855 = vsub.f32 1.0, %v2854
      %v2856 = vmul.f32 %v2853, %v2855
      %v2857 = vadd.f32 %v2853, %v2856
      %vm2858 = vweird.f32 %v2852
      %vm2859 = vweird.f32 %v2853
      %vm2860 = vmor %vm2858, %vm2859
      %v2861 = vsel %vm2860, %v2853, %v2857
      %v2862 = vand.u32 2147483647, %v2852
      %vm2863 = vcmp.eq.f32.partialorder %v2862, 8.507059e+37
      %v2864 = vand.u32 %v2852, 2147483648
      %v2865 = vor.u32 1.1754944e-38, %v2864
      %v2866 = vsel %vm2863, %v2865, %v2861
      %v2867 = vmul.f32 %v2842, %v2866
      %v2868 = vmin.f32 %v2867, 1.0
      %v2869 = vmax.f32 %v2868, -1.0
      %v2870 = vmul.f32 %v778, %v778
      %v2871 = vmin.f32 16.0, %v2870
      %v2872 = vmul.f32 %v2871, 2.1237322e-06
      %v2873 = vadd.f32 %v2872, 0.00028619796
      %v2874 = vmul.f32 %v2871, %v2873
      %v2875 = vadd.f32 %v2874, 0.0036580483
      %v2876 = vmul.f32 %v2871, %v2875
      %v2877 = vadd.f32 %v2876, 0.05243302
      %v2878 = vmul.f32 %v2871, %v2877
      %v2879 = vadd.f32 %v2878, 0.18741608
      %v2880 = vmul.f32 %v2871, %v2879
      %v2881 = vadd.f32 %v2880, 1.1283791
      %v2882 = vmul.f32 %v778, %v2881
      %v2883 = vmul.f32 %v2871, 3.8918573e-05
      %v2884 = vadd.f32 %v2883, 0.001143296
      %v2885 = vmul.f32 %v2871, %v2884
      %v2886 = vadd.f32 %v2885, 0.014752088
      %v2887 = vmul.f32 %v2871, %v2886
      %v2888 = vadd.f32 %v2887, 0.112945676
      %v2889 = vmul.f32 %v2871, %v2888
      %v2890 = vadd.f32 %v2889, 0.4994258
      %v2891 = vmul.f32 %v2871, %v2890
      %v2892 = vadd.f32 %v2891, 1.0
      %v2893 = vrcp.pop %v2892
      %v2894 = vmul.f32 %v2892, %v2893
      %v2895 = vsub.f32 1.0, %v2894
      %v2896 = vmul.f32 %v2893, %v2895
      %v2897 = vadd.f32 %v2893, %v2896
      %vm2898 = vweird.f32 %v2892
      %vm2899 = vweird.f32 %v2893
      %vm2900 = vmor %vm2898, %vm2899
      %v2901 = vsel %vm2900, %v2893, %v2897
      %v2902 = vand.u32 2147483647, %v2892
      %vm2903 = vcmp.eq.f32.partialorder %v2902, 8.507059e+37
      %v2904 = vand.u32 %v2892, 2147483648
      %v2905 = vor.u32 1.1754944e-38, %v2904
      %v2906 = vsel %vm2903, %v2905, %v2901
      %v2907 = vmul.f32 %v2882, %v2906
      %v2908 = vmin.f32 %v2907, 1.0
      %v2909 = vmax.f32 %v2908, -1.0
      %v2910 = vmul.f32 %v779, %v779
      %v2911 = vmin.f32 16.0, %v2910
      %v2912 = vmul.f32 %v2911, 2.1237322e-06
      %v2913 = vadd.f32 %v2912, 0.00028619796
      %v2914 = vmul.f32 %v2911, %v2913
      %v2915 = vadd.f32 %v2914, 0.0036580483
      %v2916 = vmul.f32 %v2911, %v2915
      %v2917 = vadd.f32 %v2916, 0.05243302
      %v2918 = vmul.f32 %v2911, %v2917
      %v2919 = vadd.f32 %v2918, 0.18741608
      %v2920 = vmul.f32 %v2911, %v2919
      %v2921 = vadd.f32 %v2920, 1.1283791
      %v2922 = vmul.f32 %v779, %v2921
      %v2923 = vmul.f32 %v2911, 3.8918573e-05
      %v2924 = vadd.f32 %v2923, 0.001143296
      %v2925 = vmul.f32 %v2911, %v2924
      %v2926 = vadd.f32 %v2925, 0.014752088
      %v2927 = vmul.f32 %v2911, %v2926
      %v2928 = vadd.f32 %v2927, 0.112945676
      %v2929 = vmul.f32 %v2911, %v2928
      %v2930 = vadd.f32 %v2929, 0.4994258
      %v2931 = vmul.f32 %v2911, %v2930
      %v2932 = vadd.f32 %v2931, 1.0
      %v2933 = vrcp.pop %v2932
      %v2934 = vmul.f32 %v2932, %v2933
      %v2935 = vsub.f32 1.0, %v2934
      %v2936 = vmul.f32 %v2933, %v2935
      %v2937 = vadd.f32 %v2933, %v2936
      %vm2938 = vweird.f32 %v2932
      %vm2939 = vweird.f32 %v2933
      %vm2940 = vmor %vm2938, %vm2939
      %v2941 = vsel %vm2940, %v2933, %v2937
      %v2942 = vand.u32 2147483647, %v2932
      %vm2943 = vcmp.eq.f32.partialorder %v2942, 8.507059e+37
      %v2944 = vand.u32 %v2932, 2147483648
      %v2945 = vor.u32 1.1754944e-38, %v2944
      %v2946 = vsel %vm2943, %v2945, %v2941
      %v2947 = vmul.f32 %v2922, %v2946
      %v2948 = vmin.f32 %v2947, 1.0
      %v2949 = vmax.f32 %v2948, -1.0
      %v2950 = vmul.f32 %v780, %v780
      %v2951 = vmin.f32 16.0, %v2950
      %v2952 = vmul.f32 %v2951, 2.1237322e-06
      %v2953 = vadd.f32 %v2952, 0.00028619796
      %v2954 = vmul.f32 %v2951, %v2953
      %v2955 = vadd.f32 %v2954, 0.0036580483
      %v2956 = vmul.f32 %v2951, %v2955
      %v2957 = vadd.f32 %v2956, 0.05243302
      %v2958 = vmul.f32 %v2951, %v2957
      %v2959 = vadd.f32 %v2958, 0.18741608
      %v2960 = vmul.f32 %v2951, %v2959
      %v2961 = vadd.f32 %v2960, 1.1283791
      %v2962 = vmul.f32 %v780, %v2961
      %v2963 = vmul.f32 %v2951, 3.8918573e-05
      %v2964 = vadd.f32 %v2963, 0.001143296
      %v2965 = vmul.f32 %v2951, %v2964
      %v2966 = vadd.f32 %v2965, 0.014752088
      %v2967 = vmul.f32 %v2951, %v2966
      %v2968 = vadd.f32 %v2967, 0.112945676
      %v2969 = vmul.f32 %v2951, %v2968
      %v2970 = vadd.f32 %v2969, 0.4994258
      %v2971 = vmul.f32 %v2951, %v2970
      %v2972 = vadd.f32 %v2971, 1.0
      %v2973 = vrcp.pop %v2972
      %v2974 = vmul.f32 %v2972, %v2973
      %v2975 = vsub.f32 1.0, %v2974
      %v2976 = vmul.f32 %v2973, %v2975
      %v2977 = vadd.f32 %v2973, %v2976
      %vm2978 = vweird.f32 %v2972
      %vm2979 = vweird.f32 %v2973
      %vm2980 = vmor %vm2978, %vm2979
      %v2981 = vsel %vm2980, %v2973, %v2977
      %v2982 = vand.u32 2147483647, %v2972
      %vm2983 = vcmp.eq.f32.partialorder %v2982, 8.507059e+37
      %v2984 = vand.u32 %v2972, 2147483648
      %v2985 = vor.u32 1.1754944e-38, %v2984
      %v2986 = vsel %vm2983, %v2985, %v2981
      %v2987 = vmul.f32 %v2962, %v2986
      %v2988 = vmin.f32 %v2987, 1.0
      %v2989 = vmax.f32 %v2988, -1.0
      %v2990 = vmul.f32 %v781, %v781
      %v2991 = vmin.f32 16.0, %v2990
      %v2992 = vmul.f32 %v2991, 2.1237322e-06
      %v2993 = vadd.f32 %v2992, 0.00028619796
      %v2994 = vmul.f32 %v2991, %v2993
      %v2995 = vadd.f32 %v2994, 0.0036580483
      %v2996 = vmul.f32 %v2991, %v2995
      %v2997 = vadd.f32 %v2996, 0.05243302
      %v2998 = vmul.f32 %v2991, %v2997
      %v2999 = vadd.f32 %v2998, 0.18741608
      %v3000 = vmul.f32 %v2991, %v2999
      %v3001 = vadd.f32 %v3000, 1.1283791
      %v3002 = vmul.f32 %v781, %v3001
      %v3003 = vmul.f32 %v2991, 3.8918573e-05
      %v3004 = vadd.f32 %v3003, 0.001143296
      %v3005 = vmul.f32 %v2991, %v3004
      %v3006 = vadd.f32 %v3005, 0.014752088
      %v3007 = vmul.f32 %v2991, %v3006
      %v3008 = vadd.f32 %v3007, 0.112945676
      %v3009 = vmul.f32 %v2991, %v3008
      %v3010 = vadd.f32 %v3009, 0.4994258
      %v3011 = vmul.f32 %v2991, %v3010
      %v3012 = vadd.f32 %v3011, 1.0
      %v3013 = vrcp.pop %v3012
      %v3014 = vmul.f32 %v3012, %v3013
      %v3015 = vsub.f32 1.0, %v3014
      %v3016 = vmul.f32 %v3013, %v3015
      %v3017 = vadd.f32 %v3013, %v3016
      %vm3018 = vweird.f32 %v3012
      %vm3019 = vweird.f32 %v3013
      %vm3020 = vmor %vm3018, %vm3019
      %v3021 = vsel %vm3020, %v3013, %v3017
      %v3022 = vand.u32 2147483647, %v3012
      %vm3023 = vcmp.eq.f32.partialorder %v3022, 8.507059e+37
      %v3024 = vand.u32 %v3012, 2147483648
      %v3025 = vor.u32 1.1754944e-38, %v3024
      %v3026 = vsel %vm3023, %v3025, %v3021
      %v3027 = vmul.f32 %v3002, %v3026
      %v3028 = vmin.f32 %v3027, 1.0
      %v3029 = vmax.f32 %v3028, -1.0
      %v3030 = vmul.f32 %v782, %v782
      %v3031 = vmin.f32 16.0, %v3030
      %v3032 = vmul.f32 %v3031, 2.1237322e-06
      %v3033 = vadd.f32 %v3032, 0.00028619796
      %v3034 = vmul.f32 %v3031, %v3033
      %v3035 = vadd.f32 %v3034, 0.0036580483
      %v3036 = vmul.f32 %v3031, %v3035
      %v3037 = vadd.f32 %v3036, 0.05243302
      %v3038 = vmul.f32 %v3031, %v3037
      %v3039 = vadd.f32 %v3038, 0.18741608
      %v3040 = vmul.f32 %v3031, %v3039
      %v3041 = vadd.f32 %v3040, 1.1283791
      %v3042 = vmul.f32 %v782, %v3041
      %v3043 = vmul.f32 %v3031, 3.8918573e-05
      %v3044 = vadd.f32 %v3043, 0.001143296
      %v3045 = vmul.f32 %v3031, %v3044
      %v3046 = vadd.f32 %v3045, 0.014752088
      %v3047 = vmul.f32 %v3031, %v3046
      %v3048 = vadd.f32 %v3047, 0.112945676
      %v3049 = vmul.f32 %v3031, %v3048
      %v3050 = vadd.f32 %v3049, 0.4994258
      %v3051 = vmul.f32 %v3031, %v3050
      %v3052 = vadd.f32 %v3051, 1.0
      %v3053 = vrcp.pop %v3052
      %v3054 = vmul.f32 %v3052, %v3053
      %v3055 = vsub.f32 1.0, %v3054
      %v3056 = vmul.f32 %v3053, %v3055
      %v3057 = vadd.f32 %v3053, %v3056
      %vm3058 = vweird.f32 %v3052
      %vm3059 = vweird.f32 %v3053
      %vm3060 = vmor %vm3058, %vm3059
      %v3061 = vsel %vm3060, %v3053, %v3057
      %v3062 = vand.u32 2147483647, %v3052
      %vm3063 = vcmp.eq.f32.partialorder %v3062, 8.507059e+37
      %v3064 = vand.u32 %v3052, 2147483648
      %v3065 = vor.u32 1.1754944e-38, %v3064
      %v3066 = vsel %vm3063, %v3065, %v3061
      %v3067 = vmul.f32 %v3042, %v3066
      %v3068 = vmin.f32 %v3067, 1.0
      %v3069 = vmax.f32 %v3068, -1.0
      %v3070 = vmul.f32 %v783, %v783
      %v3071 = vmin.f32 16.0, %v3070
      %v3072 = vmul.f32 %v3071, 2.1237322e-06
      %v3073 = vadd.f32 %v3072, 0.00028619796
      %v3074 = vmul.f32 %v3071, %v3073
      %v3075 = vadd.f32 %v3074, 0.0036580483
      %v3076 = vmul.f32 %v3071, %v3075
      %v3077 = vadd.f32 %v3076, 0.05243302
      %v3078 = vmul.f32 %v3071, %v3077
      %v3079 = vadd.f32 %v3078, 0.18741608
      %v3080 = vmul.f32 %v3071, %v3079
      %v3081 = vadd.f32 %v3080, 1.1283791
      %v3082 = vmul.f32 %v783, %v3081
      %v3083 = vmul.f32 %v3071, 3.8918573e-05
      %v3084 = vadd.f32 %v3083, 0.001143296
      %v3085 = vmul.f32 %v3071, %v3084
      %v3086 = vadd.f32 %v3085, 0.014752088
      %v3087 = vmul.f32 %v3071, %v3086
      %v3088 = vadd.f32 %v3087, 0.112945676
      %v3089 = vmul.f32 %v3071, %v3088
      %v3090 = vadd.f32 %v3089, 0.4994258
      %v3091 = vmul.f32 %v3071, %v3090
      %v3092 = vadd.f32 %v3091, 1.0
      %v3093 = vrcp.pop %v3092
      %v3094 = vmul.f32 %v3092, %v3093
      %v3095 = vsub.f32 1.0, %v3094
      %v3096 = vmul.f32 %v3093, %v3095
      %v3097 = vadd.f32 %v3093, %v3096
      %vm3098 = vweird.f32 %v3092
      %vm3099 = vweird.f32 %v3093
      %vm3100 = vmor %vm3098, %vm3099
      %v3101 = vsel %vm3100, %v3093, %v3097
      %v3102 = vand.u32 2147483647, %v3092
      %vm3103 = vcmp.eq.f32.partialorder %v3102, 8.507059e+37
      %v3104 = vand.u32 %v3092, 2147483648
      %v3105 = vor.u32 1.1754944e-38, %v3104
      %v3106 = vsel %vm3103, %v3105, %v3101
      %v3107 = vmul.f32 %v3082, %v3106
      %v3108 = vmin.f32 %v3107, 1.0
      %v3109 = vmax.f32 %v3108, -1.0
      %v3110 = vmul.f32 %v784, %v784
      %v3111 = vmin.f32 16.0, %v3110
      %v3112 = vmul.f32 %v3111, 2.1237322e-06
      %v3113 = vadd.f32 %v3112, 0.00028619796
      %v3114 = vmul.f32 %v3111, %v3113
      %v3115 = vadd.f32 %v3114, 0.0036580483
      %v3116 = vmul.f32 %v3111, %v3115
      %v3117 = vadd.f32 %v3116, 0.05243302
      %v3118 = vmul.f32 %v3111, %v3117
      %v3119 = vadd.f32 %v3118, 0.18741608
      %v3120 = vmul.f32 %v3111, %v3119
      %v3121 = vadd.f32 %v3120, 1.1283791
      %v3122 = vmul.f32 %v784, %v3121
      %v3123 = vmul.f32 %v3111, 3.8918573e-05
      %v3124 = vadd.f32 %v3123, 0.001143296
      %v3125 = vmul.f32 %v3111, %v3124
      %v3126 = vadd.f32 %v3125, 0.014752088
      %v3127 = vmul.f32 %v3111, %v3126
      %v3128 = vadd.f32 %v3127, 0.112945676
      %v3129 = vmul.f32 %v3111, %v3128
      %v3130 = vadd.f32 %v3129, 0.4994258
      %v3131 = vmul.f32 %v3111, %v3130
      %v3132 = vadd.f32 %v3131, 1.0
      %v3133 = vrcp.pop %v3132
      %v3134 = vmul.f32 %v3132, %v3133
      %v3135 = vsub.f32 1.0, %v3134
      %v3136 = vmul.f32 %v3133, %v3135
      %v3137 = vadd.f32 %v3133, %v3136
      %vm3138 = vweird.f32 %v3132
      %vm3139 = vweird.f32 %v3133
      %vm3140 = vmor %vm3138, %vm3139
      %v3141 = vsel %vm3140, %v3133, %v3137
      %v3142 = vand.u32 2147483647, %v3132
      %vm3143 = vcmp.eq.f32.partialorder %v3142, 8.507059e+37
      %v3144 = vand.u32 %v3132, 2147483648
      %v3145 = vor.u32 1.1754944e-38, %v3144
      %v3146 = vsel %vm3143, %v3145, %v3141
      %v3147 = vmul.f32 %v3122, %v3146
      %v3148 = vmin.f32 %v3147, 1.0
      %v3149 = vmax.f32 %v3148, -1.0
      %v3150 = vmul.f32 %v785, %v785
      %v3151 = vmin.f32 16.0, %v3150
      %v3152 = vmul.f32 %v3151, 2.1237322e-06
      %v3153 = vadd.f32 %v3152, 0.00028619796
      %v3154 = vmul.f32 %v3151, %v3153
      %v3155 = vadd.f32 %v3154, 0.0036580483
      %v3156 = vmul.f32 %v3151, %v3155
      %v3157 = vadd.f32 %v3156, 0.05243302
      %v3158 = vmul.f32 %v3151, %v3157
      %v3159 = vadd.f32 %v3158, 0.18741608
      %v3160 = vmul.f32 %v3151, %v3159
      %v3161 = vadd.f32 %v3160, 1.1283791
      %v3162 = vmul.f32 %v785, %v3161
      %v3163 = vmul.f32 %v3151, 3.8918573e-05
      %v3164 = vadd.f32 %v3163, 0.001143296
      %v3165 = vmul.f32 %v3151, %v3164
      %v3166 = vadd.f32 %v3165, 0.014752088
      %v3167 = vmul.f32 %v3151, %v3166
      %v3168 = vadd.f32 %v3167, 0.112945676
      %v3169 = vmul.f32 %v3151, %v3168
      %v3170 = vadd.f32 %v3169, 0.4994258
      %v3171 = vmul.f32 %v3151, %v3170
      %v3172 = vadd.f32 %v3171, 1.0
      %v3173 = vrcp.pop %v3172
      %v3174 = vmul.f32 %v3172, %v3173
      %v3175 = vsub.f32 1.0, %v3174
      %v3176 = vmul.f32 %v3173, %v3175
      %v3177 = vadd.f32 %v3173, %v3176
      %vm3178 = vweird.f32 %v3172
      %vm3179 = vweird.f32 %v3173
      %vm3180 = vmor %vm3178, %vm3179
      %v3181 = vsel %vm3180, %v3173, %v3177
      %v3182 = vand.u32 2147483647, %v3172
      %vm3183 = vcmp.eq.f32.partialorder %v3182, 8.507059e+37
      %v3184 = vand.u32 %v3172, 2147483648
      %v3185 = vor.u32 1.1754944e-38, %v3184
      %v3186 = vsel %vm3183, %v3185, %v3181
      %v3187 = vmul.f32 %v3162, %v3186
      %v3188 = vmin.f32 %v3187, 1.0
      %v3189 = vmax.f32 %v3188, -1.0
      %v3190 = vmul.f32 %v786, %v786
      %v3191 = vmin.f32 16.0, %v3190
      %v3192 = vmul.f32 %v3191, 2.1237322e-06
      %v3193 = vadd.f32 %v3192, 0.00028619796
      %v3194 = vmul.f32 %v3191, %v3193
      %v3195 = vadd.f32 %v3194, 0.0036580483
      %v3196 = vmul.f32 %v3191, %v3195
      %v3197 = vadd.f32 %v3196, 0.05243302
      %v3198 = vmul.f32 %v3191, %v3197
      %v3199 = vadd.f32 %v3198, 0.18741608
      %v3200 = vmul.f32 %v3191, %v3199
      %v3201 = vadd.f32 %v3200, 1.1283791
      %v3202 = vmul.f32 %v786, %v3201
      %v3203 = vmul.f32 %v3191, 3.8918573e-05
      %v3204 = vadd.f32 %v3203, 0.001143296
      %v3205 = vmul.f32 %v3191, %v3204
      %v3206 = vadd.f32 %v3205, 0.014752088
      %v3207 = vmul.f32 %v3191, %v3206
      %v3208 = vadd.f32 %v3207, 0.112945676
      %v3209 = vmul.f32 %v3191, %v3208
      %v3210 = vadd.f32 %v3209, 0.4994258
      %v3211 = vmul.f32 %v3191, %v3210
      %v3212 = vadd.f32 %v3211, 1.0
      %v3213 = vrcp.pop %v3212
      %v3214 = vmul.f32 %v3212, %v3213
      %v3215 = vsub.f32 1.0, %v3214
      %v3216 = vmul.f32 %v3213, %v3215
      %v3217 = vadd.f32 %v3213, %v3216
      %vm3218 = vweird.f32 %v3212
      %vm3219 = vweird.f32 %v3213
      %vm3220 = vmor %vm3218, %vm3219
      %v3221 = vsel %vm3220, %v3213, %v3217
      %v3222 = vand.u32 2147483647, %v3212
      %vm3223 = vcmp.eq.f32.partialorder %v3222, 8.507059e+37
      %v3224 = vand.u32 %v3212, 2147483648
      %v3225 = vor.u32 1.1754944e-38, %v3224
      %v3226 = vsel %vm3223, %v3225, %v3221
      %v3227 = vmul.f32 %v3202, %v3226
      %v3228 = vmin.f32 %v3227, 1.0
      %v3229 = vmax.f32 %v3228, -1.0
      %v3230 = vmul.f32 %v787, %v787
      %v3231 = vmin.f32 16.0, %v3230
      %v3232 = vmul.f32 %v3231, 2.1237322e-06
      %v3233 = vadd.f32 %v3232, 0.00028619796
      %v3234 = vmul.f32 %v3231, %v3233
      %v3235 = vadd.f32 %v3234, 0.0036580483
      %v3236 = vmul.f32 %v3231, %v3235
      %v3237 = vadd.f32 %v3236, 0.05243302
      %v3238 = vmul.f32 %v3231, %v3237
      %v3239 = vadd.f32 %v3238, 0.18741608
      %v3240 = vmul.f32 %v3231, %v3239
      %v3241 = vadd.f32 %v3240, 1.1283791
      %v3242 = vmul.f32 %v787, %v3241
      %v3243 = vmul.f32 %v3231, 3.8918573e-05
      %v3244 = vadd.f32 %v3243, 0.001143296
      %v3245 = vmul.f32 %v3231, %v3244
      %v3246 = vadd.f32 %v3245, 0.014752088
      %v3247 = vmul.f32 %v3231, %v3246
      %v3248 = vadd.f32 %v3247, 0.112945676
      %v3249 = vmul.f32 %v3231, %v3248
      %v3250 = vadd.f32 %v3249, 0.4994258
      %v3251 = vmul.f32 %v3231, %v3250
      %v3252 = vadd.f32 %v3251, 1.0
      %v3253 = vrcp.pop %v3252
      %v3254 = vmul.f32 %v3252, %v3253
      %v3255 = vsub.f32 1.0, %v3254
      %v3256 = vmul.f32 %v3253, %v3255
      %v3257 = vadd.f32 %v3253, %v3256
      %vm3258 = vweird.f32 %v3252
      %vm3259 = vweird.f32 %v3253
      %vm3260 = vmor %vm3258, %vm3259
      %v3261 = vsel %vm3260, %v3253, %v3257
      %v3262 = vand.u32 2147483647, %v3252
      %vm3263 = vcmp.eq.f32.partialorder %v3262, 8.507059e+37
      %v3264 = vand.u32 %v3252, 2147483648
      %v3265 = vor.u32 1.1754944e-38, %v3264
      %v3266 = vsel %vm3263, %v3265, %v3261
      %v3267 = vmul.f32 %v3242, %v3266
      %v3268 = vmin.f32 %v3267, 1.0
      %v3269 = vmax.f32 %v3268, -1.0
      %v3270 = vmul.f32 %v788, %v788
      %v3271 = vmin.f32 16.0, %v3270
      %v3272 = vmul.f32 %v3271, 2.1237322e-06
      %v3273 = vadd.f32 %v3272, 0.00028619796
      %v3274 = vmul.f32 %v3271, %v3273
      %v3275 = vadd.f32 %v3274, 0.0036580483
      %v3276 = vmul.f32 %v3271, %v3275
      %v3277 = vadd.f32 %v3276, 0.05243302
      %v3278 = vmul.f32 %v3271, %v3277
      %v3279 = vadd.f32 %v3278, 0.18741608
      %v3280 = vmul.f32 %v3271, %v3279
      %v3281 = vadd.f32 %v3280, 1.1283791
      %v3282 = vmul.f32 %v788, %v3281
      %v3283 = vmul.f32 %v3271, 3.8918573e-05
      %v3284 = vadd.f32 %v3283, 0.001143296
      %v3285 = vmul.f32 %v3271, %v3284
      %v3286 = vadd.f32 %v3285, 0.014752088
      %v3287 = vmul.f32 %v3271, %v3286
      %v3288 = vadd.f32 %v3287, 0.112945676
      %v3289 = vmul.f32 %v3271, %v3288
      %v3290 = vadd.f32 %v3289, 0.4994258
      %v3291 = vmul.f32 %v3271, %v3290
      %v3292 = vadd.f32 %v3291, 1.0
      %v3293 = vrcp.pop %v3292
      %v3294 = vmul.f32 %v3292, %v3293
      %v3295 = vsub.f32 1.0, %v3294
      %v3296 = vmul.f32 %v3293, %v3295
      %v3297 = vadd.f32 %v3293, %v3296
      %vm3298 = vweird.f32 %v3292
      %vm3299 = vweird.f32 %v3293
      %vm3300 = vmor %vm3298, %vm3299
      %v3301 = vsel %vm3300, %v3293, %v3297
      %v3302 = vand.u32 2147483647, %v3292
      %vm3303 = vcmp.eq.f32.partialorder %v3302, 8.507059e+37
      %v3304 = vand.u32 %v3292, 2147483648
      %v3305 = vor.u32 1.1754944e-38, %v3304
      %v3306 = vsel %vm3303, %v3305, %v3301
      %v3307 = vmul.f32 %v3282, %v3306
      %v3308 = vmin.f32 %v3307, 1.0
      %v3309 = vmax.f32 %v3308, -1.0
      %v3310 = vmul.f32 %v789, %v789
      %v3311 = vmin.f32 16.0, %v3310
      %v3312 = vmul.f32 %v3311, 2.1237322e-06
      %v3313 = vadd.f32 %v3312, 0.00028619796
      %v3314 = vmul.f32 %v3311, %v3313
      %v3315 = vadd.f32 %v3314, 0.0036580483
      %v3316 = vmul.f32 %v3311, %v3315
      %v3317 = vadd.f32 %v3316, 0.05243302
      %v3318 = vmul.f32 %v3311, %v3317
      %v3319 = vadd.f32 %v3318, 0.18741608
      %v3320 = vmul.f32 %v3311, %v3319
      %v3321 = vadd.f32 %v3320, 1.1283791
      %v3322 = vmul.f32 %v789, %v3321
      %v3323 = vmul.f32 %v3311, 3.8918573e-05
      %v3324 = vadd.f32 %v3323, 0.001143296
      %v3325 = vmul.f32 %v3311, %v3324
      %v3326 = vadd.f32 %v3325, 0.014752088
      %v3327 = vmul.f32 %v3311, %v3326
      %v3328 = vadd.f32 %v3327, 0.112945676
      %v3329 = vmul.f32 %v3311, %v3328
      %v3330 = vadd.f32 %v3329, 0.4994258
      %v3331 = vmul.f32 %v3311, %v3330
      %v3332 = vadd.f32 %v3331, 1.0
      %v3333 = vrcp.pop %v3332
      %v3334 = vmul.f32 %v3332, %v3333
      %v3335 = vsub.f32 1.0, %v3334
      %v3336 = vmul.f32 %v3333, %v3335
      %v3337 = vadd.f32 %v3333, %v3336
      %vm3338 = vweird.f32 %v3332
      %vm3339 = vweird.f32 %v3333
      %vm3340 = vmor %vm3338, %vm3339
      %v3341 = vsel %vm3340, %v3333, %v3337
      %v3342 = vand.u32 2147483647, %v3332
      %vm3343 = vcmp.eq.f32.partialorder %v3342, 8.507059e+37
      %v3344 = vand.u32 %v3332, 2147483648
      %v3345 = vor.u32 1.1754944e-38, %v3344
      %v3346 = vsel %vm3343, %v3345, %v3341
      %v3347 = vmul.f32 %v3322, %v3346
      %v3348 = vmin.f32 %v3347, 1.0
      %v3349 = vmax.f32 %v3348, -1.0
      %v3350 = vadd.f32 %v829, 1.0
      %v3351 = vadd.f32 %v869, 1.0
      %v3352 = vadd.f32 %v909, 1.0
      %v3353 = vadd.f32 %v949, 1.0
      %v3354 = vadd.f32 %v989, 1.0
      %v3355 = vadd.f32 %v1029, 1.0
      %v3356 = vadd.f32 %v1069, 1.0
      %v3357 = vadd.f32 %v1109, 1.0
      %v3358 = vadd.f32 %v1149, 1.0
      %v3359 = vadd.f32 %v1189, 1.0
      %v3360 = vadd.f32 %v1229, 1.0
      %v3361 = vadd.f32 %v1269, 1.0
      %v3362 = vadd.f32 %v1309, 1.0
      %v3363 = vadd.f32 %v1349, 1.0
      %v3364 = vadd.f32 %v1389, 1.0
      %v3365 = vadd.f32 %v1429, 1.0
      %v3366 = vadd.f32 %v1469, 1.0
      %v3367 = vadd.f32 %v1509, 1.0
      %v3368 = vadd.f32 %v1549, 1.0
      %v3369 = vadd.f32 %v1589, 1.0
      %v3370 = vadd.f32 %v1629, 1.0
      %v3371 = vadd.f32 %v1669, 1.0
      %v3372 = vadd.f32 %v1709, 1.0
      %v3373 = vadd.f32 %v1749, 1.0
      %v3374 = vadd.f32 %v1789, 1.0
      %v3375 = vadd.f32 %v1829, 1.0
      %v3376 = vadd.f32 %v1869, 1.0
      %v3377 = vadd.f32 %v1909, 1.0
      %v3378 = vadd.f32 %v1949, 1.0
      %v3379 = vadd.f32 %v1989, 1.0
      %v3380 = vadd.f32 %v2029, 1.0
      %v3381 = vadd.f32 %v2069, 1.0
      %v3382 = vadd.f32 %v2109, 1.0
      %v3383 = vadd.f32 %v2149, 1.0
      %v3384 = vadd.f32 %v2189, 1.0
      %v3385 = vadd.f32 %v2229, 1.0
      %v3386 = vadd.f32 %v2269, 1.0
      %v3387 = vadd.f32 %v2309, 1.0
      %v3388 = vadd.f32 %v2349, 1.0
      %v3389 = vadd.f32 %v2389, 1.0
      %v3390 = vadd.f32 %v2429, 1.0
      %v3391 = vadd.f32 %v2469, 1.0
      %v3392 = vadd.f32 %v2509, 1.0
      %v3393 = vadd.f32 %v2549, 1.0
      %v3394 = vadd.f32 %v2589, 1.0
      %v3395 = vadd.f32 %v2629, 1.0
      %v3396 = vadd.f32 %v2669, 1.0
      %v3397 = vadd.f32 %v2709, 1.0
      %v3398 = vadd.f32 %v2749, 1.0
      %v3399 = vadd.f32 %v2789, 1.0
      %v3400 = vadd.f32 %v2829, 1.0
      %v3401 = vadd.f32 %v2869, 1.0
      %v3402 = vadd.f32 %v2909, 1.0
      %v3403 = vadd.f32 %v2949, 1.0
      %v3404 = vadd.f32 %v2989, 1.0
      %v3405 = vadd.f32 %v3029, 1.0
      %v3406 = vadd.f32 %v3069, 1.0
      %v3407 = vadd.f32 %v3109, 1.0
      %v3408 = vadd.f32 %v3149, 1.0
      %v3409 = vadd.f32 %v3189, 1.0
      %v3410 = vadd.f32 %v3229, 1.0
      %v3411 = vadd.f32 %v3269, 1.0
      %v3412 = vadd.f32 %v3309, 1.0
      %v3413 = vadd.f32 %v3349, 1.0
      %v3414 = vmul.f32 %v662, %v3350
      %v3415 = vmul.f32 %v663, %v3351
      %v3416 = vmul.f32 %v664, %v3352
      %v3417 = vmul.f32 %v665, %v3353
      %v3418 = vmul.f32 %v666, %v3354
      %v3419 = vmul.f32 %v667, %v3355
      %v3420 = vmul.f32 %v668, %v3356
      %v3421 = vmul.f32 %v669, %v3357
      %v3422 = vmul.f32 %v670, %v3358
      %v3423 = vmul.f32 %v671, %v3359
      %v3424 = vmul.f32 %v672, %v3360
      %v3425 = vmul.f32 %v673, %v3361
      %v3426 = vmul.f32 %v674, %v3362
      %v3427 = vmul.f32 %v675, %v3363
      %v3428 = vmul.f32 %v676, %v3364
      %v3429 = vmul.f32 %v677, %v3365
      %v3430 = vmul.f32 %v678, %v3366
      %v3431 = vmul.f32 %v679, %v3367
      %v3432 = vmul.f32 %v680, %v3368
      %v3433 = vmul.f32 %v681, %v3369
      %v3434 = vmul.f32 %v682, %v3370
      %v3435 = vmul.f32 %v683, %v3371
      %v3436 = vmul.f32 %v684, %v3372
      %v3437 = vmul.f32 %v685, %v3373
      %v3438 = vmul.f32 %v686, %v3374
      %v3439 = vmul.f32 %v687, %v3375
      %v3440 = vmul.f32 %v688, %v3376
      %v3441 = vmul.f32 %v689, %v3377
      %v3442 = vmul.f32 %v690, %v3378
      %v3443 = vmul.f32 %v691, %v3379
      %v3444 = vmul.f32 %v692, %v3380
      %v3445 = vmul.f32 %v693, %v3381
      %v3446 = vmul.f32 %v694, %v3382
      %v3447 = vmul.f32 %v695, %v3383
      %v3448 = vmul.f32 %v696, %v3384
      %v3449 = vmul.f32 %v697, %v3385
      %v3450 = vmul.f32 %v698, %v3386
      %v3451 = vmul.f32 %v699, %v3387
      %v3452 = vmul.f32 %v700, %v3388
      %v3453 = vmul.f32 %v701, %v3389
      %v3454 = vmul.f32 %v702, %v3390
      %v3455 = vmul.f32 %v703, %v3391
      %v3456 = vmul.f32 %v704, %v3392
      %v3457 = vmul.f32 %v705, %v3393
      %v3458 = vmul.f32 %v706, %v3394
      %v3459 = vmul.f32 %v707, %v3395
      %v3460 = vmul.f32 %v708, %v3396
      %v3461 = vmul.f32 %v709, %v3397
      %v3462 = vmul.f32 %v710, %v3398
      %v3463 = vmul.f32 %v711, %v3399
      %v3464 = vmul.f32 %v712, %v3400
      %v3465 = vmul.f32 %v713, %v3401
      %v3466 = vmul.f32 %v714, %v3402
      %v3467 = vmul.f32 %v715, %v3403
      %v3468 = vmul.f32 %v716, %v3404
      %v3469 = vmul.f32 %v717, %v3405
      %v3470 = vmul.f32 %v718, %v3406
      %v3471 = vmul.f32 %v719, %v3407
      %v3472 = vmul.f32 %v720, %v3408
      %v3473 = vmul.f32 %v721, %v3409
      %v3474 = vmul.f32 %v722, %v3410
      %v3475 = vmul.f32 %v723, %v3411
      %v3476 = vmul.f32 %v724, %v3412
      %v3477 = vmul.f32 %v725, %v3413
      %v3478 = vpack.c.bf16 %v3415, %v3414
      %v3479 = vpack.c.bf16 %v3417, %v3416
      %v3480 = vpack.c.bf16 %v3419, %v3418
      %v3481 = vpack.c.bf16 %v3421, %v3420
      %v3482 = vpack.c.bf16 %v3423, %v3422
      %v3483 = vpack.c.bf16 %v3425, %v3424
      %v3484 = vpack.c.bf16 %v3427, %v3426
      %v3485 = vpack.c.bf16 %v3429, %v3428
      %v3486 = vpack.c.bf16 %v3431, %v3430
      %v3487 = vpack.c.bf16 %v3433, %v3432
      %v3488 = vpack.c.bf16 %v3435, %v3434
      %v3489 = vpack.c.bf16 %v3437, %v3436
      %v3490 = vpack.c.bf16 %v3439, %v3438
      %v3491 = vpack.c.bf16 %v3441, %v3440
      %v3492 = vpack.c.bf16 %v3443, %v3442
      %v3493 = vpack.c.bf16 %v3445, %v3444
      %v3494 = vpack.c.bf16 %v3447, %v3446
      %v3495 = vpack.c.bf16 %v3449, %v3448
      %v3496 = vpack.c.bf16 %v3451, %v3450
      %v3497 = vpack.c.bf16 %v3453, %v3452
      %v3498 = vpack.c.bf16 %v3455, %v3454
      %v3499 = vpack.c.bf16 %v3457, %v3456
      %v3500 = vpack.c.bf16 %v3459, %v3458
      %v3501 = vpack.c.bf16 %v3461, %v3460
      %v3502 = vpack.c.bf16 %v3463, %v3462
      %v3503 = vpack.c.bf16 %v3465, %v3464
      %v3504 = vpack.c.bf16 %v3467, %v3466
      %v3505 = vpack.c.bf16 %v3469, %v3468
      %v3506 = vpack.c.bf16 %v3471, %v3470
      %v3507 = vpack.c.bf16 %v3473, %v3472
      %v3508 = vpack.c.bf16 %v3475, %v3474
      %v3509 = vpack.c.bf16 %v3477, %v3476
      %3510 = vst [vmem:[%s237] sm:$0xff] %v3478
      %3511 = vst [vmem:[%s237 + $0x8] sm:$0xff] %v3479
      %3512 = vst [vmem:[%s237 + $0x10] sm:$0xff] %v3480
      %3513 = vst [vmem:[%s237 + $0x18] sm:$0xff] %v3481
      %3514 = vst [vmem:[%s237 + $0x20] sm:$0xff] %v3482
      %3515 = vst [vmem:[%s237 + $0x28] sm:$0xff] %v3483
      %3516 = vst [vmem:[%s237 + $0x30] sm:$0xff] %v3484
      %3517 = vst [vmem:[%s237 + $0x38] sm:$0xff] %v3485
      %3518 = vst [vmem:[%s237 + $0x40] sm:$0xff] %v3486
      %3519 = vst [vmem:[%s237 + $0x48] sm:$0xff] %v3487
      %3520 = vst [vmem:[%s237 + $0x50] sm:$0xff] %v3488
      %3521 = vst [vmem:[%s237 + $0x58] sm:$0xff] %v3489
      %3522 = vst [vmem:[%s237 + $0x60] sm:$0xff] %v3490
      %3523 = vst [vmem:[%s237 + $0x68] sm:$0xff] %v3491
      %3524 = vst [vmem:[%s237 + $0x70] sm:$0xff] %v3492
      %3525 = vst [vmem:[%s237 + $0x78] sm:$0xff] %v3493
      %3526 = vst [vmem:[%s237 + $0x80] sm:$0xff] %v3494
      %3527 = vst [vmem:[%s237 + $0x88] sm:$0xff] %v3495
      %3528 = vst [vmem:[%s237 + $0x90] sm:$0xff] %v3496
      %3529 = vst [vmem:[%s237 + $0x98] sm:$0xff] %v3497
      %3530 = vst [vmem:[%s237 + $0xa0] sm:$0xff] %v3498
      %3531 = vst [vmem:[%s237 + $0xa8] sm:$0xff] %v3499
      %3532 = vst [vmem:[%s237 + $0xb0] sm:$0xff] %v3500
      %3533 = vst [vmem:[%s237 + $0xb8] sm:$0xff] %v3501
      %3534 = vst [vmem:[%s237 + $0xc0] sm:$0xff] %v3502
      %3535 = vst [vmem:[%s237 + $0xc8] sm:$0xff] %v3503
      %3536 = vst [vmem:[%s237 + $0xd0] sm:$0xff] %v3504
      %3537 = vst [vmem:[%s237 + $0xd8] sm:$0xff] %v3505
      %3538 = vst [vmem:[%s237 + $0xe0] sm:$0xff] %v3506
      %3539 = vst [vmem:[%s237 + $0xe8] sm:$0xff] %v3507
      %3540 = vst [vmem:[%s237 + $0xf0] sm:$0xff] %v3508
      %3541 = vst [vmem:[%s237 + $0xf8] sm:$0xff] %v3509
      %s3542 = smul.u32 16, %s18
      %s3543 = smul.u32 4, %s19
      %p3544 = scmp.lt.s32.totalorder %s3542, 31
      %s3545 = scalar_select %p3544, %s3542, 31
      %p3546 = scmp.lt.s32.totalorder %s3543, 3
      %s3547 = scalar_select %p3546, %s3543, 3
      %s3548 = smul.addr %s3545, 4
      %s3549 = sadd.s32 %s3547, %s3548
      %s3550 = smul.addr %s3549, 4
      %s3551 = scalar_lea.vmem %s3, %s3550
      // Predicated region
      $region33: #{_forward_impl.15} parent=31 // pred_check
        %p3552 = pneg %p124
      $region34: #{_forward_impl.15} parent=31 // pred_check_branch
        %3554 = sbr.rel (%p3552) target = $region36
      $region35: #{_forward_impl.15} parent=31 // pred_region
        %s3555 = smul.u32 16, %s18
        %s3556 = smul.u32 4, %s19
      $region36: #{_forward_impl.15} parent=31 // pred_fallthru
        _
    $region32: #{_forward_impl.15} parent=5 // pred_fallthru
      _
    %p3557 = scmp.le.s32.totalorder 2, %s9
    // Predicated region
    $region37: #{_forward_impl.15} parent=5 // pred_check
      %p3558 = pneg %p3557
    $region38: #{_forward_impl.15} parent=5 // pred_check_branch
      %3560 = sbr.rel (%p3558) target = $region40
    $region39: #{_forward_impl.15} parent=5 // pred_region
      %s3561 = ssub.s32 %s9, 2
      // Predicated region
      $region41: #{_forward_impl.15} parent=39 // pred_check
        %p3562 = pneg %p130
      $region42: #{_forward_impl.15} parent=39 // pred_check_branch
        %3564 = sbr.rel (%p3562) target = $region44
      $region43: #{_forward_impl.15} parent=39 // pred_region
        %s3565 = smul.u32 16, %s20
        %s3566 = smul.u32 4, %s21
        %p3567 = scmp.lt.s32.totalorder %s3565, 31
        %s3568 = scalar_select %p3567, %s3565, 31
        %p3569 = scmp.lt.s32.totalorder %s3566, 3
        %s3570 = scalar_select %p3569, %s3566, 3
        %s3571 = smul.addr %s3568, 4
        %s3572 = sadd.s32 %s3570, %s3571
        %s3573 = smul.addr %s3572, 4
        %s3574 = scalar_lea.vmem %s3, %s3573
      $region44: #{_forward_impl.15} parent=39 // pred_fallthru
        _
    $region40: #{_forward_impl.15} parent=5 // pred_fallthru
      _
  $region6: #{_forward_impl.15} parent=0 // loop_footer
    %s13 = sadd.s32 1, %s9
  $region7: #{_forward_impl.15} parent=0 // loop_footer_branch
    %8 = sbr.rel target = $region3
  $region8: #{_forward_impl.15} parent=0 // loop_exit
    _

// kernel: _forward_impl.16
$region0: #{_forward_impl.16}
  #allocation0 [shape = 'u32[]', space=smem, size = 0x4, offset = 0x4, fixed_abs, tag = 'smem constant byte address 0x4 - core index']
  #allocation1 [shape = 'u32[72,128]{1,0:T(1,128)}', space=vmem, size = 0x9000, scoped, tag = 'internal scratch']
  #allocation2 [shape = 'f32[128,128]{1,0:T(8,128)}', space=vmem, size = 0x10000, scoped, tag = 'scratch operand']
  %s0 = inlined_call_operand.vmem [shape: bf16[256,512], index: 0, kind: input, shape index: {}]
  %s1 = inlined_call_operand.vmem [shape: bf16[512,128], index: 1, kind: input, shape index: {}]
  %s2 = inlined_call_operand.vmem [shape: f32[1,128], index: 2, kind: input, shape index: {}]
  %s3 = inlined_call_operand.vmem [shape: f32[256,128], index: 3, kind: input, shape index: {}]
  %s4 = inlined_call_operand.vmem [shape: f32[1,128], index: 4, kind: input, shape index: {}]
  %s5 = inlined_call_operand.vmem [shape: f32[1,128], index: 5, kind: input, shape index: {}]
  %s6 = inlined_call_operand.vmem [shape: f32[256,128], index: 6, kind: output, shape index: {}]
  %s7 = sld [smem:[#allocation0]]
  $region103: #{_forward_impl.16} parent=0
    _
  %s9 = ssub.s32 1, %s7
  %s10 = scalar_select 0, %s9, %s7
  $region1: #{_forward_impl.16} parent=0
    #allocation3 [shape = 'u8[131072]{0}', space=vmem, size = 0x20000, scoped, tag = 'input window, operand 0']
    loop: start=0, step=1, limit=6
    $region2: #{_forward_impl.16} parent=1 // loop_pre_header
      _
    $region3: #{_forward_impl.16} parent=1 // loop_header
      %s12 = sphi 0, %s16
      %p13 = scmp.ge.s32.totalorder %s12, 6
      %s19 = sphi 0, %s31
      %s20 = sphi 0, %s27
      %s21 = sphi 0, %s19
      %s22 = sphi 0, %s20
      %s23 = sphi 0, %s21
      %s24 = sphi 0, %s22
      %s36 = sphi 0, %s38
      %s39 = sphi 0, %s36
      %s40 = sphi 0, %s39
      %s56 = sphi 0, %s40
      %s62 = sphi 0, %s64
      %s65 = sphi 0, %s62
      %s66 = sphi 0, %s65
      %s82 = sphi 0, %s66
      %s86 = sphi 0, %s86
      %s88 = sphi 0, %s86
      %s89 = sphi 0, %s88
      %s103 = sphi 0, %s89
      %s109 = sphi 0, %s111
      %s112 = sphi 0, %s109
      %s113 = sphi 0, %s112
      %s129 = sphi 0, %s113
      %s133 = sphi 0, %s133
      %s135 = sphi 0, %s133
      %s136 = sphi 0, %s135
      %s150 = sphi 0, %s136
      %s154 = sphi 0, %s154
      %s156 = sphi 0, %s154
      %s157 = sphi 0, %s156
      %s171 = sphi 0, %s157
      %s177 = sphi 0, %s179
      %s180 = sphi 0, %s177
      %s181 = sphi 0, %s180
      %s197 = sphi 0, %s181
    $region4: #{_forward_impl.16} parent=1 // loop_header_branch
      %15 = sbr.rel (%p13) target = $region8
    $region5: #{_forward_impl.16} parent=1 // loop_body
      %s17 = ssub.s32 %s12, 1
      %s18 = ssub.s32 %s12, 2
      %s25 = sadd.s32 1, %s20
      %p26 = scmp.ge.s32.totalorder %s25, 2
      %s27 = scalar_select %p26, 0, %s25
      %s28 = sadd.s32 1, %s19
      %s29 = scalar_select %p26, %s28, %s19
      %p30 = scmp.ge.s32.totalorder %s29, 2
      %s31 = scalar_select %p30, 0, %s29
      %s32 = ssub.s32 %s19, %s31
      %s33 = ssub.s32 %s20, %s27
      %s34 = sor.u32 %s32, %s33
      %p35 = scmp.eq.s32.totalorder %s34, 0
      %s37 = sadd.s32 %s36, 1
      %s38 = scalar_select %p35, %s36, %s37
      %p41 = pneg %p35
      %p42 = scmp.eq.s32.totalorder %s12, 3
      %p43 = por %p41, %p42
      %p44 = scmp.ne.s32.totalorder %s36, %s39
      %p45 = scmp.eq.s32.totalorder %s12, 0
      %p46 = por %p44, %p45
      %p47 = scmp.ne.s32.totalorder %s36, %s39
      %p48 = scmp.eq.s32.totalorder %s17, 3
      %p49 = por %p47, %p48
      %p50 = scmp.ne.s32.totalorder %s39, %s40
      %p51 = scmp.eq.s32.totalorder %s17, 0
      %p52 = por %p50, %p51
      %p53 = scmp.ne.s32.totalorder %s39, %s40
      %p54 = scmp.eq.s32.totalorder %s18, 3
      %p55 = por %p53, %p54
      %p57 = scmp.ne.s32.totalorder %s40, %s56
      %p58 = scmp.eq.s32.totalorder %s18, 0
      %p59 = por %p57, %p58
      %s60 = ssub.s32 %s20, %s27
      %p61 = scmp.eq.s32.totalorder %s60, 0
      %s63 = sadd.s32 %s62, 1
      %s64 = scalar_select %p61, %s62, %s63
      %p67 = pneg %p61
      %p68 = scmp.eq.s32.totalorder %s12, 3
      %p69 = por %p67, %p68
      %p70 = scmp.ne.s32.totalorder %s62, %s65
      %p71 = scmp.eq.s32.totalorder %s12, 0
      %p72 = por %p70, %p71
      %p73 = scmp.ne.s32.totalorder %s62, %s65
      %p74 = scmp.eq.s32.totalorder %s17, 3
      %p75 = por %p73, %p74
      %p76 = scmp.ne.s32.totalorder %s65, %s66
      %p77 = scmp.eq.s32.totalorder %s17, 0
      %p78 = por %p76, %p77
      %p79 = scmp.ne.s32.totalorder %s65, %s66
      %p80 = scmp.eq.s32.totalorder %s18, 3
      %p81 = por %p79, %p80
      %p83 = scmp.ne.s32.totalorder %s66, %s82
      %p84 = scmp.eq.s32.totalorder %s18, 0
      %p85 = por %p83, %p84
      %s87 = sadd.s32 %s86, 1
      %p90 = scmp.eq.s32.totalorder %s12, 3
      %p91 = scmp.ne.s32.totalorder %s86, %s88
      %p92 = scmp.eq.s32.totalorder %s12, 0
      %p93 = por %p91, %p92
      %p94 = scmp.ne.s32.totalorder %s86, %s88
      %p95 = scmp.eq.s32.totalorder %s17, 3
      %p96 = por %p94, %p95
      %p97 = scmp.ne.s32.totalorder %s88, %s89
      %p98 = scmp.eq.s32.totalorder %s17, 0
      %p99 = por %p97, %p98
      %p100 = scmp.ne.s32.totalorder %s88, %s89
      %p101 = scmp.eq.s32.totalorder %s18, 3
      %p102 = por %p100, %p101
      %p104 = scmp.ne.s32.totalorder %s89, %s103
      %p105 = scmp.eq.s32.totalorder %s18, 0
      %p106 = por %p104, %p105
      %s107 = ssub.s32 %s19, %s31
      %p108 = scmp.eq.s32.totalorder %s107, 0
      %s110 = sadd.s32 %s109, 1
      %s111 = scalar_select %p108, %s109, %s110
      %p114 = pneg %p108
      %p115 = scmp.eq.s32.totalorder %s12, 3
      %p116 = por %p114, %p115
      %p117 = scmp.ne.s32.totalorder %s109, %s112
      %p118 = scmp.eq.s32.totalorder %s12, 0
      %p119 = por %p117, %p118
      %p120 = scmp.ne.s32.totalorder %s109, %s112
      %p121 = scmp.eq.s32.totalorder %s17, 3
      %p122 = por %p120, %p121
      %p123 = scmp.ne.s32.totalorder %s112, %s113
      %p124 = scmp.eq.s32.totalorder %s17, 0
      %p125 = por %p123, %p124
      %p126 = scmp.ne.s32.totalorder %s112, %s113
      %p127 = scmp.eq.s32.totalorder %s18, 3
      %p128 = por %p126, %p127
      %p130 = scmp.ne.s32.totalorder %s113, %s129
      %p131 = scmp.eq.s32.totalorder %s18, 0
      %p132 = por %p130, %p131
      %s134 = sadd.s32 %s133, 1
      %p137 = scmp.eq.s32.totalorder %s12, 3
      %p138 = scmp.ne.s32.totalorder %s133, %s135
      %p139 = scmp.eq.s32.totalorder %s12, 0
      %p140 = por %p138, %p139
      %p141 = scmp.ne.s32.totalorder %s133, %s135
      %p142 = scmp.eq.s32.totalorder %s17, 3
      %p143 = por %p141, %p142
      %p144 = scmp.ne.s32.totalorder %s135, %s136
      %p145 = scmp.eq.s32.totalorder %s17, 0
      %p146 = por %p144, %p145
      %p147 = scmp.ne.s32.totalorder %s135, %s136
      %p148 = scmp.eq.s32.totalorder %s18, 3
      %p149 = por %p147, %p148
      %p151 = scmp.ne.s32.totalorder %s136, %s150
      %p152 = scmp.eq.s32.totalorder %s18, 0
      %p153 = por %p151, %p152
      %s155 = sadd.s32 %s154, 1
      %p158 = scmp.eq.s32.totalorder %s12, 3
      %p159 = scmp.ne.s32.totalorder %s154, %s156
      %p160 = scmp.eq.s32.totalorder %s12, 0
      %p161 = por %p159, %p160
      %p162 = scmp.ne.s32.totalorder %s154, %s156
      %p163 = scmp.eq.s32.totalorder %s17, 3
      %p164 = por %p162, %p163
      %p165 = scmp.ne.s32.totalorder %s156, %s157
      %p166 = scmp.eq.s32.totalorder %s17, 0
      %p167 = por %p165, %p166
      %p168 = scmp.ne.s32.totalorder %s156, %s157
      %p169 = scmp.eq.s32.totalorder %s18, 3
      %p170 = por %p168, %p169
      %p172 = scmp.ne.s32.totalorder %s157, %s171
      %p173 = scmp.eq.s32.totalorder %s18, 0
      %p174 = por %p172, %p173
      %s175 = ssub.s32 %s19, %s31
      %p176 = scmp.eq.s32.totalorder %s175, 0
      %s178 = sadd.s32 %s177, 1
      %s179 = scalar_select %p176, %s177, %s178
      %p182 = pneg %p176
      %p183 = scmp.eq.s32.totalorder %s12, 3
      %p184 = por %p182, %p183
      %p185 = scmp.ne.s32.totalorder %s177, %s180
      %p186 = scmp.eq.s32.totalorder %s12, 0
      %p187 = por %p185, %p186
      %p188 = scmp.ne.s32.totalorder %s177, %s180
      %p189 = scmp.eq.s32.totalorder %s17, 3
      %p190 = por %p188, %p189
      %p191 = scmp.ne.s32.totalorder %s180, %s181
      %p192 = scmp.eq.s32.totalorder %s17, 0
      %p193 = por %p191, %p192
      %p194 = scmp.ne.s32.totalorder %s180, %s181
      %p195 = scmp.eq.s32.totalorder %s18, 3
      %p196 = por %p194, %p195
      %p198 = scmp.ne.s32.totalorder %s181, %s197
      %p199 = scmp.eq.s32.totalorder %s18, 0
      %p200 = por %p198, %p199
      %p201 = scmp.le.s32.totalorder 1, %s12
      %p202 = scmp.lt.s32.totalorder %s12, 5
      %p203 = pnand %p201, %p202
      %p204 = pneg %p203
      // Predicated region
      $region9: #{_forward_impl.16} parent=5 // pred_check
        _
      $region10: #{_forward_impl.16} parent=5 // pred_check_branch
        %206 = sbr.rel (%p203) target = $region12
      $region11: #{_forward_impl.16} parent=5 // pred_region
        %s207 = ssub.s32 %s12, 1
        // Predicated region
        $region13: #{_forward_impl.16} parent=11 // pred_check
          %p208 = pneg %p99
        $region14: #{_forward_impl.16} parent=11 // pred_check_branch
          %210 = sbr.rel (%p208) target = $region16
        $region15: #{_forward_impl.16} parent=11 // pred_region
          _
        $region16: #{_forward_impl.16} parent=11 // pred_fallthru
          _
        // Predicated region
        $region17: #{_forward_impl.16} parent=11 // pred_check
          %p211 = pneg %p146
        $region18: #{_forward_impl.16} parent=11 // pred_check_branch
          %213 = sbr.rel (%p211) target = $region20
        $region19: #{_forward_impl.16} parent=11 // pred_region
          _
        $region20: #{_forward_impl.16} parent=11 // pred_fallthru
          _
        // Predicated region
        $region21: #{_forward_impl.16} parent=11 // pred_check
          %p214 = pneg %p167
        $region22: #{_forward_impl.16} parent=11 // pred_check_branch
          %216 = sbr.rel (%p214) target = $region24
        $region23: #{_forward_impl.16} parent=11 // pred_region
          _
        $region24: #{_forward_impl.16} parent=11 // pred_fallthru
          _
      $region12: #{_forward_impl.16} parent=5 // pred_fallthru
        _
      %p217 = scmp.lt.s32.totalorder %s12, 4
      // Predicated region
      $region25: #{_forward_impl.16} parent=5 // pred_check
        %p218 = pneg %p217
      $region26: #{_forward_impl.16} parent=5 // pred_check_branch
        %220 = sbr.rel (%p218) target = $region28
      $region27: #{_forward_impl.16} parent=5 // pred_region
        // Predicated region
        $region29: #{_forward_impl.16} parent=27 // pred_check
          %p221 = pneg %p46
        $region30: #{_forward_impl.16} parent=27 // pred_check_branch
          %223 = sbr.rel (%p221) target = $region32
        $region31: #{_forward_impl.16} parent=27 // pred_region
          %s224 = sand.u32 %s36, 1
          %s225 = sand.u32 %s36, 1
          %s226 = smul.addr %s225, 128
          %s227 = scalar_lea.vmem [#allocation3], %s226
          %s228 = smul.u32 16, %s19
          %s229 = smul.u32 2, %s20
          %s230 = smul.addr %s228, 4
          %s231 = sadd.s32 %s229, %s230
          %s232 = smul.addr %s231, 4
          %s233 = scalar_lea.vmem %s0, %s232
          // Predicated region
          $region33: #{_forward_impl.16} parent=31 // pred_check
            _
          $region34: #{_forward_impl.16} parent=31 // pred_check_branch
            %235 = sbr.rel (0) target = $region36
          $region35: #{_forward_impl.16} parent=31 // pred_region
            // Predicated region
            $region37: #{_forward_impl.16} parent=35 // pred_check
              _
            $region38: #{_forward_impl.16} parent=35 // pred_check_branch
              %237 = sbr.rel (0) target = $region40
            $region39: #{_forward_impl.16} parent=35 // pred_region
              // Predicated region
              $region52: #{_forward_impl.16} parent=39 // pred_check
                _
              $region53: #{_forward_impl.16} parent=39 // pred_check_branch
                %283 = sbr.rel (0) target = $region55
              $region54: #{_forward_impl.16} parent=39 // pred_region
                loop: start=0, step=1, limit=1
                $region56: #{_forward_impl.16} parent=54 // loop_pre_header
                  _
                $region57: #{_forward_impl.16} parent=54 // loop_header
                  %s285 = sphi 0, %s289
                  %p286 = scmp.ge.s32.totalorder %s285, 1
                  %s290 = sphi %s233, %s233
                  %s291 = sphi %s227, %s227
                $region58: #{_forward_impl.16} parent=54 // loop_header_branch
                  %288 = sbr.rel (%p286) target = $region62
                $region59: #{_forward_impl.16} parent=54 // loop_body
                  %v292 = vld [vmem:[%s290] sm:$0xff]
                  %293 = vst [vmem:[%s291] sm:$0xff] %v292
                  %v294 = vld [vmem:[%s290 + $0x10] sm:$0xff]
                  %295 = vst [vmem:[%s291 + $0x8] sm:$0xff] %v294
                  %v296 = vld [vmem:[%s290 + $0x20] sm:$0xff]
                  %297 = vst [vmem:[%s291 + $0x10] sm:$0xff] %v296
                  %v298 = vld [vmem:[%s290 + $0x30] sm:$0xff]
                  %299 = vst [vmem:[%s291 + $0x18] sm:$0xff] %v298
                  %v300 = vld [vmem:[%s290 + $0x40] sm:$0xff]
                  %301 = vst [vmem:[%s291 + $0x20] sm:$0xff] %v300
                  %v302 = vld [vmem:[%s290 + $0x50] sm:$0xff]
                  %303 = vst [vmem:[%s291 + $0x28] sm:$0xff] %v302
                  %v304 = vld [vmem:[%s290 + $0x60] sm:$0xff]
                  %305 = vst [vmem:[%s291 + $0x30] sm:$0xff] %v304
                  %v306 = vld [vmem:[%s290 + $0x70] sm:$0xff]
                  %307 = vst [vmem:[%s291 + $0x38] sm:$0xff] %v306
                  %v308 = vld [vmem:[%s290 + $0x80] sm:$0xff]
                  %309 = vst [vmem:[%s291 + $0x40] sm:$0xff] %v308
                  %v310 = vld [vmem:[%s290 + $0x90] sm:$0xff]
                  %311 = vst [vmem:[%s291 + $0x48] sm:$0xff] %v310
                  %v312 = vld [vmem:[%s290 + $0xa0] sm:$0xff]
                  %313 = vst [vmem:[%s291 + $0x50] sm:$0xff] %v312
                  %v314 = vld [vmem:[%s290 + $0xb0] sm:$0xff]
                  %315 = vst [vmem:[%s291 + $0x58] sm:$0xff] %v314
                  %v316 = vld [vmem:[%s290 + $0xc0] sm:$0xff]
                  %317 = vst [vmem:[%s291 + $0x60] sm:$0xff] %v316
                  %v318 = vld [vmem:[%s290 + $0xd0] sm:$0xff]
                  %319 = vst [vmem:[%s291 + $0x68] sm:$0xff] %v318
                  %v320 = vld [vmem:[%s290 + $0xe0] sm:$0xff]
                  %321 = vst [vmem:[%s291 + $0x70] sm:$0xff] %v320
                  %v322 = vld [vmem:[%s290 + $0xf0] sm:$0xff]
                  %323 = vst [vmem:[%s291 + $0x78] sm:$0xff] %v322
                $region60: #{_forward_impl.16} parent=54 // loop_footer
                  %s289 = sadd.s32 1, %s285
                $region61: #{_forward_impl.16} parent=54 // loop_footer_branch
                  %284 = sbr.rel target = $region57
                $region62: #{_forward_impl.16} parent=54 // loop_exit
                  _
              $region55: #{_forward_impl.16} parent=39 // pred_fallthru
                _
              // Predicated region
              $region63: #{_forward_impl.16} parent=39 // pred_check
                _
              $region64: #{_forward_impl.16} parent=39 // pred_check_branch
                %325 = sbr.rel target = $region66
              $region65: #{_forward_impl.16} parent=39 // pred_region
                _
              $region66: #{_forward_impl.16} parent=39 // pred_fallthru
                _
            $region40: #{_forward_impl.16} parent=35 // pred_fallthru
              _
            // Predicated region
            $region41: #{_forward_impl.16} parent=35 // pred_check
              _
            $region42: #{_forward_impl.16} parent=35 // pred_check_branch
              %239 = sbr.rel target = $region44
            $region43: #{_forward_impl.16} parent=35 // pred_region
              %s241 = ssub.s32 256, 1
              loop: start=0, step=1, limit=1
              $region45: #{_forward_impl.16} parent=43 // loop_pre_header
                _
              $region46: #{_forward_impl.16} parent=43 // loop_header
                %s243 = sphi 0, %s247
                %p244 = scmp.ge.s32.totalorder %s243, 1
                %s248 = sphi %s233, %s233
                %s249 = sphi %s227, %s227
              $region47: #{_forward_impl.16} parent=43 // loop_header_branch
                %246 = sbr.rel (%p244) target = $region51
              $region48: #{_forward_impl.16} parent=43 // loop_body
                %v250 = vld [vmem:[%s248] sm:%s241]
                %251 = vst [vmem:[%s249] sm:%s241] %v250
                %v252 = vld [vmem:[%s248 + $0x10] sm:%s241]
                %253 = vst [vmem:[%s249 + $0x8] sm:%s241] %v252
                %v254 = vld [vmem:[%s248 + $0x20] sm:%s241]
                %255 = vst [vmem:[%s249 + $0x10] sm:%s241] %v254
                %v256 = vld [vmem:[%s248 + $0x30] sm:%s241]
                %257 = vst [vmem:[%s249 + $0x18] sm:%s241] %v256
                %v258 = vld [vmem:[%s248 + $0x40] sm:%s241]
                %259 = vst [vmem:[%s249 + $0x20] sm:%s241] %v258
                %v260 = vld [vmem:[%s248 + $0x50] sm:%s241]
                %261 = vst [vmem:[%s249 + $0x28] sm:%s241] %v260
                %v262 = vld [vmem:[%s248 + $0x60] sm:%s241]
                %263 = vst [vmem:[%s249 + $0x30] sm:%s241] %v262
                %v264 = vld [vmem:[%s248 + $0x70] sm:%s241]
                %265 = vst [vmem:[%s249 + $0x38] sm:%s241] %v264
                %v266 = vld [vmem:[%s248 + $0x80] sm:%s241]
                %267 = vst [vmem:[%s249 + $0x40] sm:%s241] %v266
                %v268 = vld [vmem:[%s248 + $0x90] sm:%s241]
                %269 = vst [vmem:[%s249 + $0x48] sm:%s241] %v268
                %v270 = vld [vmem:[%s248 + $0xa0] sm:%s241]
                %271 = vst [vmem:[%s249 + $0x50] sm:%s241] %v270
                %v272 = vld [vmem:[%s248 + $0xb0] sm:%s241]
                %273 = vst [vmem:[%s249 + $0x58] sm:%s241] %v272
                %v274 = vld [vmem:[%s248 + $0xc0] sm:%s241]
                %275 = vst [vmem:[%s249 + $0x60] sm:%s241] %v274
                %v276 = vld [vmem:[%s248 + $0xd0] sm:%s241]
                %277 = vst [vmem:[%s249 + $0x68] sm:%s241] %v276
                %v278 = vld [vmem:[%s248 + $0xe0] sm:%s241]
                %279 = vst [vmem:[%s249 + $0x70] sm:%s241] %v278
                %v280 = vld [vmem:[%s248 + $0xf0] sm:%s241]
                %281 = vst [vmem:[%s249 + $0x78] sm:%s241] %v280
              $region49: #{_forward_impl.16} parent=43 // loop_footer
                %s247 = sadd.s32 1, %s243
              $region50: #{_forward_impl.16} parent=43 // loop_footer_branch
                %242 = sbr.rel target = $region46
              $region51: #{_forward_impl.16} parent=43 // loop_exit
                _
            $region44: #{_forward_impl.16} parent=35 // pred_fallthru
              _
          $region36: #{_forward_impl.16} parent=31 // pred_fallthru
            _
          %326 = vnop
        $region32: #{_forward_impl.16} parent=27 // pred_fallthru
          _
        // Predicated region
        $region67: #{_forward_impl.16} parent=27 // pred_check
          %p327 = pneg %p72
        $region68: #{_forward_impl.16} parent=27 // pred_check_branch
          %329 = sbr.rel (%p327) target = $region70
        $region69: #{_forward_impl.16} parent=27 // pred_region
          %s330 = smul.u32 32, %s20
          %p331 = scmp.lt.s32.totalorder %s330, 63
          %s332 = scalar_select %p331, %s330, 63
          %s333 = smul.addr %s332, 4
          %s334 = scalar_lea.vmem %s1, %s333
          %s335 = smul.u32 32, %s20
        $region70: #{_forward_impl.16} parent=27 // pred_fallthru
          _
        // Predicated region
        $region71: #{_forward_impl.16} parent=27 // pred_check
          %p336 = pneg %p119
        $region72: #{_forward_impl.16} parent=27 // pred_check_branch
          %338 = sbr.rel (%p336) target = $region74
        $region73: #{_forward_impl.16} parent=27 // pred_region
          %s339 = smul.u32 16, %s19
          %p340 = scmp.lt.s32.totalorder %s339, 31
          %s341 = scalar_select %p340, %s339, 31
          %s342 = smul.addr %s341, 8
          %s343 = scalar_lea.vmem %s3, %s342
          %s344 = smul.u32 16, %s19
        $region74: #{_forward_impl.16} parent=27 // pred_fallthru
          _
      $region28: #{_forward_impl.16} parent=5 // pred_fallthru
        _
      %p345 = scmp.le.s32.totalorder 1, %s12
      %p346 = scmp.lt.s32.totalorder %s12, 5
      %p347 = pnand %p345, %p346
      %p348 = pneg %p347
      // Predicated region
      $region75: #{_forward_impl.16} parent=5 // pred_check
        _
      $region76: #{_forward_impl.16} parent=5 // pred_check_branch
        %350 = sbr.rel (%p347) target = $region78
      $region77: #{_forward_impl.16} parent=5 // pred_region
        %s351 = ssub.s32 %s12, 1
        %s352 = sand.u32 %s39, 1
        %s353 = sand.u32 %s39, 1
        %s354 = smul.addr %s353, 128
        %s355 = scalar_lea.vmem [#allocation3], %s354
        // Predicated region
        $region79: #{_forward_impl.16} parent=77 // pred_check
          %p356 = pneg %p52
        $region80: #{_forward_impl.16} parent=77 // pred_check_branch
          %358 = sbr.rel (%p356) target = $region82
        $region81: #{_forward_impl.16} parent=77 // pred_region
          _
        $region82: #{_forward_impl.16} parent=77 // pred_fallthru
          _
        %s359 = sand.u32 %s39, 1
        %s360 = sand.u32 %s39, 1
        %s361 = smul.addr %s360, 128
        %s362 = scalar_lea.vmem [#allocation3], %s361
        %p363 = pneg %p52
        %p364 = pneg %p49
        %s365 = smul.u32 32, %s22
        %p366 = scmp.lt.s32.totalorder %s365, 63
        %s367 = scalar_select %p366, %s365, 63
        %s368 = smul.addr %s367, 4
        %s369 = scalar_lea.vmem %s1, %s368
        %p370 = pneg %p78
        %p371 = pneg %p75
        %p372 = pneg %p99
        %p373 = pneg %p96
        %s374 = smul.u32 16, %s21
        %p375 = scmp.lt.s32.totalorder %s374, 31
        %s376 = scalar_select %p375, %s374, 31
        %s377 = smul.addr %s376, 8
        %s378 = scalar_lea.vmem %s3, %s377
        %p379 = pneg %p125
        %p380 = pneg %p122
        %p381 = pneg %p146
        %p382 = pneg %p143
        %p383 = pneg %p167
        %p384 = pneg %p164
        %p385 = pneg %p193
        %p386 = pneg %p190
        %s387 = smul.u32 16, %s21
        %p388 = scmp.lt.s32.totalorder %s387, 31
        %s389 = scalar_select %p388, %s387, 31
        %s390 = smul.addr %s389, 8
        %s391 = scalar_lea.vmem %s6, %s390
        %s392 = smul.u32 16, %s21
        %s393 = smul.u32 2, %s22
        %s394 = smul.u32 32, %s22
        %p395 = scmp.lt.s32.totalorder %s394, 63
        %s396 = scalar_select %p395, %s394, 63
        %s397 = smul.addr %s396, 4
        %s398 = scalar_lea.vmem %s1, %s397
        %s399 = smul.u32 32, %s22
        %s400 = smul.u32 16, %s21
        %p401 = scmp.lt.s32.totalorder %s400, 31
        %s402 = scalar_select %p401, %s400, 31
        %s403 = smul.addr %s402, 8
        %s404 = scalar_lea.vmem %s3, %s403
        %s405 = smul.u32 16, %s21
        %s406 = smul.u32 16, %s21
        %p407 = scmp.lt.s32.totalorder %s406, 31
        %s408 = scalar_select %p407, %s406, 31
        %s409 = smul.addr %s408, 8
        %s410 = scalar_lea.vmem %s6, %s409
        %s411 = smul.u32 16, %s21
        %p412 = scmp.eq.s32.totalorder %s22, 0
        // Predicated region
        $region83: #{_forward_impl.16} parent=77 // pred_check
          %p413 = pneg %p412
        $region84: #{_forward_impl.16} parent=77 // pred_check_branch
          %415 = sbr.rel (%p413) target = $region86
        $region85: #{_forward_impl.16} parent=77 // pred_region
          %416 = vst [vmem:[#allocation2] sm:$0xff] 0.0
          %417 = vst [vmem:[#allocation2 + $0x8] sm:$0xff] 0.0
          %418 = vst [vmem:[#allocation2 + $0x10] sm:$0xff] 0.0
          %419 = vst [vmem:[#allocation2 + $0x18] sm:$0xff] 0.0
          %420 = vst [vmem:[#allocation2 + $0x20] sm:$0xff] 0.0
          %421 = vst [vmem:[#allocation2 + $0x28] sm:$0xff] 0.0
          %422 = vst [vmem:[#allocation2 + $0x30] sm:$0xff] 0.0
          %423 = vst [vmem:[#allocation2 + $0x38] sm:$0xff] 0.0
          %424 = vst [vmem:[#allocation2 + $0x40] sm:$0xff] 0.0
          %425 = vst [vmem:[#allocation2 + $0x48] sm:$0xff] 0.0
          %426 = vst [vmem:[#allocation2 + $0x50] sm:$0xff] 0.0
          %427 = vst [vmem:[#allocation2 + $0x58] sm:$0xff] 0.0
          %428 = vst [vmem:[#allocation2 + $0x60] sm:$0xff] 0.0
          %429 = vst [vmem:[#allocation2 + $0x68] sm:$0xff] 0.0
          %430 = vst [vmem:[#allocation2 + $0x70] sm:$0xff] 0.0
          %431 = vst [vmem:[#allocation2 + $0x78] sm:$0xff] 0.0
        $region86: #{_forward_impl.16} parent=77 // pred_fallthru
          _
        %v432 = vld [vmem:[#allocation2] sm:$0xff]
        %v433 = vld [vmem:[#allocation2 + $0x8] sm:$0xff]
        %v434 = vld [vmem:[#allocation2 + $0x10] sm:$0xff]
        %v435 = vld [vmem:[#allocation2 + $0x18] sm:$0xff]
        %v436 = vld [vmem:[#allocation2 + $0x20] sm:$0xff]
        %v437 = vld [vmem:[#allocation2 + $0x28] sm:$0xff]
        %v438 = vld [vmem:[#allocation2 + $0x30] sm:$0xff]
        %v439 = vld [vmem:[#allocation2 + $0x38] sm:$0xff]
        %v440 = vld [vmem:[#allocation2 + $0x40] sm:$0xff]
        %v441 = vld [vmem:[#allocation2 + $0x48] sm:$0xff]
        %v442 = vld [vmem:[#allocation2 + $0x50] sm:$0xff]
        %v443 = vld [vmem:[#allocation2 + $0x58] sm:$0xff]
        %v444 = vld [vmem:[#allocation2 + $0x60] sm:$0xff]
        %v445 = vld [vmem:[#allocation2 + $0x68] sm:$0xff]
        %v446 = vld [vmem:[#allocation2 + $0x70] sm:$0xff]
        %v447 = vld [vmem:[#allocation2 + $0x78] sm:$0xff]
        %v448 = vld [vmem:[%s355] sm:$0xff]
        %v449 = vld [vmem:[%s355 + $0x8] sm:$0xff]
        %v450 = vld [vmem:[%s355 + $0x10] sm:$0xff]
        %v451 = vld [vmem:[%s355 + $0x18] sm:$0xff]
        %v452 = vld [vmem:[%s355 + $0x20] sm:$0xff]
        %v453 = vld [vmem:[%s355 + $0x28] sm:$0xff]
        %v454 = vld [vmem:[%s355 + $0x30] sm:$0xff]
        %v455 = vld [vmem:[%s355 + $0x38] sm:$0xff]
        %v456 = vld [vmem:[%s355 + $0x40] sm:$0xff]
        %v457 = vld [vmem:[%s355 + $0x48] sm:$0xff]
        %v458 = vld [vmem:[%s355 + $0x50] sm:$0xff]
        %v459 = vld [vmem:[%s355 + $0x58] sm:$0xff]
        %v460 = vld [vmem:[%s355 + $0x60] sm:$0xff]
        %v461 = vld [vmem:[%s355 + $0x68] sm:$0xff]
        %v462 = vld [vmem:[%s355 + $0x70] sm:$0xff]
        %v463 = vld [vmem:[%s355 + $0x78] sm:$0xff]
        %v464 = vld [vmem:[%s398] sm:$0xf]
        %v465 = vld [vmem:[%s398 + $0x4] sm:$0xf]
        %v466 = vld [vmem:[%s398 + $0x8] sm:$0xf]
        %v467 = vld [vmem:[%s398 + $0xc] sm:$0xf]
        %v468 = vld [vmem:[%s398 + $0x10] sm:$0xf]
        %v469 = vld [vmem:[%s398 + $0x14] sm:$0xf]
        %v470 = vld [vmem:[%s398 + $0x18] sm:$0xf]
        %v471 = vld [vmem:[%s398 + $0x1c] sm:$0xf]
        %v472 = vld [vmem:[%s398 + $0x20] sm:$0xf]
        %v473 = vld [vmem:[%s398 + $0x24] sm:$0xf]
        %v474 = vld [vmem:[%s398 + $0x28] sm:$0xf]
        %v475 = vld [vmem:[%s398 + $0x2c] sm:$0xf]
        %v476 = vld [vmem:[%s398 + $0x30] sm:$0xf]
        %v477 = vld [vmem:[%s398 + $0x34] sm:$0xf]
        %v478 = vld [vmem:[%s398 + $0x38] sm:$0xf]
        %v479 = vld [vmem:[%s398 + $0x3c] sm:$0xf]
        %v480 = vld [vmem:[%s398 + $0x40] sm:$0xf]
        %v481 = vld [vmem:[%s398 + $0x44] sm:$0xf]
        %v482 = vld [vmem:[%s398 + $0x48] sm:$0xf]
        %v483 = vld [vmem:[%s398 + $0x4c] sm:$0xf]
        %v484 = vld [vmem:[%s398 + $0x50] sm:$0xf]
        %v485 = vld [vmem:[%s398 + $0x54] sm:$0xf]
        %v486 = vld [vmem:[%s398 + $0x58] sm:$0xf]
        %v487 = vld [vmem:[%s398 + $0x5c] sm:$0xf]
        %v488 = vld [vmem:[%s398 + $0x60] sm:$0xf]
        %v489 = vld [vmem:[%s398 + $0x64] sm:$0xf]
        %v490 = vld [vmem:[%s398 + $0x68] sm:$0xf]
        %v491 = vld [vmem:[%s398 + $0x6c] sm:$0xf]
        %v492 = vld [vmem:[%s398 + $0x70] sm:$0xf]
        %v493 = vld [vmem:[%s398 + $0x74] sm:$0xf]
        %v494 = vld [vmem:[%s398 + $0x78] sm:$0xf]
        %v495 = vld [vmem:[%s398 + $0x7c] sm:$0xf]
        %v512 = vunpack.c.l.b16 %v448
        %v513 = vunpack.c.h.b16 %v448
        %v514 = vunpack.c.l.b16 %v449
        %v515 = vunpack.c.h.b16 %v449
        %v516 = vunpack.c.l.b16 %v450
        %v517 = vunpack.c.h.b16 %v450
        %v518 = vunpack.c.l.b16 %v451
        %v519 = vunpack.c.h.b16 %v451
        %v520 = vunpack.c.l.b16 %v452
        %v521 = vunpack.c.h.b16 %v452
        %v522 = vunpack.c.l.b16 %v453
        %v523 = vunpack.c.h.b16 %v453
        %v524 = vunpack.c.l.b16 %v454
        %v525 = vunpack.c.h.b16 %v454
        %v526 = vunpack.c.l.b16 %v455
        %v527 = vunpack.c.h.b16 %v455
        %v528 = vunpack.c.l.b16 %v456
        %v529 = vunpack.c.h.b16 %v456
        %v530 = vunpack.c.l.b16 %v457
        %v531 = vunpack.c.h.b16 %v457
        %v532 = vunpack.c.l.b16 %v458
        %v533 = vunpack.c.h.b16 %v458
        %v534 = vunpack.c.l.b16 %v459
        %v535 = vunpack.c.h.b16 %v459
        %v536 = vunpack.c.l.b16 %v460
        %v537 = vunpack.c.h.b16 %v460
        %v538 = vunpack.c.l.b16 %v461
        %v539 = vunpack.c.h.b16 %v461
        %v540 = vunpack.c.l.b16 %v462
        %v541 = vunpack.c.h.b16 %v462
        %v542 = vunpack.c.l.b16 %v463
        %v543 = vunpack.c.h.b16 %v463
        %v544 = vpack.c.b16 %v514, %v512
        %v545 = vpack.c.b16 %v515, %v513
        %v546 = vpack.c.b16 %v518, %v516
        %v547 = vpack.c.b16 %v519, %v517
        %v548 = vpack.c.b16 %v522, %v520
        %v549 = vpack.c.b16 %v523, %v521
        %v550 = vpack.c.b16 %v526, %v524
        %v551 = vpack.c.b16 %v527, %v525
        %v552 = vpack.c.b16 %v530, %v528
        %v553 = vpack.c.b16 %v531, %v529
        %v554 = vpack.c.b16 %v534, %v532
        %v555 = vpack.c.b16 %v535, %v533
        %v556 = vpack.c.b16 %v538, %v536
        %v557 = vpack.c.b16 %v539, %v537
        %v558 = vpack.c.b16 %v542, %v540
        %v559 = vpack.c.b16 %v543, %v541
        %v608 = vunpack.c.l.b16 %v464
        %v609 = vunpack.c.l.b16 %v465
        %v610 = vunpack.c.l.b16 %v466
        %v611 = vunpack.c.l.b16 %v467
        %v612 = vunpack.c.l.b16 %v468
        %v613 = vunpack.c.l.b16 %v469
        %v614 = vunpack.c.l.b16 %v470
        %v615 = vunpack.c.l.b16 %v471
        %v616 = vunpack.c.l.b16 %v472
        %v617 = vunpack.c.l.b16 %v473
        %v618 = vunpack.c.l.b16 %v474
        %v619 = vunpack.c.l.b16 %v475
        %v620 = vunpack.c.l.b16 %v476
        %v621 = vunpack.c.l.b16 %v477
        %v622 = vunpack.c.l.b16 %v478
        %v623 = vunpack.c.l.b16 %v479
        %v624 = vunpack.c.l.b16 %v480
        %v625 = vunpack.c.l.b16 %v481
        %v626 = vunpack.c.l.b16 %v482
        %v627 = vunpack.c.l.b16 %v483
        %v628 = vunpack.c.l.b16 %v484
        %v629 = vunpack.c.l.b16 %v485
        %v630 = vunpack.c.l.b16 %v486
        %v631 = vunpack.c.l.b16 %v487
        %v632 = vunpack.c.l.b16 %v488
        %v633 = vunpack.c.l.b16 %v489
        %v634 = vunpack.c.l.b16 %v490
        %v635 = vunpack.c.l.b16 %v491
        %v636 = vunpack.c.l.b16 %v492
        %v637 = vunpack.c.l.b16 %v493
        %v638 = vunpack.c.l.b16 %v494
        %v639 = vunpack.c.l.b16 %v495
        %v640 = vpack.c.b16 %v609, %v608
        %v641 = vpack.c.b16 %v611, %v610
        %v642 = vpack.c.b16 %v613, %v612
        %v643 = vpack.c.b16 %v615, %v614
        %v644 = vpack.c.b16 %v617, %v616
        %v645 = vpack.c.b16 %v619, %v618
        %v646 = vpack.c.b16 %v621, %v620
        %v647 = vpack.c.b16 %v623, %v622
        %v648 = vpack.c.b16 %v625, %v624
        %v649 = vpack.c.b16 %v627, %v626
        %v650 = vpack.c.b16 %v629, %v628
        %v651 = vpack.c.b16 %v631, %v630
        %v652 = vpack.c.b16 %v633, %v632
        %v653 = vpack.c.b16 %v635, %v634
        %v654 = vpack.c.b16 %v637, %v636
        %v655 = vpack.c.b16 %v639, %v638
        %672 = vmatpush.bf16.msra.mxu0 %v647
        %673 = vmatpush.bf16.msra.mxu0 %v646
        %674 = vmatpush.bf16.msra.mxu0 %v645
        %675 = vmatpush.bf16.msra.mxu0 %v644
        %676 = vmatpush.bf16.msra.mxu0 %v643
        %677 = vmatpush.bf16.msra.mxu0 %v642
        %678 = vmatpush.bf16.msra.mxu0 %v641
        %679 = vmatpush.bf16.msra.mxu0 %v640
        %680 = vmatmul.bf16.gmra.mxu0 %v544
        %v681 = vpop.f32.mrf.mxu0
        %v682 = vadd.f32 0.0, %v681
        %v683 = vpop.f32.mrf.mxu0
        %v684 = vadd.f32 0.0, %v683
        %685 = vmatmul.bf16.gmra.mxu0 %v546
        %v686 = vpop.f32.mrf.mxu0
        %v687 = vadd.f32 0.0, %v686
        %v688 = vpop.f32.mrf.mxu0
        %v689 = vadd.f32 0.0, %v688
        %690 = vmatmul.bf16.gmra.mxu0 %v548
        %v691 = vpop.f32.mrf.mxu0
        %v692 = vadd.f32 0.0, %v691
        %v693 = vpop.f32.mrf.mxu0
        %v694 = vadd.f32 0.0, %v693
        %695 = vmatmul.bf16.gmra.mxu0 %v550
        %v696 = vpop.f32.mrf.mxu0
        %v697 = vadd.f32 0.0, %v696
        %v698 = vpop.f32.mrf.mxu0
        %v699 = vadd.f32 0.0, %v698
        %700 = vmatmul.bf16.gmra.mxu0 %v552
        %v701 = vpop.f32.mrf.mxu0
        %v702 = vadd.f32 0.0, %v701
        %v703 = vpop.f32.mrf.mxu0
        %v704 = vadd.f32 0.0, %v703
        %705 = vmatmul.bf16.gmra.mxu0 %v554
        %v706 = vpop.f32.mrf.mxu0
        %v707 = vadd.f32 0.0, %v706
        %v708 = vpop.f32.mrf.mxu0
        %v709 = vadd.f32 0.0, %v708
        %710 = vmatmul.bf16.gmra.mxu0 %v556
        %v711 = vpop.f32.mrf.mxu0
        %v712 = vadd.f32 0.0, %v711
        %v713 = vpop.f32.mrf.mxu0
        %v714 = vadd.f32 0.0, %v713
        %715 = vmatmul.bf16.gmra.mxu0 %v558
        %v716 = vpop.f32.mrf.mxu0
        %v717 = vadd.f32 0.0, %v716
        %v718 = vpop.f32.mrf.mxu0
        %v719 = vadd.f32 0.0, %v718
        %720 = vdwg.mxu0
        %721 = vmatpush.bf16.msra.mxu0 %v655
        %722 = vmatpush.bf16.msra.mxu0 %v654
        %723 = vmatpush.bf16.msra.mxu0 %v653
        %724 = vmatpush.bf16.msra.mxu0 %v652
        %725 = vmatpush.bf16.msra.mxu0 %v651
        %726 = vmatpush.bf16.msra.mxu0 %v650
        %727 = vmatpush.bf16.msra.mxu0 %v649
        %728 = vmatpush.bf16.msra.mxu0 %v648
        %729 = vmatmul.bf16.gmra.mxu0 %v545
        %v730 = vpop.f32.mrf.mxu0
        %v731 = vadd.f32 %v682, %v730
        %v732 = vpop.f32.mrf.mxu0
        %v733 = vadd.f32 %v684, %v732
        %734 = vmatmul.bf16.gmra.mxu0 %v547
        %v735 = vpop.f32.mrf.mxu0
        %v736 = vadd.f32 %v687, %v735
        %v737 = vpop.f32.mrf.mxu0
        %v738 = vadd.f32 %v689, %v737
        %739 = vmatmul.bf16.gmra.mxu0 %v549
        %v740 = vpop.f32.mrf.mxu0
        %v741 = vadd.f32 %v692, %v740
        %v742 = vpop.f32.mrf.mxu0
        %v743 = vadd.f32 %v694, %v742
        %744 = vmatmul.bf16.gmra.mxu0 %v551
        %v745 = vpop.f32.mrf.mxu0
        %v746 = vadd.f32 %v697, %v745
        %v747 = vpop.f32.mrf.mxu0
        %v748 = vadd.f32 %v699, %v747
        %749 = vmatmul.bf16.gmra.mxu0 %v553
        %v750 = vpop.f32.mrf.mxu0
        %v751 = vadd.f32 %v702, %v750
        %v752 = vpop.f32.mrf.mxu0
        %v753 = vadd.f32 %v704, %v752
        %754 = vmatmul.bf16.gmra.mxu0 %v555
        %v755 = vpop.f32.mrf.mxu0
        %v756 = vadd.f32 %v707, %v755
        %v757 = vpop.f32.mrf.mxu0
        %v758 = vadd.f32 %v709, %v757
        %759 = vmatmul.bf16.gmra.mxu0 %v557
        %v760 = vpop.f32.mrf.mxu0
        %v761 = vadd.f32 %v712, %v760
        %v762 = vpop.f32.mrf.mxu0
        %v763 = vadd.f32 %v714, %v762
        %764 = vmatmul.bf16.gmra.mxu0 %v559
        %v765 = vpop.f32.mrf.mxu0
        %v766 = vadd.f32 %v717, %v765
        %v767 = vpop.f32.mrf.mxu0
        %v768 = vadd.f32 %v719, %v767
        %769 = vdwg.mxu0
        %v770 = vadd.f32 %v432, %v731
        %v771 = vadd.f32 %v433, %v733
        %v772 = vadd.f32 %v434, %v736
        %v773 = vadd.f32 %v435, %v738
        %v774 = vadd.f32 %v436, %v741
        %v775 = vadd.f32 %v437, %v743
        %v776 = vadd.f32 %v438, %v746
        %v777 = vadd.f32 %v439, %v748
        %v778 = vadd.f32 %v440, %v751
        %v779 = vadd.f32 %v441, %v753
        %v780 = vadd.f32 %v442, %v756
        %v781 = vadd.f32 %v443, %v758
        %v782 = vadd.f32 %v444, %v761
        %v783 = vadd.f32 %v445, %v763
        %v784 = vadd.f32 %v446, %v766
        %v785 = vadd.f32 %v447, %v768
        %786 = vst [vmem:[#allocation2] sm:$0xff] %v770
        %787 = vst [vmem:[#allocation2 + $0x8] sm:$0xff] %v771
        %788 = vst [vmem:[#allocation2 + $0x10] sm:$0xff] %v772
        %789 = vst [vmem:[#allocation2 + $0x18] sm:$0xff] %v773
        %790 = vst [vmem:[#allocation2 + $0x20] sm:$0xff] %v774
        %791 = vst [vmem:[#allocation2 + $0x28] sm:$0xff] %v775
        %792 = vst [vmem:[#allocation2 + $0x30] sm:$0xff] %v776
        %793 = vst [vmem:[#allocation2 + $0x38] sm:$0xff] %v777
        %794 = vst [vmem:[#allocation2 + $0x40] sm:$0xff] %v778
        %795 = vst [vmem:[#allocation2 + $0x48] sm:$0xff] %v779
        %796 = vst [vmem:[#allocation2 + $0x50] sm:$0xff] %v780
        %797 = vst [vmem:[#allocation2 + $0x58] sm:$0xff] %v781
        %798 = vst [vmem:[#allocation2 + $0x60] sm:$0xff] %v782
        %799 = vst [vmem:[#allocation2 + $0x68] sm:$0xff] %v783
        %800 = vst [vmem:[#allocation2 + $0x70] sm:$0xff] %v784
        %801 = vst [vmem:[#allocation2 + $0x78] sm:$0xff] %v785
        %p802 = scmp.eq.s32.totalorder %s22, 1
        // Predicated region
        $region87: #{_forward_impl.16} parent=77 // pred_check
          %p803 = pneg %p802
        $region88: #{_forward_impl.16} parent=77 // pred_check_branch
          %805 = sbr.rel (%p803) target = $region90
        $region89: #{_forward_impl.16} parent=77 // pred_region
          %v806 = vld [vmem:[#allocation2] sm:$0xff]
          %v807 = vld [vmem:[#allocation2 + $0x8] sm:$0xff]
          %v808 = vld [vmem:[#allocation2 + $0x10] sm:$0xff]
          %v809 = vld [vmem:[#allocation2 + $0x18] sm:$0xff]
          %v810 = vld [vmem:[#allocation2 + $0x20] sm:$0xff]
          %v811 = vld [vmem:[#allocation2 + $0x28] sm:$0xff]
          %v812 = vld [vmem:[#allocation2 + $0x30] sm:$0xff]
          %v813 = vld [vmem:[#allocation2 + $0x38] sm:$0xff]
          %v814 = vld [vmem:[#allocation2 + $0x40] sm:$0xff]
          %v815 = vld [vmem:[#allocation2 + $0x48] sm:$0xff]
          %v816 = vld [vmem:[#allocation2 + $0x50] sm:$0xff]
          %v817 = vld [vmem:[#allocation2 + $0x58] sm:$0xff]
          %v818 = vld [vmem:[#allocation2 + $0x60] sm:$0xff]
          %v819 = vld [vmem:[#allocation2 + $0x68] sm:$0xff]
          %v820 = vld [vmem:[#allocation2 + $0x70] sm:$0xff]
          %v821 = vld [vmem:[#allocation2 + $0x78] sm:$0xff]
          %v822 = vld [vmem:[%s404] sm:$0xff]
          %v823 = vld [vmem:[%s404 + $0x8] sm:$0xff]
          %v824 = vld [vmem:[%s404 + $0x10] sm:$0xff]
          %v825 = vld [vmem:[%s404 + $0x18] sm:$0xff]
          %v826 = vld [vmem:[%s404 + $0x20] sm:$0xff]
          %v827 = vld [vmem:[%s404 + $0x28] sm:$0xff]
          %v828 = vld [vmem:[%s404 + $0x30] sm:$0xff]
          %v829 = vld [vmem:[%s404 + $0x38] sm:$0xff]
          %v830 = vld [vmem:[%s404 + $0x40] sm:$0xff]
          %v831 = vld [vmem:[%s404 + $0x48] sm:$0xff]
          %v832 = vld [vmem:[%s404 + $0x50] sm:$0xff]
          %v833 = vld [vmem:[%s404 + $0x58] sm:$0xff]
          %v834 = vld [vmem:[%s404 + $0x60] sm:$0xff]
          %v835 = vld [vmem:[%s404 + $0x68] sm:$0xff]
          %v836 = vld [vmem:[%s404 + $0x70] sm:$0xff]
          %v837 = vld [vmem:[%s404 + $0x78] sm:$0xff]
          %v838 = vld [vmem:[%s2] sm:$0x1]
          %v839 = vld [vmem:[%s4] sm:$0x1]
          %v840 = vld [vmem:[%s5] sm:$0x1]
          %v842 = vperm.slane %v838, 0
          %v844 = vadd.f32 %v806, %v842
          %v845 = vadd.f32 %v807, %v842
          %v846 = vadd.f32 %v808, %v842
          %v847 = vadd.f32 %v809, %v842
          %v848 = vadd.f32 %v810, %v842
          %v849 = vadd.f32 %v811, %v842
          %v850 = vadd.f32 %v812, %v842
          %v851 = vadd.f32 %v813, %v842
          %v852 = vadd.f32 %v814, %v842
          %v853 = vadd.f32 %v815, %v842
          %v854 = vadd.f32 %v816, %v842
          %v855 = vadd.f32 %v817, %v842
          %v856 = vadd.f32 %v818, %v842
          %v857 = vadd.f32 %v819, %v842
          %v858 = vadd.f32 %v820, %v842
          %v859 = vadd.f32 %v821, %v842
          %v860 = vadd.f32 %v844, %v822
          %v861 = vadd.f32 %v845, %v823
          %v862 = vadd.f32 %v846, %v824
          %v863 = vadd.f32 %v847, %v825
          %v864 = vadd.f32 %v848, %v826
          %v865 = vadd.f32 %v849, %v827
          %v866 = vadd.f32 %v850, %v828
          %v867 = vadd.f32 %v851, %v829
          %v868 = vadd.f32 %v852, %v830
          %v869 = vadd.f32 %v853, %v831
          %v870 = vadd.f32 %v854, %v832
          %v871 = vadd.f32 %v855, %v833
          %v872 = vadd.f32 %v856, %v834
          %v873 = vadd.f32 %v857, %v835
          %v874 = vadd.f32 %v858, %v836
          %v875 = vadd.f32 %v859, %v837
          %876 = vadd.xlane.f32.xlu0 %v860
          %v877 = vpop.xlane.xlu0 %876
          %878 = vadd.xlane.f32.xlu0 %v861
          %v879 = vpop.xlane.xlu0 %878
          %880 = vadd.xlane.f32.xlu0 %v862
          %v881 = vpop.xlane.xlu0 %880
          %882 = vadd.xlane.f32.xlu0 %v863
          %v883 = vpop.xlane.xlu0 %882
          %884 = vadd.xlane.f32.xlu0 %v864
          %v885 = vpop.xlane.xlu0 %884
          %886 = vadd.xlane.f32.xlu0 %v865
          %v887 = vpop.xlane.xlu0 %886
          %888 = vadd.xlane.f32.xlu0 %v866
          %v889 = vpop.xlane.xlu0 %888
          %890 = vadd.xlane.f32.xlu0 %v867
          %v891 = vpop.xlane.xlu0 %890
          %892 = vadd.xlane.f32.xlu0 %v868
          %v893 = vpop.xlane.xlu0 %892
          %894 = vadd.xlane.f32.xlu0 %v869
          %v895 = vpop.xlane.xlu0 %894
          %896 = vadd.xlane.f32.xlu0 %v870
          %v897 = vpop.xlane.xlu0 %896
          %898 = vadd.xlane.f32.xlu0 %v871
          %v899 = vpop.xlane.xlu0 %898
          %900 = vadd.xlane.f32.xlu0 %v872
          %v901 = vpop.xlane.xlu0 %900
          %902 = vadd.xlane.f32.xlu0 %v873
          %v903 = vpop.xlane.xlu0 %902
          %904 = vadd.xlane.f32.xlu0 %v874
          %v905 = vpop.xlane.xlu0 %904
          %906 = vadd.xlane.f32.xlu0 %v875
          %v907 = vpop.xlane.xlu0 %906
          %v908 = vrcp.pop 128.0
          %v909 = vmul.f32 128.0, %v908
          %v910 = vsub.f32 1.0, %v909
          %v911 = vmul.f32 %v908, %v910
          %v912 = vadd.f32 %v908, %v911
          %vm913 = vweird.f32 %v908
          %v914 = vsel %vm913, %v908, %v912
          %v915 = vmul.f32 %v877, %v914
          %v916 = vmul.f32 %v879, %v914
          %v917 = vmul.f32 %v881, %v914
          %v918 = vmul.f32 %v883, %v914
          %v919 = vmul.f32 %v885, %v914
          %v920 = vmul.f32 %v887, %v914
          %v921 = vmul.f32 %v889, %v914
          %v922 = vmul.f32 %v891, %v914
          %v923 = vmul.f32 %v893, %v914
          %v924 = vmul.f32 %v895, %v914
          %v925 = vmul.f32 %v897, %v914
          %v926 = vmul.f32 %v899, %v914
          %v927 = vmul.f32 %v901, %v914
          %v928 = vmul.f32 %v903, %v914
          %v929 = vmul.f32 %v905, %v914
          %v930 = vmul.f32 %v907, %v914
          %v931 = vsub.f32 %v860, %v915
          %v932 = vsub.f32 %v861, %v916
          %v933 = vsub.f32 %v862, %v917
          %v934 = vsub.f32 %v863, %v918
          %v935 = vsub.f32 %v864, %v919
          %v936 = vsub.f32 %v865, %v920
          %v937 = vsub.f32 %v866, %v921
          %v938 = vsub.f32 %v867, %v922
          %v939 = vsub.f32 %v868, %v923
          %v940 = vsub.f32 %v869, %v924
          %v941 = vsub.f32 %v870, %v925
          %v942 = vsub.f32 %v871, %v926
          %v943 = vsub.f32 %v872, %v927
          %v944 = vsub.f32 %v873, %v928
          %v945 = vsub.f32 %v874, %v929
          %v946 = vsub.f32 %v875, %v930
          %v947 = vmul.f32 %v931, %v931
          %v948 = vmul.f32 %v932, %v932
          %v949 = vmul.f32 %v933, %v933
          %v950 = vmul.f32 %v934, %v934
          %v951 = vmul.f32 %v935, %v935
          %v952 = vmul.f32 %v936, %v936
          %v953 = vmul.f32 %v937, %v937
          %v954 = vmul.f32 %v938, %v938
          %v955 = vmul.f32 %v939, %v939
          %v956 = vmul.f32 %v940, %v940
          %v957 = vmul.f32 %v941, %v941
          %v958 = vmul.f32 %v942, %v942
          %v959 = vmul.f32 %v943, %v943
          %v960 = vmul.f32 %v944, %v944
          %v961 = vmul.f32 %v945, %v945
          %v962 = vmul.f32 %v946, %v946
          %963 = vadd.xlane.f32.xlu0 %v947
          %v964 = vpop.xlane.xlu0 %963
          %965 = vadd.xlane.f32.xlu0 %v948
          %v966 = vpop.xlane.xlu0 %965
          %967 = vadd.xlane.f32.xlu0 %v949
          %v968 = vpop.xlane.xlu0 %967
          %969 = vadd.xlane.f32.xlu0 %v950
          %v970 = vpop.xlane.xlu0 %969
          %971 = vadd.xlane.f32.xlu0 %v951
          %v972 = vpop.xlane.xlu0 %971
          %973 = vadd.xlane.f32.xlu0 %v952
          %v974 = vpop.xlane.xlu0 %973
          %975 = vadd.xlane.f32.xlu0 %v953
          %v976 = vpop.xlane.xlu0 %975
          %977 = vadd.xlane.f32.xlu0 %v954
          %v978 = vpop.xlane.xlu0 %977
          %979 = vadd.xlane.f32.xlu0 %v955
          %v980 = vpop.xlane.xlu0 %979
          %981 = vadd.xlane.f32.xlu0 %v956
          %v982 = vpop.xlane.xlu0 %981
          %983 = vadd.xlane.f32.xlu0 %v957
          %v984 = vpop.xlane.xlu0 %983
          %985 = vadd.xlane.f32.xlu0 %v958
          %v986 = vpop.xlane.xlu0 %985
          %987 = vadd.xlane.f32.xlu0 %v959
          %v988 = vpop.xlane.xlu0 %987
          %989 = vadd.xlane.f32.xlu0 %v960
          %v990 = vpop.xlane.xlu0 %989
          %991 = vadd.xlane.f32.xlu0 %v961
          %v992 = vpop.xlane.xlu0 %991
          %993 = vadd.xlane.f32.xlu0 %v962
          %v994 = vpop.xlane.xlu0 %993
          %v995 = vmul.f32 %v964, %v914
          %v996 = vmul.f32 %v966, %v914
          %v997 = vmul.f32 %v968, %v914
          %v998 = vmul.f32 %v970, %v914
          %v999 = vmul.f32 %v972, %v914
          %v1000 = vmul.f32 %v974, %v914
          %v1001 = vmul.f32 %v976, %v914
          %v1002 = vmul.f32 %v978, %v914
          %v1003 = vmul.f32 %v980, %v914
          %v1004 = vmul.f32 %v982, %v914
          %v1005 = vmul.f32 %v984, %v914
          %v1006 = vmul.f32 %v986, %v914
          %v1007 = vmul.f32 %v988, %v914
          %v1008 = vmul.f32 %v990, %v914
          %v1009 = vmul.f32 %v992, %v914
          %v1010 = vmul.f32 %v994, %v914
          %v1011 = vadd.f32 %v995, 1e-12
          %v1012 = vadd.f32 %v996, 1e-12
          %v1013 = vadd.f32 %v997, 1e-12
          %v1014 = vadd.f32 %v998, 1e-12
          %v1015 = vadd.f32 %v999, 1e-12
          %v1016 = vadd.f32 %v1000, 1e-12
          %v1017 = vadd.f32 %v1001, 1e-12
          %v1018 = vadd.f32 %v1002, 1e-12
          %v1019 = vadd.f32 %v1003, 1e-12
          %v1020 = vadd.f32 %v1004, 1e-12
          %v1021 = vadd.f32 %v1005, 1e-12
          %v1022 = vadd.f32 %v1006, 1e-12
          %v1023 = vadd.f32 %v1007, 1e-12
          %v1024 = vadd.f32 %v1008, 1e-12
          %v1025 = vadd.f32 %v1009, 1e-12
          %v1026 = vadd.f32 %v1010, 1e-12
          %v1027 = vrsqrt.pop %v1011
          %v1028 = vmul.f32 %v1027, %v1011
          %v1029 = vmul.f32 %v1028, %v1027
          %v1030 = vmul.f32 0.5, %v1029
          %v1031 = vsub.f32 1.5, %v1030
          %v1032 = vmul.f32 %v1027, %v1031
          %vm1033 = vweird.f32 %v1011
          %vm1034 = vweird.f32 %v1027
          %vm1035 = vmor %vm1033, %vm1034
          %v1036 = vsel %vm1035, %v1027, %v1032
          %v1037 = vrsqrt.pop %v1012
          %v1038 = vmul.f32 %v1037, %v1012
          %v1039 = vmul.f32 %v1038, %v1037
          %v1040 = vmul.f32 0.5, %v1039
          %v1041 = vsub.f32 1.5, %v1040
          %v1042 = vmul.f32 %v1037, %v1041
          %vm1043 = vweird.f32 %v1012
          %vm1044 = vweird.f32 %v1037
          %vm1045 = vmor %vm1043, %vm1044
          %v1046 = vsel %vm1045, %v1037, %v1042
          %v1047 = vrsqrt.pop %v1013
          %v1048 = vmul.f32 %v1047, %v1013
          %v1049 = vmul.f32 %v1048, %v1047
          %v1050 = vmul.f32 0.5, %v1049
          %v1051 = vsub.f32 1.5, %v1050
          %v1052 = vmul.f32 %v1047, %v1051
          %vm1053 = vweird.f32 %v1013
          %vm1054 = vweird.f32 %v1047
          %vm1055 = vmor %vm1053, %vm1054
          %v1056 = vsel %vm1055, %v1047, %v1052
          %v1057 = vrsqrt.pop %v1014
          %v1058 = vmul.f32 %v1057, %v1014
          %v1059 = vmul.f32 %v1058, %v1057
          %v1060 = vmul.f32 0.5, %v1059
          %v1061 = vsub.f32 1.5, %v1060
          %v1062 = vmul.f32 %v1057, %v1061
          %vm1063 = vweird.f32 %v1014
          %vm1064 = vweird.f32 %v1057
          %vm1065 = vmor %vm1063, %vm1064
          %v1066 = vsel %vm1065, %v1057, %v1062
          %v1067 = vrsqrt.pop %v1015
          %v1068 = vmul.f32 %v1067, %v1015
          %v1069 = vmul.f32 %v1068, %v1067
          %v1070 = vmul.f32 0.5, %v1069
          %v1071 = vsub.f32 1.5, %v1070
          %v1072 = vmul.f32 %v1067, %v1071
          %vm1073 = vweird.f32 %v1015
          %vm1074 = vweird.f32 %v1067
          %vm1075 = vmor %vm1073, %vm1074
          %v1076 = vsel %vm1075, %v1067, %v1072
          %v1077 = vrsqrt.pop %v1016
          %v1078 = vmul.f32 %v1077, %v1016
          %v1079 = vmul.f32 %v1078, %v1077
          %v1080 = vmul.f32 0.5, %v1079
          %v1081 = vsub.f32 1.5, %v1080
          %v1082 = vmul.f32 %v1077, %v1081
          %vm1083 = vweird.f32 %v1016
          %vm1084 = vweird.f32 %v1077
          %vm1085 = vmor %vm1083, %vm1084
          %v1086 = vsel %vm1085, %v1077, %v1082
          %v1087 = vrsqrt.pop %v1017
          %v1088 = vmul.f32 %v1087, %v1017
          %v1089 = vmul.f32 %v1088, %v1087
          %v1090 = vmul.f32 0.5, %v1089
          %v1091 = vsub.f32 1.5, %v1090
          %v1092 = vmul.f32 %v1087, %v1091
          %vm1093 = vweird.f32 %v1017
          %vm1094 = vweird.f32 %v1087
          %vm1095 = vmor %vm1093, %vm1094
          %v1096 = vsel %vm1095, %v1087, %v1092
          %v1097 = vrsqrt.pop %v1018
          %v1098 = vmul.f32 %v1097, %v1018
          %v1099 = vmul.f32 %v1098, %v1097
          %v1100 = vmul.f32 0.5, %v1099
          %v1101 = vsub.f32 1.5, %v1100
          %v1102 = vmul.f32 %v1097, %v1101
          %vm1103 = vweird.f32 %v1018
          %vm1104 = vweird.f32 %v1097
          %vm1105 = vmor %vm1103, %vm1104
          %v1106 = vsel %vm1105, %v1097, %v1102
          %v1107 = vrsqrt.pop %v1019
          %v1108 = vmul.f32 %v1107, %v1019
          %v1109 = vmul.f32 %v1108, %v1107
          %v1110 = vmul.f32 0.5, %v1109
          %v1111 = vsub.f32 1.5, %v1110
          %v1112 = vmul.f32 %v1107, %v1111
          %vm1113 = vweird.f32 %v1019
          %vm1114 = vweird.f32 %v1107
          %vm1115 = vmor %vm1113, %vm1114
          %v1116 = vsel %vm1115, %v1107, %v1112
          %v1117 = vrsqrt.pop %v1020
          %v1118 = vmul.f32 %v1117, %v1020
          %v1119 = vmul.f32 %v1118, %v1117
          %v1120 = vmul.f32 0.5, %v1119
          %v1121 = vsub.f32 1.5, %v1120
          %v1122 = vmul.f32 %v1117, %v1121
          %vm1123 = vweird.f32 %v1020
          %vm1124 = vweird.f32 %v1117
          %vm1125 = vmor %vm1123, %vm1124
          %v1126 = vsel %vm1125, %v1117, %v1122
          %v1127 = vrsqrt.pop %v1021
          %v1128 = vmul.f32 %v1127, %v1021
          %v1129 = vmul.f32 %v1128, %v1127
          %v1130 = vmul.f32 0.5, %v1129
          %v1131 = vsub.f32 1.5, %v1130
          %v1132 = vmul.f32 %v1127, %v1131
          %vm1133 = vweird.f32 %v1021
          %vm1134 = vweird.f32 %v1127
          %vm1135 = vmor %vm1133, %vm1134
          %v1136 = vsel %vm1135, %v1127, %v1132
          %v1137 = vrsqrt.pop %v1022
          %v1138 = vmul.f32 %v1137, %v1022
          %v1139 = vmul.f32 %v1138, %v1137
          %v1140 = vmul.f32 0.5, %v1139
          %v1141 = vsub.f32 1.5, %v1140
          %v1142 = vmul.f32 %v1137, %v1141
          %vm1143 = vweird.f32 %v1022
          %vm1144 = vweird.f32 %v1137
          %vm1145 = vmor %vm1143, %vm1144
          %v1146 = vsel %vm1145, %v1137, %v1142
          %v1147 = vrsqrt.pop %v1023
          %v1148 = vmul.f32 %v1147, %v1023
          %v1149 = vmul.f32 %v1148, %v1147
          %v1150 = vmul.f32 0.5, %v1149
          %v1151 = vsub.f32 1.5, %v1150
          %v1152 = vmul.f32 %v1147, %v1151
          %vm1153 = vweird.f32 %v1023
          %vm1154 = vweird.f32 %v1147
          %vm1155 = vmor %vm1153, %vm1154
          %v1156 = vsel %vm1155, %v1147, %v1152
          %v1157 = vrsqrt.pop %v1024
          %v1158 = vmul.f32 %v1157, %v1024
          %v1159 = vmul.f32 %v1158, %v1157
          %v1160 = vmul.f32 0.5, %v1159
          %v1161 = vsub.f32 1.5, %v1160
          %v1162 = vmul.f32 %v1157, %v1161
          %vm1163 = vweird.f32 %v1024
          %vm1164 = vweird.f32 %v1157
          %vm1165 = vmor %vm1163, %vm1164
          %v1166 = vsel %vm1165, %v1157, %v1162
          %v1167 = vrsqrt.pop %v1025
          %v1168 = vmul.f32 %v1167, %v1025
          %v1169 = vmul.f32 %v1168, %v1167
          %v1170 = vmul.f32 0.5, %v1169
          %v1171 = vsub.f32 1.5, %v1170
          %v1172 = vmul.f32 %v1167, %v1171
          %vm1173 = vweird.f32 %v1025
          %vm1174 = vweird.f32 %v1167
          %vm1175 = vmor %vm1173, %vm1174
          %v1176 = vsel %vm1175, %v1167, %v1172
          %v1177 = vrsqrt.pop %v1026
          %v1178 = vmul.f32 %v1177, %v1026
          %v1179 = vmul.f32 %v1178, %v1177
          %v1180 = vmul.f32 0.5, %v1179
          %v1181 = vsub.f32 1.5, %v1180
          %v1182 = vmul.f32 %v1177, %v1181
          %vm1183 = vweird.f32 %v1026
          %vm1184 = vweird.f32 %v1177
          %vm1185 = vmor %vm1183, %vm1184
          %v1186 = vsel %vm1185, %v1177, %v1182
          %v1187 = vmul.f32 %v931, %v1036
          %v1188 = vmul.f32 %v932, %v1046
          %v1189 = vmul.f32 %v933, %v1056
          %v1190 = vmul.f32 %v934, %v1066
          %v1191 = vmul.f32 %v935, %v1076
          %v1192 = vmul.f32 %v936, %v1086
          %v1193 = vmul.f32 %v937, %v1096
          %v1194 = vmul.f32 %v938, %v1106
          %v1195 = vmul.f32 %v939, %v1116
          %v1196 = vmul.f32 %v940, %v1126
          %v1197 = vmul.f32 %v941, %v1136
          %v1198 = vmul.f32 %v942, %v1146
          %v1199 = vmul.f32 %v943, %v1156
          %v1200 = vmul.f32 %v944, %v1166
          %v1201 = vmul.f32 %v945, %v1176
          %v1202 = vmul.f32 %v946, %v1186
          %v1204 = vperm.slane %v839, 0
          %v1206 = vmul.f32 %v1187, %v1204
          %v1207 = vmul.f32 %v1188, %v1204
          %v1208 = vmul.f32 %v1189, %v1204
          %v1209 = vmul.f32 %v1190, %v1204
          %v1210 = vmul.f32 %v1191, %v1204
          %v1211 = vmul.f32 %v1192, %v1204
          %v1212 = vmul.f32 %v1193, %v1204
          %v1213 = vmul.f32 %v1194, %v1204
          %v1214 = vmul.f32 %v1195, %v1204
          %v1215 = vmul.f32 %v1196, %v1204
          %v1216 = vmul.f32 %v1197, %v1204
          %v1217 = vmul.f32 %v1198, %v1204
          %v1218 = vmul.f32 %v1199, %v1204
          %v1219 = vmul.f32 %v1200, %v1204
          %v1220 = vmul.f32 %v1201, %v1204
          %v1221 = vmul.f32 %v1202, %v1204
          %v1223 = vperm.slane %v840, 0
          %v1225 = vadd.f32 %v1206, %v1223
          %v1226 = vadd.f32 %v1207, %v1223
          %v1227 = vadd.f32 %v1208, %v1223
          %v1228 = vadd.f32 %v1209, %v1223
          %v1229 = vadd.f32 %v1210, %v1223
          %v1230 = vadd.f32 %v1211, %v1223
          %v1231 = vadd.f32 %v1212, %v1223
          %v1232 = vadd.f32 %v1213, %v1223
          %v1233 = vadd.f32 %v1214, %v1223
          %v1234 = vadd.f32 %v1215, %v1223
          %v1235 = vadd.f32 %v1216, %v1223
          %v1236 = vadd.f32 %v1217, %v1223
          %v1237 = vadd.f32 %v1218, %v1223
          %v1238 = vadd.f32 %v1219, %v1223
          %v1239 = vadd.f32 %v1220, %v1223
          %v1240 = vadd.f32 %v1221, %v1223
          %1241 = vst [vmem:[%s410] sm:$0xff] %v1225
          %1242 = vst [vmem:[%s410 + $0x8] sm:$0xff] %v1226
          %1243 = vst [vmem:[%s410 + $0x10] sm:$0xff] %v1227
          %1244 = vst [vmem:[%s410 + $0x18] sm:$0xff] %v1228
          %1245 = vst [vmem:[%s410 + $0x20] sm:$0xff] %v1229
          %1246 = vst [vmem:[%s410 + $0x28] sm:$0xff] %v1230
          %1247 = vst [vmem:[%s410 + $0x30] sm:$0xff] %v1231
          %1248 = vst [vmem:[%s410 + $0x38] sm:$0xff] %v1232
          %1249 = vst [vmem:[%s410 + $0x40] sm:$0xff] %v1233
          %1250 = vst [vmem:[%s410 + $0x48] sm:$0xff] %v1234
          %1251 = vst [vmem:[%s410 + $0x50] sm:$0xff] %v1235
          %1252 = vst [vmem:[%s410 + $0x58] sm:$0xff] %v1236
          %1253 = vst [vmem:[%s410 + $0x60] sm:$0xff] %v1237
          %1254 = vst [vmem:[%s410 + $0x68] sm:$0xff] %v1238
          %1255 = vst [vmem:[%s410 + $0x70] sm:$0xff] %v1239
          %1256 = vst [vmem:[%s410 + $0x78] sm:$0xff] %v1240
        $region90: #{_forward_impl.16} parent=77 // pred_fallthru
          _
        %s1257 = smul.u32 16, %s21
        %p1258 = scmp.lt.s32.totalorder %s1257, 31
        %s1259 = scalar_select %p1258, %s1257, 31
        %s1260 = smul.addr %s1259, 8
        %s1261 = scalar_lea.vmem %s6, %s1260
        // Predicated region
        $region91: #{_forward_impl.16} parent=77 // pred_check
          %p1262 = pneg %p190
        $region92: #{_forward_impl.16} parent=77 // pred_check_branch
          %1264 = sbr.rel (%p1262) target = $region94
        $region93: #{_forward_impl.16} parent=77 // pred_region
          %s1265 = smul.u32 16, %s21
        $region94: #{_forward_impl.16} parent=77 // pred_fallthru
          _
      $region78: #{_forward_impl.16} parent=5 // pred_fallthru
        _
      %p1266 = scmp.le.s32.totalorder 2, %s12
      // Predicated region
      $region95: #{_forward_impl.16} parent=5 // pred_check
        %p1267 = pneg %p1266
      $region96: #{_forward_impl.16} parent=5 // pred_check_branch
        %1269 = sbr.rel (%p1267) target = $region98
      $region97: #{_forward_impl.16} parent=5 // pred_region
        %s1270 = ssub.s32 %s12, 2
        // Predicated region
        $region99: #{_forward_impl.16} parent=97 // pred_check
          %p1271 = pneg %p196
        $region100: #{_forward_impl.16} parent=97 // pred_check_branch
          %1273 = sbr.rel (%p1271) target = $region102
        $region101: #{_forward_impl.16} parent=97 // pred_region
          %s1274 = smul.u32 16, %s23
          %p1275 = scmp.lt.s32.totalorder %s1274, 31
          %s1276 = scalar_select %p1275, %s1274, 31
          %s1277 = smul.addr %s1276, 8
          %s1278 = scalar_lea.vmem %s6, %s1277
        $region102: #{_forward_impl.16} parent=97 // pred_fallthru
          _
      $region98: #{_forward_impl.16} parent=5 // pred_fallthru
        _
    $region6: #{_forward_impl.16} parent=1 // loop_footer
      %s16 = sadd.s32 1, %s12
    $region7: #{_forward_impl.16} parent=1 // loop_footer_branch
      %11 = sbr.rel target = $region3
    $region8: #{_forward_impl.16} parent=1 // loop_exit
      _

</llo_original>
